<compile_context>
chip_gen: v7x
topology: tpu7x:2x2x1
jax: 0.10.0
libtpu: 0.0.40
codegen_flags: <defaults>
</compile_context>

<pallas_src>
import functools

import jax
import jax.numpy as jnp
from jax.experimental import pallas as pl
from jax.experimental.pallas import tpu as pltpu


# ----------------------------------------------------------------------------
# Pallas kernel: full residual block for one image (NHWC block of shape
# (1, H, W, C)); weights are pre-reshaped to (9, C, C) taps in bf16.
# ----------------------------------------------------------------------------
def resnet_block_kernel(x_ref, w1_ref, b1_ref, g1_ref, be1_ref,
                        w2_ref, b2_ref, g2_ref, be2_ref,
                        o_ref, xp_ref, mid_ref):
    _, H, W, C = x_ref.shape
    x = x_ref[0]                                        # (H, W, C) f32

    # Zero-padded copy of x (pad=1) in VMEM scratch for conv1.
    xp_ref[...] = jnp.zeros((H + 2, W + 2, C), jnp.float32)
    xp_ref[1:H + 1, 1:W + 1, :] = x

    def conv3x3(src_ref, w_ref, b_ref):
        # 9 shifted taps, each a (H*W, C) x (C, C) bf16 MXU matmul, f32 acc.
        acc = jnp.zeros((H * W, C), jnp.float32)
        for t in range(9):
            dy, dx = divmod(t, 3)
            tap = src_ref[dy:dy + H, dx:dx + W, :].reshape(H * W, C)
            acc = acc + jnp.dot(tap.astype(jnp.bfloat16), w_ref[t],
                                preferred_element_type=jnp.float32)
        return acc + b_ref[...]                          # bias (1, C) broadcast

    def inst_norm(h, g_ref, be_ref):
        # InstanceNorm2d(affine=True): per-channel stats over H*W, eps=1e-5.
        mu = jnp.mean(h, axis=0, keepdims=True)
        var = jnp.mean(jnp.square(h - mu), axis=0, keepdims=True)
        return (h - mu) * jax.lax.rsqrt(var + 1e-5) * g_ref[...] + be_ref[...]

    h = conv3x3(xp_ref, w1_ref, b1_ref)                  # (H*W, C) f32
    h = jnp.maximum(inst_norm(h, g1_ref, be1_ref), 0.0)  # ReLU
    # TODO(synk): Dropout(0.5) omitted (inference-mode identity).

    # Zero-padded intermediate for conv2.
    mid_ref[...] = jnp.zeros((H + 2, W + 2, C), jnp.float32)
    mid_ref[1:H + 1, 1:W + 1, :] = h.reshape(H, W, C)

    y = conv3x3(mid_ref, w2_ref, b2_ref)
    y = inst_norm(y, g2_ref, be2_ref)

    # Residual connection (f32).
    o_ref[0] = (x + y.reshape(H, W, C)).astype(o_ref.dtype)


# ----------------------------------------------------------------------------
# Wrapper: NCHW in / NCHW out (matches the PyTorch module interface).
# ----------------------------------------------------------------------------
@jax.jit
def resnet_block_forward(x_nchw, w1, b1, g1, be1, w2, b2, g2, be2):
    x = jnp.transpose(x_nchw, (0, 2, 3, 1))              # NCHW -> NHWC
    N, H, W, C = x.shape

    # Weights: (3, 3, Cin, Cout) -> (9, Cin, Cout) taps, bf16 for the MXU.
    w1b = w1.reshape(9, C, C).astype(jnp.bfloat16)
    w2b = w2.reshape(9, C, C).astype(jnp.bfloat16)
    row = lambda v: v.reshape(1, C).astype(jnp.float32)

    flops = 4 * 9 * N * H * W * C * C                    # 2 convs, 2 flops/MAC
    bytes_acc = 2 * N * H * W * C * 4 + 2 * 9 * C * C * 2 + 8 * C * 4

    out = pl.pallas_call(
        resnet_block_kernel,
        out_shape=jax.ShapeDtypeStruct((N, H, W, C), jnp.float32),
        grid=(N,),
        in_specs=[
            pl.BlockSpec((1, H, W, C), lambda n: (n, 0, 0, 0)),   # x
            pl.BlockSpec((9, C, C), lambda n: (0, 0, 0)),         # w1
            pl.BlockSpec((1, C), lambda n: (0, 0)),               # b1
            pl.BlockSpec((1, C), lambda n: (0, 0)),               # gamma1
            pl.BlockSpec((1, C), lambda n: (0, 0)),               # beta1
            pl.BlockSpec((9, C, C), lambda n: (0, 0, 0)),         # w2
            pl.BlockSpec((1, C), lambda n: (0, 0)),               # b2
            pl.BlockSpec((1, C), lambda n: (0, 0)),               # gamma2
            pl.BlockSpec((1, C), lambda n: (0, 0)),               # beta2
        ],
        out_specs=pl.BlockSpec((1, H, W, C), lambda n: (n, 0, 0, 0)),
        scratch_shapes=[
            pltpu.VMEM((H + 2, W + 2, C), jnp.float32),           # padded x
            pltpu.VMEM((H + 2, W + 2, C), jnp.float32),           # padded mid
        ],
        compiler_params=pltpu.CompilerParams(
            dimension_semantics=("parallel",),
            vmem_limit_bytes=32 * 1024 * 1024,
        ),
        cost_estimate=pl.CostEstimate(
            flops=flops, transcendentals=0, bytes_accessed=bytes_acc),
    )(x, w1b, row(b1), row(g1), row(be1), w2b, row(b2), row(g2), row(be2))

    return jnp.transpose(out, (0, 3, 1, 2))               # NHWC -> NCHW


# ----------------------------------------------------------------------------
# Pure-JAX reference (same bf16 matmul operands / f32 accumulation).
# ----------------------------------------------------------------------------
def resnet_block_ref(x_nchw, w1, b1, g1, be1, w2, b2, g2, be2):
    x = jnp.transpose(x_nchw, (0, 2, 3, 1))

    def conv(inp, w, b):
        out = jax.lax.conv_general_dilated(
            inp.astype(jnp.bfloat16), w.astype(jnp.bfloat16),
            window_strides=(1, 1), padding=((1, 1), (1, 1)),
            dimension_numbers=("NHWC", "HWIO", "NHWC"),
            preferred_element_type=jnp.float32)
        return out + b

    def inorm(h, g, be):
        mu = jnp.mean(h, axis=(1, 2), keepdims=True)
        var = jnp.mean(jnp.square(h - mu), axis=(1, 2), keepdims=True)
        return (h - mu) * jax.lax.rsqrt(var + 1e-5) * g + be

    h = jnp.maximum(inorm(conv(x, w1, b1), g1, be1), 0.0)
    y = inorm(conv(h, w2, b2), g2, be2)
    return jnp.transpose(x + y, (0, 3, 1, 2))


# ----------------------------------------------------------------------------
if __name__ == "__main__":
    N, DIM, H, W = 2, 128, 16, 16                        # dim = 128 (lane-dense)

    root = jax.random.PRNGKey(0)
    kx, kw1, kb1, kg1, kbe1, kw2, kb2, kg2, kbe2 = jax.random.split(root, 9)

    x = jax.random.normal(kx, (N, DIM, H, W), jnp.float32)
    w1 = jax.random.normal(kw1, (3, 3, DIM, DIM), jnp.float32) * 0.05
    b1 = jax.random.normal(kb1, (DIM,), jnp.float32) * 0.01
    g1 = 1.0 + 0.1 * jax.random.normal(kg1, (DIM,), jnp.float32)
    be1 = 0.1 * jax.random.normal(kbe1, (DIM,), jnp.float32)
    w2 = jax.random.normal(kw2, (3, 3, DIM, DIM), jnp.float32) * 0.05
    b2 = jax.random.normal(kb2, (DIM,), jnp.float32) * 0.01
    g2 = 1.0 + 0.1 * jax.random.normal(kg2, (DIM,), jnp.float32)
    be2 = 0.1 * jax.random.normal(kbe2, (DIM,), jnp.float32)

    out = resnet_block_forward(x, w1, b1, g1, be1, w2, b2, g2, be2)
    out = jax.block_until_ready(out)
    assert out.shape == (N, DIM, H, W)

    ref = jax.block_until_ready(
        resnet_block_ref(x, w1, b1, g1, be1, w2, b2, g2, be2))
    max_err = float(jnp.max(jnp.abs(out - ref)))
    assert max_err < 3e-2, f"mismatch vs reference: {max_err}"

    print("KERNEL_OK")
</pallas_src>

<mosaic_0001>
module attributes {stable_mosaic.version = 11 : i64} {
  func.func @resnet_block_kernel(%arg0: i32, %arg1: memref<1x16x16x128xf32, #tpu.memory_space<vmem>>, %arg2: memref<9x128x128xbf16, #tpu.memory_space<vmem>>, %arg3: memref<1x128xf32, #tpu.memory_space<vmem>>, %arg4: memref<1x128xf32, #tpu.memory_space<vmem>>, %arg5: memref<1x128xf32, #tpu.memory_space<vmem>>, %arg6: memref<9x128x128xbf16, #tpu.memory_space<vmem>>, %arg7: memref<1x128xf32, #tpu.memory_space<vmem>>, %arg8: memref<1x128xf32, #tpu.memory_space<vmem>>, %arg9: memref<1x128xf32, #tpu.memory_space<vmem>>, %arg10: memref<1x16x16x128xf32, #tpu.memory_space<vmem>>, %arg11: memref<18x18x128xf32, #tpu.memory_space<vmem>>, %arg12: memref<18x18x128xf32, #tpu.memory_space<vmem>>) attributes {dimension_semantics = [#tpu.dimension_semantics<parallel>], iteration_bounds = array<i64: 2>, scalar_prefetch = 0 : i64, scratch_operands = 2 : i64, tpu.core_type = #tpu.core_type<tc>, window_params = [{transform_indices = @transform_0, window_bounds = array<i64: 1, 16, 16, 128>}, {pipeline_mode = #tpu.pipeline_mode<synchronous>, transform_indices = @transform_1, window_bounds = array<i64: 9, 128, 128>}, {pipeline_mode = #tpu.pipeline_mode<synchronous>, transform_indices = @transform_2, window_bounds = array<i64: 1, 128>}, {pipeline_mode = #tpu.pipeline_mode<synchronous>, transform_indices = @transform_3, window_bounds = array<i64: 1, 128>}, {pipeline_mode = #tpu.pipeline_mode<synchronous>, transform_indices = @transform_4, window_bounds = array<i64: 1, 128>}, {pipeline_mode = #tpu.pipeline_mode<synchronous>, transform_indices = @transform_5, window_bounds = array<i64: 9, 128, 128>}, {pipeline_mode = #tpu.pipeline_mode<synchronous>, transform_indices = @transform_6, window_bounds = array<i64: 1, 128>}, {pipeline_mode = #tpu.pipeline_mode<synchronous>, transform_indices = @transform_7, window_bounds = array<i64: 1, 128>}, {pipeline_mode = #tpu.pipeline_mode<synchronous>, transform_indices = @transform_8, window_bounds = array<i64: 1, 128>}, {transform_indices = @transform_9, window_bounds = array<i64: 1, 16, 16, 128>}]} {
    %c0 = arith.constant 0 : index
    %c0_0 = arith.constant 0 : index
    %c0_1 = arith.constant 0 : index
    %c0_2 = arith.constant 0 : index
    %0 = vector.load %arg1[%c0, %c0_0, %c0_1, %c0_2] : memref<1x16x16x128xf32, #tpu.memory_space<vmem>>, vector<1x16x16x128xf32>
    %1 = vector.shape_cast %0 : vector<1x16x16x128xf32> to vector<16x16x128xf32>
    %cst = arith.constant 0.000000e+00 : f32
    %2 = vector.broadcast %cst : f32 to vector<18x18x128xf32>
    %c0_3 = arith.constant 0 : index
    %c0_4 = arith.constant 0 : index
    %c0_5 = arith.constant 0 : index
    %3 = vector.load %arg11[%c0_3, %c0_4, %c0_5] : memref<18x18x128xf32, #tpu.memory_space<vmem>>, vector<18x18x128xf32>
    tpu.vector_store %arg11[%c0_3, %c0_4, %c0_5], %2 {strides = array<i32>} : memref<18x18x128xf32, #tpu.memory_space<vmem>>, vector<18x18x128xf32>,
    %c1 = arith.constant 1 : index
    %c1_6 = arith.constant 1 : index
    %c0_7 = arith.constant 0 : index
    %4 = vector.load %arg11[%c1, %c1_6, %c0_7] : memref<18x18x128xf32, #tpu.memory_space<vmem>>, vector<16x16x128xf32>
    tpu.vector_store %arg11[%c1, %c1_6, %c0_7], %1 {strides = array<i32>} : memref<18x18x128xf32, #tpu.memory_space<vmem>>, vector<16x16x128xf32>,
    %cst_8 = arith.constant 0.000000e+00 : f32
    %5 = vector.broadcast %cst_8 : f32 to vector<256x128xf32>
    %c0_9 = arith.constant 0 : index
    %c0_10 = arith.constant 0 : index
    %c0_11 = arith.constant 0 : index
    %6 = vector.load %arg11[%c0_9, %c0_10, %c0_11] : memref<18x18x128xf32, #tpu.memory_space<vmem>>, vector<16x16x128xf32>
    %7 = vector.shape_cast %6 : vector<16x16x128xf32> to vector<256x128xf32>
    %8 = arith.truncf %7 : vector<256x128xf32> to vector<256x128xbf16>
    %c0_12 = arith.constant 0 : index
    %c0_13 = arith.constant 0 : index
    %c0_14 = arith.constant 0 : index
    %9 = vector.load %arg2[%c0_12, %c0_13, %c0_14] : memref<9x128x128xbf16, #tpu.memory_space<vmem>>, vector<1x128x128xbf16>
    %10 = vector.shape_cast %9 : vector<1x128x128xbf16> to vector<128x128xbf16>
    %cst_15 = arith.constant dense<0.000000e+00> : vector<256x128xf32>
    %11 = tpu.matmul %8, %10, %cst_15 {dimension_numbers = #tpu.dot_dimension_numbers<[1], [0], [0], [1], [0, 0, 1, 1], [], []>} : vector<256x128xbf16>, vector<128x128xbf16>, vector<256x128xf32> -> vector<256x128xf32>
    %12 = arith.addf %5, %11 : vector<256x128xf32>
    %c0_16 = arith.constant 0 : index
    %c1_17 = arith.constant 1 : index
    %c0_18 = arith.constant 0 : index
    %13 = vector.load %arg11[%c0_16, %c1_17, %c0_18] : memref<18x18x128xf32, #tpu.memory_space<vmem>>, vector<16x16x128xf32>
    %14 = vector.shape_cast %13 : vector<16x16x128xf32> to vector<256x128xf32>
    %15 = arith.truncf %14 : vector<256x128xf32> to vector<256x128xbf16>
    %c1_19 = arith.constant 1 : index
    %c0_20 = arith.constant 0 : index
    %c0_21 = arith.constant 0 : index
    %16 = vector.load %arg2[%c1_19, %c0_20, %c0_21] : memref<9x128x128xbf16, #tpu.memory_space<vmem>>, vector<1x128x128xbf16>
    %17 = vector.shape_cast %16 : vector<1x128x128xbf16> to vector<128x128xbf16>
    %cst_22 = arith.constant dense<0.000000e+00> : vector<256x128xf32>
    %18 = tpu.matmul %15, %17, %cst_22 {dimension_numbers = #tpu.dot_dimension_numbers<[1], [0], [0], [1], [0, 0, 1, 1], [], []>} : vector<256x128xbf16>, vector<128x128xbf16>, vector<256x128xf32> -> vector<256x128xf32>
    %19 = arith.addf %12, %18 : vector<256x128xf32>
    %c0_23 = arith.constant 0 : index
    %c2 = arith.constant 2 : index
    %c0_24 = arith.constant 0 : index
    %20 = vector.load %arg11[%c0_23, %c2, %c0_24] : memref<18x18x128xf32, #tpu.memory_space<vmem>>, vector<16x16x128xf32>
    %21 = vector.shape_cast %20 : vector<16x16x128xf32> to vector<256x128xf32>
    %22 = arith.truncf %21 : vector<256x128xf32> to vector<256x128xbf16>
    %c2_25 = arith.constant 2 : index
    %c0_26 = arith.constant 0 : index
    %c0_27 = arith.constant 0 : index
    %23 = vector.load %arg2[%c2_25, %c0_26, %c0_27] : memref<9x128x128xbf16, #tpu.memory_space<vmem>>, vector<1x128x128xbf16>
    %24 = vector.shape_cast %23 : vector<1x128x128xbf16> to vector<128x128xbf16>
    %cst_28 = arith.constant dense<0.000000e+00> : vector<256x128xf32>
    %25 = tpu.matmul %22, %24, %cst_28 {dimension_numbers = #tpu.dot_dimension_numbers<[1], [0], [0], [1], [0, 0, 1, 1], [], []>} : vector<256x128xbf16>, vector<128x128xbf16>, vector<256x128xf32> -> vector<256x128xf32>
    %26 = arith.addf %19, %25 : vector<256x128xf32>
    %c1_29 = arith.constant 1 : index
    %c0_30 = arith.constant 0 : index
    %c0_31 = arith.constant 0 : index
    %27 = vector.load %arg11[%c1_29, %c0_30, %c0_31] : memref<18x18x128xf32, #tpu.memory_space<vmem>>, vector<16x16x128xf32>
    %28 = vector.shape_cast %27 : vector<16x16x128xf32> to vector<256x128xf32>
    %29 = arith.truncf %28 : vector<256x128xf32> to vector<256x128xbf16>
    %c3 = arith.constant 3 : index
    %c0_32 = arith.constant 0 : index
    %c0_33 = arith.constant 0 : index
    %30 = vector.load %arg2[%c3, %c0_32, %c0_33] : memref<9x128x128xbf16, #tpu.memory_space<vmem>>, vector<1x128x128xbf16>
    %31 = vector.shape_cast %30 : vector<1x128x128xbf16> to vector<128x128xbf16>
    %cst_34 = arith.constant dense<0.000000e+00> : vector<256x128xf32>
    %32 = tpu.matmul %29, %31, %cst_34 {dimension_numbers = #tpu.dot_dimension_numbers<[1], [0], [0], [1], [0, 0, 1, 1], [], []>} : vector<256x128xbf16>, vector<128x128xbf16>, vector<256x128xf32> -> vector<256x128xf32>
    %33 = arith.addf %26, %32 : vector<256x128xf32>
    %c1_35 = arith.constant 1 : index
    %c1_36 = arith.constant 1 : index
    %c0_37 = arith.constant 0 : index
    %34 = vector.load %arg11[%c1_35, %c1_36, %c0_37] : memref<18x18x128xf32, #tpu.memory_space<vmem>>, vector<16x16x128xf32>
    %35 = vector.shape_cast %34 : vector<16x16x128xf32> to vector<256x128xf32>
    %36 = arith.truncf %35 : vector<256x128xf32> to vector<256x128xbf16>
    %c4 = arith.constant 4 : index
    %c0_38 = arith.constant 0 : index
    %c0_39 = arith.constant 0 : index
    %37 = vector.load %arg2[%c4, %c0_38, %c0_39] : memref<9x128x128xbf16, #tpu.memory_space<vmem>>, vector<1x128x128xbf16>
    %38 = vector.shape_cast %37 : vector<1x128x128xbf16> to vector<128x128xbf16>
    %cst_40 = arith.constant dense<0.000000e+00> : vector<256x128xf32>
    %39 = tpu.matmul %36, %38, %cst_40 {dimension_numbers = #tpu.dot_dimension_numbers<[1], [0], [0], [1], [0, 0, 1, 1], [], []>} : vector<256x128xbf16>, vector<128x128xbf16>, vector<256x128xf32> -> vector<256x128xf32>
    %40 = arith.addf %33, %39 : vector<256x128xf32>
    %c1_41 = arith.constant 1 : index
    %c2_42 = arith.constant 2 : index
    %c0_43 = arith.constant 0 : index
    %41 = vector.load %arg11[%c1_41, %c2_42, %c0_43] : memref<18x18x128xf32, #tpu.memory_space<vmem>>, vector<16x16x128xf32>
    %42 = vector.shape_cast %41 : vector<16x16x128xf32> to vector<256x128xf32>
    %43 = arith.truncf %42 : vector<256x128xf32> to vector<256x128xbf16>
    %c5 = arith.constant 5 : index
    %c0_44 = arith.constant 0 : index
    %c0_45 = arith.constant 0 : index
    %44 = vector.load %arg2[%c5, %c0_44, %c0_45] : memref<9x128x128xbf16, #tpu.memory_space<vmem>>, vector<1x128x128xbf16>
    %45 = vector.shape_cast %44 : vector<1x128x128xbf16> to vector<128x128xbf16>
    %cst_46 = arith.constant dense<0.000000e+00> : vector<256x128xf32>
    %46 = tpu.matmul %43, %45, %cst_46 {dimension_numbers = #tpu.dot_dimension_numbers<[1], [0], [0], [1], [0, 0, 1, 1], [], []>} : vector<256x128xbf16>, vector<128x128xbf16>, vector<256x128xf32> -> vector<256x128xf32>
    %47 = arith.addf %40, %46 : vector<256x128xf32>
    %c2_47 = arith.constant 2 : index
    %c0_48 = arith.constant 0 : index
    %c0_49 = arith.constant 0 : index
    %48 = vector.load %arg11[%c2_47, %c0_48, %c0_49] : memref<18x18x128xf32, #tpu.memory_space<vmem>>, vector<16x16x128xf32>
    %49 = vector.shape_cast %48 : vector<16x16x128xf32> to vector<256x128xf32>
    %50 = arith.truncf %49 : vector<256x128xf32> to vector<256x128xbf16>
    %c6 = arith.constant 6 : index
    %c0_50 = arith.constant 0 : index
    %c0_51 = arith.constant 0 : index
    %51 = vector.load %arg2[%c6, %c0_50, %c0_51] : memref<9x128x128xbf16, #tpu.memory_space<vmem>>, vector<1x128x128xbf16>
    %52 = vector.shape_cast %51 : vector<1x128x128xbf16> to vector<128x128xbf16>
    %cst_52 = arith.constant dense<0.000000e+00> : vector<256x128xf32>
    %53 = tpu.matmul %50, %52, %cst_52 {dimension_numbers = #tpu.dot_dimension_numbers<[1], [0], [0], [1], [0, 0, 1, 1], [], []>} : vector<256x128xbf16>, vector<128x128xbf16>, vector<256x128xf32> -> vector<256x128xf32>
    %54 = arith.addf %47, %53 : vector<256x128xf32>
    %c2_53 = arith.constant 2 : index
    %c1_54 = arith.constant 1 : index
    %c0_55 = arith.constant 0 : index
    %55 = vector.load %arg11[%c2_53, %c1_54, %c0_55] : memref<18x18x128xf32, #tpu.memory_space<vmem>>, vector<16x16x128xf32>
    %56 = vector.shape_cast %55 : vector<16x16x128xf32> to vector<256x128xf32>
    %57 = arith.truncf %56 : vector<256x128xf32> to vector<256x128xbf16>
    %c7 = arith.constant 7 : index
    %c0_56 = arith.constant 0 : index
    %c0_57 = arith.constant 0 : index
    %58 = vector.load %arg2[%c7, %c0_56, %c0_57] : memref<9x128x128xbf16, #tpu.memory_space<vmem>>, vector<1x128x128xbf16>
    %59 = vector.shape_cast %58 : vector<1x128x128xbf16> to vector<128x128xbf16>
    %cst_58 = arith.constant dense<0.000000e+00> : vector<256x128xf32>
    %60 = tpu.matmul %57, %59, %cst_58 {dimension_numbers = #tpu.dot_dimension_numbers<[1], [0], [0], [1], [0, 0, 1, 1], [], []>} : vector<256x128xbf16>, vector<128x128xbf16>, vector<256x128xf32> -> vector<256x128xf32>
    %61 = arith.addf %54, %60 : vector<256x128xf32>
    %c2_59 = arith.constant 2 : index
    %c2_60 = arith.constant 2 : index
    %c0_61 = arith.constant 0 : index
    %62 = vector.load %arg11[%c2_59, %c2_60, %c0_61] : memref<18x18x128xf32, #tpu.memory_space<vmem>>, vector<16x16x128xf32>
    %63 = vector.shape_cast %62 : vector<16x16x128xf32> to vector<256x128xf32>
    %64 = arith.truncf %63 : vector<256x128xf32> to vector<256x128xbf16>
    %c8 = arith.constant 8 : index
    %c0_62 = arith.constant 0 : index
    %c0_63 = arith.constant 0 : index
    %65 = vector.load %arg2[%c8, %c0_62, %c0_63] : memref<9x128x128xbf16, #tpu.memory_space<vmem>>, vector<1x128x128xbf16>
    %66 = vector.shape_cast %65 : vector<1x128x128xbf16> to vector<128x128xbf16>
    %cst_64 = arith.constant dense<0.000000e+00> : vector<256x128xf32>
    %67 = tpu.matmul %64, %66, %cst_64 {dimension_numbers = #tpu.dot_dimension_numbers<[1], [0], [0], [1], [0, 0, 1, 1], [], []>} : vector<256x128xbf16>, vector<128x128xbf16>, vector<256x128xf32> -> vector<256x128xf32>
    %68 = arith.addf %61, %67 : vector<256x128xf32>
    %c0_65 = arith.constant 0 : index
    %c0_66 = arith.constant 0 : index
    %69 = vector.load %arg3[%c0_65, %c0_66] : memref<1x128xf32, #tpu.memory_space<vmem>>, vector<1x128xf32>
    %70 = vector.broadcast %69 : vector<1x128xf32> to vector<256x128xf32>
    %71 = arith.addf %68, %70 : vector<256x128xf32>
    %cst_67 = arith.constant dense<0.000000e+00> : vector<128xf32>
    %72 = vector.multi_reduction <add>, %71, %cst_67 [0] : vector<256x128xf32> to vector<128xf32>
    %73 = vector.shape_cast %72 : vector<128xf32> to vector<1x128xf32>
    %cst_68 = arith.constant 2.560000e+02 : f32
    %74 = vector.broadcast %cst_68 : f32 to vector<1x128xf32>
    %75 = arith.divf %73, %74 : vector<1x128xf32>
    %76 = vector.broadcast %75 : vector<1x128xf32> to vector<256x128xf32>
    %77 = arith.subf %71, %76 : vector<256x128xf32>
    %78 = arith.mulf %77, %77 : vector<256x128xf32>
    %cst_69 = arith.constant dense<0.000000e+00> : vector<128xf32>
    %79 = vector.multi_reduction <add>, %78, %cst_69 [0] : vector<256x128xf32> to vector<128xf32>
    %80 = vector.shape_cast %79 : vector<128xf32> to vector<1x128xf32>
    %cst_70 = arith.constant 2.560000e+02 : f32
    %81 = vector.broadcast %cst_70 : f32 to vector<1x128xf32>
    %82 = arith.divf %80, %81 : vector<1x128xf32>
    %83 = vector.broadcast %75 : vector<1x128xf32> to vector<256x128xf32>
    %84 = arith.subf %71, %83 : vector<256x128xf32>
    %cst_71 = arith.constant 9.99999974E-6 : f32
    %85 = vector.broadcast %cst_71 : f32 to vector<1x128xf32>
    %86 = arith.addf %82, %85 : vector<1x128xf32>
    %87 = math.rsqrt %86 : vector<1x128xf32>
    %88 = vector.broadcast %87 : vector<1x128xf32> to vector<256x128xf32>
    %89 = arith.mulf %84, %88 : vector<256x128xf32>
    %c0_72 = arith.constant 0 : index
    %c0_73 = arith.constant 0 : index
    %90 = vector.load %arg4[%c0_72, %c0_73] : memref<1x128xf32, #tpu.memory_space<vmem>>, vector<1x128xf32>
    %91 = vector.broadcast %90 : vector<1x128xf32> to vector<256x128xf32>
    %92 = arith.mulf %89, %91 : vector<256x128xf32>
    %c0_74 = arith.constant 0 : index
    %c0_75 = arith.constant 0 : index
    %93 = vector.load %arg5[%c0_74, %c0_75] : memref<1x128xf32, #tpu.memory_space<vmem>>, vector<1x128xf32>
    %94 = vector.broadcast %93 : vector<1x128xf32> to vector<256x128xf32>
    %95 = arith.addf %92, %94 : vector<256x128xf32>
    %cst_76 = arith.constant 0.000000e+00 : f32
    %96 = vector.broadcast %cst_76 : f32 to vector<256x128xf32>
    %97 = arith.maximumf %95, %96 : vector<256x128xf32>
    %cst_77 = arith.constant 0.000000e+00 : f32
    %98 = vector.broadcast %cst_77 : f32 to vector<18x18x128xf32>
    %c0_78 = arith.constant 0 : index
    %c0_79 = arith.constant 0 : index
    %c0_80 = arith.constant 0 : index
    %99 = vector.load %arg12[%c0_78, %c0_79, %c0_80] : memref<18x18x128xf32, #tpu.memory_space<vmem>>, vector<18x18x128xf32>
    tpu.vector_store %arg12[%c0_78, %c0_79, %c0_80], %98 {strides = array<i32>} : memref<18x18x128xf32, #tpu.memory_space<vmem>>, vector<18x18x128xf32>,
    %100 = vector.shape_cast %97 : vector<256x128xf32> to vector<16x16x128xf32>
    %c1_81 = arith.constant 1 : index
    %c1_82 = arith.constant 1 : index
    %c0_83 = arith.constant 0 : index
    %101 = vector.load %arg12[%c1_81, %c1_82, %c0_83] : memref<18x18x128xf32, #tpu.memory_space<vmem>>, vector<16x16x128xf32>
    tpu.vector_store %arg12[%c1_81, %c1_82, %c0_83], %100 {strides = array<i32>} : memref<18x18x128xf32, #tpu.memory_space<vmem>>, vector<16x16x128xf32>,
    %cst_84 = arith.constant 0.000000e+00 : f32
    %102 = vector.broadcast %cst_84 : f32 to vector<256x128xf32>
    %c0_85 = arith.constant 0 : index
    %c0_86 = arith.constant 0 : index
    %c0_87 = arith.constant 0 : index
    %103 = vector.load %arg12[%c0_85, %c0_86, %c0_87] : memref<18x18x128xf32, #tpu.memory_space<vmem>>, vector<16x16x128xf32>
    %104 = vector.shape_cast %103 : vector<16x16x128xf32> to vector<256x128xf32>
    %105 = arith.truncf %104 : vector<256x128xf32> to vector<256x128xbf16>
    %c0_88 = arith.constant 0 : index
    %c0_89 = arith.constant 0 : index
    %c0_90 = arith.constant 0 : index
    %106 = vector.load %arg6[%c0_88, %c0_89, %c0_90] : memref<9x128x128xbf16, #tpu.memory_space<vmem>>, vector<1x128x128xbf16>
    %107 = vector.shape_cast %106 : vector<1x128x128xbf16> to vector<128x128xbf16>
    %cst_91 = arith.constant dense<0.000000e+00> : vector<256x128xf32>
    %108 = tpu.matmul %105, %107, %cst_91 {dimension_numbers = #tpu.dot_dimension_numbers<[1], [0], [0], [1], [0, 0, 1, 1], [], []>} : vector<256x128xbf16>, vector<128x128xbf16>, vector<256x128xf32> -> vector<256x128xf32>
    %109 = arith.addf %102, %108 : vector<256x128xf32>
    %c0_92 = arith.constant 0 : index
    %c1_93 = arith.constant 1 : index
    %c0_94 = arith.constant 0 : index
    %110 = vector.load %arg12[%c0_92, %c1_93, %c0_94] : memref<18x18x128xf32, #tpu.memory_space<vmem>>, vector<16x16x128xf32>
    %111 = vector.shape_cast %110 : vector<16x16x128xf32> to vector<256x128xf32>
    %112 = arith.truncf %111 : vector<256x128xf32> to vector<256x128xbf16>
    %c1_95 = arith.constant 1 : index
    %c0_96 = arith.constant 0 : index
    %c0_97 = arith.constant 0 : index
    %113 = vector.load %arg6[%c1_95, %c0_96, %c0_97] : memref<9x128x128xbf16, #tpu.memory_space<vmem>>, vector<1x128x128xbf16>
    %114 = vector.shape_cast %113 : vector<1x128x128xbf16> to vector<128x128xbf16>
    %cst_98 = arith.constant dense<0.000000e+00> : vector<256x128xf32>
    %115 = tpu.matmul %112, %114, %cst_98 {dimension_numbers = #tpu.dot_dimension_numbers<[1], [0], [0], [1], [0, 0, 1, 1], [], []>} : vector<256x128xbf16>, vector<128x128xbf16>, vector<256x128xf32> -> vector<256x128xf32>
    %116 = arith.addf %109, %115 : vector<256x128xf32>
    %c0_99 = arith.constant 0 : index
    %c2_100 = arith.constant 2 : index
    %c0_101 = arith.constant 0 : index
    %117 = vector.load %arg12[%c0_99, %c2_100, %c0_101] : memref<18x18x128xf32, #tpu.memory_space<vmem>>, vector<16x16x128xf32>
    %118 = vector.shape_cast %117 : vector<16x16x128xf32> to vector<256x128xf32>
    %119 = arith.truncf %118 : vector<256x128xf32> to vector<256x128xbf16>
    %c2_102 = arith.constant 2 : index
    %c0_103 = arith.constant 0 : index
    %c0_104 = arith.constant 0 : index
    %120 = vector.load %arg6[%c2_102, %c0_103, %c0_104] : memref<9x128x128xbf16, #tpu.memory_space<vmem>>, vector<1x128x128xbf16>
    %121 = vector.shape_cast %120 : vector<1x128x128xbf16> to vector<128x128xbf16>
    %cst_105 = arith.constant dense<0.000000e+00> : vector<256x128xf32>
    %122 = tpu.matmul %119, %121, %cst_105 {dimension_numbers = #tpu.dot_dimension_numbers<[1], [0], [0], [1], [0, 0, 1, 1], [], []>} : vector<256x128xbf16>, vector<128x128xbf16>, vector<256x128xf32> -> vector<256x128xf32>
    %123 = arith.addf %116, %122 : vector<256x128xf32>
    %c1_106 = arith.constant 1 : index
    %c0_107 = arith.constant 0 : index
    %c0_108 = arith.constant 0 : index
    %124 = vector.load %arg12[%c1_106, %c0_107, %c0_108] : memref<18x18x128xf32, #tpu.memory_space<vmem>>, vector<16x16x128xf32>
    %125 = vector.shape_cast %124 : vector<16x16x128xf32> to vector<256x128xf32>
    %126 = arith.truncf %125 : vector<256x128xf32> to vector<256x128xbf16>
    %c3_109 = arith.constant 3 : index
    %c0_110 = arith.constant 0 : index
    %c0_111 = arith.constant 0 : index
    %127 = vector.load %arg6[%c3_109, %c0_110, %c0_111] : memref<9x128x128xbf16, #tpu.memory_space<vmem>>, vector<1x128x128xbf16>
    %128 = vector.shape_cast %127 : vector<1x128x128xbf16> to vector<128x128xbf16>
    %cst_112 = arith.constant dense<0.000000e+00> : vector<256x128xf32>
    %129 = tpu.matmul %126, %128, %cst_112 {dimension_numbers = #tpu.dot_dimension_numbers<[1], [0], [0], [1], [0, 0, 1, 1], [], []>} : vector<256x128xbf16>, vector<128x128xbf16>, vector<256x128xf32> -> vector<256x128xf32>
    %130 = arith.addf %123, %129 : vector<256x128xf32>
    %c1_113 = arith.constant 1 : index
    %c1_114 = arith.constant 1 : index
    %c0_115 = arith.constant 0 : index
    %131 = vector.load %arg12[%c1_113, %c1_114, %c0_115] : memref<18x18x128xf32, #tpu.memory_space<vmem>>, vector<16x16x128xf32>
    %132 = vector.shape_cast %131 : vector<16x16x128xf32> to vector<256x128xf32>
    %133 = arith.truncf %132 : vector<256x128xf32> to vector<256x128xbf16>
    %c4_116 = arith.constant 4 : index
    %c0_117 = arith.constant 0 : index
    %c0_118 = arith.constant 0 : index
    %134 = vector.load %arg6[%c4_116, %c0_117, %c0_118] : memref<9x128x128xbf16, #tpu.memory_space<vmem>>, vector<1x128x128xbf16>
    %135 = vector.shape_cast %134 : vector<1x128x128xbf16> to vector<128x128xbf16>
    %cst_119 = arith.constant dense<0.000000e+00> : vector<256x128xf32>
    %136 = tpu.matmul %133, %135, %cst_119 {dimension_numbers = #tpu.dot_dimension_numbers<[1], [0], [0], [1], [0, 0, 1, 1], [], []>} : vector<256x128xbf16>, vector<128x128xbf16>, vector<256x128xf32> -> vector<256x128xf32>
    %137 = arith.addf %130, %136 : vector<256x128xf32>
    %c1_120 = arith.constant 1 : index
    %c2_121 = arith.constant 2 : index
    %c0_122 = arith.constant 0 : index
    %138 = vector.load %arg12[%c1_120, %c2_121, %c0_122] : memref<18x18x128xf32, #tpu.memory_space<vmem>>, vector<16x16x128xf32>
    %139 = vector.shape_cast %138 : vector<16x16x128xf32> to vector<256x128xf32>
    %140 = arith.truncf %139 : vector<256x128xf32> to vector<256x128xbf16>
    %c5_123 = arith.constant 5 : index
    %c0_124 = arith.constant 0 : index
    %c0_125 = arith.constant 0 : index
    %141 = vector.load %arg6[%c5_123, %c0_124, %c0_125] : memref<9x128x128xbf16, #tpu.memory_space<vmem>>, vector<1x128x128xbf16>
    %142 = vector.shape_cast %141 : vector<1x128x128xbf16> to vector<128x128xbf16>
    %cst_126 = arith.constant dense<0.000000e+00> : vector<256x128xf32>
    %143 = tpu.matmul %140, %142, %cst_126 {dimension_numbers = #tpu.dot_dimension_numbers<[1], [0], [0], [1], [0, 0, 1, 1], [], []>} : vector<256x128xbf16>, vector<128x128xbf16>, vector<256x128xf32> -> vector<256x128xf32>
    %144 = arith.addf %137, %143 : vector<256x128xf32>
    %c2_127 = arith.constant 2 : index
    %c0_128 = arith.constant 0 : index
    %c0_129 = arith.constant 0 : index
    %145 = vector.load %arg12[%c2_127, %c0_128, %c0_129] : memref<18x18x128xf32, #tpu.memory_space<vmem>>, vector<16x16x128xf32>
    %146 = vector.shape_cast %145 : vector<16x16x128xf32> to vector<256x128xf32>
    %147 = arith.truncf %146 : vector<256x128xf32> to vector<256x128xbf16>
    %c6_130 = arith.constant 6 : index
    %c0_131 = arith.constant 0 : index
    %c0_132 = arith.constant 0 : index
    %148 = vector.load %arg6[%c6_130, %c0_131, %c0_132] : memref<9x128x128xbf16, #tpu.memory_space<vmem>>, vector<1x128x128xbf16>
    %149 = vector.shape_cast %148 : vector<1x128x128xbf16> to vector<128x128xbf16>
    %cst_133 = arith.constant dense<0.000000e+00> : vector<256x128xf32>
    %150 = tpu.matmul %147, %149, %cst_133 {dimension_numbers = #tpu.dot_dimension_numbers<[1], [0], [0], [1], [0, 0, 1, 1], [], []>} : vector<256x128xbf16>, vector<128x128xbf16>, vector<256x128xf32> -> vector<256x128xf32>
    %151 = arith.addf %144, %150 : vector<256x128xf32>
    %c2_134 = arith.constant 2 : index
    %c1_135 = arith.constant 1 : index
    %c0_136 = arith.constant 0 : index
    %152 = vector.load %arg12[%c2_134, %c1_135, %c0_136] : memref<18x18x128xf32, #tpu.memory_space<vmem>>, vector<16x16x128xf32>
    %153 = vector.shape_cast %152 : vector<16x16x128xf32> to vector<256x128xf32>
    %154 = arith.truncf %153 : vector<256x128xf32> to vector<256x128xbf16>
    %c7_137 = arith.constant 7 : index
    %c0_138 = arith.constant 0 : index
    %c0_139 = arith.constant 0 : index
    %155 = vector.load %arg6[%c7_137, %c0_138, %c0_139] : memref<9x128x128xbf16, #tpu.memory_space<vmem>>, vector<1x128x128xbf16>
    %156 = vector.shape_cast %155 : vector<1x128x128xbf16> to vector<128x128xbf16>
    %cst_140 = arith.constant dense<0.000000e+00> : vector<256x128xf32>
    %157 = tpu.matmul %154, %156, %cst_140 {dimension_numbers = #tpu.dot_dimension_numbers<[1], [0], [0], [1], [0, 0, 1, 1], [], []>} : vector<256x128xbf16>, vector<128x128xbf16>, vector<256x128xf32> -> vector<256x128xf32>
    %158 = arith.addf %151, %157 : vector<256x128xf32>
    %c2_141 = arith.constant 2 : index
    %c2_142 = arith.constant 2 : index
    %c0_143 = arith.constant 0 : index
    %159 = vector.load %arg12[%c2_141, %c2_142, %c0_143] : memref<18x18x128xf32, #tpu.memory_space<vmem>>, vector<16x16x128xf32>
    %160 = vector.shape_cast %159 : vector<16x16x128xf32> to vector<256x128xf32>
    %161 = arith.truncf %160 : vector<256x128xf32> to vector<256x128xbf16>
    %c8_144 = arith.constant 8 : index
    %c0_145 = arith.constant 0 : index
    %c0_146 = arith.constant 0 : index
    %162 = vector.load %arg6[%c8_144, %c0_145, %c0_146] : memref<9x128x128xbf16, #tpu.memory_space<vmem>>, vector<1x128x128xbf16>
    %163 = vector.shape_cast %162 : vector<1x128x128xbf16> to vector<128x128xbf16>
    %cst_147 = arith.constant dense<0.000000e+00> : vector<256x128xf32>
    %164 = tpu.matmul %161, %163, %cst_147 {dimension_numbers = #tpu.dot_dimension_numbers<[1], [0], [0], [1], [0, 0, 1, 1], [], []>} : vector<256x128xbf16>, vector<128x128xbf16>, vector<256x128xf32> -> vector<256x128xf32>
    %165 = arith.addf %158, %164 : vector<256x128xf32>
    %c0_148 = arith.constant 0 : index
    %c0_149 = arith.constant 0 : index
    %166 = vector.load %arg7[%c0_148, %c0_149] : memref<1x128xf32, #tpu.memory_space<vmem>>, vector<1x128xf32>
    %167 = vector.broadcast %166 : vector<1x128xf32> to vector<256x128xf32>
    %168 = arith.addf %165, %167 : vector<256x128xf32>
    %cst_150 = arith.constant dense<0.000000e+00> : vector<128xf32>
    %169 = vector.multi_reduction <add>, %168, %cst_150 [0] : vector<256x128xf32> to vector<128xf32>
    %170 = vector.shape_cast %169 : vector<128xf32> to vector<1x128xf32>
    %cst_151 = arith.constant 2.560000e+02 : f32
    %171 = vector.broadcast %cst_151 : f32 to vector<1x128xf32>
    %172 = arith.divf %170, %171 : vector<1x128xf32>
    %173 = vector.broadcast %172 : vector<1x128xf32> to vector<256x128xf32>
    %174 = arith.subf %168, %173 : vector<256x128xf32>
    %175 = arith.mulf %174, %174 : vector<256x128xf32>
    %cst_152 = arith.constant dense<0.000000e+00> : vector<128xf32>
    %176 = vector.multi_reduction <add>, %175, %cst_152 [0] : vector<256x128xf32> to vector<128xf32>
    %177 = vector.shape_cast %176 : vector<128xf32> to vector<1x128xf32>
    %cst_153 = arith.constant 2.560000e+02 : f32
    %178 = vector.broadcast %cst_153 : f32 to vector<1x128xf32>
    %179 = arith.divf %177, %178 : vector<1x128xf32>
    %180 = vector.broadcast %172 : vector<1x128xf32> to vector<256x128xf32>
    %181 = arith.subf %168, %180 : vector<256x128xf32>
    %cst_154 = arith.constant 9.99999974E-6 : f32
    %182 = vector.broadcast %cst_154 : f32 to vector<1x128xf32>
    %183 = arith.addf %179, %182 : vector<1x128xf32>
    %184 = math.rsqrt %183 : vector<1x128xf32>
    %185 = vector.broadcast %184 : vector<1x128xf32> to vector<256x128xf32>
    %186 = arith.mulf %181, %185 : vector<256x128xf32>
    %c0_155 = arith.constant 0 : index
    %c0_156 = arith.constant 0 : index
    %187 = vector.load %arg8[%c0_155, %c0_156] : memref<1x128xf32, #tpu.memory_space<vmem>>, vector<1x128xf32>
    %188 = vector.broadcast %187 : vector<1x128xf32> to vector<256x128xf32>
    %189 = arith.mulf %186, %188 : vector<256x128xf32>
    %c0_157 = arith.constant 0 : index
    %c0_158 = arith.constant 0 : index
    %190 = vector.load %arg9[%c0_157, %c0_158] : memref<1x128xf32, #tpu.memory_space<vmem>>, vector<1x128xf32>
    %191 = vector.broadcast %190 : vector<1x128xf32> to vector<256x128xf32>
    %192 = arith.addf %189, %191 : vector<256x128xf32>
    %193 = vector.shape_cast %192 : vector<256x128xf32> to vector<16x16x128xf32>
    %194 = arith.addf %1, %193 : vector<16x16x128xf32>
    %c0_159 = arith.constant 0 : index
    %c0_160 = arith.constant 0 : index
    %c0_161 = arith.constant 0 : index
    %c0_162 = arith.constant 0 : index
    %195 = vector.load %arg10[%c0_159, %c0_160, %c0_161, %c0_162] : memref<1x16x16x128xf32, #tpu.memory_space<vmem>>, vector<1x16x16x128xf32>
    %196 = vector.shape_cast %195 : vector<1x16x16x128xf32> to vector<16x16x128xf32>
    %197 = vector.shape_cast %194 : vector<16x16x128xf32> to vector<1x16x16x128xf32>
    tpu.vector_store %arg10[%c0_159, %c0_160, %c0_161, %c0_162], %197 {strides = array<i32>} : memref<1x16x16x128xf32, #tpu.memory_space<vmem>>, vector<1x16x16x128xf32>,
    return
  }
  func.func @transform_0(%arg0: i32) -> (i32, i32, i32, i32) {
    %c0_i32 = arith.constant 0 : i32
    %c0_i32_0 = arith.constant 0 : i32
    %c0_i32_1 = arith.constant 0 : i32
    %c0_i32_2 = arith.constant 0 : i32
    return %arg0, %c0_i32, %c0_i32_0, %c0_i32_1 : i32, i32, i32, i32
  }
  func.func @transform_1(%arg0: i32) -> (i32, i32, i32) {
    %c0_i32 = arith.constant 0 : i32
    %c0_i32_0 = arith.constant 0 : i32
    %c0_i32_1 = arith.constant 0 : i32
    %c0_i32_2 = arith.constant 0 : i32
    return %c0_i32, %c0_i32_0, %c0_i32_1 : i32, i32, i32
  }
  func.func @transform_2(%arg0: i32) -> (i32, i32) {
    %c0_i32 = arith.constant 0 : i32
    %c0_i32_0 = arith.constant 0 : i32
    %c0_i32_1 = arith.constant 0 : i32
    return %c0_i32, %c0_i32_0 : i32, i32
  }
  func.func @transform_3(%arg0: i32) -> (i32, i32) {
    %c0_i32 = arith.constant 0 : i32
    %c0_i32_0 = arith.constant 0 : i32
    %c0_i32_1 = arith.constant 0 : i32
    return %c0_i32, %c0_i32_0 : i32, i32
  }
  func.func @transform_4(%arg0: i32) -> (i32, i32) {
    %c0_i32 = arith.constant 0 : i32
    %c0_i32_0 = arith.constant 0 : i32
    %c0_i32_1 = arith.constant 0 : i32
    return %c0_i32, %c0_i32_0 : i32, i32
  }
  func.func @transform_5(%arg0: i32) -> (i32, i32, i32) {
    %c0_i32 = arith.constant 0 : i32
    %c0_i32_0 = arith.constant 0 : i32
    %c0_i32_1 = arith.constant 0 : i32
    %c0_i32_2 = arith.constant 0 : i32
    return %c0_i32, %c0_i32_0, %c0_i32_1 : i32, i32, i32
  }
  func.func @transform_6(%arg0: i32) -> (i32, i32) {
    %c0_i32 = arith.constant 0 : i32
    %c0_i32_0 = arith.constant 0 : i32
    %c0_i32_1 = arith.constant 0 : i32
    return %c0_i32, %c0_i32_0 : i32, i32
  }
  func.func @transform_7(%arg0: i32) -> (i32, i32) {
    %c0_i32 = arith.constant 0 : i32
    %c0_i32_0 = arith.constant 0 : i32
    %c0_i32_1 = arith.constant 0 : i32
    return %c0_i32, %c0_i32_0 : i32, i32
  }
  func.func @transform_8(%arg0: i32) -> (i32, i32) {
    %c0_i32 = arith.constant 0 : i32
    %c0_i32_0 = arith.constant 0 : i32
    %c0_i32_1 = arith.constant 0 : i32
    return %c0_i32, %c0_i32_0 : i32, i32
  }
  func.func @transform_9(%arg0: i32) -> (i32, i32, i32, i32) {
    %c0_i32 = arith.constant 0 : i32
    %c0_i32_0 = arith.constant 0 : i32
    %c0_i32_1 = arith.constant 0 : i32
    %c0_i32_2 = arith.constant 0 : i32
    return %arg0, %c0_i32, %c0_i32_0, %c0_i32_1 : i32, i32, i32, i32
  }
}

</mosaic_0001>

<llo_original>
// kernel: resnet_block_forward.1
$region0: #{resnet_block_forward.1}
  #allocation0 [shape = 'u32[]', space=smem, size = 0x4, offset = 0x4, fixed_abs, tag = 'smem constant byte address 0x4 - core index']
  #allocation1 [shape = 'u32[144,128]{1,0:T(1,128)}', space=vmem, size = 0x12000, scoped, tag = 'internal scratch']
  #allocation2 [shape = 'f32[18,18,128]{2,1,0:T(8,128)}', space=vmem, size = 0x36000, scoped, tag = 'scratch operand']
  #allocation3 [shape = 'f32[18,18,128]{2,1,0:T(8,128)}', space=vmem, size = 0x36000, scoped, tag = 'scratch operand']
  %s0 = inlined_call_operand.vmem [shape: f32[2,16,16,128], index: 0, kind: input, shape index: {}]
  %s1 = inlined_call_operand.vmem [shape: bf16[9,128,128], index: 1, kind: input, shape index: {}]
  %s2 = inlined_call_operand.vmem [shape: f32[1,128], index: 2, kind: input, shape index: {}]
  %s3 = inlined_call_operand.vmem [shape: f32[1,128], index: 3, kind: input, shape index: {}]
  %s4 = inlined_call_operand.vmem [shape: f32[1,128], index: 4, kind: input, shape index: {}]
  %s5 = inlined_call_operand.vmem [shape: bf16[9,128,128], index: 5, kind: input, shape index: {}]
  %s6 = inlined_call_operand.vmem [shape: f32[1,128], index: 6, kind: input, shape index: {}]
  %s7 = inlined_call_operand.vmem [shape: f32[1,128], index: 7, kind: input, shape index: {}]
  %s8 = inlined_call_operand.vmem [shape: f32[1,128], index: 8, kind: input, shape index: {}]
  %s9 = inlined_call_operand.hbm [shape: f32[2,16,16,128], index: 9, kind: output, shape index: {}]
  %s10 = sld [smem:[#allocation0]]
  $region69: #{resnet_block_forward.1} parent=0
    _
  %s12 = ssub.s32 1, %s10
  %s13 = scalar_select 0, %s12, %s10
  $region1: #{resnet_block_forward.1} parent=0
    #allocation4 [shape = 'u8[262144]{0}', space=vmem, size = 0x40000, scoped, tag = 'output window, operand 0']
    #allocation5 [shape = 's32[2]{0}', space=sflag, size = 0x8, scoped, tag = 'scoped memory for resnet_block_forward.1']
    %14 = vsyncpa [#allocation5], 0
    %s15 = scalar_lea.sflag [#allocation5], 1
    %16 = vsyncpa %s15, 0
    loop: start=0, step=1, limit=4
    $region2: #{resnet_block_forward.1} parent=1 // loop_pre_header
      _
    $region3: #{resnet_block_forward.1} parent=1 // loop_header
      %s18 = sphi 0, %s22
      %p19 = scmp.ge.s32.totalorder %s18, 4
      %s28 = sphi 0, %s30
      %s31 = sphi 0, %s28
      %s32 = sphi 0, %s31
      %s48 = sphi 0, %s32
      %s52 = sphi 0, %s52
      %s54 = sphi 0, %s52
      %s55 = sphi 0, %s54
      %s69 = sphi 0, %s55
      %s73 = sphi 0, %s73
      %s75 = sphi 0, %s73
      %s76 = sphi 0, %s75
      %s90 = sphi 0, %s76
      %s94 = sphi 0, %s94
      %s96 = sphi 0, %s94
      %s97 = sphi 0, %s96
      %s111 = sphi 0, %s97
      %s115 = sphi 0, %s115
      %s117 = sphi 0, %s115
      %s118 = sphi 0, %s117
      %s132 = sphi 0, %s118
      %s136 = sphi 0, %s136
      %s138 = sphi 0, %s136
      %s139 = sphi 0, %s138
      %s153 = sphi 0, %s139
      %s157 = sphi 0, %s157
      %s159 = sphi 0, %s157
      %s160 = sphi 0, %s159
      %s174 = sphi 0, %s160
      %s178 = sphi 0, %s178
      %s180 = sphi 0, %s178
      %s181 = sphi 0, %s180
      %s195 = sphi 0, %s181
      %s199 = sphi 0, %s199
      %s201 = sphi 0, %s199
      %s202 = sphi 0, %s201
      %s216 = sphi 0, %s202
      %s222 = sphi 0, %s224
      %s225 = sphi 0, %s222
      %s226 = sphi 0, %s225
      %s242 = sphi 0, %s226
    $region4: #{resnet_block_forward.1} parent=1 // loop_header_branch
      %21 = sbr.rel (%p19) target = $region8
    $region5: #{resnet_block_forward.1} parent=1 // loop_body
      %s23 = ssub.s32 %s18, 1
      %s24 = ssub.s32 %s18, 2
      %s25 = sadd.s32 %s18, 1
      %s26 = ssub.s32 %s18, %s25
      %p27 = scmp.eq.s32.totalorder %s26, 0
      %s29 = sadd.s32 %s28, 1
      %s30 = scalar_select %p27, %s28, %s29
      %p33 = pneg %p27
      %p34 = scmp.eq.s32.totalorder %s18, 1
      %p35 = por %p33, %p34
      %p36 = scmp.ne.s32.totalorder %s28, %s31
      %p37 = scmp.eq.s32.totalorder %s18, 0
      %p38 = por %p36, %p37
      %p39 = scmp.ne.s32.totalorder %s28, %s31
      %p40 = scmp.eq.s32.totalorder %s23, 1
      %p41 = por %p39, %p40
      %p42 = scmp.ne.s32.totalorder %s31, %s32
      %p43 = scmp.eq.s32.totalorder %s23, 0
      %p44 = por %p42, %p43
      %p45 = scmp.ne.s32.totalorder %s31, %s32
      %p46 = scmp.eq.s32.totalorder %s24, 1
      %p47 = por %p45, %p46
      %p49 = scmp.ne.s32.totalorder %s32, %s48
      %p50 = scmp.eq.s32.totalorder %s24, 0
      %p51 = por %p49, %p50
      %s53 = sadd.s32 %s52, 1
      %p56 = scmp.eq.s32.totalorder %s18, 1
      %p57 = scmp.ne.s32.totalorder %s52, %s54
      %p58 = scmp.eq.s32.totalorder %s18, 0
      %p59 = por %p57, %p58
      %p60 = scmp.ne.s32.totalorder %s52, %s54
      %p61 = scmp.eq.s32.totalorder %s23, 1
      %p62 = por %p60, %p61
      %p63 = scmp.ne.s32.totalorder %s54, %s55
      %p64 = scmp.eq.s32.totalorder %s23, 0
      %p65 = por %p63, %p64
      %p66 = scmp.ne.s32.totalorder %s54, %s55
      %p67 = scmp.eq.s32.totalorder %s24, 1
      %p68 = por %p66, %p67
      %p70 = scmp.ne.s32.totalorder %s55, %s69
      %p71 = scmp.eq.s32.totalorder %s24, 0
      %p72 = por %p70, %p71
      %s74 = sadd.s32 %s73, 1
      %p77 = scmp.eq.s32.totalorder %s18, 1
      %p78 = scmp.ne.s32.totalorder %s73, %s75
      %p79 = scmp.eq.s32.totalorder %s18, 0
      %p80 = por %p78, %p79
      %p81 = scmp.ne.s32.totalorder %s73, %s75
      %p82 = scmp.eq.s32.totalorder %s23, 1
      %p83 = por %p81, %p82
      %p84 = scmp.ne.s32.totalorder %s75, %s76
      %p85 = scmp.eq.s32.totalorder %s23, 0
      %p86 = por %p84, %p85
      %p87 = scmp.ne.s32.totalorder %s75, %s76
      %p88 = scmp.eq.s32.totalorder %s24, 1
      %p89 = por %p87, %p88
      %p91 = scmp.ne.s32.totalorder %s76, %s90
      %p92 = scmp.eq.s32.totalorder %s24, 0
      %p93 = por %p91, %p92
      %s95 = sadd.s32 %s94, 1
      %p98 = scmp.eq.s32.totalorder %s18, 1
      %p99 = scmp.ne.s32.totalorder %s94, %s96
      %p100 = scmp.eq.s32.totalorder %s18, 0
      %p101 = por %p99, %p100
      %p102 = scmp.ne.s32.totalorder %s94, %s96
      %p103 = scmp.eq.s32.totalorder %s23, 1
      %p104 = por %p102, %p103
      %p105 = scmp.ne.s32.totalorder %s96, %s97
      %p106 = scmp.eq.s32.totalorder %s23, 0
      %p107 = por %p105, %p106
      %p108 = scmp.ne.s32.totalorder %s96, %s97
      %p109 = scmp.eq.s32.totalorder %s24, 1
      %p110 = por %p108, %p109
      %p112 = scmp.ne.s32.totalorder %s97, %s111
      %p113 = scmp.eq.s32.totalorder %s24, 0
      %p114 = por %p112, %p113
      %s116 = sadd.s32 %s115, 1
      %p119 = scmp.eq.s32.totalorder %s18, 1
      %p120 = scmp.ne.s32.totalorder %s115, %s117
      %p121 = scmp.eq.s32.totalorder %s18, 0
      %p122 = por %p120, %p121
      %p123 = scmp.ne.s32.totalorder %s115, %s117
      %p124 = scmp.eq.s32.totalorder %s23, 1
      %p125 = por %p123, %p124
      %p126 = scmp.ne.s32.totalorder %s117, %s118
      %p127 = scmp.eq.s32.totalorder %s23, 0
      %p128 = por %p126, %p127
      %p129 = scmp.ne.s32.totalorder %s117, %s118
      %p130 = scmp.eq.s32.totalorder %s24, 1
      %p131 = por %p129, %p130
      %p133 = scmp.ne.s32.totalorder %s118, %s132
      %p134 = scmp.eq.s32.totalorder %s24, 0
      %p135 = por %p133, %p134
      %s137 = sadd.s32 %s136, 1
      %p140 = scmp.eq.s32.totalorder %s18, 1
      %p141 = scmp.ne.s32.totalorder %s136, %s138
      %p142 = scmp.eq.s32.totalorder %s18, 0
      %p143 = por %p141, %p142
      %p144 = scmp.ne.s32.totalorder %s136, %s138
      %p145 = scmp.eq.s32.totalorder %s23, 1
      %p146 = por %p144, %p145
      %p147 = scmp.ne.s32.totalorder %s138, %s139
      %p148 = scmp.eq.s32.totalorder %s23, 0
      %p149 = por %p147, %p148
      %p150 = scmp.ne.s32.totalorder %s138, %s139
      %p151 = scmp.eq.s32.totalorder %s24, 1
      %p152 = por %p150, %p151
      %p154 = scmp.ne.s32.totalorder %s139, %s153
      %p155 = scmp.eq.s32.totalorder %s24, 0
      %p156 = por %p154, %p155
      %s158 = sadd.s32 %s157, 1
      %p161 = scmp.eq.s32.totalorder %s18, 1
      %p162 = scmp.ne.s32.totalorder %s157, %s159
      %p163 = scmp.eq.s32.totalorder %s18, 0
      %p164 = por %p162, %p163
      %p165 = scmp.ne.s32.totalorder %s157, %s159
      %p166 = scmp.eq.s32.totalorder %s23, 1
      %p167 = por %p165, %p166
      %p168 = scmp.ne.s32.totalorder %s159, %s160
      %p169 = scmp.eq.s32.totalorder %s23, 0
      %p170 = por %p168, %p169
      %p171 = scmp.ne.s32.totalorder %s159, %s160
      %p172 = scmp.eq.s32.totalorder %s24, 1
      %p173 = por %p171, %p172
      %p175 = scmp.ne.s32.totalorder %s160, %s174
      %p176 = scmp.eq.s32.totalorder %s24, 0
      %p177 = por %p175, %p176
      %s179 = sadd.s32 %s178, 1
      %p182 = scmp.eq.s32.totalorder %s18, 1
      %p183 = scmp.ne.s32.totalorder %s178, %s180
      %p184 = scmp.eq.s32.totalorder %s18, 0
      %p185 = por %p183, %p184
      %p186 = scmp.ne.s32.totalorder %s178, %s180
      %p187 = scmp.eq.s32.totalorder %s23, 1
      %p188 = por %p186, %p187
      %p189 = scmp.ne.s32.totalorder %s180, %s181
      %p190 = scmp.eq.s32.totalorder %s23, 0
      %p191 = por %p189, %p190
      %p192 = scmp.ne.s32.totalorder %s180, %s181
      %p193 = scmp.eq.s32.totalorder %s24, 1
      %p194 = por %p192, %p193
      %p196 = scmp.ne.s32.totalorder %s181, %s195
      %p197 = scmp.eq.s32.totalorder %s24, 0
      %p198 = por %p196, %p197
      %s200 = sadd.s32 %s199, 1
      %p203 = scmp.eq.s32.totalorder %s18, 1
      %p204 = scmp.ne.s32.totalorder %s199, %s201
      %p205 = scmp.eq.s32.totalorder %s18, 0
      %p206 = por %p204, %p205
      %p207 = scmp.ne.s32.totalorder %s199, %s201
      %p208 = scmp.eq.s32.totalorder %s23, 1
      %p209 = por %p207, %p208
      %p210 = scmp.ne.s32.totalorder %s201, %s202
      %p211 = scmp.eq.s32.totalorder %s23, 0
      %p212 = por %p210, %p211
      %p213 = scmp.ne.s32.totalorder %s201, %s202
      %p214 = scmp.eq.s32.totalorder %s24, 1
      %p215 = por %p213, %p214
      %p217 = scmp.ne.s32.totalorder %s202, %s216
      %p218 = scmp.eq.s32.totalorder %s24, 0
      %p219 = por %p217, %p218
      %s220 = ssub.s32 %s18, %s25
      %p221 = scmp.eq.s32.totalorder %s220, 0
      %s223 = sadd.s32 %s222, 1
      %s224 = scalar_select %p221, %s222, %s223
      %p227 = pneg %p221
      %p228 = scmp.eq.s32.totalorder %s18, 1
      %p229 = por %p227, %p228
      %p230 = scmp.ne.s32.totalorder %s222, %s225
      %p231 = scmp.eq.s32.totalorder %s18, 0
      %p232 = por %p230, %p231
      %p233 = scmp.ne.s32.totalorder %s222, %s225
      %p234 = scmp.eq.s32.totalorder %s23, 1
      %p235 = por %p233, %p234
      %p236 = scmp.ne.s32.totalorder %s225, %s226
      %p237 = scmp.eq.s32.totalorder %s23, 0
      %p238 = por %p236, %p237
      %p239 = scmp.ne.s32.totalorder %s225, %s226
      %p240 = scmp.eq.s32.totalorder %s24, 1
      %p241 = por %p239, %p240
      %p243 = scmp.ne.s32.totalorder %s226, %s242
      %p244 = scmp.eq.s32.totalorder %s24, 0
      %p245 = por %p243, %p244
      %p246 = scmp.le.s32.totalorder 1, %s18
      %p247 = scmp.lt.s32.totalorder %s18, 3
      %p248 = pnand %p246, %p247
      %p249 = pneg %p248
      // Predicated region
      $region9: #{resnet_block_forward.1} parent=5 // pred_check
        _
      $region10: #{resnet_block_forward.1} parent=5 // pred_check_branch
        %251 = sbr.rel (%p248) target = $region12
      $region11: #{resnet_block_forward.1} parent=5 // pred_region
        %s252 = ssub.s32 %s18, 1
        // Predicated region
        $region13: #{resnet_block_forward.1} parent=11 // pred_check
          %p253 = pneg %p65
        $region14: #{resnet_block_forward.1} parent=11 // pred_check_branch
          %255 = sbr.rel (%p253) target = $region16
        $region15: #{resnet_block_forward.1} parent=11 // pred_region
          _
        $region16: #{resnet_block_forward.1} parent=11 // pred_fallthru
          _
        // Predicated region
        $region17: #{resnet_block_forward.1} parent=11 // pred_check
          %p256 = pneg %p86
        $region18: #{resnet_block_forward.1} parent=11 // pred_check_branch
          %258 = sbr.rel (%p256) target = $region20
        $region19: #{resnet_block_forward.1} parent=11 // pred_region
          _
        $region20: #{resnet_block_forward.1} parent=11 // pred_fallthru
          _
        // Predicated region
        $region21: #{resnet_block_forward.1} parent=11 // pred_check
          %p259 = pneg %p107
        $region22: #{resnet_block_forward.1} parent=11 // pred_check_branch
          %261 = sbr.rel (%p259) target = $region24
        $region23: #{resnet_block_forward.1} parent=11 // pred_region
          _
        $region24: #{resnet_block_forward.1} parent=11 // pred_fallthru
          _
        // Predicated region
        $region25: #{resnet_block_forward.1} parent=11 // pred_check
          %p262 = pneg %p128
        $region26: #{resnet_block_forward.1} parent=11 // pred_check_branch
          %264 = sbr.rel (%p262) target = $region28
        $region27: #{resnet_block_forward.1} parent=11 // pred_region
          _
        $region28: #{resnet_block_forward.1} parent=11 // pred_fallthru
          _
        // Predicated region
        $region29: #{resnet_block_forward.1} parent=11 // pred_check
          %p265 = pneg %p149
        $region30: #{resnet_block_forward.1} parent=11 // pred_check_branch
          %267 = sbr.rel (%p265) target = $region32
        $region31: #{resnet_block_forward.1} parent=11 // pred_region
          _
        $region32: #{resnet_block_forward.1} parent=11 // pred_fallthru
          _
        // Predicated region
        $region33: #{resnet_block_forward.1} parent=11 // pred_check
          %p268 = pneg %p170
        $region34: #{resnet_block_forward.1} parent=11 // pred_check_branch
          %270 = sbr.rel (%p268) target = $region36
        $region35: #{resnet_block_forward.1} parent=11 // pred_region
          _
        $region36: #{resnet_block_forward.1} parent=11 // pred_fallthru
          _
        // Predicated region
        $region37: #{resnet_block_forward.1} parent=11 // pred_check
          %p271 = pneg %p191
        $region38: #{resnet_block_forward.1} parent=11 // pred_check_branch
          %273 = sbr.rel (%p271) target = $region40
        $region39: #{resnet_block_forward.1} parent=11 // pred_region
          _
        $region40: #{resnet_block_forward.1} parent=11 // pred_fallthru
          _
        // Predicated region
        $region41: #{resnet_block_forward.1} parent=11 // pred_check
          %p274 = pneg %p212
        $region42: #{resnet_block_forward.1} parent=11 // pred_check_branch
          %276 = sbr.rel (%p274) target = $region44
        $region43: #{resnet_block_forward.1} parent=11 // pred_region
          _
        $region44: #{resnet_block_forward.1} parent=11 // pred_fallthru
          _
      $region12: #{resnet_block_forward.1} parent=5 // pred_fallthru
        _
      %p277 = scmp.lt.s32.totalorder %s18, 2
      // Predicated region
      $region45: #{resnet_block_forward.1} parent=5 // pred_check
        %p278 = pneg %p277
      $region46: #{resnet_block_forward.1} parent=5 // pred_check_branch
        %280 = sbr.rel (%p278) target = $region48
      $region47: #{resnet_block_forward.1} parent=5 // pred_region
        // Predicated region
        $region49: #{resnet_block_forward.1} parent=47 // pred_check
          %p281 = pneg %p38
        $region50: #{resnet_block_forward.1} parent=47 // pred_check_branch
          %283 = sbr.rel (%p281) target = $region52
        $region51: #{resnet_block_forward.1} parent=47 // pred_region
          %p284 = scmp.lt.s32.totalorder %s18, 1
          %s285 = scalar_select %p284, %s18, 1
          %s286 = smul.addr %s285, 32
          %s287 = smul.addr %s286, 8
          %s288 = scalar_lea.vmem %s0, %s287
        $region52: #{resnet_block_forward.1} parent=47 // pred_fallthru
          _
      $region48: #{resnet_block_forward.1} parent=5 // pred_fallthru
        _
      %p289 = scmp.le.s32.totalorder 1, %s18
      %p290 = scmp.lt.s32.totalorder %s18, 3
      %p291 = pnand %p289, %p290
      %p292 = pneg %p291
      // Predicated region
      $region53: #{resnet_block_forward.1} parent=5 // pred_check
        _
      $region54: #{resnet_block_forward.1} parent=5 // pred_check_branch
        %294 = sbr.rel (%p291) target = $region56
      $region55: #{resnet_block_forward.1} parent=5 // pred_region
        %s295 = ssub.s32 %s18, 1
        %p296 = scmp.lt.s32.totalorder %s23, 1
        %s297 = scalar_select %p296, %s23, 1
        %s298 = smul.addr %s297, 32
        %s299 = smul.addr %s298, 8
        %s300 = scalar_lea.vmem %s0, %s299
        %p301 = pneg %p44
        %p302 = pneg %p41
        %p303 = pneg %p65
        %p304 = pneg %p62
        %p305 = pneg %p86
        %p306 = pneg %p83
        %p307 = pneg %p107
        %p308 = pneg %p104
        %p309 = pneg %p128
        %p310 = pneg %p125
        %p311 = pneg %p149
        %p312 = pneg %p146
        %p313 = pneg %p170
        %p314 = pneg %p167
        %p315 = pneg %p191
        %p316 = pneg %p188
        %p317 = pneg %p212
        %p318 = pneg %p209
        %p319 = pneg %p238
        %p320 = pneg %p235
        %s321 = sand.u32 %s225, 1
        %s322 = scalar_lea.sflag [#allocation5], %s321
        %s323 = sand.u32 %s225, 1
        %s324 = smul.addr %s323, 256
        %s325 = scalar_lea.vmem [#allocation4], %s324
        %p326 = scmp.lt.s32.totalorder %s23, 1
        %s327 = scalar_select %p326, %s23, 1
        %s328 = smul.addr %s327, 32
        %s329 = smul.addr %s328, 8
        %s330 = scalar_lea.vmem %s0, %s329
        %v332 = vld [vmem:[%s330] sm:$0xff]
        %v333 = vld [vmem:[%s330 + $0x8] sm:$0xff]
        %v334 = vld [vmem:[%s330 + $0x10] sm:$0xff]
        %v335 = vld [vmem:[%s330 + $0x18] sm:$0xff]
        %v336 = vld [vmem:[%s330 + $0x20] sm:$0xff]
        %v337 = vld [vmem:[%s330 + $0x28] sm:$0xff]
        %v338 = vld [vmem:[%s330 + $0x30] sm:$0xff]
        %v339 = vld [vmem:[%s330 + $0x38] sm:$0xff]
        %v340 = vld [vmem:[%s330 + $0x40] sm:$0xff]
        %v341 = vld [vmem:[%s330 + $0x48] sm:$0xff]
        %v342 = vld [vmem:[%s330 + $0x50] sm:$0xff]
        %v343 = vld [vmem:[%s330 + $0x58] sm:$0xff]
        %v344 = vld [vmem:[%s330 + $0x60] sm:$0xff]
        %v345 = vld [vmem:[%s330 + $0x68] sm:$0xff]
        %v346 = vld [vmem:[%s330 + $0x70] sm:$0xff]
        %v347 = vld [vmem:[%s330 + $0x78] sm:$0xff]
        %v348 = vld [vmem:[%s330 + $0x80] sm:$0xff]
        %v349 = vld [vmem:[%s330 + $0x88] sm:$0xff]
        %v350 = vld [vmem:[%s330 + $0x90] sm:$0xff]
        %v351 = vld [vmem:[%s330 + $0x98] sm:$0xff]
        %v352 = vld [vmem:[%s330 + $0xa0] sm:$0xff]
        %v353 = vld [vmem:[%s330 + $0xa8] sm:$0xff]
        %v354 = vld [vmem:[%s330 + $0xb0] sm:$0xff]
        %v355 = vld [vmem:[%s330 + $0xb8] sm:$0xff]
        %v356 = vld [vmem:[%s330 + $0xc0] sm:$0xff]
        %v357 = vld [vmem:[%s330 + $0xc8] sm:$0xff]
        %v358 = vld [vmem:[%s330 + $0xd0] sm:$0xff]
        %v359 = vld [vmem:[%s330 + $0xd8] sm:$0xff]
        %v360 = vld [vmem:[%s330 + $0xe0] sm:$0xff]
        %v361 = vld [vmem:[%s330 + $0xe8] sm:$0xff]
        %v362 = vld [vmem:[%s330 + $0xf0] sm:$0xff]
        %v363 = vld [vmem:[%s330 + $0xf8] sm:$0xff]
        %364 = vst [vmem:[#allocation2] sm:$0xff] 0.0
        %365 = vst [vmem:[#allocation2 + $0x8] sm:$0xff] 0.0
        %366 = vst [vmem:[#allocation2 + $0x10] sm:$0x3] 0.0
        %367 = vst [vmem:[#allocation2 + $0x18] sm:$0xff] 0.0
        %368 = vst [vmem:[#allocation2 + $0x20] sm:$0xff] 0.0
        %369 = vst [vmem:[#allocation2 + $0x28] sm:$0x3] 0.0
        %370 = vst [vmem:[#allocation2 + $0x30] sm:$0xff] 0.0
        %371 = vst [vmem:[#allocation2 + $0x38] sm:$0xff] 0.0
        %372 = vst [vmem:[#allocation2 + $0x40] sm:$0x3] 0.0
        %373 = vst [vmem:[#allocation2 + $0x48] sm:$0xff] 0.0
        %374 = vst [vmem:[#allocation2 + $0x50] sm:$0xff] 0.0
        %375 = vst [vmem:[#allocation2 + $0x58] sm:$0x3] 0.0
        %376 = vst [vmem:[#allocation2 + $0x60] sm:$0xff] 0.0
        %377 = vst [vmem:[#allocation2 + $0x68] sm:$0xff] 0.0
        %378 = vst [vmem:[#allocation2 + $0x70] sm:$0x3] 0.0
        %379 = vst [vmem:[#allocation2 + $0x78] sm:$0xff] 0.0
        %380 = vst [vmem:[#allocation2 + $0x80] sm:$0xff] 0.0
        %381 = vst [vmem:[#allocation2 + $0x88] sm:$0x3] 0.0
        %382 = vst [vmem:[#allocation2 + $0x90] sm:$0xff] 0.0
        %383 = vst [vmem:[#allocation2 + $0x98] sm:$0xff] 0.0
        %384 = vst [vmem:[#allocation2 + $0xa0] sm:$0x3] 0.0
        %385 = vst [vmem:[#allocation2 + $0xa8] sm:$0xff] 0.0
        %386 = vst [vmem:[#allocation2 + $0xb0] sm:$0xff] 0.0
        %387 = vst [vmem:[#allocation2 + $0xb8] sm:$0x3] 0.0
        %388 = vst [vmem:[#allocation2 + $0xc0] sm:$0xff] 0.0
        %389 = vst [vmem:[#allocation2 + $0xc8] sm:$0xff] 0.0
        %390 = vst [vmem:[#allocation2 + $0xd0] sm:$0x3] 0.0
        %391 = vst [vmem:[#allocation2 + $0xd8] sm:$0xff] 0.0
        %392 = vst [vmem:[#allocation2 + $0xe0] sm:$0xff] 0.0
        %393 = vst [vmem:[#allocation2 + $0xe8] sm:$0x3] 0.0
        %394 = vst [vmem:[#allocation2 + $0xf0] sm:$0xff] 0.0
        %395 = vst [vmem:[#allocation2 + $0xf8] sm:$0xff] 0.0
        %396 = vst [vmem:[#allocation2 + $0x100] sm:$0x3] 0.0
        %397 = vst [vmem:[#allocation2 + $0x108] sm:$0xff] 0.0
        %398 = vst [vmem:[#allocation2 + $0x110] sm:$0xff] 0.0
        %399 = vst [vmem:[#allocation2 + $0x118] sm:$0x3] 0.0
        %400 = vst [vmem:[#allocation2 + $0x120] sm:$0xff] 0.0
        %401 = vst [vmem:[#allocation2 + $0x128] sm:$0xff] 0.0
        %402 = vst [vmem:[#allocation2 + $0x130] sm:$0x3] 0.0
        %403 = vst [vmem:[#allocation2 + $0x138] sm:$0xff] 0.0
        %404 = vst [vmem:[#allocation2 + $0x140] sm:$0xff] 0.0
        %405 = vst [vmem:[#allocation2 + $0x148] sm:$0x3] 0.0
        %406 = vst [vmem:[#allocation2 + $0x150] sm:$0xff] 0.0
        %407 = vst [vmem:[#allocation2 + $0x158] sm:$0xff] 0.0
        %408 = vst [vmem:[#allocation2 + $0x160] sm:$0x3] 0.0
        %409 = vst [vmem:[#allocation2 + $0x168] sm:$0xff] 0.0
        %410 = vst [vmem:[#allocation2 + $0x170] sm:$0xff] 0.0
        %411 = vst [vmem:[#allocation2 + $0x178] sm:$0x3] 0.0
        %412 = vst [vmem:[#allocation2 + $0x180] sm:$0xff] 0.0
        %413 = vst [vmem:[#allocation2 + $0x188] sm:$0xff] 0.0
        %414 = vst [vmem:[#allocation2 + $0x190] sm:$0x3] 0.0
        %415 = vst [vmem:[#allocation2 + $0x198] sm:$0xff] 0.0
        %416 = vst [vmem:[#allocation2 + $0x1a0] sm:$0xff] 0.0
        %417 = vst [vmem:[#allocation2 + $0x1a8] sm:$0x3] 0.0
        %s418 = scalar_lea.vmem [#allocation2], 24
        %419 = vst [vmem:[%s418 + $0x1] sm:$0xff] %v332
        %420 = vst [vmem:[%s418 + $0x9] sm:$0xff] %v333
        %421 = vst [vmem:[%s418 + $0x19] sm:$0xff] %v334
        %422 = vst [vmem:[%s418 + $0x21] sm:$0xff] %v335
        %423 = vst [vmem:[%s418 + $0x31] sm:$0xff] %v336
        %424 = vst [vmem:[%s418 + $0x39] sm:$0xff] %v337
        %425 = vst [vmem:[%s418 + $0x49] sm:$0xff] %v338
        %426 = vst [vmem:[%s418 + $0x51] sm:$0xff] %v339
        %427 = vst [vmem:[%s418 + $0x61] sm:$0xff] %v340
        %428 = vst [vmem:[%s418 + $0x69] sm:$0xff] %v341
        %429 = vst [vmem:[%s418 + $0x79] sm:$0xff] %v342
        %430 = vst [vmem:[%s418 + $0x81] sm:$0xff] %v343
        %431 = vst [vmem:[%s418 + $0x91] sm:$0xff] %v344
        %432 = vst [vmem:[%s418 + $0x99] sm:$0xff] %v345
        %433 = vst [vmem:[%s418 + $0xa9] sm:$0xff] %v346
        %434 = vst [vmem:[%s418 + $0xb1] sm:$0xff] %v347
        %435 = vst [vmem:[%s418 + $0xc1] sm:$0xff] %v348
        %436 = vst [vmem:[%s418 + $0xc9] sm:$0xff] %v349
        %437 = vst [vmem:[%s418 + $0xd9] sm:$0xff] %v350
        %438 = vst [vmem:[%s418 + $0xe1] sm:$0xff] %v351
        %439 = vst [vmem:[%s418 + $0xf1] sm:$0xff] %v352
        %440 = vst [vmem:[%s418 + $0xf9] sm:$0xff] %v353
        %441 = vst [vmem:[%s418 + $0x109] sm:$0xff] %v354
        %442 = vst [vmem:[%s418 + $0x111] sm:$0xff] %v355
        %443 = vst [vmem:[%s418 + $0x121] sm:$0xff] %v356
        %444 = vst [vmem:[%s418 + $0x129] sm:$0xff] %v357
        %445 = vst [vmem:[%s418 + $0x139] sm:$0xff] %v358
        %446 = vst [vmem:[%s418 + $0x141] sm:$0xff] %v359
        %447 = vst [vmem:[%s418 + $0x151] sm:$0xff] %v360
        %448 = vst [vmem:[%s418 + $0x159] sm:$0xff] %v361
        %449 = vst [vmem:[%s418 + $0x169] sm:$0xff] %v362
        %450 = vst [vmem:[%s418 + $0x171] sm:$0xff] %v363
        %v451 = vld [vmem:[#allocation2] sm:$0xff]
        %v452 = vld [vmem:[#allocation2 + $0x8] sm:$0xff]
        %v453 = vld [vmem:[#allocation2 + $0x18] sm:$0xff]
        %v454 = vld [vmem:[#allocation2 + $0x20] sm:$0xff]
        %v455 = vld [vmem:[#allocation2 + $0x30] sm:$0xff]
        %v456 = vld [vmem:[#allocation2 + $0x38] sm:$0xff]
        %v457 = vld [vmem:[#allocation2 + $0x48] sm:$0xff]
        %v458 = vld [vmem:[#allocation2 + $0x50] sm:$0xff]
        %v459 = vld [vmem:[#allocation2 + $0x60] sm:$0xff]
        %v460 = vld [vmem:[#allocation2 + $0x68] sm:$0xff]
        %v461 = vld [vmem:[#allocation2 + $0x78] sm:$0xff]
        %v462 = vld [vmem:[#allocation2 + $0x80] sm:$0xff]
        %v463 = vld [vmem:[#allocation2 + $0x90] sm:$0xff]
        %v464 = vld [vmem:[#allocation2 + $0x98] sm:$0xff]
        %v465 = vld [vmem:[#allocation2 + $0xa8] sm:$0xff]
        %v466 = vld [vmem:[#allocation2 + $0xb0] sm:$0xff]
        %v467 = vld [vmem:[#allocation2 + $0xc0] sm:$0xff]
        %v468 = vld [vmem:[#allocation2 + $0xc8] sm:$0xff]
        %v469 = vld [vmem:[#allocation2 + $0xd8] sm:$0xff]
        %v470 = vld [vmem:[#allocation2 + $0xe0] sm:$0xff]
        %v471 = vld [vmem:[#allocation2 + $0xf0] sm:$0xff]
        %v472 = vld [vmem:[#allocation2 + $0xf8] sm:$0xff]
        %v473 = vld [vmem:[#allocation2 + $0x108] sm:$0xff]
        %v474 = vld [vmem:[#allocation2 + $0x110] sm:$0xff]
        %v475 = vld [vmem:[#allocation2 + $0x120] sm:$0xff]
        %v476 = vld [vmem:[#allocation2 + $0x128] sm:$0xff]
        %v477 = vld [vmem:[#allocation2 + $0x138] sm:$0xff]
        %v478 = vld [vmem:[#allocation2 + $0x140] sm:$0xff]
        %v479 = vld [vmem:[#allocation2 + $0x150] sm:$0xff]
        %v480 = vld [vmem:[#allocation2 + $0x158] sm:$0xff]
        %v481 = vld [vmem:[#allocation2 + $0x168] sm:$0xff]
        %v482 = vld [vmem:[#allocation2 + $0x170] sm:$0xff]
        %v483 = vpack.c.bf16 %v452, %v451
        %v484 = vpack.c.bf16 %v454, %v453
        %v485 = vpack.c.bf16 %v456, %v455
        %v486 = vpack.c.bf16 %v458, %v457
        %v487 = vpack.c.bf16 %v460, %v459
        %v488 = vpack.c.bf16 %v462, %v461
        %v489 = vpack.c.bf16 %v464, %v463
        %v490 = vpack.c.bf16 %v466, %v465
        %v491 = vpack.c.bf16 %v468, %v467
        %v492 = vpack.c.bf16 %v470, %v469
        %v493 = vpack.c.bf16 %v472, %v471
        %v494 = vpack.c.bf16 %v474, %v473
        %v495 = vpack.c.bf16 %v476, %v475
        %v496 = vpack.c.bf16 %v478, %v477
        %v497 = vpack.c.bf16 %v480, %v479
        %v498 = vpack.c.bf16 %v482, %v481
        %v499 = vld [vmem:[%s1] sm:$0xf]
        %v500 = vld [vmem:[%s1 + $0x4] sm:$0xf]
        %v501 = vld [vmem:[%s1 + $0x8] sm:$0xf]
        %v502 = vld [vmem:[%s1 + $0xc] sm:$0xf]
        %v503 = vld [vmem:[%s1 + $0x10] sm:$0xf]
        %v504 = vld [vmem:[%s1 + $0x14] sm:$0xf]
        %v505 = vld [vmem:[%s1 + $0x18] sm:$0xf]
        %v506 = vld [vmem:[%s1 + $0x1c] sm:$0xf]
        %v507 = vld [vmem:[%s1 + $0x20] sm:$0xf]
        %v508 = vld [vmem:[%s1 + $0x24] sm:$0xf]
        %v509 = vld [vmem:[%s1 + $0x28] sm:$0xf]
        %v510 = vld [vmem:[%s1 + $0x2c] sm:$0xf]
        %v511 = vld [vmem:[%s1 + $0x30] sm:$0xf]
        %v512 = vld [vmem:[%s1 + $0x34] sm:$0xf]
        %v513 = vld [vmem:[%s1 + $0x38] sm:$0xf]
        %v514 = vld [vmem:[%s1 + $0x3c] sm:$0xf]
        %v515 = vld [vmem:[#allocation2 + $0x1] sm:$0xff]
        %v516 = vld [vmem:[#allocation2 + $0x9] sm:$0xff]
        %v517 = vld [vmem:[#allocation2 + $0x19] sm:$0xff]
        %v518 = vld [vmem:[#allocation2 + $0x21] sm:$0xff]
        %v519 = vld [vmem:[#allocation2 + $0x31] sm:$0xff]
        %v520 = vld [vmem:[#allocation2 + $0x39] sm:$0xff]
        %v521 = vld [vmem:[#allocation2 + $0x49] sm:$0xff]
        %v522 = vld [vmem:[#allocation2 + $0x51] sm:$0xff]
        %v523 = vld [vmem:[#allocation2 + $0x61] sm:$0xff]
        %v524 = vld [vmem:[#allocation2 + $0x69] sm:$0xff]
        %v525 = vld [vmem:[#allocation2 + $0x79] sm:$0xff]
        %v526 = vld [vmem:[#allocation2 + $0x81] sm:$0xff]
        %v527 = vld [vmem:[#allocation2 + $0x91] sm:$0xff]
        %v528 = vld [vmem:[#allocation2 + $0x99] sm:$0xff]
        %v529 = vld [vmem:[#allocation2 + $0xa9] sm:$0xff]
        %v530 = vld [vmem:[#allocation2 + $0xb1] sm:$0xff]
        %v531 = vld [vmem:[#allocation2 + $0xc1] sm:$0xff]
        %v532 = vld [vmem:[#allocation2 + $0xc9] sm:$0xff]
        %v533 = vld [vmem:[#allocation2 + $0xd9] sm:$0xff]
        %v534 = vld [vmem:[#allocation2 + $0xe1] sm:$0xff]
        %v535 = vld [vmem:[#allocation2 + $0xf1] sm:$0xff]
        %v536 = vld [vmem:[#allocation2 + $0xf9] sm:$0xff]
        %v537 = vld [vmem:[#allocation2 + $0x109] sm:$0xff]
        %v538 = vld [vmem:[#allocation2 + $0x111] sm:$0xff]
        %v539 = vld [vmem:[#allocation2 + $0x121] sm:$0xff]
        %v540 = vld [vmem:[#allocation2 + $0x129] sm:$0xff]
        %v541 = vld [vmem:[#allocation2 + $0x139] sm:$0xff]
        %v542 = vld [vmem:[#allocation2 + $0x141] sm:$0xff]
        %v543 = vld [vmem:[#allocation2 + $0x151] sm:$0xff]
        %v544 = vld [vmem:[#allocation2 + $0x159] sm:$0xff]
        %v545 = vld [vmem:[#allocation2 + $0x169] sm:$0xff]
        %v546 = vld [vmem:[#allocation2 + $0x171] sm:$0xff]
        %v547 = vpack.c.bf16 %v516, %v515
        %v548 = vpack.c.bf16 %v518, %v517
        %v549 = vpack.c.bf16 %v520, %v519
        %v550 = vpack.c.bf16 %v522, %v521
        %v551 = vpack.c.bf16 %v524, %v523
        %v552 = vpack.c.bf16 %v526, %v525
        %v553 = vpack.c.bf16 %v528, %v527
        %v554 = vpack.c.bf16 %v530, %v529
        %v555 = vpack.c.bf16 %v532, %v531
        %v556 = vpack.c.bf16 %v534, %v533
        %v557 = vpack.c.bf16 %v536, %v535
        %v558 = vpack.c.bf16 %v538, %v537
        %v559 = vpack.c.bf16 %v540, %v539
        %v560 = vpack.c.bf16 %v542, %v541
        %v561 = vpack.c.bf16 %v544, %v543
        %v562 = vpack.c.bf16 %v546, %v545
        %s563 = scalar_lea.vmem %s1, 64
        %v564 = vld [vmem:[%s563] sm:$0xf]
        %v565 = vld [vmem:[%s563 + $0x4] sm:$0xf]
        %v566 = vld [vmem:[%s563 + $0x8] sm:$0xf]
        %v567 = vld [vmem:[%s563 + $0xc] sm:$0xf]
        %v568 = vld [vmem:[%s563 + $0x10] sm:$0xf]
        %v569 = vld [vmem:[%s563 + $0x14] sm:$0xf]
        %v570 = vld [vmem:[%s563 + $0x18] sm:$0xf]
        %v571 = vld [vmem:[%s563 + $0x1c] sm:$0xf]
        %v572 = vld [vmem:[%s563 + $0x20] sm:$0xf]
        %v573 = vld [vmem:[%s563 + $0x24] sm:$0xf]
        %v574 = vld [vmem:[%s563 + $0x28] sm:$0xf]
        %v575 = vld [vmem:[%s563 + $0x2c] sm:$0xf]
        %v576 = vld [vmem:[%s563 + $0x30] sm:$0xf]
        %v577 = vld [vmem:[%s563 + $0x34] sm:$0xf]
        %v578 = vld [vmem:[%s563 + $0x38] sm:$0xf]
        %v579 = vld [vmem:[%s563 + $0x3c] sm:$0xf]
        %v596 = vunpack.c.l.b16 %v564
        %v597 = vunpack.c.l.b16 %v565
        %v598 = vunpack.c.l.b16 %v566
        %v599 = vunpack.c.l.b16 %v567
        %v600 = vunpack.c.l.b16 %v568
        %v601 = vunpack.c.l.b16 %v569
        %v602 = vunpack.c.l.b16 %v570
        %v603 = vunpack.c.l.b16 %v571
        %v604 = vunpack.c.l.b16 %v572
        %v605 = vunpack.c.l.b16 %v573
        %v606 = vunpack.c.l.b16 %v574
        %v607 = vunpack.c.l.b16 %v575
        %v608 = vunpack.c.l.b16 %v576
        %v609 = vunpack.c.l.b16 %v577
        %v610 = vunpack.c.l.b16 %v578
        %v611 = vunpack.c.l.b16 %v579
        %v612 = vpack.c.b16 %v597, %v596
        %v613 = vpack.c.b16 %v599, %v598
        %v614 = vpack.c.b16 %v601, %v600
        %v615 = vpack.c.b16 %v603, %v602
        %v616 = vpack.c.b16 %v605, %v604
        %v617 = vpack.c.b16 %v607, %v606
        %v618 = vpack.c.b16 %v609, %v608
        %v619 = vpack.c.b16 %v611, %v610
        %628 = vmatprep.subr.bf16.mxu0 0
        %629 = vmatpush1.bf16.msra.mxu0 %v612
        %630 = vmatprep.subr.bf16.mxu0 0
        %631 = vmatpush1.bf16.msra.mxu0 %v613
        %632 = vmatprep.subr.bf16.mxu0 0
        %633 = vmatpush1.bf16.msra.mxu0 %v614
        %634 = vmatprep.subr.bf16.mxu0 0
        %635 = vmatpush1.bf16.msra.mxu0 %v615
        %636 = vmatprep.subr.bf16.mxu0 0
        %637 = vmatpush1.bf16.msra.mxu0 %v616
        %638 = vmatprep.subr.bf16.mxu0 0
        %639 = vmatpush1.bf16.msra.mxu0 %v617
        %640 = vmatprep.subr.bf16.mxu0 0
        %641 = vmatpush1.bf16.msra.mxu0 %v618
        %642 = vmatprep.subr.bf16.mxu0 0
        %643 = vmatpush1.bf16.msra.mxu0 %v619
        %644 = vmatprep.subr.bf16.mxu0 0
        %645 = vmatpush1.bf16.msra.mxu0 0
        %646 = vmatprep.subr.bf16.mxu0 0
        %647 = vmatpush1.bf16.msra.mxu0 0
        %648 = vmatprep.subr.bf16.mxu0 0
        %649 = vmatpush1.bf16.msra.mxu0 0
        %650 = vmatprep.subr.bf16.mxu0 0
        %651 = vmatpush1.bf16.msra.mxu0 0
        %652 = vmatprep.subr.bf16.mxu0 0
        %653 = vmatpush1.bf16.msra.mxu0 0
        %654 = vmatprep.subr.bf16.mxu0 0
        %655 = vmatpush1.bf16.msra.mxu0 0
        %656 = vmatprep.subr.bf16.mxu0 0
        %657 = vmatpush1.bf16.msra.mxu0 0
        %658 = vmatprep.subr.bf16.mxu0 0
        %659 = vmatpush1.bf16.msra.mxu0 0
        %660 = vmatprep.mubr.bf16.mxu0 0
        %661 = vmatmul.mubr.bf16.gmra.mrb[0].mxu0 %v547
        %v662 = vpop.f32.mrb[0].mxu0
        %v663 = vadd.f32 0.0, %v662
        %v664 = vpop.f32.mrb[0].mxu0
        %v665 = vpop.f32.mrb[0].mxu0
        %v666 = vadd.f32 0.0, %v665
        %v667 = vpop.f32.mrb[0].mxu0
        %668 = vmatprep.mubr.bf16.mxu0 0
        %669 = vmatmul.mubr.bf16.gmra.mrb[0].mxu0 %v548
        %v670 = vpop.f32.mrb[0].mxu0
        %v671 = vadd.f32 0.0, %v670
        %v672 = vpop.f32.mrb[0].mxu0
        %v673 = vpop.f32.mrb[0].mxu0
        %v674 = vadd.f32 0.0, %v673
        %v675 = vpop.f32.mrb[0].mxu0
        %676 = vmatprep.mubr.bf16.mxu0 0
        %677 = vmatmul.mubr.bf16.gmra.mrb[0].mxu0 %v549
        %v678 = vpop.f32.mrb[0].mxu0
        %v679 = vadd.f32 0.0, %v678
        %v680 = vpop.f32.mrb[0].mxu0
        %v681 = vpop.f32.mrb[0].mxu0
        %v682 = vadd.f32 0.0, %v681
        %v683 = vpop.f32.mrb[0].mxu0
        %684 = vmatprep.mubr.bf16.mxu0 0
        %685 = vmatmul.mubr.bf16.gmra.mrb[0].mxu0 %v550
        %v686 = vpop.f32.mrb[0].mxu0
        %v687 = vadd.f32 0.0, %v686
        %v688 = vpop.f32.mrb[0].mxu0
        %v689 = vpop.f32.mrb[0].mxu0
        %v690 = vadd.f32 0.0, %v689
        %v691 = vpop.f32.mrb[0].mxu0
        %692 = vmatprep.mubr.bf16.mxu0 0
        %693 = vmatmul.mubr.bf16.gmra.mrb[0].mxu0 %v551
        %v694 = vpop.f32.mrb[0].mxu0
        %v695 = vadd.f32 0.0, %v694
        %v696 = vpop.f32.mrb[0].mxu0
        %v697 = vpop.f32.mrb[0].mxu0
        %v698 = vadd.f32 0.0, %v697
        %v699 = vpop.f32.mrb[0].mxu0
        %700 = vmatprep.mubr.bf16.mxu0 0
        %701 = vmatmul.mubr.bf16.gmra.mrb[0].mxu0 %v552
        %v702 = vpop.f32.mrb[0].mxu0
        %v703 = vadd.f32 0.0, %v702
        %v704 = vpop.f32.mrb[0].mxu0
        %v705 = vpop.f32.mrb[0].mxu0
        %v706 = vadd.f32 0.0, %v705
        %v707 = vpop.f32.mrb[0].mxu0
        %708 = vmatprep.mubr.bf16.mxu0 0
        %709 = vmatmul.mubr.bf16.gmra.mrb[0].mxu0 %v553
        %v710 = vpop.f32.mrb[0].mxu0
        %v711 = vadd.f32 0.0, %v710
        %v712 = vpop.f32.mrb[0].mxu0
        %v713 = vpop.f32.mrb[0].mxu0
        %v714 = vadd.f32 0.0, %v713
        %v715 = vpop.f32.mrb[0].mxu0
        %716 = vmatprep.mubr.bf16.mxu0 0
        %717 = vmatmul.mubr.bf16.gmra.mrb[0].mxu0 %v554
        %v718 = vpop.f32.mrb[0].mxu0
        %v719 = vadd.f32 0.0, %v718
        %v720 = vpop.f32.mrb[0].mxu0
        %v721 = vpop.f32.mrb[0].mxu0
        %v722 = vadd.f32 0.0, %v721
        %v723 = vpop.f32.mrb[0].mxu0
        %724 = vmatprep.mubr.bf16.mxu0 0
        %725 = vmatmul.mubr.bf16.gmra.mrb[0].mxu0 %v555
        %v726 = vpop.f32.mrb[0].mxu0
        %v727 = vadd.f32 0.0, %v726
        %v728 = vpop.f32.mrb[0].mxu0
        %v729 = vpop.f32.mrb[0].mxu0
        %v730 = vadd.f32 0.0, %v729
        %v731 = vpop.f32.mrb[0].mxu0
        %732 = vmatprep.mubr.bf16.mxu0 0
        %733 = vmatmul.mubr.bf16.gmra.mrb[0].mxu0 %v556
        %v734 = vpop.f32.mrb[0].mxu0
        %v735 = vadd.f32 0.0, %v734
        %v736 = vpop.f32.mrb[0].mxu0
        %v737 = vpop.f32.mrb[0].mxu0
        %v738 = vadd.f32 0.0, %v737
        %v739 = vpop.f32.mrb[0].mxu0
        %740 = vmatprep.mubr.bf16.mxu0 0
        %741 = vmatmul.mubr.bf16.gmra.mrb[0].mxu0 %v557
        %v742 = vpop.f32.mrb[0].mxu0
        %v743 = vadd.f32 0.0, %v742
        %v744 = vpop.f32.mrb[0].mxu0
        %v745 = vpop.f32.mrb[0].mxu0
        %v746 = vadd.f32 0.0, %v745
        %v747 = vpop.f32.mrb[0].mxu0
        %748 = vmatprep.mubr.bf16.mxu0 0
        %749 = vmatmul.mubr.bf16.gmra.mrb[0].mxu0 %v558
        %v750 = vpop.f32.mrb[0].mxu0
        %v751 = vadd.f32 0.0, %v750
        %v752 = vpop.f32.mrb[0].mxu0
        %v753 = vpop.f32.mrb[0].mxu0
        %v754 = vadd.f32 0.0, %v753
        %v755 = vpop.f32.mrb[0].mxu0
        %756 = vmatprep.mubr.bf16.mxu0 0
        %757 = vmatmul.mubr.bf16.gmra.mrb[0].mxu0 %v559
        %v758 = vpop.f32.mrb[0].mxu0
        %v759 = vadd.f32 0.0, %v758
        %v760 = vpop.f32.mrb[0].mxu0
        %v761 = vpop.f32.mrb[0].mxu0
        %v762 = vadd.f32 0.0, %v761
        %v763 = vpop.f32.mrb[0].mxu0
        %764 = vmatprep.mubr.bf16.mxu0 0
        %765 = vmatmul.mubr.bf16.gmra.mrb[0].mxu0 %v560
        %v766 = vpop.f32.mrb[0].mxu0
        %v767 = vadd.f32 0.0, %v766
        %v768 = vpop.f32.mrb[0].mxu0
        %v769 = vpop.f32.mrb[0].mxu0
        %v770 = vadd.f32 0.0, %v769
        %v771 = vpop.f32.mrb[0].mxu0
        %772 = vmatprep.mubr.bf16.mxu0 0
        %773 = vmatmul.mubr.bf16.gmra.mrb[0].mxu0 %v561
        %v774 = vpop.f32.mrb[0].mxu0
        %v775 = vadd.f32 0.0, %v774
        %v776 = vpop.f32.mrb[0].mxu0
        %v777 = vpop.f32.mrb[0].mxu0
        %v778 = vadd.f32 0.0, %v777
        %v779 = vpop.f32.mrb[0].mxu0
        %780 = vmatprep.mubr.bf16.mxu0 0
        %781 = vmatmul.mubr.bf16.gmra.mrb[0].mxu0 %v562
        %v782 = vpop.f32.mrb[0].mxu0
        %v783 = vadd.f32 0.0, %v782
        %v784 = vpop.f32.mrb[0].mxu0
        %v785 = vpop.f32.mrb[0].mxu0
        %v786 = vadd.f32 0.0, %v785
        %v787 = vpop.f32.mrb[0].mxu0
        %788 = vdwg.mxu0
        %v805 = vunpack.c.l.b16 %v499
        %v806 = vunpack.c.l.b16 %v500
        %v807 = vunpack.c.l.b16 %v501
        %v808 = vunpack.c.l.b16 %v502
        %v809 = vunpack.c.l.b16 %v503
        %v810 = vunpack.c.l.b16 %v504
        %v811 = vunpack.c.l.b16 %v505
        %v812 = vunpack.c.l.b16 %v506
        %v813 = vunpack.c.l.b16 %v507
        %v814 = vunpack.c.l.b16 %v508
        %v815 = vunpack.c.l.b16 %v509
        %v816 = vunpack.c.l.b16 %v510
        %v817 = vunpack.c.l.b16 %v511
        %v818 = vunpack.c.l.b16 %v512
        %v819 = vunpack.c.l.b16 %v513
        %v820 = vunpack.c.l.b16 %v514
        %v821 = vpack.c.b16 %v806, %v805
        %v822 = vpack.c.b16 %v808, %v807
        %v823 = vpack.c.b16 %v810, %v809
        %v824 = vpack.c.b16 %v812, %v811
        %v825 = vpack.c.b16 %v814, %v813
        %v826 = vpack.c.b16 %v816, %v815
        %v827 = vpack.c.b16 %v818, %v817
        %v828 = vpack.c.b16 %v820, %v819
        %837 = vmatprep.subr.bf16.mxu0 0
        %838 = vmatpush1.bf16.msra.mxu0 %v821
        %839 = vmatprep.subr.bf16.mxu0 0
        %840 = vmatpush1.bf16.msra.mxu0 %v822
        %841 = vmatprep.subr.bf16.mxu0 0
        %842 = vmatpush1.bf16.msra.mxu0 %v823
        %843 = vmatprep.subr.bf16.mxu0 0
        %844 = vmatpush1.bf16.msra.mxu0 %v824
        %845 = vmatprep.subr.bf16.mxu0 0
        %846 = vmatpush1.bf16.msra.mxu0 %v825
        %847 = vmatprep.subr.bf16.mxu0 0
        %848 = vmatpush1.bf16.msra.mxu0 %v826
        %849 = vmatprep.subr.bf16.mxu0 0
        %850 = vmatpush1.bf16.msra.mxu0 %v827
        %851 = vmatprep.subr.bf16.mxu0 0
        %852 = vmatpush1.bf16.msra.mxu0 %v828
        %853 = vmatprep.subr.bf16.mxu0 0
        %854 = vmatpush1.bf16.msra.mxu0 0
        %855 = vmatprep.subr.bf16.mxu0 0
        %856 = vmatpush1.bf16.msra.mxu0 0
        %857 = vmatprep.subr.bf16.mxu0 0
        %858 = vmatpush1.bf16.msra.mxu0 0
        %859 = vmatprep.subr.bf16.mxu0 0
        %860 = vmatpush1.bf16.msra.mxu0 0
        %861 = vmatprep.subr.bf16.mxu0 0
        %862 = vmatpush1.bf16.msra.mxu0 0
        %863 = vmatprep.subr.bf16.mxu0 0
        %864 = vmatpush1.bf16.msra.mxu0 0
        %865 = vmatprep.subr.bf16.mxu0 0
        %866 = vmatpush1.bf16.msra.mxu0 0
        %867 = vmatprep.subr.bf16.mxu0 0
        %868 = vmatpush1.bf16.msra.mxu0 0
        %869 = vmatprep.mubr.bf16.mxu0 0
        %870 = vmatmul.mubr.bf16.gmra.mrb[0].mxu0 %v483
        %v871 = vpop.f32.mrb[0].mxu0
        %v872 = vadd.f32 %v663, %v871
        %v873 = vpop.f32.mrb[0].mxu0
        %v874 = vpop.f32.mrb[0].mxu0
        %v875 = vadd.f32 %v666, %v874
        %v876 = vpop.f32.mrb[0].mxu0
        %877 = vmatprep.mubr.bf16.mxu0 0
        %878 = vmatmul.mubr.bf16.gmra.mrb[0].mxu0 %v484
        %v879 = vpop.f32.mrb[0].mxu0
        %v880 = vadd.f32 %v671, %v879
        %v881 = vpop.f32.mrb[0].mxu0
        %v882 = vpop.f32.mrb[0].mxu0
        %v883 = vadd.f32 %v674, %v882
        %v884 = vpop.f32.mrb[0].mxu0
        %885 = vmatprep.mubr.bf16.mxu0 0
        %886 = vmatmul.mubr.bf16.gmra.mrb[0].mxu0 %v485
        %v887 = vpop.f32.mrb[0].mxu0
        %v888 = vadd.f32 %v679, %v887
        %v889 = vpop.f32.mrb[0].mxu0
        %v890 = vpop.f32.mrb[0].mxu0
        %v891 = vadd.f32 %v682, %v890
        %v892 = vpop.f32.mrb[0].mxu0
        %893 = vmatprep.mubr.bf16.mxu0 0
        %894 = vmatmul.mubr.bf16.gmra.mrb[0].mxu0 %v486
        %v895 = vpop.f32.mrb[0].mxu0
        %v896 = vadd.f32 %v687, %v895
        %v897 = vpop.f32.mrb[0].mxu0
        %v898 = vpop.f32.mrb[0].mxu0
        %v899 = vadd.f32 %v690, %v898
        %v900 = vpop.f32.mrb[0].mxu0
        %901 = vmatprep.mubr.bf16.mxu0 0
        %902 = vmatmul.mubr.bf16.gmra.mrb[0].mxu0 %v487
        %v903 = vpop.f32.mrb[0].mxu0
        %v904 = vadd.f32 %v695, %v903
        %v905 = vpop.f32.mrb[0].mxu0
        %v906 = vpop.f32.mrb[0].mxu0
        %v907 = vadd.f32 %v698, %v906
        %v908 = vpop.f32.mrb[0].mxu0
        %909 = vmatprep.mubr.bf16.mxu0 0
        %910 = vmatmul.mubr.bf16.gmra.mrb[0].mxu0 %v488
        %v911 = vpop.f32.mrb[0].mxu0
        %v912 = vadd.f32 %v703, %v911
        %v913 = vpop.f32.mrb[0].mxu0
        %v914 = vpop.f32.mrb[0].mxu0
        %v915 = vadd.f32 %v706, %v914
        %v916 = vpop.f32.mrb[0].mxu0
        %917 = vmatprep.mubr.bf16.mxu0 0
        %918 = vmatmul.mubr.bf16.gmra.mrb[0].mxu0 %v489
        %v919 = vpop.f32.mrb[0].mxu0
        %v920 = vadd.f32 %v711, %v919
        %v921 = vpop.f32.mrb[0].mxu0
        %v922 = vpop.f32.mrb[0].mxu0
        %v923 = vadd.f32 %v714, %v922
        %v924 = vpop.f32.mrb[0].mxu0
        %925 = vmatprep.mubr.bf16.mxu0 0
        %926 = vmatmul.mubr.bf16.gmra.mrb[0].mxu0 %v490
        %v927 = vpop.f32.mrb[0].mxu0
        %v928 = vadd.f32 %v719, %v927
        %v929 = vpop.f32.mrb[0].mxu0
        %v930 = vpop.f32.mrb[0].mxu0
        %v931 = vadd.f32 %v722, %v930
        %v932 = vpop.f32.mrb[0].mxu0
        %933 = vmatprep.mubr.bf16.mxu0 0
        %934 = vmatmul.mubr.bf16.gmra.mrb[0].mxu0 %v491
        %v935 = vpop.f32.mrb[0].mxu0
        %v936 = vadd.f32 %v727, %v935
        %v937 = vpop.f32.mrb[0].mxu0
        %v938 = vpop.f32.mrb[0].mxu0
        %v939 = vadd.f32 %v730, %v938
        %v940 = vpop.f32.mrb[0].mxu0
        %941 = vmatprep.mubr.bf16.mxu0 0
        %942 = vmatmul.mubr.bf16.gmra.mrb[0].mxu0 %v492
        %v943 = vpop.f32.mrb[0].mxu0
        %v944 = vadd.f32 %v735, %v943
        %v945 = vpop.f32.mrb[0].mxu0
        %v946 = vpop.f32.mrb[0].mxu0
        %v947 = vadd.f32 %v738, %v946
        %v948 = vpop.f32.mrb[0].mxu0
        %949 = vmatprep.mubr.bf16.mxu0 0
        %950 = vmatmul.mubr.bf16.gmra.mrb[0].mxu0 %v493
        %v951 = vpop.f32.mrb[0].mxu0
        %v952 = vadd.f32 %v743, %v951
        %v953 = vpop.f32.mrb[0].mxu0
        %v954 = vpop.f32.mrb[0].mxu0
        %v955 = vadd.f32 %v746, %v954
        %v956 = vpop.f32.mrb[0].mxu0
        %957 = vmatprep.mubr.bf16.mxu0 0
        %958 = vmatmul.mubr.bf16.gmra.mrb[0].mxu0 %v494
        %v959 = vpop.f32.mrb[0].mxu0
        %v960 = vadd.f32 %v751, %v959
        %v961 = vpop.f32.mrb[0].mxu0
        %v962 = vpop.f32.mrb[0].mxu0
        %v963 = vadd.f32 %v754, %v962
        %v964 = vpop.f32.mrb[0].mxu0
        %965 = vmatprep.mubr.bf16.mxu0 0
        %966 = vmatmul.mubr.bf16.gmra.mrb[0].mxu0 %v495
        %v967 = vpop.f32.mrb[0].mxu0
        %v968 = vadd.f32 %v759, %v967
        %v969 = vpop.f32.mrb[0].mxu0
        %v970 = vpop.f32.mrb[0].mxu0
        %v971 = vadd.f32 %v762, %v970
        %v972 = vpop.f32.mrb[0].mxu0
        %973 = vmatprep.mubr.bf16.mxu0 0
        %974 = vmatmul.mubr.bf16.gmra.mrb[0].mxu0 %v496
        %v975 = vpop.f32.mrb[0].mxu0
        %v976 = vadd.f32 %v767, %v975
        %v977 = vpop.f32.mrb[0].mxu0
        %v978 = vpop.f32.mrb[0].mxu0
        %v979 = vadd.f32 %v770, %v978
        %v980 = vpop.f32.mrb[0].mxu0
        %981 = vmatprep.mubr.bf16.mxu0 0
        %982 = vmatmul.mubr.bf16.gmra.mrb[0].mxu0 %v497
        %v983 = vpop.f32.mrb[0].mxu0
        %v984 = vadd.f32 %v775, %v983
        %v985 = vpop.f32.mrb[0].mxu0
        %v986 = vpop.f32.mrb[0].mxu0
        %v987 = vadd.f32 %v778, %v986
        %v988 = vpop.f32.mrb[0].mxu0
        %989 = vmatprep.mubr.bf16.mxu0 0
        %990 = vmatmul.mubr.bf16.gmra.mrb[0].mxu0 %v498
        %v991 = vpop.f32.mrb[0].mxu0
        %v992 = vadd.f32 %v783, %v991
        %v993 = vpop.f32.mrb[0].mxu0
        %v994 = vpop.f32.mrb[0].mxu0
        %v995 = vadd.f32 %v786, %v994
        %v996 = vpop.f32.mrb[0].mxu0
        %997 = vdwg.mxu0
        %v998 = vld [vmem:[#allocation2 + $0x2] sm:$0xff]
        %v999 = vld [vmem:[#allocation2 + $0xa] sm:$0xff]
        %v1000 = vld [vmem:[#allocation2 + $0x1a] sm:$0xff]
        %v1001 = vld [vmem:[#allocation2 + $0x22] sm:$0xff]
        %v1002 = vld [vmem:[#allocation2 + $0x32] sm:$0xff]
        %v1003 = vld [vmem:[#allocation2 + $0x3a] sm:$0xff]
        %v1004 = vld [vmem:[#allocation2 + $0x4a] sm:$0xff]
        %v1005 = vld [vmem:[#allocation2 + $0x52] sm:$0xff]
        %v1006 = vld [vmem:[#allocation2 + $0x62] sm:$0xff]
        %v1007 = vld [vmem:[#allocation2 + $0x6a] sm:$0xff]
        %v1008 = vld [vmem:[#allocation2 + $0x7a] sm:$0xff]
        %v1009 = vld [vmem:[#allocation2 + $0x82] sm:$0xff]
        %v1010 = vld [vmem:[#allocation2 + $0x92] sm:$0xff]
        %v1011 = vld [vmem:[#allocation2 + $0x9a] sm:$0xff]
        %v1012 = vld [vmem:[#allocation2 + $0xaa] sm:$0xff]
        %v1013 = vld [vmem:[#allocation2 + $0xb2] sm:$0xff]
        %v1014 = vld [vmem:[#allocation2 + $0xc2] sm:$0xff]
        %v1015 = vld [vmem:[#allocation2 + $0xca] sm:$0xff]
        %v1016 = vld [vmem:[#allocation2 + $0xda] sm:$0xff]
        %v1017 = vld [vmem:[#allocation2 + $0xe2] sm:$0xff]
        %v1018 = vld [vmem:[#allocation2 + $0xf2] sm:$0xff]
        %v1019 = vld [vmem:[#allocation2 + $0xfa] sm:$0xff]
        %v1020 = vld [vmem:[#allocation2 + $0x10a] sm:$0xff]
        %v1021 = vld [vmem:[#allocation2 + $0x112] sm:$0xff]
        %v1022 = vld [vmem:[#allocation2 + $0x122] sm:$0xff]
        %v1023 = vld [vmem:[#allocation2 + $0x12a] sm:$0xff]
        %v1024 = vld [vmem:[#allocation2 + $0x13a] sm:$0xff]
        %v1025 = vld [vmem:[#allocation2 + $0x142] sm:$0xff]
        %v1026 = vld [vmem:[#allocation2 + $0x152] sm:$0xff]
        %v1027 = vld [vmem:[#allocation2 + $0x15a] sm:$0xff]
        %v1028 = vld [vmem:[#allocation2 + $0x16a] sm:$0xff]
        %v1029 = vld [vmem:[#allocation2 + $0x172] sm:$0xff]
        %v1030 = vpack.c.bf16 %v999, %v998
        %v1031 = vpack.c.bf16 %v1001, %v1000
        %v1032 = vpack.c.bf16 %v1003, %v1002
        %v1033 = vpack.c.bf16 %v1005, %v1004
        %v1034 = vpack.c.bf16 %v1007, %v1006
        %v1035 = vpack.c.bf16 %v1009, %v1008
        %v1036 = vpack.c.bf16 %v1011, %v1010
        %v1037 = vpack.c.bf16 %v1013, %v1012
        %v1038 = vpack.c.bf16 %v1015, %v1014
        %v1039 = vpack.c.bf16 %v1017, %v1016
        %v1040 = vpack.c.bf16 %v1019, %v1018
        %v1041 = vpack.c.bf16 %v1021, %v1020
        %v1042 = vpack.c.bf16 %v1023, %v1022
        %v1043 = vpack.c.bf16 %v1025, %v1024
        %v1044 = vpack.c.bf16 %v1027, %v1026
        %v1045 = vpack.c.bf16 %v1029, %v1028
        %s1046 = scalar_lea.vmem %s1, 128
        %v1047 = vld [vmem:[%s1046] sm:$0xf]
        %v1048 = vld [vmem:[%s1046 + $0x4] sm:$0xf]
        %v1049 = vld [vmem:[%s1046 + $0x8] sm:$0xf]
        %v1050 = vld [vmem:[%s1046 + $0xc] sm:$0xf]
        %v1051 = vld [vmem:[%s1046 + $0x10] sm:$0xf]
        %v1052 = vld [vmem:[%s1046 + $0x14] sm:$0xf]
        %v1053 = vld [vmem:[%s1046 + $0x18] sm:$0xf]
        %v1054 = vld [vmem:[%s1046 + $0x1c] sm:$0xf]
        %v1055 = vld [vmem:[%s1046 + $0x20] sm:$0xf]
        %v1056 = vld [vmem:[%s1046 + $0x24] sm:$0xf]
        %v1057 = vld [vmem:[%s1046 + $0x28] sm:$0xf]
        %v1058 = vld [vmem:[%s1046 + $0x2c] sm:$0xf]
        %v1059 = vld [vmem:[%s1046 + $0x30] sm:$0xf]
        %v1060 = vld [vmem:[%s1046 + $0x34] sm:$0xf]
        %v1061 = vld [vmem:[%s1046 + $0x38] sm:$0xf]
        %v1062 = vld [vmem:[%s1046 + $0x3c] sm:$0xf]
        %v1079 = vunpack.c.l.b16 %v1047
        %v1080 = vunpack.c.l.b16 %v1048
        %v1081 = vunpack.c.l.b16 %v1049
        %v1082 = vunpack.c.l.b16 %v1050
        %v1083 = vunpack.c.l.b16 %v1051
        %v1084 = vunpack.c.l.b16 %v1052
        %v1085 = vunpack.c.l.b16 %v1053
        %v1086 = vunpack.c.l.b16 %v1054
        %v1087 = vunpack.c.l.b16 %v1055
        %v1088 = vunpack.c.l.b16 %v1056
        %v1089 = vunpack.c.l.b16 %v1057
        %v1090 = vunpack.c.l.b16 %v1058
        %v1091 = vunpack.c.l.b16 %v1059
        %v1092 = vunpack.c.l.b16 %v1060
        %v1093 = vunpack.c.l.b16 %v1061
        %v1094 = vunpack.c.l.b16 %v1062
        %v1095 = vpack.c.b16 %v1080, %v1079
        %v1096 = vpack.c.b16 %v1082, %v1081
        %v1097 = vpack.c.b16 %v1084, %v1083
        %v1098 = vpack.c.b16 %v1086, %v1085
        %v1099 = vpack.c.b16 %v1088, %v1087
        %v1100 = vpack.c.b16 %v1090, %v1089
        %v1101 = vpack.c.b16 %v1092, %v1091
        %v1102 = vpack.c.b16 %v1094, %v1093
        %1111 = vmatprep.subr.bf16.mxu0 0
        %1112 = vmatpush1.bf16.msra.mxu0 %v1095
        %1113 = vmatprep.subr.bf16.mxu0 0
        %1114 = vmatpush1.bf16.msra.mxu0 %v1096
        %1115 = vmatprep.subr.bf16.mxu0 0
        %1116 = vmatpush1.bf16.msra.mxu0 %v1097
        %1117 = vmatprep.subr.bf16.mxu0 0
        %1118 = vmatpush1.bf16.msra.mxu0 %v1098
        %1119 = vmatprep.subr.bf16.mxu0 0
        %1120 = vmatpush1.bf16.msra.mxu0 %v1099
        %1121 = vmatprep.subr.bf16.mxu0 0
        %1122 = vmatpush1.bf16.msra.mxu0 %v1100
        %1123 = vmatprep.subr.bf16.mxu0 0
        %1124 = vmatpush1.bf16.msra.mxu0 %v1101
        %1125 = vmatprep.subr.bf16.mxu0 0
        %1126 = vmatpush1.bf16.msra.mxu0 %v1102
        %1127 = vmatprep.subr.bf16.mxu0 0
        %1128 = vmatpush1.bf16.msra.mxu0 0
        %1129 = vmatprep.subr.bf16.mxu0 0
        %1130 = vmatpush1.bf16.msra.mxu0 0
        %1131 = vmatprep.subr.bf16.mxu0 0
        %1132 = vmatpush1.bf16.msra.mxu0 0
        %1133 = vmatprep.subr.bf16.mxu0 0
        %1134 = vmatpush1.bf16.msra.mxu0 0
        %1135 = vmatprep.subr.bf16.mxu0 0
        %1136 = vmatpush1.bf16.msra.mxu0 0
        %1137 = vmatprep.subr.bf16.mxu0 0
        %1138 = vmatpush1.bf16.msra.mxu0 0
        %1139 = vmatprep.subr.bf16.mxu0 0
        %1140 = vmatpush1.bf16.msra.mxu0 0
        %1141 = vmatprep.subr.bf16.mxu0 0
        %1142 = vmatpush1.bf16.msra.mxu0 0
        %1143 = vmatprep.mubr.bf16.mxu0 0
        %1144 = vmatmul.mubr.bf16.gmra.mrb[0].mxu0 %v1030
        %v1145 = vpop.f32.mrb[0].mxu0
        %v1146 = vadd.f32 0.0, %v1145
        %v1147 = vpop.f32.mrb[0].mxu0
        %v1148 = vpop.f32.mrb[0].mxu0
        %v1149 = vadd.f32 0.0, %v1148
        %v1150 = vpop.f32.mrb[0].mxu0
        %1151 = vmatprep.mubr.bf16.mxu0 0
        %1152 = vmatmul.mubr.bf16.gmra.mrb[0].mxu0 %v1031
        %v1153 = vpop.f32.mrb[0].mxu0
        %v1154 = vadd.f32 0.0, %v1153
        %v1155 = vpop.f32.mrb[0].mxu0
        %v1156 = vpop.f32.mrb[0].mxu0
        %v1157 = vadd.f32 0.0, %v1156
        %v1158 = vpop.f32.mrb[0].mxu0
        %1159 = vmatprep.mubr.bf16.mxu0 0
        %1160 = vmatmul.mubr.bf16.gmra.mrb[0].mxu0 %v1032
        %v1161 = vpop.f32.mrb[0].mxu0
        %v1162 = vadd.f32 0.0, %v1161
        %v1163 = vpop.f32.mrb[0].mxu0
        %v1164 = vpop.f32.mrb[0].mxu0
        %v1165 = vadd.f32 0.0, %v1164
        %v1166 = vpop.f32.mrb[0].mxu0
        %1167 = vmatprep.mubr.bf16.mxu0 0
        %1168 = vmatmul.mubr.bf16.gmra.mrb[0].mxu0 %v1033
        %v1169 = vpop.f32.mrb[0].mxu0
        %v1170 = vadd.f32 0.0, %v1169
        %v1171 = vpop.f32.mrb[0].mxu0
        %v1172 = vpop.f32.mrb[0].mxu0
        %v1173 = vadd.f32 0.0, %v1172
        %v1174 = vpop.f32.mrb[0].mxu0
        %1175 = vmatprep.mubr.bf16.mxu0 0
        %1176 = vmatmul.mubr.bf16.gmra.mrb[0].mxu0 %v1034
        %v1177 = vpop.f32.mrb[0].mxu0
        %v1178 = vadd.f32 0.0, %v1177
        %v1179 = vpop.f32.mrb[0].mxu0
        %v1180 = vpop.f32.mrb[0].mxu0
        %v1181 = vadd.f32 0.0, %v1180
        %v1182 = vpop.f32.mrb[0].mxu0
        %1183 = vmatprep.mubr.bf16.mxu0 0
        %1184 = vmatmul.mubr.bf16.gmra.mrb[0].mxu0 %v1035
        %v1185 = vpop.f32.mrb[0].mxu0
        %v1186 = vadd.f32 0.0, %v1185
        %v1187 = vpop.f32.mrb[0].mxu0
        %v1188 = vpop.f32.mrb[0].mxu0
        %v1189 = vadd.f32 0.0, %v1188
        %v1190 = vpop.f32.mrb[0].mxu0
        %1191 = vmatprep.mubr.bf16.mxu0 0
        %1192 = vmatmul.mubr.bf16.gmra.mrb[0].mxu0 %v1036
        %v1193 = vpop.f32.mrb[0].mxu0
        %v1194 = vadd.f32 0.0, %v1193
        %v1195 = vpop.f32.mrb[0].mxu0
        %v1196 = vpop.f32.mrb[0].mxu0
        %v1197 = vadd.f32 0.0, %v1196
        %v1198 = vpop.f32.mrb[0].mxu0
        %1199 = vmatprep.mubr.bf16.mxu0 0
        %1200 = vmatmul.mubr.bf16.gmra.mrb[0].mxu0 %v1037
        %v1201 = vpop.f32.mrb[0].mxu0
        %v1202 = vadd.f32 0.0, %v1201
        %v1203 = vpop.f32.mrb[0].mxu0
        %v1204 = vpop.f32.mrb[0].mxu0
        %v1205 = vadd.f32 0.0, %v1204
        %v1206 = vpop.f32.mrb[0].mxu0
        %1207 = vmatprep.mubr.bf16.mxu0 0
        %1208 = vmatmul.mubr.bf16.gmra.mrb[0].mxu0 %v1038
        %v1209 = vpop.f32.mrb[0].mxu0
        %v1210 = vadd.f32 0.0, %v1209
        %v1211 = vpop.f32.mrb[0].mxu0
        %v1212 = vpop.f32.mrb[0].mxu0
        %v1213 = vadd.f32 0.0, %v1212
        %v1214 = vpop.f32.mrb[0].mxu0
        %1215 = vmatprep.mubr.bf16.mxu0 0
        %1216 = vmatmul.mubr.bf16.gmra.mrb[0].mxu0 %v1039
        %v1217 = vpop.f32.mrb[0].mxu0
        %v1218 = vadd.f32 0.0, %v1217
        %v1219 = vpop.f32.mrb[0].mxu0
        %v1220 = vpop.f32.mrb[0].mxu0
        %v1221 = vadd.f32 0.0, %v1220
        %v1222 = vpop.f32.mrb[0].mxu0
        %1223 = vmatprep.mubr.bf16.mxu0 0
        %1224 = vmatmul.mubr.bf16.gmra.mrb[0].mxu0 %v1040
        %v1225 = vpop.f32.mrb[0].mxu0
        %v1226 = vadd.f32 0.0, %v1225
        %v1227 = vpop.f32.mrb[0].mxu0
        %v1228 = vpop.f32.mrb[0].mxu0
        %v1229 = vadd.f32 0.0, %v1228
        %v1230 = vpop.f32.mrb[0].mxu0
        %1231 = vmatprep.mubr.bf16.mxu0 0
        %1232 = vmatmul.mubr.bf16.gmra.mrb[0].mxu0 %v1041
        %v1233 = vpop.f32.mrb[0].mxu0
        %v1234 = vadd.f32 0.0, %v1233
        %v1235 = vpop.f32.mrb[0].mxu0
        %v1236 = vpop.f32.mrb[0].mxu0
        %v1237 = vadd.f32 0.0, %v1236
        %v1238 = vpop.f32.mrb[0].mxu0
        %1239 = vmatprep.mubr.bf16.mxu0 0
        %1240 = vmatmul.mubr.bf16.gmra.mrb[0].mxu0 %v1042
        %v1241 = vpop.f32.mrb[0].mxu0
        %v1242 = vadd.f32 0.0, %v1241
        %v1243 = vpop.f32.mrb[0].mxu0
        %v1244 = vpop.f32.mrb[0].mxu0
        %v1245 = vadd.f32 0.0, %v1244
        %v1246 = vpop.f32.mrb[0].mxu0
        %1247 = vmatprep.mubr.bf16.mxu0 0
        %1248 = vmatmul.mubr.bf16.gmra.mrb[0].mxu0 %v1043
        %v1249 = vpop.f32.mrb[0].mxu0
        %v1250 = vadd.f32 0.0, %v1249
        %v1251 = vpop.f32.mrb[0].mxu0
        %v1252 = vpop.f32.mrb[0].mxu0
        %v1253 = vadd.f32 0.0, %v1252
        %v1254 = vpop.f32.mrb[0].mxu0
        %1255 = vmatprep.mubr.bf16.mxu0 0
        %1256 = vmatmul.mubr.bf16.gmra.mrb[0].mxu0 %v1044
        %v1257 = vpop.f32.mrb[0].mxu0
        %v1258 = vadd.f32 0.0, %v1257
        %v1259 = vpop.f32.mrb[0].mxu0
        %v1260 = vpop.f32.mrb[0].mxu0
        %v1261 = vadd.f32 0.0, %v1260
        %v1262 = vpop.f32.mrb[0].mxu0
        %1263 = vmatprep.mubr.bf16.mxu0 0
        %1264 = vmatmul.mubr.bf16.gmra.mrb[0].mxu0 %v1045
        %v1265 = vpop.f32.mrb[0].mxu0
        %v1266 = vadd.f32 0.0, %v1265
        %v1267 = vpop.f32.mrb[0].mxu0
        %v1268 = vpop.f32.mrb[0].mxu0
        %v1269 = vadd.f32 0.0, %v1268
        %v1270 = vpop.f32.mrb[0].mxu0
        %1271 = vdwg.mxu0
        %v1272 = vadd.f32 %v872, %v1146
        %v1273 = vadd.f32 %v875, %v1149
        %v1274 = vadd.f32 %v880, %v1154
        %v1275 = vadd.f32 %v883, %v1157
        %v1276 = vadd.f32 %v888, %v1162
        %v1277 = vadd.f32 %v891, %v1165
        %v1278 = vadd.f32 %v896, %v1170
        %v1279 = vadd.f32 %v899, %v1173
        %v1280 = vadd.f32 %v904, %v1178
        %v1281 = vadd.f32 %v907, %v1181
        %v1282 = vadd.f32 %v912, %v1186
        %v1283 = vadd.f32 %v915, %v1189
        %v1284 = vadd.f32 %v920, %v1194
        %v1285 = vadd.f32 %v923, %v1197
        %v1286 = vadd.f32 %v928, %v1202
        %v1287 = vadd.f32 %v931, %v1205
        %v1288 = vadd.f32 %v936, %v1210
        %v1289 = vadd.f32 %v939, %v1213
        %v1290 = vadd.f32 %v944, %v1218
        %v1291 = vadd.f32 %v947, %v1221
        %v1292 = vadd.f32 %v952, %v1226
        %v1293 = vadd.f32 %v955, %v1229
        %v1294 = vadd.f32 %v960, %v1234
        %v1295 = vadd.f32 %v963, %v1237
        %v1296 = vadd.f32 %v968, %v1242
        %v1297 = vadd.f32 %v971, %v1245
        %v1298 = vadd.f32 %v976, %v1250
        %v1299 = vadd.f32 %v979, %v1253
        %v1300 = vadd.f32 %v984, %v1258
        %v1301 = vadd.f32 %v987, %v1261
        %v1302 = vadd.f32 %v992, %v1266
        %v1303 = vadd.f32 %v995, %v1269
        %v1304 = vld [vmem:[%s418] sm:$0xff]
        %v1305 = vld [vmem:[%s418 + $0x8] sm:$0xff]
        %v1306 = vld [vmem:[%s418 + $0x18] sm:$0xff]
        %v1307 = vld [vmem:[%s418 + $0x20] sm:$0xff]
        %v1308 = vld [vmem:[%s418 + $0x30] sm:$0xff]
        %v1309 = vld [vmem:[%s418 + $0x38] sm:$0xff]
        %v1310 = vld [vmem:[%s418 + $0x48] sm:$0xff]
        %v1311 = vld [vmem:[%s418 + $0x50] sm:$0xff]
        %v1312 = vld [vmem:[%s418 + $0x60] sm:$0xff]
        %v1313 = vld [vmem:[%s418 + $0x68] sm:$0xff]
        %v1314 = vld [vmem:[%s418 + $0x78] sm:$0xff]
        %v1315 = vld [vmem:[%s418 + $0x80] sm:$0xff]
        %v1316 = vld [vmem:[%s418 + $0x90] sm:$0xff]
        %v1317 = vld [vmem:[%s418 + $0x98] sm:$0xff]
        %v1318 = vld [vmem:[%s418 + $0xa8] sm:$0xff]
        %v1319 = vld [vmem:[%s418 + $0xb0] sm:$0xff]
        %v1320 = vld [vmem:[%s418 + $0xc0] sm:$0xff]
        %v1321 = vld [vmem:[%s418 + $0xc8] sm:$0xff]
        %v1322 = vld [vmem:[%s418 + $0xd8] sm:$0xff]
        %v1323 = vld [vmem:[%s418 + $0xe0] sm:$0xff]
        %v1324 = vld [vmem:[%s418 + $0xf0] sm:$0xff]
        %v1325 = vld [vmem:[%s418 + $0xf8] sm:$0xff]
        %v1326 = vld [vmem:[%s418 + $0x108] sm:$0xff]
        %v1327 = vld [vmem:[%s418 + $0x110] sm:$0xff]
        %v1328 = vld [vmem:[%s418 + $0x120] sm:$0xff]
        %v1329 = vld [vmem:[%s418 + $0x128] sm:$0xff]
        %v1330 = vld [vmem:[%s418 + $0x138] sm:$0xff]
        %v1331 = vld [vmem:[%s418 + $0x140] sm:$0xff]
        %v1332 = vld [vmem:[%s418 + $0x150] sm:$0xff]
        %v1333 = vld [vmem:[%s418 + $0x158] sm:$0xff]
        %v1334 = vld [vmem:[%s418 + $0x168] sm:$0xff]
        %v1335 = vld [vmem:[%s418 + $0x170] sm:$0xff]
        %v1336 = vpack.c.bf16 %v1305, %v1304
        %v1337 = vpack.c.bf16 %v1307, %v1306
        %v1338 = vpack.c.bf16 %v1309, %v1308
        %v1339 = vpack.c.bf16 %v1311, %v1310
        %v1340 = vpack.c.bf16 %v1313, %v1312
        %v1341 = vpack.c.bf16 %v1315, %v1314
        %v1342 = vpack.c.bf16 %v1317, %v1316
        %v1343 = vpack.c.bf16 %v1319, %v1318
        %v1344 = vpack.c.bf16 %v1321, %v1320
        %v1345 = vpack.c.bf16 %v1323, %v1322
        %v1346 = vpack.c.bf16 %v1325, %v1324
        %v1347 = vpack.c.bf16 %v1327, %v1326
        %v1348 = vpack.c.bf16 %v1329, %v1328
        %v1349 = vpack.c.bf16 %v1331, %v1330
        %v1350 = vpack.c.bf16 %v1333, %v1332
        %v1351 = vpack.c.bf16 %v1335, %v1334
        %s1352 = scalar_lea.vmem %s1, 192
        %v1353 = vld [vmem:[%s1352] sm:$0xf]
        %v1354 = vld [vmem:[%s1352 + $0x4] sm:$0xf]
        %v1355 = vld [vmem:[%s1352 + $0x8] sm:$0xf]
        %v1356 = vld [vmem:[%s1352 + $0xc] sm:$0xf]
        %v1357 = vld [vmem:[%s1352 + $0x10] sm:$0xf]
        %v1358 = vld [vmem:[%s1352 + $0x14] sm:$0xf]
        %v1359 = vld [vmem:[%s1352 + $0x18] sm:$0xf]
        %v1360 = vld [vmem:[%s1352 + $0x1c] sm:$0xf]
        %v1361 = vld [vmem:[%s1352 + $0x20] sm:$0xf]
        %v1362 = vld [vmem:[%s1352 + $0x24] sm:$0xf]
        %v1363 = vld [vmem:[%s1352 + $0x28] sm:$0xf]
        %v1364 = vld [vmem:[%s1352 + $0x2c] sm:$0xf]
        %v1365 = vld [vmem:[%s1352 + $0x30] sm:$0xf]
        %v1366 = vld [vmem:[%s1352 + $0x34] sm:$0xf]
        %v1367 = vld [vmem:[%s1352 + $0x38] sm:$0xf]
        %v1368 = vld [vmem:[%s1352 + $0x3c] sm:$0xf]
        %v1385 = vunpack.c.l.b16 %v1353
        %v1386 = vunpack.c.l.b16 %v1354
        %v1387 = vunpack.c.l.b16 %v1355
        %v1388 = vunpack.c.l.b16 %v1356
        %v1389 = vunpack.c.l.b16 %v1357
        %v1390 = vunpack.c.l.b16 %v1358
        %v1391 = vunpack.c.l.b16 %v1359
        %v1392 = vunpack.c.l.b16 %v1360
        %v1393 = vunpack.c.l.b16 %v1361
        %v1394 = vunpack.c.l.b16 %v1362
        %v1395 = vunpack.c.l.b16 %v1363
        %v1396 = vunpack.c.l.b16 %v1364
        %v1397 = vunpack.c.l.b16 %v1365
        %v1398 = vunpack.c.l.b16 %v1366
        %v1399 = vunpack.c.l.b16 %v1367
        %v1400 = vunpack.c.l.b16 %v1368
        %v1401 = vpack.c.b16 %v1386, %v1385
        %v1402 = vpack.c.b16 %v1388, %v1387
        %v1403 = vpack.c.b16 %v1390, %v1389
        %v1404 = vpack.c.b16 %v1392, %v1391
        %v1405 = vpack.c.b16 %v1394, %v1393
        %v1406 = vpack.c.b16 %v1396, %v1395
        %v1407 = vpack.c.b16 %v1398, %v1397
        %v1408 = vpack.c.b16 %v1400, %v1399
        %1417 = vmatprep.subr.bf16.mxu0 0
        %1418 = vmatpush1.bf16.msra.mxu0 %v1401
        %1419 = vmatprep.subr.bf16.mxu0 0
        %1420 = vmatpush1.bf16.msra.mxu0 %v1402
        %1421 = vmatprep.subr.bf16.mxu0 0
        %1422 = vmatpush1.bf16.msra.mxu0 %v1403
        %1423 = vmatprep.subr.bf16.mxu0 0
        %1424 = vmatpush1.bf16.msra.mxu0 %v1404
        %1425 = vmatprep.subr.bf16.mxu0 0
        %1426 = vmatpush1.bf16.msra.mxu0 %v1405
        %1427 = vmatprep.subr.bf16.mxu0 0
        %1428 = vmatpush1.bf16.msra.mxu0 %v1406
        %1429 = vmatprep.subr.bf16.mxu0 0
        %1430 = vmatpush1.bf16.msra.mxu0 %v1407
        %1431 = vmatprep.subr.bf16.mxu0 0
        %1432 = vmatpush1.bf16.msra.mxu0 %v1408
        %1433 = vmatprep.subr.bf16.mxu0 0
        %1434 = vmatpush1.bf16.msra.mxu0 0
        %1435 = vmatprep.subr.bf16.mxu0 0
        %1436 = vmatpush1.bf16.msra.mxu0 0
        %1437 = vmatprep.subr.bf16.mxu0 0
        %1438 = vmatpush1.bf16.msra.mxu0 0
        %1439 = vmatprep.subr.bf16.mxu0 0
        %1440 = vmatpush1.bf16.msra.mxu0 0
        %1441 = vmatprep.subr.bf16.mxu0 0
        %1442 = vmatpush1.bf16.msra.mxu0 0
        %1443 = vmatprep.subr.bf16.mxu0 0
        %1444 = vmatpush1.bf16.msra.mxu0 0
        %1445 = vmatprep.subr.bf16.mxu0 0
        %1446 = vmatpush1.bf16.msra.mxu0 0
        %1447 = vmatprep.subr.bf16.mxu0 0
        %1448 = vmatpush1.bf16.msra.mxu0 0
        %1449 = vmatprep.mubr.bf16.mxu0 0
        %1450 = vmatmul.mubr.bf16.gmra.mrb[0].mxu0 %v1336
        %v1451 = vpop.f32.mrb[0].mxu0
        %v1452 = vadd.f32 0.0, %v1451
        %v1453 = vpop.f32.mrb[0].mxu0
        %v1454 = vpop.f32.mrb[0].mxu0
        %v1455 = vadd.f32 0.0, %v1454
        %v1456 = vpop.f32.mrb[0].mxu0
        %1457 = vmatprep.mubr.bf16.mxu0 0
        %1458 = vmatmul.mubr.bf16.gmra.mrb[0].mxu0 %v1337
        %v1459 = vpop.f32.mrb[0].mxu0
        %v1460 = vadd.f32 0.0, %v1459
        %v1461 = vpop.f32.mrb[0].mxu0
        %v1462 = vpop.f32.mrb[0].mxu0
        %v1463 = vadd.f32 0.0, %v1462
        %v1464 = vpop.f32.mrb[0].mxu0
        %1465 = vmatprep.mubr.bf16.mxu0 0
        %1466 = vmatmul.mubr.bf16.gmra.mrb[0].mxu0 %v1338
        %v1467 = vpop.f32.mrb[0].mxu0
        %v1468 = vadd.f32 0.0, %v1467
        %v1469 = vpop.f32.mrb[0].mxu0
        %v1470 = vpop.f32.mrb[0].mxu0
        %v1471 = vadd.f32 0.0, %v1470
        %v1472 = vpop.f32.mrb[0].mxu0
        %1473 = vmatprep.mubr.bf16.mxu0 0
        %1474 = vmatmul.mubr.bf16.gmra.mrb[0].mxu0 %v1339
        %v1475 = vpop.f32.mrb[0].mxu0
        %v1476 = vadd.f32 0.0, %v1475
        %v1477 = vpop.f32.mrb[0].mxu0
        %v1478 = vpop.f32.mrb[0].mxu0
        %v1479 = vadd.f32 0.0, %v1478
        %v1480 = vpop.f32.mrb[0].mxu0
        %1481 = vmatprep.mubr.bf16.mxu0 0
        %1482 = vmatmul.mubr.bf16.gmra.mrb[0].mxu0 %v1340
        %v1483 = vpop.f32.mrb[0].mxu0
        %v1484 = vadd.f32 0.0, %v1483
        %v1485 = vpop.f32.mrb[0].mxu0
        %v1486 = vpop.f32.mrb[0].mxu0
        %v1487 = vadd.f32 0.0, %v1486
        %v1488 = vpop.f32.mrb[0].mxu0
        %1489 = vmatprep.mubr.bf16.mxu0 0
        %1490 = vmatmul.mubr.bf16.gmra.mrb[0].mxu0 %v1341
        %v1491 = vpop.f32.mrb[0].mxu0
        %v1492 = vadd.f32 0.0, %v1491
        %v1493 = vpop.f32.mrb[0].mxu0
        %v1494 = vpop.f32.mrb[0].mxu0
        %v1495 = vadd.f32 0.0, %v1494
        %v1496 = vpop.f32.mrb[0].mxu0
        %1497 = vmatprep.mubr.bf16.mxu0 0
        %1498 = vmatmul.mubr.bf16.gmra.mrb[0].mxu0 %v1342
        %v1499 = vpop.f32.mrb[0].mxu0
        %v1500 = vadd.f32 0.0, %v1499
        %v1501 = vpop.f32.mrb[0].mxu0
        %v1502 = vpop.f32.mrb[0].mxu0
        %v1503 = vadd.f32 0.0, %v1502
        %v1504 = vpop.f32.mrb[0].mxu0
        %1505 = vmatprep.mubr.bf16.mxu0 0
        %1506 = vmatmul.mubr.bf16.gmra.mrb[0].mxu0 %v1343
        %v1507 = vpop.f32.mrb[0].mxu0
        %v1508 = vadd.f32 0.0, %v1507
        %v1509 = vpop.f32.mrb[0].mxu0
        %v1510 = vpop.f32.mrb[0].mxu0
        %v1511 = vadd.f32 0.0, %v1510
        %v1512 = vpop.f32.mrb[0].mxu0
        %1513 = vmatprep.mubr.bf16.mxu0 0
        %1514 = vmatmul.mubr.bf16.gmra.mrb[0].mxu0 %v1344
        %v1515 = vpop.f32.mrb[0].mxu0
        %v1516 = vadd.f32 0.0, %v1515
        %v1517 = vpop.f32.mrb[0].mxu0
        %v1518 = vpop.f32.mrb[0].mxu0
        %v1519 = vadd.f32 0.0, %v1518
        %v1520 = vpop.f32.mrb[0].mxu0
        %1521 = vmatprep.mubr.bf16.mxu0 0
        %1522 = vmatmul.mubr.bf16.gmra.mrb[0].mxu0 %v1345
        %v1523 = vpop.f32.mrb[0].mxu0
        %v1524 = vadd.f32 0.0, %v1523
        %v1525 = vpop.f32.mrb[0].mxu0
        %v1526 = vpop.f32.mrb[0].mxu0
        %v1527 = vadd.f32 0.0, %v1526
        %v1528 = vpop.f32.mrb[0].mxu0
        %1529 = vmatprep.mubr.bf16.mxu0 0
        %1530 = vmatmul.mubr.bf16.gmra.mrb[0].mxu0 %v1346
        %v1531 = vpop.f32.mrb[0].mxu0
        %v1532 = vadd.f32 0.0, %v1531
        %v1533 = vpop.f32.mrb[0].mxu0
        %v1534 = vpop.f32.mrb[0].mxu0
        %v1535 = vadd.f32 0.0, %v1534
        %v1536 = vpop.f32.mrb[0].mxu0
        %1537 = vmatprep.mubr.bf16.mxu0 0
        %1538 = vmatmul.mubr.bf16.gmra.mrb[0].mxu0 %v1347
        %v1539 = vpop.f32.mrb[0].mxu0
        %v1540 = vadd.f32 0.0, %v1539
        %v1541 = vpop.f32.mrb[0].mxu0
        %v1542 = vpop.f32.mrb[0].mxu0
        %v1543 = vadd.f32 0.0, %v1542
        %v1544 = vpop.f32.mrb[0].mxu0
        %1545 = vmatprep.mubr.bf16.mxu0 0
        %1546 = vmatmul.mubr.bf16.gmra.mrb[0].mxu0 %v1348
        %v1547 = vpop.f32.mrb[0].mxu0
        %v1548 = vadd.f32 0.0, %v1547
        %v1549 = vpop.f32.mrb[0].mxu0
        %v1550 = vpop.f32.mrb[0].mxu0
        %v1551 = vadd.f32 0.0, %v1550
        %v1552 = vpop.f32.mrb[0].mxu0
        %1553 = vmatprep.mubr.bf16.mxu0 0
        %1554 = vmatmul.mubr.bf16.gmra.mrb[0].mxu0 %v1349
        %v1555 = vpop.f32.mrb[0].mxu0
        %v1556 = vadd.f32 0.0, %v1555
        %v1557 = vpop.f32.mrb[0].mxu0
        %v1558 = vpop.f32.mrb[0].mxu0
        %v1559 = vadd.f32 0.0, %v1558
        %v1560 = vpop.f32.mrb[0].mxu0
        %1561 = vmatprep.mubr.bf16.mxu0 0
        %1562 = vmatmul.mubr.bf16.gmra.mrb[0].mxu0 %v1350
        %v1563 = vpop.f32.mrb[0].mxu0
        %v1564 = vadd.f32 0.0, %v1563
        %v1565 = vpop.f32.mrb[0].mxu0
        %v1566 = vpop.f32.mrb[0].mxu0
        %v1567 = vadd.f32 0.0, %v1566
        %v1568 = vpop.f32.mrb[0].mxu0
        %1569 = vmatprep.mubr.bf16.mxu0 0
        %1570 = vmatmul.mubr.bf16.gmra.mrb[0].mxu0 %v1351
        %v1571 = vpop.f32.mrb[0].mxu0
        %v1572 = vadd.f32 0.0, %v1571
        %v1573 = vpop.f32.mrb[0].mxu0
        %v1574 = vpop.f32.mrb[0].mxu0
        %v1575 = vadd.f32 0.0, %v1574
        %v1576 = vpop.f32.mrb[0].mxu0
        %1577 = vdwg.mxu0
        %v1578 = vadd.f32 %v1272, %v1452
        %v1579 = vadd.f32 %v1273, %v1455
        %v1580 = vadd.f32 %v1274, %v1460
        %v1581 = vadd.f32 %v1275, %v1463
        %v1582 = vadd.f32 %v1276, %v1468
        %v1583 = vadd.f32 %v1277, %v1471
        %v1584 = vadd.f32 %v1278, %v1476
        %v1585 = vadd.f32 %v1279, %v1479
        %v1586 = vadd.f32 %v1280, %v1484
        %v1587 = vadd.f32 %v1281, %v1487
        %v1588 = vadd.f32 %v1282, %v1492
        %v1589 = vadd.f32 %v1283, %v1495
        %v1590 = vadd.f32 %v1284, %v1500
        %v1591 = vadd.f32 %v1285, %v1503
        %v1592 = vadd.f32 %v1286, %v1508
        %v1593 = vadd.f32 %v1287, %v1511
        %v1594 = vadd.f32 %v1288, %v1516
        %v1595 = vadd.f32 %v1289, %v1519
        %v1596 = vadd.f32 %v1290, %v1524
        %v1597 = vadd.f32 %v1291, %v1527
        %v1598 = vadd.f32 %v1292, %v1532
        %v1599 = vadd.f32 %v1293, %v1535
        %v1600 = vadd.f32 %v1294, %v1540
        %v1601 = vadd.f32 %v1295, %v1543
        %v1602 = vadd.f32 %v1296, %v1548
        %v1603 = vadd.f32 %v1297, %v1551
        %v1604 = vadd.f32 %v1298, %v1556
        %v1605 = vadd.f32 %v1299, %v1559
        %v1606 = vadd.f32 %v1300, %v1564
        %v1607 = vadd.f32 %v1301, %v1567
        %v1608 = vadd.f32 %v1302, %v1572
        %v1609 = vadd.f32 %v1303, %v1575
        %v1610 = vld [vmem:[%s418 + $0x1] sm:$0xff]
        %v1611 = vld [vmem:[%s418 + $0x9] sm:$0xff]
        %v1612 = vld [vmem:[%s418 + $0x19] sm:$0xff]
        %v1613 = vld [vmem:[%s418 + $0x21] sm:$0xff]
        %v1614 = vld [vmem:[%s418 + $0x31] sm:$0xff]
        %v1615 = vld [vmem:[%s418 + $0x39] sm:$0xff]
        %v1616 = vld [vmem:[%s418 + $0x49] sm:$0xff]
        %v1617 = vld [vmem:[%s418 + $0x51] sm:$0xff]
        %v1618 = vld [vmem:[%s418 + $0x61] sm:$0xff]
        %v1619 = vld [vmem:[%s418 + $0x69] sm:$0xff]
        %v1620 = vld [vmem:[%s418 + $0x79] sm:$0xff]
        %v1621 = vld [vmem:[%s418 + $0x81] sm:$0xff]
        %v1622 = vld [vmem:[%s418 + $0x91] sm:$0xff]
        %v1623 = vld [vmem:[%s418 + $0x99] sm:$0xff]
        %v1624 = vld [vmem:[%s418 + $0xa9] sm:$0xff]
        %v1625 = vld [vmem:[%s418 + $0xb1] sm:$0xff]
        %v1626 = vld [vmem:[%s418 + $0xc1] sm:$0xff]
        %v1627 = vld [vmem:[%s418 + $0xc9] sm:$0xff]
        %v1628 = vld [vmem:[%s418 + $0xd9] sm:$0xff]
        %v1629 = vld [vmem:[%s418 + $0xe1] sm:$0xff]
        %v1630 = vld [vmem:[%s418 + $0xf1] sm:$0xff]
        %v1631 = vld [vmem:[%s418 + $0xf9] sm:$0xff]
        %v1632 = vld [vmem:[%s418 + $0x109] sm:$0xff]
        %v1633 = vld [vmem:[%s418 + $0x111] sm:$0xff]
        %v1634 = vld [vmem:[%s418 + $0x121] sm:$0xff]
        %v1635 = vld [vmem:[%s418 + $0x129] sm:$0xff]
        %v1636 = vld [vmem:[%s418 + $0x139] sm:$0xff]
        %v1637 = vld [vmem:[%s418 + $0x141] sm:$0xff]
        %v1638 = vld [vmem:[%s418 + $0x151] sm:$0xff]
        %v1639 = vld [vmem:[%s418 + $0x159] sm:$0xff]
        %v1640 = vld [vmem:[%s418 + $0x169] sm:$0xff]
        %v1641 = vld [vmem:[%s418 + $0x171] sm:$0xff]
        %v1642 = vpack.c.bf16 %v1611, %v1610
        %v1643 = vpack.c.bf16 %v1613, %v1612
        %v1644 = vpack.c.bf16 %v1615, %v1614
        %v1645 = vpack.c.bf16 %v1617, %v1616
        %v1646 = vpack.c.bf16 %v1619, %v1618
        %v1647 = vpack.c.bf16 %v1621, %v1620
        %v1648 = vpack.c.bf16 %v1623, %v1622
        %v1649 = vpack.c.bf16 %v1625, %v1624
        %v1650 = vpack.c.bf16 %v1627, %v1626
        %v1651 = vpack.c.bf16 %v1629, %v1628
        %v1652 = vpack.c.bf16 %v1631, %v1630
        %v1653 = vpack.c.bf16 %v1633, %v1632
        %v1654 = vpack.c.bf16 %v1635, %v1634
        %v1655 = vpack.c.bf16 %v1637, %v1636
        %v1656 = vpack.c.bf16 %v1639, %v1638
        %v1657 = vpack.c.bf16 %v1641, %v1640
        %s1658 = scalar_lea.vmem %s1, 256
        %v1659 = vld [vmem:[%s1658] sm:$0xf]
        %v1660 = vld [vmem:[%s1658 + $0x4] sm:$0xf]
        %v1661 = vld [vmem:[%s1658 + $0x8] sm:$0xf]
        %v1662 = vld [vmem:[%s1658 + $0xc] sm:$0xf]
        %v1663 = vld [vmem:[%s1658 + $0x10] sm:$0xf]
        %v1664 = vld [vmem:[%s1658 + $0x14] sm:$0xf]
        %v1665 = vld [vmem:[%s1658 + $0x18] sm:$0xf]
        %v1666 = vld [vmem:[%s1658 + $0x1c] sm:$0xf]
        %v1667 = vld [vmem:[%s1658 + $0x20] sm:$0xf]
        %v1668 = vld [vmem:[%s1658 + $0x24] sm:$0xf]
        %v1669 = vld [vmem:[%s1658 + $0x28] sm:$0xf]
        %v1670 = vld [vmem:[%s1658 + $0x2c] sm:$0xf]
        %v1671 = vld [vmem:[%s1658 + $0x30] sm:$0xf]
        %v1672 = vld [vmem:[%s1658 + $0x34] sm:$0xf]
        %v1673 = vld [vmem:[%s1658 + $0x38] sm:$0xf]
        %v1674 = vld [vmem:[%s1658 + $0x3c] sm:$0xf]
        %v1691 = vunpack.c.l.b16 %v1659
        %v1692 = vunpack.c.l.b16 %v1660
        %v1693 = vunpack.c.l.b16 %v1661
        %v1694 = vunpack.c.l.b16 %v1662
        %v1695 = vunpack.c.l.b16 %v1663
        %v1696 = vunpack.c.l.b16 %v1664
        %v1697 = vunpack.c.l.b16 %v1665
        %v1698 = vunpack.c.l.b16 %v1666
        %v1699 = vunpack.c.l.b16 %v1667
        %v1700 = vunpack.c.l.b16 %v1668
        %v1701 = vunpack.c.l.b16 %v1669
        %v1702 = vunpack.c.l.b16 %v1670
        %v1703 = vunpack.c.l.b16 %v1671
        %v1704 = vunpack.c.l.b16 %v1672
        %v1705 = vunpack.c.l.b16 %v1673
        %v1706 = vunpack.c.l.b16 %v1674
        %v1707 = vpack.c.b16 %v1692, %v1691
        %v1708 = vpack.c.b16 %v1694, %v1693
        %v1709 = vpack.c.b16 %v1696, %v1695
        %v1710 = vpack.c.b16 %v1698, %v1697
        %v1711 = vpack.c.b16 %v1700, %v1699
        %v1712 = vpack.c.b16 %v1702, %v1701
        %v1713 = vpack.c.b16 %v1704, %v1703
        %v1714 = vpack.c.b16 %v1706, %v1705
        %1723 = vmatprep.subr.bf16.mxu0 0
        %1724 = vmatpush1.bf16.msra.mxu0 %v1707
        %1725 = vmatprep.subr.bf16.mxu0 0
        %1726 = vmatpush1.bf16.msra.mxu0 %v1708
        %1727 = vmatprep.subr.bf16.mxu0 0
        %1728 = vmatpush1.bf16.msra.mxu0 %v1709
        %1729 = vmatprep.subr.bf16.mxu0 0
        %1730 = vmatpush1.bf16.msra.mxu0 %v1710
        %1731 = vmatprep.subr.bf16.mxu0 0
        %1732 = vmatpush1.bf16.msra.mxu0 %v1711
        %1733 = vmatprep.subr.bf16.mxu0 0
        %1734 = vmatpush1.bf16.msra.mxu0 %v1712
        %1735 = vmatprep.subr.bf16.mxu0 0
        %1736 = vmatpush1.bf16.msra.mxu0 %v1713
        %1737 = vmatprep.subr.bf16.mxu0 0
        %1738 = vmatpush1.bf16.msra.mxu0 %v1714
        %1739 = vmatprep.subr.bf16.mxu0 0
        %1740 = vmatpush1.bf16.msra.mxu0 0
        %1741 = vmatprep.subr.bf16.mxu0 0
        %1742 = vmatpush1.bf16.msra.mxu0 0
        %1743 = vmatprep.subr.bf16.mxu0 0
        %1744 = vmatpush1.bf16.msra.mxu0 0
        %1745 = vmatprep.subr.bf16.mxu0 0
        %1746 = vmatpush1.bf16.msra.mxu0 0
        %1747 = vmatprep.subr.bf16.mxu0 0
        %1748 = vmatpush1.bf16.msra.mxu0 0
        %1749 = vmatprep.subr.bf16.mxu0 0
        %1750 = vmatpush1.bf16.msra.mxu0 0
        %1751 = vmatprep.subr.bf16.mxu0 0
        %1752 = vmatpush1.bf16.msra.mxu0 0
        %1753 = vmatprep.subr.bf16.mxu0 0
        %1754 = vmatpush1.bf16.msra.mxu0 0
        %1755 = vmatprep.mubr.bf16.mxu0 0
        %1756 = vmatmul.mubr.bf16.gmra.mrb[0].mxu0 %v1642
        %v1757 = vpop.f32.mrb[0].mxu0
        %v1758 = vadd.f32 0.0, %v1757
        %v1759 = vpop.f32.mrb[0].mxu0
        %v1760 = vpop.f32.mrb[0].mxu0
        %v1761 = vadd.f32 0.0, %v1760
        %v1762 = vpop.f32.mrb[0].mxu0
        %1763 = vmatprep.mubr.bf16.mxu0 0
        %1764 = vmatmul.mubr.bf16.gmra.mrb[0].mxu0 %v1643
        %v1765 = vpop.f32.mrb[0].mxu0
        %v1766 = vadd.f32 0.0, %v1765
        %v1767 = vpop.f32.mrb[0].mxu0
        %v1768 = vpop.f32.mrb[0].mxu0
        %v1769 = vadd.f32 0.0, %v1768
        %v1770 = vpop.f32.mrb[0].mxu0
        %1771 = vmatprep.mubr.bf16.mxu0 0
        %1772 = vmatmul.mubr.bf16.gmra.mrb[0].mxu0 %v1644
        %v1773 = vpop.f32.mrb[0].mxu0
        %v1774 = vadd.f32 0.0, %v1773
        %v1775 = vpop.f32.mrb[0].mxu0
        %v1776 = vpop.f32.mrb[0].mxu0
        %v1777 = vadd.f32 0.0, %v1776
        %v1778 = vpop.f32.mrb[0].mxu0
        %1779 = vmatprep.mubr.bf16.mxu0 0
        %1780 = vmatmul.mubr.bf16.gmra.mrb[0].mxu0 %v1645
        %v1781 = vpop.f32.mrb[0].mxu0
        %v1782 = vadd.f32 0.0, %v1781
        %v1783 = vpop.f32.mrb[0].mxu0
        %v1784 = vpop.f32.mrb[0].mxu0
        %v1785 = vadd.f32 0.0, %v1784
        %v1786 = vpop.f32.mrb[0].mxu0
        %1787 = vmatprep.mubr.bf16.mxu0 0
        %1788 = vmatmul.mubr.bf16.gmra.mrb[0].mxu0 %v1646
        %v1789 = vpop.f32.mrb[0].mxu0
        %v1790 = vadd.f32 0.0, %v1789
        %v1791 = vpop.f32.mrb[0].mxu0
        %v1792 = vpop.f32.mrb[0].mxu0
        %v1793 = vadd.f32 0.0, %v1792
        %v1794 = vpop.f32.mrb[0].mxu0
        %1795 = vmatprep.mubr.bf16.mxu0 0
        %1796 = vmatmul.mubr.bf16.gmra.mrb[0].mxu0 %v1647
        %v1797 = vpop.f32.mrb[0].mxu0
        %v1798 = vadd.f32 0.0, %v1797
        %v1799 = vpop.f32.mrb[0].mxu0
        %v1800 = vpop.f32.mrb[0].mxu0
        %v1801 = vadd.f32 0.0, %v1800
        %v1802 = vpop.f32.mrb[0].mxu0
        %1803 = vmatprep.mubr.bf16.mxu0 0
        %1804 = vmatmul.mubr.bf16.gmra.mrb[0].mxu0 %v1648
        %v1805 = vpop.f32.mrb[0].mxu0
        %v1806 = vadd.f32 0.0, %v1805
        %v1807 = vpop.f32.mrb[0].mxu0
        %v1808 = vpop.f32.mrb[0].mxu0
        %v1809 = vadd.f32 0.0, %v1808
        %v1810 = vpop.f32.mrb[0].mxu0
        %1811 = vmatprep.mubr.bf16.mxu0 0
        %1812 = vmatmul.mubr.bf16.gmra.mrb[0].mxu0 %v1649
        %v1813 = vpop.f32.mrb[0].mxu0
        %v1814 = vadd.f32 0.0, %v1813
        %v1815 = vpop.f32.mrb[0].mxu0
        %v1816 = vpop.f32.mrb[0].mxu0
        %v1817 = vadd.f32 0.0, %v1816
        %v1818 = vpop.f32.mrb[0].mxu0
        %1819 = vmatprep.mubr.bf16.mxu0 0
        %1820 = vmatmul.mubr.bf16.gmra.mrb[0].mxu0 %v1650
        %v1821 = vpop.f32.mrb[0].mxu0
        %v1822 = vadd.f32 0.0, %v1821
        %v1823 = vpop.f32.mrb[0].mxu0
        %v1824 = vpop.f32.mrb[0].mxu0
        %v1825 = vadd.f32 0.0, %v1824
        %v1826 = vpop.f32.mrb[0].mxu0
        %1827 = vmatprep.mubr.bf16.mxu0 0
        %1828 = vmatmul.mubr.bf16.gmra.mrb[0].mxu0 %v1651
        %v1829 = vpop.f32.mrb[0].mxu0
        %v1830 = vadd.f32 0.0, %v1829
        %v1831 = vpop.f32.mrb[0].mxu0
        %v1832 = vpop.f32.mrb[0].mxu0
        %v1833 = vadd.f32 0.0, %v1832
        %v1834 = vpop.f32.mrb[0].mxu0
        %1835 = vmatprep.mubr.bf16.mxu0 0
        %1836 = vmatmul.mubr.bf16.gmra.mrb[0].mxu0 %v1652
        %v1837 = vpop.f32.mrb[0].mxu0
        %v1838 = vadd.f32 0.0, %v1837
        %v1839 = vpop.f32.mrb[0].mxu0
        %v1840 = vpop.f32.mrb[0].mxu0
        %v1841 = vadd.f32 0.0, %v1840
        %v1842 = vpop.f32.mrb[0].mxu0
        %1843 = vmatprep.mubr.bf16.mxu0 0
        %1844 = vmatmul.mubr.bf16.gmra.mrb[0].mxu0 %v1653
        %v1845 = vpop.f32.mrb[0].mxu0
        %v1846 = vadd.f32 0.0, %v1845
        %v1847 = vpop.f32.mrb[0].mxu0
        %v1848 = vpop.f32.mrb[0].mxu0
        %v1849 = vadd.f32 0.0, %v1848
        %v1850 = vpop.f32.mrb[0].mxu0
        %1851 = vmatprep.mubr.bf16.mxu0 0
        %1852 = vmatmul.mubr.bf16.gmra.mrb[0].mxu0 %v1654
        %v1853 = vpop.f32.mrb[0].mxu0
        %v1854 = vadd.f32 0.0, %v1853
        %v1855 = vpop.f32.mrb[0].mxu0
        %v1856 = vpop.f32.mrb[0].mxu0
        %v1857 = vadd.f32 0.0, %v1856
        %v1858 = vpop.f32.mrb[0].mxu0
        %1859 = vmatprep.mubr.bf16.mxu0 0
        %1860 = vmatmul.mubr.bf16.gmra.mrb[0].mxu0 %v1655
        %v1861 = vpop.f32.mrb[0].mxu0
        %v1862 = vadd.f32 0.0, %v1861
        %v1863 = vpop.f32.mrb[0].mxu0
        %v1864 = vpop.f32.mrb[0].mxu0
        %v1865 = vadd.f32 0.0, %v1864
        %v1866 = vpop.f32.mrb[0].mxu0
        %1867 = vmatprep.mubr.bf16.mxu0 0
        %1868 = vmatmul.mubr.bf16.gmra.mrb[0].mxu0 %v1656
        %v1869 = vpop.f32.mrb[0].mxu0
        %v1870 = vadd.f32 0.0, %v1869
        %v1871 = vpop.f32.mrb[0].mxu0
        %v1872 = vpop.f32.mrb[0].mxu0
        %v1873 = vadd.f32 0.0, %v1872
        %v1874 = vpop.f32.mrb[0].mxu0
        %1875 = vmatprep.mubr.bf16.mxu0 0
        %1876 = vmatmul.mubr.bf16.gmra.mrb[0].mxu0 %v1657
        %v1877 = vpop.f32.mrb[0].mxu0
        %v1878 = vadd.f32 0.0, %v1877
        %v1879 = vpop.f32.mrb[0].mxu0
        %v1880 = vpop.f32.mrb[0].mxu0
        %v1881 = vadd.f32 0.0, %v1880
        %v1882 = vpop.f32.mrb[0].mxu0
        %1883 = vdwg.mxu0
        %v1884 = vadd.f32 %v1578, %v1758
        %v1885 = vadd.f32 %v1579, %v1761
        %v1886 = vadd.f32 %v1580, %v1766
        %v1887 = vadd.f32 %v1581, %v1769
        %v1888 = vadd.f32 %v1582, %v1774
        %v1889 = vadd.f32 %v1583, %v1777
        %v1890 = vadd.f32 %v1584, %v1782
        %v1891 = vadd.f32 %v1585, %v1785
        %v1892 = vadd.f32 %v1586, %v1790
        %v1893 = vadd.f32 %v1587, %v1793
        %v1894 = vadd.f32 %v1588, %v1798
        %v1895 = vadd.f32 %v1589, %v1801
        %v1896 = vadd.f32 %v1590, %v1806
        %v1897 = vadd.f32 %v1591, %v1809
        %v1898 = vadd.f32 %v1592, %v1814
        %v1899 = vadd.f32 %v1593, %v1817
        %v1900 = vadd.f32 %v1594, %v1822
        %v1901 = vadd.f32 %v1595, %v1825
        %v1902 = vadd.f32 %v1596, %v1830
        %v1903 = vadd.f32 %v1597, %v1833
        %v1904 = vadd.f32 %v1598, %v1838
        %v1905 = vadd.f32 %v1599, %v1841
        %v1906 = vadd.f32 %v1600, %v1846
        %v1907 = vadd.f32 %v1601, %v1849
        %v1908 = vadd.f32 %v1602, %v1854
        %v1909 = vadd.f32 %v1603, %v1857
        %v1910 = vadd.f32 %v1604, %v1862
        %v1911 = vadd.f32 %v1605, %v1865
        %v1912 = vadd.f32 %v1606, %v1870
        %v1913 = vadd.f32 %v1607, %v1873
        %v1914 = vadd.f32 %v1608, %v1878
        %v1915 = vadd.f32 %v1609, %v1881
        %v1916 = vld [vmem:[%s418 + $0x2] sm:$0xff]
        %v1917 = vld [vmem:[%s418 + $0xa] sm:$0xff]
        %v1918 = vld [vmem:[%s418 + $0x1a] sm:$0xff]
        %v1919 = vld [vmem:[%s418 + $0x22] sm:$0xff]
        %v1920 = vld [vmem:[%s418 + $0x32] sm:$0xff]
        %v1921 = vld [vmem:[%s418 + $0x3a] sm:$0xff]
        %v1922 = vld [vmem:[%s418 + $0x4a] sm:$0xff]
        %v1923 = vld [vmem:[%s418 + $0x52] sm:$0xff]
        %v1924 = vld [vmem:[%s418 + $0x62] sm:$0xff]
        %v1925 = vld [vmem:[%s418 + $0x6a] sm:$0xff]
        %v1926 = vld [vmem:[%s418 + $0x7a] sm:$0xff]
        %v1927 = vld [vmem:[%s418 + $0x82] sm:$0xff]
        %v1928 = vld [vmem:[%s418 + $0x92] sm:$0xff]
        %v1929 = vld [vmem:[%s418 + $0x9a] sm:$0xff]
        %v1930 = vld [vmem:[%s418 + $0xaa] sm:$0xff]
        %v1931 = vld [vmem:[%s418 + $0xb2] sm:$0xff]
        %v1932 = vld [vmem:[%s418 + $0xc2] sm:$0xff]
        %v1933 = vld [vmem:[%s418 + $0xca] sm:$0xff]
        %v1934 = vld [vmem:[%s418 + $0xda] sm:$0xff]
        %v1935 = vld [vmem:[%s418 + $0xe2] sm:$0xff]
        %v1936 = vld [vmem:[%s418 + $0xf2] sm:$0xff]
        %v1937 = vld [vmem:[%s418 + $0xfa] sm:$0xff]
        %v1938 = vld [vmem:[%s418 + $0x10a] sm:$0xff]
        %v1939 = vld [vmem:[%s418 + $0x112] sm:$0xff]
        %v1940 = vld [vmem:[%s418 + $0x122] sm:$0xff]
        %v1941 = vld [vmem:[%s418 + $0x12a] sm:$0xff]
        %v1942 = vld [vmem:[%s418 + $0x13a] sm:$0xff]
        %v1943 = vld [vmem:[%s418 + $0x142] sm:$0xff]
        %v1944 = vld [vmem:[%s418 + $0x152] sm:$0xff]
        %v1945 = vld [vmem:[%s418 + $0x15a] sm:$0xff]
        %v1946 = vld [vmem:[%s418 + $0x16a] sm:$0xff]
        %v1947 = vld [vmem:[%s418 + $0x172] sm:$0xff]
        %v1948 = vpack.c.bf16 %v1917, %v1916
        %v1949 = vpack.c.bf16 %v1919, %v1918
        %v1950 = vpack.c.bf16 %v1921, %v1920
        %v1951 = vpack.c.bf16 %v1923, %v1922
        %v1952 = vpack.c.bf16 %v1925, %v1924
        %v1953 = vpack.c.bf16 %v1927, %v1926
        %v1954 = vpack.c.bf16 %v1929, %v1928
        %v1955 = vpack.c.bf16 %v1931, %v1930
        %v1956 = vpack.c.bf16 %v1933, %v1932
        %v1957 = vpack.c.bf16 %v1935, %v1934
        %v1958 = vpack.c.bf16 %v1937, %v1936
        %v1959 = vpack.c.bf16 %v1939, %v1938
        %v1960 = vpack.c.bf16 %v1941, %v1940
        %v1961 = vpack.c.bf16 %v1943, %v1942
        %v1962 = vpack.c.bf16 %v1945, %v1944
        %v1963 = vpack.c.bf16 %v1947, %v1946
        %s1964 = scalar_lea.vmem %s1, 320
        %v1965 = vld [vmem:[%s1964] sm:$0xf]
        %v1966 = vld [vmem:[%s1964 + $0x4] sm:$0xf]
        %v1967 = vld [vmem:[%s1964 + $0x8] sm:$0xf]
        %v1968 = vld [vmem:[%s1964 + $0xc] sm:$0xf]
        %v1969 = vld [vmem:[%s1964 + $0x10] sm:$0xf]
        %v1970 = vld [vmem:[%s1964 + $0x14] sm:$0xf]
        %v1971 = vld [vmem:[%s1964 + $0x18] sm:$0xf]
        %v1972 = vld [vmem:[%s1964 + $0x1c] sm:$0xf]
        %v1973 = vld [vmem:[%s1964 + $0x20] sm:$0xf]
        %v1974 = vld [vmem:[%s1964 + $0x24] sm:$0xf]
        %v1975 = vld [vmem:[%s1964 + $0x28] sm:$0xf]
        %v1976 = vld [vmem:[%s1964 + $0x2c] sm:$0xf]
        %v1977 = vld [vmem:[%s1964 + $0x30] sm:$0xf]
        %v1978 = vld [vmem:[%s1964 + $0x34] sm:$0xf]
        %v1979 = vld [vmem:[%s1964 + $0x38] sm:$0xf]
        %v1980 = vld [vmem:[%s1964 + $0x3c] sm:$0xf]
        %v1997 = vunpack.c.l.b16 %v1965
        %v1998 = vunpack.c.l.b16 %v1966
        %v1999 = vunpack.c.l.b16 %v1967
        %v2000 = vunpack.c.l.b16 %v1968
        %v2001 = vunpack.c.l.b16 %v1969
        %v2002 = vunpack.c.l.b16 %v1970
        %v2003 = vunpack.c.l.b16 %v1971
        %v2004 = vunpack.c.l.b16 %v1972
        %v2005 = vunpack.c.l.b16 %v1973
        %v2006 = vunpack.c.l.b16 %v1974
        %v2007 = vunpack.c.l.b16 %v1975
        %v2008 = vunpack.c.l.b16 %v1976
        %v2009 = vunpack.c.l.b16 %v1977
        %v2010 = vunpack.c.l.b16 %v1978
        %v2011 = vunpack.c.l.b16 %v1979
        %v2012 = vunpack.c.l.b16 %v1980
        %v2013 = vpack.c.b16 %v1998, %v1997
        %v2014 = vpack.c.b16 %v2000, %v1999
        %v2015 = vpack.c.b16 %v2002, %v2001
        %v2016 = vpack.c.b16 %v2004, %v2003
        %v2017 = vpack.c.b16 %v2006, %v2005
        %v2018 = vpack.c.b16 %v2008, %v2007
        %v2019 = vpack.c.b16 %v2010, %v2009
        %v2020 = vpack.c.b16 %v2012, %v2011
        %2029 = vmatprep.subr.bf16.mxu0 0
        %2030 = vmatpush1.bf16.msra.mxu0 %v2013
        %2031 = vmatprep.subr.bf16.mxu0 0
        %2032 = vmatpush1.bf16.msra.mxu0 %v2014
        %2033 = vmatprep.subr.bf16.mxu0 0
        %2034 = vmatpush1.bf16.msra.mxu0 %v2015
        %2035 = vmatprep.subr.bf16.mxu0 0
        %2036 = vmatpush1.bf16.msra.mxu0 %v2016
        %2037 = vmatprep.subr.bf16.mxu0 0
        %2038 = vmatpush1.bf16.msra.mxu0 %v2017
        %2039 = vmatprep.subr.bf16.mxu0 0
        %2040 = vmatpush1.bf16.msra.mxu0 %v2018
        %2041 = vmatprep.subr.bf16.mxu0 0
        %2042 = vmatpush1.bf16.msra.mxu0 %v2019
        %2043 = vmatprep.subr.bf16.mxu0 0
        %2044 = vmatpush1.bf16.msra.mxu0 %v2020
        %2045 = vmatprep.subr.bf16.mxu0 0
        %2046 = vmatpush1.bf16.msra.mxu0 0
        %2047 = vmatprep.subr.bf16.mxu0 0
        %2048 = vmatpush1.bf16.msra.mxu0 0
        %2049 = vmatprep.subr.bf16.mxu0 0
        %2050 = vmatpush1.bf16.msra.mxu0 0
        %2051 = vmatprep.subr.bf16.mxu0 0
        %2052 = vmatpush1.bf16.msra.mxu0 0
        %2053 = vmatprep.subr.bf16.mxu0 0
        %2054 = vmatpush1.bf16.msra.mxu0 0
        %2055 = vmatprep.subr.bf16.mxu0 0
        %2056 = vmatpush1.bf16.msra.mxu0 0
        %2057 = vmatprep.subr.bf16.mxu0 0
        %2058 = vmatpush1.bf16.msra.mxu0 0
        %2059 = vmatprep.subr.bf16.mxu0 0
        %2060 = vmatpush1.bf16.msra.mxu0 0
        %2061 = vmatprep.mubr.bf16.mxu0 0
        %2062 = vmatmul.mubr.bf16.gmra.mrb[0].mxu0 %v1948
        %v2063 = vpop.f32.mrb[0].mxu0
        %v2064 = vadd.f32 0.0, %v2063
        %v2065 = vpop.f32.mrb[0].mxu0
        %v2066 = vpop.f32.mrb[0].mxu0
        %v2067 = vadd.f32 0.0, %v2066
        %v2068 = vpop.f32.mrb[0].mxu0
        %2069 = vmatprep.mubr.bf16.mxu0 0
        %2070 = vmatmul.mubr.bf16.gmra.mrb[0].mxu0 %v1949
        %v2071 = vpop.f32.mrb[0].mxu0
        %v2072 = vadd.f32 0.0, %v2071
        %v2073 = vpop.f32.mrb[0].mxu0
        %v2074 = vpop.f32.mrb[0].mxu0
        %v2075 = vadd.f32 0.0, %v2074
        %v2076 = vpop.f32.mrb[0].mxu0
        %2077 = vmatprep.mubr.bf16.mxu0 0
        %2078 = vmatmul.mubr.bf16.gmra.mrb[0].mxu0 %v1950
        %v2079 = vpop.f32.mrb[0].mxu0
        %v2080 = vadd.f32 0.0, %v2079
        %v2081 = vpop.f32.mrb[0].mxu0
        %v2082 = vpop.f32.mrb[0].mxu0
        %v2083 = vadd.f32 0.0, %v2082
        %v2084 = vpop.f32.mrb[0].mxu0
        %2085 = vmatprep.mubr.bf16.mxu0 0
        %2086 = vmatmul.mubr.bf16.gmra.mrb[0].mxu0 %v1951
        %v2087 = vpop.f32.mrb[0].mxu0
        %v2088 = vadd.f32 0.0, %v2087
        %v2089 = vpop.f32.mrb[0].mxu0
        %v2090 = vpop.f32.mrb[0].mxu0
        %v2091 = vadd.f32 0.0, %v2090
        %v2092 = vpop.f32.mrb[0].mxu0
        %2093 = vmatprep.mubr.bf16.mxu0 0
        %2094 = vmatmul.mubr.bf16.gmra.mrb[0].mxu0 %v1952
        %v2095 = vpop.f32.mrb[0].mxu0
        %v2096 = vadd.f32 0.0, %v2095
        %v2097 = vpop.f32.mrb[0].mxu0
        %v2098 = vpop.f32.mrb[0].mxu0
        %v2099 = vadd.f32 0.0, %v2098
        %v2100 = vpop.f32.mrb[0].mxu0
        %2101 = vmatprep.mubr.bf16.mxu0 0
        %2102 = vmatmul.mubr.bf16.gmra.mrb[0].mxu0 %v1953
        %v2103 = vpop.f32.mrb[0].mxu0
        %v2104 = vadd.f32 0.0, %v2103
        %v2105 = vpop.f32.mrb[0].mxu0
        %v2106 = vpop.f32.mrb[0].mxu0
        %v2107 = vadd.f32 0.0, %v2106
        %v2108 = vpop.f32.mrb[0].mxu0
        %2109 = vmatprep.mubr.bf16.mxu0 0
        %2110 = vmatmul.mubr.bf16.gmra.mrb[0].mxu0 %v1954
        %v2111 = vpop.f32.mrb[0].mxu0
        %v2112 = vadd.f32 0.0, %v2111
        %v2113 = vpop.f32.mrb[0].mxu0
        %v2114 = vpop.f32.mrb[0].mxu0
        %v2115 = vadd.f32 0.0, %v2114
        %v2116 = vpop.f32.mrb[0].mxu0
        %2117 = vmatprep.mubr.bf16.mxu0 0
        %2118 = vmatmul.mubr.bf16.gmra.mrb[0].mxu0 %v1955
        %v2119 = vpop.f32.mrb[0].mxu0
        %v2120 = vadd.f32 0.0, %v2119
        %v2121 = vpop.f32.mrb[0].mxu0
        %v2122 = vpop.f32.mrb[0].mxu0
        %v2123 = vadd.f32 0.0, %v2122
        %v2124 = vpop.f32.mrb[0].mxu0
        %2125 = vmatprep.mubr.bf16.mxu0 0
        %2126 = vmatmul.mubr.bf16.gmra.mrb[0].mxu0 %v1956
        %v2127 = vpop.f32.mrb[0].mxu0
        %v2128 = vadd.f32 0.0, %v2127
        %v2129 = vpop.f32.mrb[0].mxu0
        %v2130 = vpop.f32.mrb[0].mxu0
        %v2131 = vadd.f32 0.0, %v2130
        %v2132 = vpop.f32.mrb[0].mxu0
        %2133 = vmatprep.mubr.bf16.mxu0 0
        %2134 = vmatmul.mubr.bf16.gmra.mrb[0].mxu0 %v1957
        %v2135 = vpop.f32.mrb[0].mxu0
        %v2136 = vadd.f32 0.0, %v2135
        %v2137 = vpop.f32.mrb[0].mxu0
        %v2138 = vpop.f32.mrb[0].mxu0
        %v2139 = vadd.f32 0.0, %v2138
        %v2140 = vpop.f32.mrb[0].mxu0
        %2141 = vmatprep.mubr.bf16.mxu0 0
        %2142 = vmatmul.mubr.bf16.gmra.mrb[0].mxu0 %v1958
        %v2143 = vpop.f32.mrb[0].mxu0
        %v2144 = vadd.f32 0.0, %v2143
        %v2145 = vpop.f32.mrb[0].mxu0
        %v2146 = vpop.f32.mrb[0].mxu0
        %v2147 = vadd.f32 0.0, %v2146
        %v2148 = vpop.f32.mrb[0].mxu0
        %2149 = vmatprep.mubr.bf16.mxu0 0
        %2150 = vmatmul.mubr.bf16.gmra.mrb[0].mxu0 %v1959
        %v2151 = vpop.f32.mrb[0].mxu0
        %v2152 = vadd.f32 0.0, %v2151
        %v2153 = vpop.f32.mrb[0].mxu0
        %v2154 = vpop.f32.mrb[0].mxu0
        %v2155 = vadd.f32 0.0, %v2154
        %v2156 = vpop.f32.mrb[0].mxu0
        %2157 = vmatprep.mubr.bf16.mxu0 0
        %2158 = vmatmul.mubr.bf16.gmra.mrb[0].mxu0 %v1960
        %v2159 = vpop.f32.mrb[0].mxu0
        %v2160 = vadd.f32 0.0, %v2159
        %v2161 = vpop.f32.mrb[0].mxu0
        %v2162 = vpop.f32.mrb[0].mxu0
        %v2163 = vadd.f32 0.0, %v2162
        %v2164 = vpop.f32.mrb[0].mxu0
        %2165 = vmatprep.mubr.bf16.mxu0 0
        %2166 = vmatmul.mubr.bf16.gmra.mrb[0].mxu0 %v1961
        %v2167 = vpop.f32.mrb[0].mxu0
        %v2168 = vadd.f32 0.0, %v2167
        %v2169 = vpop.f32.mrb[0].mxu0
        %v2170 = vpop.f32.mrb[0].mxu0
        %v2171 = vadd.f32 0.0, %v2170
        %v2172 = vpop.f32.mrb[0].mxu0
        %2173 = vmatprep.mubr.bf16.mxu0 0
        %2174 = vmatmul.mubr.bf16.gmra.mrb[0].mxu0 %v1962
        %v2175 = vpop.f32.mrb[0].mxu0
        %v2176 = vadd.f32 0.0, %v2175
        %v2177 = vpop.f32.mrb[0].mxu0
        %v2178 = vpop.f32.mrb[0].mxu0
        %v2179 = vadd.f32 0.0, %v2178
        %v2180 = vpop.f32.mrb[0].mxu0
        %2181 = vmatprep.mubr.bf16.mxu0 0
        %2182 = vmatmul.mubr.bf16.gmra.mrb[0].mxu0 %v1963
        %v2183 = vpop.f32.mrb[0].mxu0
        %v2184 = vadd.f32 0.0, %v2183
        %v2185 = vpop.f32.mrb[0].mxu0
        %v2186 = vpop.f32.mrb[0].mxu0
        %v2187 = vadd.f32 0.0, %v2186
        %v2188 = vpop.f32.mrb[0].mxu0
        %2189 = vdwg.mxu0
        %v2190 = vadd.f32 %v1884, %v2064
        %v2191 = vadd.f32 %v1885, %v2067
        %v2192 = vadd.f32 %v1886, %v2072
        %v2193 = vadd.f32 %v1887, %v2075
        %v2194 = vadd.f32 %v1888, %v2080
        %v2195 = vadd.f32 %v1889, %v2083
        %v2196 = vadd.f32 %v1890, %v2088
        %v2197 = vadd.f32 %v1891, %v2091
        %v2198 = vadd.f32 %v1892, %v2096
        %v2199 = vadd.f32 %v1893, %v2099
        %v2200 = vadd.f32 %v1894, %v2104
        %v2201 = vadd.f32 %v1895, %v2107
        %v2202 = vadd.f32 %v1896, %v2112
        %v2203 = vadd.f32 %v1897, %v2115
        %v2204 = vadd.f32 %v1898, %v2120
        %v2205 = vadd.f32 %v1899, %v2123
        %v2206 = vadd.f32 %v1900, %v2128
        %v2207 = vadd.f32 %v1901, %v2131
        %v2208 = vadd.f32 %v1902, %v2136
        %v2209 = vadd.f32 %v1903, %v2139
        %v2210 = vadd.f32 %v1904, %v2144
        %v2211 = vadd.f32 %v1905, %v2147
        %v2212 = vadd.f32 %v1906, %v2152
        %v2213 = vadd.f32 %v1907, %v2155
        %v2214 = vadd.f32 %v1908, %v2160
        %v2215 = vadd.f32 %v1909, %v2163
        %v2216 = vadd.f32 %v1910, %v2168
        %v2217 = vadd.f32 %v1911, %v2171
        %v2218 = vadd.f32 %v1912, %v2176
        %v2219 = vadd.f32 %v1913, %v2179
        %v2220 = vadd.f32 %v1914, %v2184
        %v2221 = vadd.f32 %v1915, %v2187
        %s2222 = scalar_lea.vmem [#allocation2], 48
        %v2223 = vld [vmem:[%s2222] sm:$0xff]
        %v2224 = vld [vmem:[%s2222 + $0x8] sm:$0xff]
        %v2225 = vld [vmem:[%s2222 + $0x18] sm:$0xff]
        %v2226 = vld [vmem:[%s2222 + $0x20] sm:$0xff]
        %v2227 = vld [vmem:[%s2222 + $0x30] sm:$0xff]
        %v2228 = vld [vmem:[%s2222 + $0x38] sm:$0xff]
        %v2229 = vld [vmem:[%s2222 + $0x48] sm:$0xff]
        %v2230 = vld [vmem:[%s2222 + $0x50] sm:$0xff]
        %v2231 = vld [vmem:[%s2222 + $0x60] sm:$0xff]
        %v2232 = vld [vmem:[%s2222 + $0x68] sm:$0xff]
        %v2233 = vld [vmem:[%s2222 + $0x78] sm:$0xff]
        %v2234 = vld [vmem:[%s2222 + $0x80] sm:$0xff]
        %v2235 = vld [vmem:[%s2222 + $0x90] sm:$0xff]
        %v2236 = vld [vmem:[%s2222 + $0x98] sm:$0xff]
        %v2237 = vld [vmem:[%s2222 + $0xa8] sm:$0xff]
        %v2238 = vld [vmem:[%s2222 + $0xb0] sm:$0xff]
        %v2239 = vld [vmem:[%s2222 + $0xc0] sm:$0xff]
        %v2240 = vld [vmem:[%s2222 + $0xc8] sm:$0xff]
        %v2241 = vld [vmem:[%s2222 + $0xd8] sm:$0xff]
        %v2242 = vld [vmem:[%s2222 + $0xe0] sm:$0xff]
        %v2243 = vld [vmem:[%s2222 + $0xf0] sm:$0xff]
        %v2244 = vld [vmem:[%s2222 + $0xf8] sm:$0xff]
        %v2245 = vld [vmem:[%s2222 + $0x108] sm:$0xff]
        %v2246 = vld [vmem:[%s2222 + $0x110] sm:$0xff]
        %v2247 = vld [vmem:[%s2222 + $0x120] sm:$0xff]
        %v2248 = vld [vmem:[%s2222 + $0x128] sm:$0xff]
        %v2249 = vld [vmem:[%s2222 + $0x138] sm:$0xff]
        %v2250 = vld [vmem:[%s2222 + $0x140] sm:$0xff]
        %v2251 = vld [vmem:[%s2222 + $0x150] sm:$0xff]
        %v2252 = vld [vmem:[%s2222 + $0x158] sm:$0xff]
        %v2253 = vld [vmem:[%s2222 + $0x168] sm:$0xff]
        %v2254 = vld [vmem:[%s2222 + $0x170] sm:$0xff]
        %v2255 = vpack.c.bf16 %v2224, %v2223
        %v2256 = vpack.c.bf16 %v2226, %v2225
        %v2257 = vpack.c.bf16 %v2228, %v2227
        %v2258 = vpack.c.bf16 %v2230, %v2229
        %v2259 = vpack.c.bf16 %v2232, %v2231
        %v2260 = vpack.c.bf16 %v2234, %v2233
        %v2261 = vpack.c.bf16 %v2236, %v2235
        %v2262 = vpack.c.bf16 %v2238, %v2237
        %v2263 = vpack.c.bf16 %v2240, %v2239
        %v2264 = vpack.c.bf16 %v2242, %v2241
        %v2265 = vpack.c.bf16 %v2244, %v2243
        %v2266 = vpack.c.bf16 %v2246, %v2245
        %v2267 = vpack.c.bf16 %v2248, %v2247
        %v2268 = vpack.c.bf16 %v2250, %v2249
        %v2269 = vpack.c.bf16 %v2252, %v2251
        %v2270 = vpack.c.bf16 %v2254, %v2253
        %s2271 = scalar_lea.vmem %s1, 384
        %v2272 = vld [vmem:[%s2271] sm:$0xf]
        %v2273 = vld [vmem:[%s2271 + $0x4] sm:$0xf]
        %v2274 = vld [vmem:[%s2271 + $0x8] sm:$0xf]
        %v2275 = vld [vmem:[%s2271 + $0xc] sm:$0xf]
        %v2276 = vld [vmem:[%s2271 + $0x10] sm:$0xf]
        %v2277 = vld [vmem:[%s2271 + $0x14] sm:$0xf]
        %v2278 = vld [vmem:[%s2271 + $0x18] sm:$0xf]
        %v2279 = vld [vmem:[%s2271 + $0x1c] sm:$0xf]
        %v2280 = vld [vmem:[%s2271 + $0x20] sm:$0xf]
        %v2281 = vld [vmem:[%s2271 + $0x24] sm:$0xf]
        %v2282 = vld [vmem:[%s2271 + $0x28] sm:$0xf]
        %v2283 = vld [vmem:[%s2271 + $0x2c] sm:$0xf]
        %v2284 = vld [vmem:[%s2271 + $0x30] sm:$0xf]
        %v2285 = vld [vmem:[%s2271 + $0x34] sm:$0xf]
        %v2286 = vld [vmem:[%s2271 + $0x38] sm:$0xf]
        %v2287 = vld [vmem:[%s2271 + $0x3c] sm:$0xf]
        %v2304 = vunpack.c.l.b16 %v2272
        %v2305 = vunpack.c.l.b16 %v2273
        %v2306 = vunpack.c.l.b16 %v2274
        %v2307 = vunpack.c.l.b16 %v2275
        %v2308 = vunpack.c.l.b16 %v2276
        %v2309 = vunpack.c.l.b16 %v2277
        %v2310 = vunpack.c.l.b16 %v2278
        %v2311 = vunpack.c.l.b16 %v2279
        %v2312 = vunpack.c.l.b16 %v2280
        %v2313 = vunpack.c.l.b16 %v2281
        %v2314 = vunpack.c.l.b16 %v2282
        %v2315 = vunpack.c.l.b16 %v2283
        %v2316 = vunpack.c.l.b16 %v2284
        %v2317 = vunpack.c.l.b16 %v2285
        %v2318 = vunpack.c.l.b16 %v2286
        %v2319 = vunpack.c.l.b16 %v2287
        %v2320 = vpack.c.b16 %v2305, %v2304
        %v2321 = vpack.c.b16 %v2307, %v2306
        %v2322 = vpack.c.b16 %v2309, %v2308
        %v2323 = vpack.c.b16 %v2311, %v2310
        %v2324 = vpack.c.b16 %v2313, %v2312
        %v2325 = vpack.c.b16 %v2315, %v2314
        %v2326 = vpack.c.b16 %v2317, %v2316
        %v2327 = vpack.c.b16 %v2319, %v2318
        %2336 = vmatprep.subr.bf16.mxu0 0
        %2337 = vmatpush1.bf16.msra.mxu0 %v2320
        %2338 = vmatprep.subr.bf16.mxu0 0
        %2339 = vmatpush1.bf16.msra.mxu0 %v2321
        %2340 = vmatprep.subr.bf16.mxu0 0
        %2341 = vmatpush1.bf16.msra.mxu0 %v2322
        %2342 = vmatprep.subr.bf16.mxu0 0
        %2343 = vmatpush1.bf16.msra.mxu0 %v2323
        %2344 = vmatprep.subr.bf16.mxu0 0
        %2345 = vmatpush1.bf16.msra.mxu0 %v2324
        %2346 = vmatprep.subr.bf16.mxu0 0
        %2347 = vmatpush1.bf16.msra.mxu0 %v2325
        %2348 = vmatprep.subr.bf16.mxu0 0
        %2349 = vmatpush1.bf16.msra.mxu0 %v2326
        %2350 = vmatprep.subr.bf16.mxu0 0
        %2351 = vmatpush1.bf16.msra.mxu0 %v2327
        %2352 = vmatprep.subr.bf16.mxu0 0
        %2353 = vmatpush1.bf16.msra.mxu0 0
        %2354 = vmatprep.subr.bf16.mxu0 0
        %2355 = vmatpush1.bf16.msra.mxu0 0
        %2356 = vmatprep.subr.bf16.mxu0 0
        %2357 = vmatpush1.bf16.msra.mxu0 0
        %2358 = vmatprep.subr.bf16.mxu0 0
        %2359 = vmatpush1.bf16.msra.mxu0 0
        %2360 = vmatprep.subr.bf16.mxu0 0
        %2361 = vmatpush1.bf16.msra.mxu0 0
        %2362 = vmatprep.subr.bf16.mxu0 0
        %2363 = vmatpush1.bf16.msra.mxu0 0
        %2364 = vmatprep.subr.bf16.mxu0 0
        %2365 = vmatpush1.bf16.msra.mxu0 0
        %2366 = vmatprep.subr.bf16.mxu0 0
        %2367 = vmatpush1.bf16.msra.mxu0 0
        %2368 = vmatprep.mubr.bf16.mxu0 0
        %2369 = vmatmul.mubr.bf16.gmra.mrb[0].mxu0 %v2255
        %v2370 = vpop.f32.mrb[0].mxu0
        %v2371 = vadd.f32 0.0, %v2370
        %v2372 = vpop.f32.mrb[0].mxu0
        %v2373 = vpop.f32.mrb[0].mxu0
        %v2374 = vadd.f32 0.0, %v2373
        %v2375 = vpop.f32.mrb[0].mxu0
        %2376 = vmatprep.mubr.bf16.mxu0 0
        %2377 = vmatmul.mubr.bf16.gmra.mrb[0].mxu0 %v2256
        %v2378 = vpop.f32.mrb[0].mxu0
        %v2379 = vadd.f32 0.0, %v2378
        %v2380 = vpop.f32.mrb[0].mxu0
        %v2381 = vpop.f32.mrb[0].mxu0
        %v2382 = vadd.f32 0.0, %v2381
        %v2383 = vpop.f32.mrb[0].mxu0
        %2384 = vmatprep.mubr.bf16.mxu0 0
        %2385 = vmatmul.mubr.bf16.gmra.mrb[0].mxu0 %v2257
        %v2386 = vpop.f32.mrb[0].mxu0
        %v2387 = vadd.f32 0.0, %v2386
        %v2388 = vpop.f32.mrb[0].mxu0
        %v2389 = vpop.f32.mrb[0].mxu0
        %v2390 = vadd.f32 0.0, %v2389
        %v2391 = vpop.f32.mrb[0].mxu0
        %2392 = vmatprep.mubr.bf16.mxu0 0
        %2393 = vmatmul.mubr.bf16.gmra.mrb[0].mxu0 %v2258
        %v2394 = vpop.f32.mrb[0].mxu0
        %v2395 = vadd.f32 0.0, %v2394
        %v2396 = vpop.f32.mrb[0].mxu0
        %v2397 = vpop.f32.mrb[0].mxu0
        %v2398 = vadd.f32 0.0, %v2397
        %v2399 = vpop.f32.mrb[0].mxu0
        %2400 = vmatprep.mubr.bf16.mxu0 0
        %2401 = vmatmul.mubr.bf16.gmra.mrb[0].mxu0 %v2259
        %v2402 = vpop.f32.mrb[0].mxu0
        %v2403 = vadd.f32 0.0, %v2402
        %v2404 = vpop.f32.mrb[0].mxu0
        %v2405 = vpop.f32.mrb[0].mxu0
        %v2406 = vadd.f32 0.0, %v2405
        %v2407 = vpop.f32.mrb[0].mxu0
        %2408 = vmatprep.mubr.bf16.mxu0 0
        %2409 = vmatmul.mubr.bf16.gmra.mrb[0].mxu0 %v2260
        %v2410 = vpop.f32.mrb[0].mxu0
        %v2411 = vadd.f32 0.0, %v2410
        %v2412 = vpop.f32.mrb[0].mxu0
        %v2413 = vpop.f32.mrb[0].mxu0
        %v2414 = vadd.f32 0.0, %v2413
        %v2415 = vpop.f32.mrb[0].mxu0
        %2416 = vmatprep.mubr.bf16.mxu0 0
        %2417 = vmatmul.mubr.bf16.gmra.mrb[0].mxu0 %v2261
        %v2418 = vpop.f32.mrb[0].mxu0
        %v2419 = vadd.f32 0.0, %v2418
        %v2420 = vpop.f32.mrb[0].mxu0
        %v2421 = vpop.f32.mrb[0].mxu0
        %v2422 = vadd.f32 0.0, %v2421
        %v2423 = vpop.f32.mrb[0].mxu0
        %2424 = vmatprep.mubr.bf16.mxu0 0
        %2425 = vmatmul.mubr.bf16.gmra.mrb[0].mxu0 %v2262
        %v2426 = vpop.f32.mrb[0].mxu0
        %v2427 = vadd.f32 0.0, %v2426
        %v2428 = vpop.f32.mrb[0].mxu0
        %v2429 = vpop.f32.mrb[0].mxu0
        %v2430 = vadd.f32 0.0, %v2429
        %v2431 = vpop.f32.mrb[0].mxu0
        %2432 = vmatprep.mubr.bf16.mxu0 0
        %2433 = vmatmul.mubr.bf16.gmra.mrb[0].mxu0 %v2263
        %v2434 = vpop.f32.mrb[0].mxu0
        %v2435 = vadd.f32 0.0, %v2434
        %v2436 = vpop.f32.mrb[0].mxu0
        %v2437 = vpop.f32.mrb[0].mxu0
        %v2438 = vadd.f32 0.0, %v2437
        %v2439 = vpop.f32.mrb[0].mxu0
        %2440 = vmatprep.mubr.bf16.mxu0 0
        %2441 = vmatmul.mubr.bf16.gmra.mrb[0].mxu0 %v2264
        %v2442 = vpop.f32.mrb[0].mxu0
        %v2443 = vadd.f32 0.0, %v2442
        %v2444 = vpop.f32.mrb[0].mxu0
        %v2445 = vpop.f32.mrb[0].mxu0
        %v2446 = vadd.f32 0.0, %v2445
        %v2447 = vpop.f32.mrb[0].mxu0
        %2448 = vmatprep.mubr.bf16.mxu0 0
        %2449 = vmatmul.mubr.bf16.gmra.mrb[0].mxu0 %v2265
        %v2450 = vpop.f32.mrb[0].mxu0
        %v2451 = vadd.f32 0.0, %v2450
        %v2452 = vpop.f32.mrb[0].mxu0
        %v2453 = vpop.f32.mrb[0].mxu0
        %v2454 = vadd.f32 0.0, %v2453
        %v2455 = vpop.f32.mrb[0].mxu0
        %2456 = vmatprep.mubr.bf16.mxu0 0
        %2457 = vmatmul.mubr.bf16.gmra.mrb[0].mxu0 %v2266
        %v2458 = vpop.f32.mrb[0].mxu0
        %v2459 = vadd.f32 0.0, %v2458
        %v2460 = vpop.f32.mrb[0].mxu0
        %v2461 = vpop.f32.mrb[0].mxu0
        %v2462 = vadd.f32 0.0, %v2461
        %v2463 = vpop.f32.mrb[0].mxu0
        %2464 = vmatprep.mubr.bf16.mxu0 0
        %2465 = vmatmul.mubr.bf16.gmra.mrb[0].mxu0 %v2267
        %v2466 = vpop.f32.mrb[0].mxu0
        %v2467 = vadd.f32 0.0, %v2466
        %v2468 = vpop.f32.mrb[0].mxu0
        %v2469 = vpop.f32.mrb[0].mxu0
        %v2470 = vadd.f32 0.0, %v2469
        %v2471 = vpop.f32.mrb[0].mxu0
        %2472 = vmatprep.mubr.bf16.mxu0 0
        %2473 = vmatmul.mubr.bf16.gmra.mrb[0].mxu0 %v2268
        %v2474 = vpop.f32.mrb[0].mxu0
        %v2475 = vadd.f32 0.0, %v2474
        %v2476 = vpop.f32.mrb[0].mxu0
        %v2477 = vpop.f32.mrb[0].mxu0
        %v2478 = vadd.f32 0.0, %v2477
        %v2479 = vpop.f32.mrb[0].mxu0
        %2480 = vmatprep.mubr.bf16.mxu0 0
        %2481 = vmatmul.mubr.bf16.gmra.mrb[0].mxu0 %v2269
        %v2482 = vpop.f32.mrb[0].mxu0
        %v2483 = vadd.f32 0.0, %v2482
        %v2484 = vpop.f32.mrb[0].mxu0
        %v2485 = vpop.f32.mrb[0].mxu0
        %v2486 = vadd.f32 0.0, %v2485
        %v2487 = vpop.f32.mrb[0].mxu0
        %2488 = vmatprep.mubr.bf16.mxu0 0
        %2489 = vmatmul.mubr.bf16.gmra.mrb[0].mxu0 %v2270
        %v2490 = vpop.f32.mrb[0].mxu0
        %v2491 = vadd.f32 0.0, %v2490
        %v2492 = vpop.f32.mrb[0].mxu0
        %v2493 = vpop.f32.mrb[0].mxu0
        %v2494 = vadd.f32 0.0, %v2493
        %v2495 = vpop.f32.mrb[0].mxu0
        %2496 = vdwg.mxu0
        %v2497 = vadd.f32 %v2190, %v2371
        %v2498 = vadd.f32 %v2191, %v2374
        %v2499 = vadd.f32 %v2192, %v2379
        %v2500 = vadd.f32 %v2193, %v2382
        %v2501 = vadd.f32 %v2194, %v2387
        %v2502 = vadd.f32 %v2195, %v2390
        %v2503 = vadd.f32 %v2196, %v2395
        %v2504 = vadd.f32 %v2197, %v2398
        %v2505 = vadd.f32 %v2198, %v2403
        %v2506 = vadd.f32 %v2199, %v2406
        %v2507 = vadd.f32 %v2200, %v2411
        %v2508 = vadd.f32 %v2201, %v2414
        %v2509 = vadd.f32 %v2202, %v2419
        %v2510 = vadd.f32 %v2203, %v2422
        %v2511 = vadd.f32 %v2204, %v2427
        %v2512 = vadd.f32 %v2205, %v2430
        %v2513 = vadd.f32 %v2206, %v2435
        %v2514 = vadd.f32 %v2207, %v2438
        %v2515 = vadd.f32 %v2208, %v2443
        %v2516 = vadd.f32 %v2209, %v2446
        %v2517 = vadd.f32 %v2210, %v2451
        %v2518 = vadd.f32 %v2211, %v2454
        %v2519 = vadd.f32 %v2212, %v2459
        %v2520 = vadd.f32 %v2213, %v2462
        %v2521 = vadd.f32 %v2214, %v2467
        %v2522 = vadd.f32 %v2215, %v2470
        %v2523 = vadd.f32 %v2216, %v2475
        %v2524 = vadd.f32 %v2217, %v2478
        %v2525 = vadd.f32 %v2218, %v2483
        %v2526 = vadd.f32 %v2219, %v2486
        %v2527 = vadd.f32 %v2220, %v2491
        %v2528 = vadd.f32 %v2221, %v2494
        %v2529 = vld [vmem:[%s2222 + $0x1] sm:$0xff]
        %v2530 = vld [vmem:[%s2222 + $0x9] sm:$0xff]
        %v2531 = vld [vmem:[%s2222 + $0x19] sm:$0xff]
        %v2532 = vld [vmem:[%s2222 + $0x21] sm:$0xff]
        %v2533 = vld [vmem:[%s2222 + $0x31] sm:$0xff]
        %v2534 = vld [vmem:[%s2222 + $0x39] sm:$0xff]
        %v2535 = vld [vmem:[%s2222 + $0x49] sm:$0xff]
        %v2536 = vld [vmem:[%s2222 + $0x51] sm:$0xff]
        %v2537 = vld [vmem:[%s2222 + $0x61] sm:$0xff]
        %v2538 = vld [vmem:[%s2222 + $0x69] sm:$0xff]
        %v2539 = vld [vmem:[%s2222 + $0x79] sm:$0xff]
        %v2540 = vld [vmem:[%s2222 + $0x81] sm:$0xff]
        %v2541 = vld [vmem:[%s2222 + $0x91] sm:$0xff]
        %v2542 = vld [vmem:[%s2222 + $0x99] sm:$0xff]
        %v2543 = vld [vmem:[%s2222 + $0xa9] sm:$0xff]
        %v2544 = vld [vmem:[%s2222 + $0xb1] sm:$0xff]
        %v2545 = vld [vmem:[%s2222 + $0xc1] sm:$0xff]
        %v2546 = vld [vmem:[%s2222 + $0xc9] sm:$0xff]
        %v2547 = vld [vmem:[%s2222 + $0xd9] sm:$0xff]
        %v2548 = vld [vmem:[%s2222 + $0xe1] sm:$0xff]
        %v2549 = vld [vmem:[%s2222 + $0xf1] sm:$0xff]
        %v2550 = vld [vmem:[%s2222 + $0xf9] sm:$0xff]
        %v2551 = vld [vmem:[%s2222 + $0x109] sm:$0xff]
        %v2552 = vld [vmem:[%s2222 + $0x111] sm:$0xff]
        %v2553 = vld [vmem:[%s2222 + $0x121] sm:$0xff]
        %v2554 = vld [vmem:[%s2222 + $0x129] sm:$0xff]
        %v2555 = vld [vmem:[%s2222 + $0x139] sm:$0xff]
        %v2556 = vld [vmem:[%s2222 + $0x141] sm:$0xff]
        %v2557 = vld [vmem:[%s2222 + $0x151] sm:$0xff]
        %v2558 = vld [vmem:[%s2222 + $0x159] sm:$0xff]
        %v2559 = vld [vmem:[%s2222 + $0x169] sm:$0xff]
        %v2560 = vld [vmem:[%s2222 + $0x171] sm:$0xff]
        %v2561 = vpack.c.bf16 %v2530, %v2529
        %v2562 = vpack.c.bf16 %v2532, %v2531
        %v2563 = vpack.c.bf16 %v2534, %v2533
        %v2564 = vpack.c.bf16 %v2536, %v2535
        %v2565 = vpack.c.bf16 %v2538, %v2537
        %v2566 = vpack.c.bf16 %v2540, %v2539
        %v2567 = vpack.c.bf16 %v2542, %v2541
        %v2568 = vpack.c.bf16 %v2544, %v2543
        %v2569 = vpack.c.bf16 %v2546, %v2545
        %v2570 = vpack.c.bf16 %v2548, %v2547
        %v2571 = vpack.c.bf16 %v2550, %v2549
        %v2572 = vpack.c.bf16 %v2552, %v2551
        %v2573 = vpack.c.bf16 %v2554, %v2553
        %v2574 = vpack.c.bf16 %v2556, %v2555
        %v2575 = vpack.c.bf16 %v2558, %v2557
        %v2576 = vpack.c.bf16 %v2560, %v2559
        %s2577 = scalar_lea.vmem %s1, 448
        %v2578 = vld [vmem:[%s2577] sm:$0xf]
        %v2579 = vld [vmem:[%s2577 + $0x4] sm:$0xf]
        %v2580 = vld [vmem:[%s2577 + $0x8] sm:$0xf]
        %v2581 = vld [vmem:[%s2577 + $0xc] sm:$0xf]
        %v2582 = vld [vmem:[%s2577 + $0x10] sm:$0xf]
        %v2583 = vld [vmem:[%s2577 + $0x14] sm:$0xf]
        %v2584 = vld [vmem:[%s2577 + $0x18] sm:$0xf]
        %v2585 = vld [vmem:[%s2577 + $0x1c] sm:$0xf]
        %v2586 = vld [vmem:[%s2577 + $0x20] sm:$0xf]
        %v2587 = vld [vmem:[%s2577 + $0x24] sm:$0xf]
        %v2588 = vld [vmem:[%s2577 + $0x28] sm:$0xf]
        %v2589 = vld [vmem:[%s2577 + $0x2c] sm:$0xf]
        %v2590 = vld [vmem:[%s2577 + $0x30] sm:$0xf]
        %v2591 = vld [vmem:[%s2577 + $0x34] sm:$0xf]
        %v2592 = vld [vmem:[%s2577 + $0x38] sm:$0xf]
        %v2593 = vld [vmem:[%s2577 + $0x3c] sm:$0xf]
        %v2610 = vunpack.c.l.b16 %v2578
        %v2611 = vunpack.c.l.b16 %v2579
        %v2612 = vunpack.c.l.b16 %v2580
        %v2613 = vunpack.c.l.b16 %v2581
        %v2614 = vunpack.c.l.b16 %v2582
        %v2615 = vunpack.c.l.b16 %v2583
        %v2616 = vunpack.c.l.b16 %v2584
        %v2617 = vunpack.c.l.b16 %v2585
        %v2618 = vunpack.c.l.b16 %v2586
        %v2619 = vunpack.c.l.b16 %v2587
        %v2620 = vunpack.c.l.b16 %v2588
        %v2621 = vunpack.c.l.b16 %v2589
        %v2622 = vunpack.c.l.b16 %v2590
        %v2623 = vunpack.c.l.b16 %v2591
        %v2624 = vunpack.c.l.b16 %v2592
        %v2625 = vunpack.c.l.b16 %v2593
        %v2626 = vpack.c.b16 %v2611, %v2610
        %v2627 = vpack.c.b16 %v2613, %v2612
        %v2628 = vpack.c.b16 %v2615, %v2614
        %v2629 = vpack.c.b16 %v2617, %v2616
        %v2630 = vpack.c.b16 %v2619, %v2618
        %v2631 = vpack.c.b16 %v2621, %v2620
        %v2632 = vpack.c.b16 %v2623, %v2622
        %v2633 = vpack.c.b16 %v2625, %v2624
        %2642 = vmatprep.subr.bf16.mxu0 0
        %2643 = vmatpush1.bf16.msra.mxu0 %v2626
        %2644 = vmatprep.subr.bf16.mxu0 0
        %2645 = vmatpush1.bf16.msra.mxu0 %v2627
        %2646 = vmatprep.subr.bf16.mxu0 0
        %2647 = vmatpush1.bf16.msra.mxu0 %v2628
        %2648 = vmatprep.subr.bf16.mxu0 0
        %2649 = vmatpush1.bf16.msra.mxu0 %v2629
        %2650 = vmatprep.subr.bf16.mxu0 0
        %2651 = vmatpush1.bf16.msra.mxu0 %v2630
        %2652 = vmatprep.subr.bf16.mxu0 0
        %2653 = vmatpush1.bf16.msra.mxu0 %v2631
        %2654 = vmatprep.subr.bf16.mxu0 0
        %2655 = vmatpush1.bf16.msra.mxu0 %v2632
        %2656 = vmatprep.subr.bf16.mxu0 0
        %2657 = vmatpush1.bf16.msra.mxu0 %v2633
        %2658 = vmatprep.subr.bf16.mxu0 0
        %2659 = vmatpush1.bf16.msra.mxu0 0
        %2660 = vmatprep.subr.bf16.mxu0 0
        %2661 = vmatpush1.bf16.msra.mxu0 0
        %2662 = vmatprep.subr.bf16.mxu0 0
        %2663 = vmatpush1.bf16.msra.mxu0 0
        %2664 = vmatprep.subr.bf16.mxu0 0
        %2665 = vmatpush1.bf16.msra.mxu0 0
        %2666 = vmatprep.subr.bf16.mxu0 0
        %2667 = vmatpush1.bf16.msra.mxu0 0
        %2668 = vmatprep.subr.bf16.mxu0 0
        %2669 = vmatpush1.bf16.msra.mxu0 0
        %2670 = vmatprep.subr.bf16.mxu0 0
        %2671 = vmatpush1.bf16.msra.mxu0 0
        %2672 = vmatprep.subr.bf16.mxu0 0
        %2673 = vmatpush1.bf16.msra.mxu0 0
        %2674 = vmatprep.mubr.bf16.mxu0 0
        %2675 = vmatmul.mubr.bf16.gmra.mrb[0].mxu0 %v2561
        %v2676 = vpop.f32.mrb[0].mxu0
        %v2677 = vadd.f32 0.0, %v2676
        %v2678 = vpop.f32.mrb[0].mxu0
        %v2679 = vpop.f32.mrb[0].mxu0
        %v2680 = vadd.f32 0.0, %v2679
        %v2681 = vpop.f32.mrb[0].mxu0
        %2682 = vmatprep.mubr.bf16.mxu0 0
        %2683 = vmatmul.mubr.bf16.gmra.mrb[0].mxu0 %v2562
        %v2684 = vpop.f32.mrb[0].mxu0
        %v2685 = vadd.f32 0.0, %v2684
        %v2686 = vpop.f32.mrb[0].mxu0
        %v2687 = vpop.f32.mrb[0].mxu0
        %v2688 = vadd.f32 0.0, %v2687
        %v2689 = vpop.f32.mrb[0].mxu0
        %2690 = vmatprep.mubr.bf16.mxu0 0
        %2691 = vmatmul.mubr.bf16.gmra.mrb[0].mxu0 %v2563
        %v2692 = vpop.f32.mrb[0].mxu0
        %v2693 = vadd.f32 0.0, %v2692
        %v2694 = vpop.f32.mrb[0].mxu0
        %v2695 = vpop.f32.mrb[0].mxu0
        %v2696 = vadd.f32 0.0, %v2695
        %v2697 = vpop.f32.mrb[0].mxu0
        %2698 = vmatprep.mubr.bf16.mxu0 0
        %2699 = vmatmul.mubr.bf16.gmra.mrb[0].mxu0 %v2564
        %v2700 = vpop.f32.mrb[0].mxu0
        %v2701 = vadd.f32 0.0, %v2700
        %v2702 = vpop.f32.mrb[0].mxu0
        %v2703 = vpop.f32.mrb[0].mxu0
        %v2704 = vadd.f32 0.0, %v2703
        %v2705 = vpop.f32.mrb[0].mxu0
        %2706 = vmatprep.mubr.bf16.mxu0 0
        %2707 = vmatmul.mubr.bf16.gmra.mrb[0].mxu0 %v2565
        %v2708 = vpop.f32.mrb[0].mxu0
        %v2709 = vadd.f32 0.0, %v2708
        %v2710 = vpop.f32.mrb[0].mxu0
        %v2711 = vpop.f32.mrb[0].mxu0
        %v2712 = vadd.f32 0.0, %v2711
        %v2713 = vpop.f32.mrb[0].mxu0
        %2714 = vmatprep.mubr.bf16.mxu0 0
        %2715 = vmatmul.mubr.bf16.gmra.mrb[0].mxu0 %v2566
        %v2716 = vpop.f32.mrb[0].mxu0
        %v2717 = vadd.f32 0.0, %v2716
        %v2718 = vpop.f32.mrb[0].mxu0
        %v2719 = vpop.f32.mrb[0].mxu0
        %v2720 = vadd.f32 0.0, %v2719
        %v2721 = vpop.f32.mrb[0].mxu0
        %2722 = vmatprep.mubr.bf16.mxu0 0
        %2723 = vmatmul.mubr.bf16.gmra.mrb[0].mxu0 %v2567
        %v2724 = vpop.f32.mrb[0].mxu0
        %v2725 = vadd.f32 0.0, %v2724
        %v2726 = vpop.f32.mrb[0].mxu0
        %v2727 = vpop.f32.mrb[0].mxu0
        %v2728 = vadd.f32 0.0, %v2727
        %v2729 = vpop.f32.mrb[0].mxu0
        %2730 = vmatprep.mubr.bf16.mxu0 0
        %2731 = vmatmul.mubr.bf16.gmra.mrb[0].mxu0 %v2568
        %v2732 = vpop.f32.mrb[0].mxu0
        %v2733 = vadd.f32 0.0, %v2732
        %v2734 = vpop.f32.mrb[0].mxu0
        %v2735 = vpop.f32.mrb[0].mxu0
        %v2736 = vadd.f32 0.0, %v2735
        %v2737 = vpop.f32.mrb[0].mxu0
        %2738 = vmatprep.mubr.bf16.mxu0 0
        %2739 = vmatmul.mubr.bf16.gmra.mrb[0].mxu0 %v2569
        %v2740 = vpop.f32.mrb[0].mxu0
        %v2741 = vadd.f32 0.0, %v2740
        %v2742 = vpop.f32.mrb[0].mxu0
        %v2743 = vpop.f32.mrb[0].mxu0
        %v2744 = vadd.f32 0.0, %v2743
        %v2745 = vpop.f32.mrb[0].mxu0
        %2746 = vmatprep.mubr.bf16.mxu0 0
        %2747 = vmatmul.mubr.bf16.gmra.mrb[0].mxu0 %v2570
        %v2748 = vpop.f32.mrb[0].mxu0
        %v2749 = vadd.f32 0.0, %v2748
        %v2750 = vpop.f32.mrb[0].mxu0
        %v2751 = vpop.f32.mrb[0].mxu0
        %v2752 = vadd.f32 0.0, %v2751
        %v2753 = vpop.f32.mrb[0].mxu0
        %2754 = vmatprep.mubr.bf16.mxu0 0
        %2755 = vmatmul.mubr.bf16.gmra.mrb[0].mxu0 %v2571
        %v2756 = vpop.f32.mrb[0].mxu0
        %v2757 = vadd.f32 0.0, %v2756
        %v2758 = vpop.f32.mrb[0].mxu0
        %v2759 = vpop.f32.mrb[0].mxu0
        %v2760 = vadd.f32 0.0, %v2759
        %v2761 = vpop.f32.mrb[0].mxu0
        %2762 = vmatprep.mubr.bf16.mxu0 0
        %2763 = vmatmul.mubr.bf16.gmra.mrb[0].mxu0 %v2572
        %v2764 = vpop.f32.mrb[0].mxu0
        %v2765 = vadd.f32 0.0, %v2764
        %v2766 = vpop.f32.mrb[0].mxu0
        %v2767 = vpop.f32.mrb[0].mxu0
        %v2768 = vadd.f32 0.0, %v2767
        %v2769 = vpop.f32.mrb[0].mxu0
        %2770 = vmatprep.mubr.bf16.mxu0 0
        %2771 = vmatmul.mubr.bf16.gmra.mrb[0].mxu0 %v2573
        %v2772 = vpop.f32.mrb[0].mxu0
        %v2773 = vadd.f32 0.0, %v2772
        %v2774 = vpop.f32.mrb[0].mxu0
        %v2775 = vpop.f32.mrb[0].mxu0
        %v2776 = vadd.f32 0.0, %v2775
        %v2777 = vpop.f32.mrb[0].mxu0
        %2778 = vmatprep.mubr.bf16.mxu0 0
        %2779 = vmatmul.mubr.bf16.gmra.mrb[0].mxu0 %v2574
        %v2780 = vpop.f32.mrb[0].mxu0
        %v2781 = vadd.f32 0.0, %v2780
        %v2782 = vpop.f32.mrb[0].mxu0
        %v2783 = vpop.f32.mrb[0].mxu0
        %v2784 = vadd.f32 0.0, %v2783
        %v2785 = vpop.f32.mrb[0].mxu0
        %2786 = vmatprep.mubr.bf16.mxu0 0
        %2787 = vmatmul.mubr.bf16.gmra.mrb[0].mxu0 %v2575
        %v2788 = vpop.f32.mrb[0].mxu0
        %v2789 = vadd.f32 0.0, %v2788
        %v2790 = vpop.f32.mrb[0].mxu0
        %v2791 = vpop.f32.mrb[0].mxu0
        %v2792 = vadd.f32 0.0, %v2791
        %v2793 = vpop.f32.mrb[0].mxu0
        %2794 = vmatprep.mubr.bf16.mxu0 0
        %2795 = vmatmul.mubr.bf16.gmra.mrb[0].mxu0 %v2576
        %v2796 = vpop.f32.mrb[0].mxu0
        %v2797 = vadd.f32 0.0, %v2796
        %v2798 = vpop.f32.mrb[0].mxu0
        %v2799 = vpop.f32.mrb[0].mxu0
        %v2800 = vadd.f32 0.0, %v2799
        %v2801 = vpop.f32.mrb[0].mxu0
        %2802 = vdwg.mxu0
        %v2803 = vadd.f32 %v2497, %v2677
        %v2804 = vadd.f32 %v2498, %v2680
        %v2805 = vadd.f32 %v2499, %v2685
        %v2806 = vadd.f32 %v2500, %v2688
        %v2807 = vadd.f32 %v2501, %v2693
        %v2808 = vadd.f32 %v2502, %v2696
        %v2809 = vadd.f32 %v2503, %v2701
        %v2810 = vadd.f32 %v2504, %v2704
        %v2811 = vadd.f32 %v2505, %v2709
        %v2812 = vadd.f32 %v2506, %v2712
        %v2813 = vadd.f32 %v2507, %v2717
        %v2814 = vadd.f32 %v2508, %v2720
        %v2815 = vadd.f32 %v2509, %v2725
        %v2816 = vadd.f32 %v2510, %v2728
        %v2817 = vadd.f32 %v2511, %v2733
        %v2818 = vadd.f32 %v2512, %v2736
        %v2819 = vadd.f32 %v2513, %v2741
        %v2820 = vadd.f32 %v2514, %v2744
        %v2821 = vadd.f32 %v2515, %v2749
        %v2822 = vadd.f32 %v2516, %v2752
        %v2823 = vadd.f32 %v2517, %v2757
        %v2824 = vadd.f32 %v2518, %v2760
        %v2825 = vadd.f32 %v2519, %v2765
        %v2826 = vadd.f32 %v2520, %v2768
        %v2827 = vadd.f32 %v2521, %v2773
        %v2828 = vadd.f32 %v2522, %v2776
        %v2829 = vadd.f32 %v2523, %v2781
        %v2830 = vadd.f32 %v2524, %v2784
        %v2831 = vadd.f32 %v2525, %v2789
        %v2832 = vadd.f32 %v2526, %v2792
        %v2833 = vadd.f32 %v2527, %v2797
        %v2834 = vadd.f32 %v2528, %v2800
        %v2835 = vld [vmem:[%s2222 + $0x2] sm:$0xff]
        %v2836 = vld [vmem:[%s2222 + $0xa] sm:$0xff]
        %v2837 = vld [vmem:[%s2222 + $0x1a] sm:$0xff]
        %v2838 = vld [vmem:[%s2222 + $0x22] sm:$0xff]
        %v2839 = vld [vmem:[%s2222 + $0x32] sm:$0xff]
        %v2840 = vld [vmem:[%s2222 + $0x3a] sm:$0xff]
        %v2841 = vld [vmem:[%s2222 + $0x4a] sm:$0xff]
        %v2842 = vld [vmem:[%s2222 + $0x52] sm:$0xff]
        %v2843 = vld [vmem:[%s2222 + $0x62] sm:$0xff]
        %v2844 = vld [vmem:[%s2222 + $0x6a] sm:$0xff]
        %v2845 = vld [vmem:[%s2222 + $0x7a] sm:$0xff]
        %v2846 = vld [vmem:[%s2222 + $0x82] sm:$0xff]
        %v2847 = vld [vmem:[%s2222 + $0x92] sm:$0xff]
        %v2848 = vld [vmem:[%s2222 + $0x9a] sm:$0xff]
        %v2849 = vld [vmem:[%s2222 + $0xaa] sm:$0xff]
        %v2850 = vld [vmem:[%s2222 + $0xb2] sm:$0xff]
        %v2851 = vld [vmem:[%s2222 + $0xc2] sm:$0xff]
        %v2852 = vld [vmem:[%s2222 + $0xca] sm:$0xff]
        %v2853 = vld [vmem:[%s2222 + $0xda] sm:$0xff]
        %v2854 = vld [vmem:[%s2222 + $0xe2] sm:$0xff]
        %v2855 = vld [vmem:[%s2222 + $0xf2] sm:$0xff]
        %v2856 = vld [vmem:[%s2222 + $0xfa] sm:$0xff]
        %v2857 = vld [vmem:[%s2222 + $0x10a] sm:$0xff]
        %v2858 = vld [vmem:[%s2222 + $0x112] sm:$0xff]
        %v2859 = vld [vmem:[%s2222 + $0x122] sm:$0xff]
        %v2860 = vld [vmem:[%s2222 + $0x12a] sm:$0xff]
        %v2861 = vld [vmem:[%s2222 + $0x13a] sm:$0xff]
        %v2862 = vld [vmem:[%s2222 + $0x142] sm:$0xff]
        %v2863 = vld [vmem:[%s2222 + $0x152] sm:$0xff]
        %v2864 = vld [vmem:[%s2222 + $0x15a] sm:$0xff]
        %v2865 = vld [vmem:[%s2222 + $0x16a] sm:$0xff]
        %v2866 = vld [vmem:[%s2222 + $0x172] sm:$0xff]
        %v2867 = vpack.c.bf16 %v2836, %v2835
        %v2868 = vpack.c.bf16 %v2838, %v2837
        %v2869 = vpack.c.bf16 %v2840, %v2839
        %v2870 = vpack.c.bf16 %v2842, %v2841
        %v2871 = vpack.c.bf16 %v2844, %v2843
        %v2872 = vpack.c.bf16 %v2846, %v2845
        %v2873 = vpack.c.bf16 %v2848, %v2847
        %v2874 = vpack.c.bf16 %v2850, %v2849
        %v2875 = vpack.c.bf16 %v2852, %v2851
        %v2876 = vpack.c.bf16 %v2854, %v2853
        %v2877 = vpack.c.bf16 %v2856, %v2855
        %v2878 = vpack.c.bf16 %v2858, %v2857
        %v2879 = vpack.c.bf16 %v2860, %v2859
        %v2880 = vpack.c.bf16 %v2862, %v2861
        %v2881 = vpack.c.bf16 %v2864, %v2863
        %v2882 = vpack.c.bf16 %v2866, %v2865
        %s2883 = scalar_lea.vmem %s1, 512
        %v2884 = vld [vmem:[%s2883] sm:$0xf]
        %v2885 = vld [vmem:[%s2883 + $0x4] sm:$0xf]
        %v2886 = vld [vmem:[%s2883 + $0x8] sm:$0xf]
        %v2887 = vld [vmem:[%s2883 + $0xc] sm:$0xf]
        %v2888 = vld [vmem:[%s2883 + $0x10] sm:$0xf]
        %v2889 = vld [vmem:[%s2883 + $0x14] sm:$0xf]
        %v2890 = vld [vmem:[%s2883 + $0x18] sm:$0xf]
        %v2891 = vld [vmem:[%s2883 + $0x1c] sm:$0xf]
        %v2892 = vld [vmem:[%s2883 + $0x20] sm:$0xf]
        %v2893 = vld [vmem:[%s2883 + $0x24] sm:$0xf]
        %v2894 = vld [vmem:[%s2883 + $0x28] sm:$0xf]
        %v2895 = vld [vmem:[%s2883 + $0x2c] sm:$0xf]
        %v2896 = vld [vmem:[%s2883 + $0x30] sm:$0xf]
        %v2897 = vld [vmem:[%s2883 + $0x34] sm:$0xf]
        %v2898 = vld [vmem:[%s2883 + $0x38] sm:$0xf]
        %v2899 = vld [vmem:[%s2883 + $0x3c] sm:$0xf]
        %v2916 = vunpack.c.l.b16 %v2884
        %v2917 = vunpack.c.l.b16 %v2885
        %v2918 = vunpack.c.l.b16 %v2886
        %v2919 = vunpack.c.l.b16 %v2887
        %v2920 = vunpack.c.l.b16 %v2888
        %v2921 = vunpack.c.l.b16 %v2889
        %v2922 = vunpack.c.l.b16 %v2890
        %v2923 = vunpack.c.l.b16 %v2891
        %v2924 = vunpack.c.l.b16 %v2892
        %v2925 = vunpack.c.l.b16 %v2893
        %v2926 = vunpack.c.l.b16 %v2894
        %v2927 = vunpack.c.l.b16 %v2895
        %v2928 = vunpack.c.l.b16 %v2896
        %v2929 = vunpack.c.l.b16 %v2897
        %v2930 = vunpack.c.l.b16 %v2898
        %v2931 = vunpack.c.l.b16 %v2899
        %v2932 = vpack.c.b16 %v2917, %v2916
        %v2933 = vpack.c.b16 %v2919, %v2918
        %v2934 = vpack.c.b16 %v2921, %v2920
        %v2935 = vpack.c.b16 %v2923, %v2922
        %v2936 = vpack.c.b16 %v2925, %v2924
        %v2937 = vpack.c.b16 %v2927, %v2926
        %v2938 = vpack.c.b16 %v2929, %v2928
        %v2939 = vpack.c.b16 %v2931, %v2930
        %2948 = vmatprep.subr.bf16.mxu0 0
        %2949 = vmatpush1.bf16.msra.mxu0 %v2932
        %2950 = vmatprep.subr.bf16.mxu0 0
        %2951 = vmatpush1.bf16.msra.mxu0 %v2933
        %2952 = vmatprep.subr.bf16.mxu0 0
        %2953 = vmatpush1.bf16.msra.mxu0 %v2934
        %2954 = vmatprep.subr.bf16.mxu0 0
        %2955 = vmatpush1.bf16.msra.mxu0 %v2935
        %2956 = vmatprep.subr.bf16.mxu0 0
        %2957 = vmatpush1.bf16.msra.mxu0 %v2936
        %2958 = vmatprep.subr.bf16.mxu0 0
        %2959 = vmatpush1.bf16.msra.mxu0 %v2937
        %2960 = vmatprep.subr.bf16.mxu0 0
        %2961 = vmatpush1.bf16.msra.mxu0 %v2938
        %2962 = vmatprep.subr.bf16.mxu0 0
        %2963 = vmatpush1.bf16.msra.mxu0 %v2939
        %2964 = vmatprep.subr.bf16.mxu0 0
        %2965 = vmatpush1.bf16.msra.mxu0 0
        %2966 = vmatprep.subr.bf16.mxu0 0
        %2967 = vmatpush1.bf16.msra.mxu0 0
        %2968 = vmatprep.subr.bf16.mxu0 0
        %2969 = vmatpush1.bf16.msra.mxu0 0
        %2970 = vmatprep.subr.bf16.mxu0 0
        %2971 = vmatpush1.bf16.msra.mxu0 0
        %2972 = vmatprep.subr.bf16.mxu0 0
        %2973 = vmatpush1.bf16.msra.mxu0 0
        %2974 = vmatprep.subr.bf16.mxu0 0
        %2975 = vmatpush1.bf16.msra.mxu0 0
        %2976 = vmatprep.subr.bf16.mxu0 0
        %2977 = vmatpush1.bf16.msra.mxu0 0
        %2978 = vmatprep.subr.bf16.mxu0 0
        %2979 = vmatpush1.bf16.msra.mxu0 0
        %2980 = vmatprep.mubr.bf16.mxu0 0
        %2981 = vmatmul.mubr.bf16.gmra.mrb[0].mxu0 %v2867
        %v2982 = vpop.f32.mrb[0].mxu0
        %v2983 = vadd.f32 0.0, %v2982
        %v2984 = vpop.f32.mrb[0].mxu0
        %v2985 = vpop.f32.mrb[0].mxu0
        %v2986 = vadd.f32 0.0, %v2985
        %v2987 = vpop.f32.mrb[0].mxu0
        %2988 = vmatprep.mubr.bf16.mxu0 0
        %2989 = vmatmul.mubr.bf16.gmra.mrb[0].mxu0 %v2868
        %v2990 = vpop.f32.mrb[0].mxu0
        %v2991 = vadd.f32 0.0, %v2990
        %v2992 = vpop.f32.mrb[0].mxu0
        %v2993 = vpop.f32.mrb[0].mxu0
        %v2994 = vadd.f32 0.0, %v2993
        %v2995 = vpop.f32.mrb[0].mxu0
        %2996 = vmatprep.mubr.bf16.mxu0 0
        %2997 = vmatmul.mubr.bf16.gmra.mrb[0].mxu0 %v2869
        %v2998 = vpop.f32.mrb[0].mxu0
        %v2999 = vadd.f32 0.0, %v2998
        %v3000 = vpop.f32.mrb[0].mxu0
        %v3001 = vpop.f32.mrb[0].mxu0
        %v3002 = vadd.f32 0.0, %v3001
        %v3003 = vpop.f32.mrb[0].mxu0
        %3004 = vmatprep.mubr.bf16.mxu0 0
        %3005 = vmatmul.mubr.bf16.gmra.mrb[0].mxu0 %v2870
        %v3006 = vpop.f32.mrb[0].mxu0
        %v3007 = vadd.f32 0.0, %v3006
        %v3008 = vpop.f32.mrb[0].mxu0
        %v3009 = vpop.f32.mrb[0].mxu0
        %v3010 = vadd.f32 0.0, %v3009
        %v3011 = vpop.f32.mrb[0].mxu0
        %3012 = vmatprep.mubr.bf16.mxu0 0
        %3013 = vmatmul.mubr.bf16.gmra.mrb[0].mxu0 %v2871
        %v3014 = vpop.f32.mrb[0].mxu0
        %v3015 = vadd.f32 0.0, %v3014
        %v3016 = vpop.f32.mrb[0].mxu0
        %v3017 = vpop.f32.mrb[0].mxu0
        %v3018 = vadd.f32 0.0, %v3017
        %v3019 = vpop.f32.mrb[0].mxu0
        %3020 = vmatprep.mubr.bf16.mxu0 0
        %3021 = vmatmul.mubr.bf16.gmra.mrb[0].mxu0 %v2872
        %v3022 = vpop.f32.mrb[0].mxu0
        %v3023 = vadd.f32 0.0, %v3022
        %v3024 = vpop.f32.mrb[0].mxu0
        %v3025 = vpop.f32.mrb[0].mxu0
        %v3026 = vadd.f32 0.0, %v3025
        %v3027 = vpop.f32.mrb[0].mxu0
        %3028 = vmatprep.mubr.bf16.mxu0 0
        %3029 = vmatmul.mubr.bf16.gmra.mrb[0].mxu0 %v2873
        %v3030 = vpop.f32.mrb[0].mxu0
        %v3031 = vadd.f32 0.0, %v3030
        %v3032 = vpop.f32.mrb[0].mxu0
        %v3033 = vpop.f32.mrb[0].mxu0
        %v3034 = vadd.f32 0.0, %v3033
        %v3035 = vpop.f32.mrb[0].mxu0
        %3036 = vmatprep.mubr.bf16.mxu0 0
        %3037 = vmatmul.mubr.bf16.gmra.mrb[0].mxu0 %v2874
        %v3038 = vpop.f32.mrb[0].mxu0
        %v3039 = vadd.f32 0.0, %v3038
        %v3040 = vpop.f32.mrb[0].mxu0
        %v3041 = vpop.f32.mrb[0].mxu0
        %v3042 = vadd.f32 0.0, %v3041
        %v3043 = vpop.f32.mrb[0].mxu0
        %3044 = vmatprep.mubr.bf16.mxu0 0
        %3045 = vmatmul.mubr.bf16.gmra.mrb[0].mxu0 %v2875
        %v3046 = vpop.f32.mrb[0].mxu0
        %v3047 = vadd.f32 0.0, %v3046
        %v3048 = vpop.f32.mrb[0].mxu0
        %v3049 = vpop.f32.mrb[0].mxu0
        %v3050 = vadd.f32 0.0, %v3049
        %v3051 = vpop.f32.mrb[0].mxu0
        %3052 = vmatprep.mubr.bf16.mxu0 0
        %3053 = vmatmul.mubr.bf16.gmra.mrb[0].mxu0 %v2876
        %v3054 = vpop.f32.mrb[0].mxu0
        %v3055 = vadd.f32 0.0, %v3054
        %v3056 = vpop.f32.mrb[0].mxu0
        %v3057 = vpop.f32.mrb[0].mxu0
        %v3058 = vadd.f32 0.0, %v3057
        %v3059 = vpop.f32.mrb[0].mxu0
        %3060 = vmatprep.mubr.bf16.mxu0 0
        %3061 = vmatmul.mubr.bf16.gmra.mrb[0].mxu0 %v2877
        %v3062 = vpop.f32.mrb[0].mxu0
        %v3063 = vadd.f32 0.0, %v3062
        %v3064 = vpop.f32.mrb[0].mxu0
        %v3065 = vpop.f32.mrb[0].mxu0
        %v3066 = vadd.f32 0.0, %v3065
        %v3067 = vpop.f32.mrb[0].mxu0
        %3068 = vmatprep.mubr.bf16.mxu0 0
        %3069 = vmatmul.mubr.bf16.gmra.mrb[0].mxu0 %v2878
        %v3070 = vpop.f32.mrb[0].mxu0
        %v3071 = vadd.f32 0.0, %v3070
        %v3072 = vpop.f32.mrb[0].mxu0
        %v3073 = vpop.f32.mrb[0].mxu0
        %v3074 = vadd.f32 0.0, %v3073
        %v3075 = vpop.f32.mrb[0].mxu0
        %3076 = vmatprep.mubr.bf16.mxu0 0
        %3077 = vmatmul.mubr.bf16.gmra.mrb[0].mxu0 %v2879
        %v3078 = vpop.f32.mrb[0].mxu0
        %v3079 = vadd.f32 0.0, %v3078
        %v3080 = vpop.f32.mrb[0].mxu0
        %v3081 = vpop.f32.mrb[0].mxu0
        %v3082 = vadd.f32 0.0, %v3081
        %v3083 = vpop.f32.mrb[0].mxu0
        %3084 = vmatprep.mubr.bf16.mxu0 0
        %3085 = vmatmul.mubr.bf16.gmra.mrb[0].mxu0 %v2880
        %v3086 = vpop.f32.mrb[0].mxu0
        %v3087 = vadd.f32 0.0, %v3086
        %v3088 = vpop.f32.mrb[0].mxu0
        %v3089 = vpop.f32.mrb[0].mxu0
        %v3090 = vadd.f32 0.0, %v3089
        %v3091 = vpop.f32.mrb[0].mxu0
        %3092 = vmatprep.mubr.bf16.mxu0 0
        %3093 = vmatmul.mubr.bf16.gmra.mrb[0].mxu0 %v2881
        %v3094 = vpop.f32.mrb[0].mxu0
        %v3095 = vadd.f32 0.0, %v3094
        %v3096 = vpop.f32.mrb[0].mxu0
        %v3097 = vpop.f32.mrb[0].mxu0
        %v3098 = vadd.f32 0.0, %v3097
        %v3099 = vpop.f32.mrb[0].mxu0
        %3100 = vmatprep.mubr.bf16.mxu0 0
        %3101 = vmatmul.mubr.bf16.gmra.mrb[0].mxu0 %v2882
        %v3102 = vpop.f32.mrb[0].mxu0
        %v3103 = vadd.f32 0.0, %v3102
        %v3104 = vpop.f32.mrb[0].mxu0
        %v3105 = vpop.f32.mrb[0].mxu0
        %v3106 = vadd.f32 0.0, %v3105
        %v3107 = vpop.f32.mrb[0].mxu0
        %3108 = vdwg.mxu0
        %v3109 = vadd.f32 %v2803, %v2983
        %v3110 = vadd.f32 %v2804, %v2986
        %v3111 = vadd.f32 %v2805, %v2991
        %v3112 = vadd.f32 %v2806, %v2994
        %v3113 = vadd.f32 %v2807, %v2999
        %v3114 = vadd.f32 %v2808, %v3002
        %v3115 = vadd.f32 %v2809, %v3007
        %v3116 = vadd.f32 %v2810, %v3010
        %v3117 = vadd.f32 %v2811, %v3015
        %v3118 = vadd.f32 %v2812, %v3018
        %v3119 = vadd.f32 %v2813, %v3023
        %v3120 = vadd.f32 %v2814, %v3026
        %v3121 = vadd.f32 %v2815, %v3031
        %v3122 = vadd.f32 %v2816, %v3034
        %v3123 = vadd.f32 %v2817, %v3039
        %v3124 = vadd.f32 %v2818, %v3042
        %v3125 = vadd.f32 %v2819, %v3047
        %v3126 = vadd.f32 %v2820, %v3050
        %v3127 = vadd.f32 %v2821, %v3055
        %v3128 = vadd.f32 %v2822, %v3058
        %v3129 = vadd.f32 %v2823, %v3063
        %v3130 = vadd.f32 %v2824, %v3066
        %v3131 = vadd.f32 %v2825, %v3071
        %v3132 = vadd.f32 %v2826, %v3074
        %v3133 = vadd.f32 %v2827, %v3079
        %v3134 = vadd.f32 %v2828, %v3082
        %v3135 = vadd.f32 %v2829, %v3087
        %v3136 = vadd.f32 %v2830, %v3090
        %v3137 = vadd.f32 %v2831, %v3095
        %v3138 = vadd.f32 %v2832, %v3098
        %v3139 = vadd.f32 %v2833, %v3103
        %v3140 = vadd.f32 %v2834, %v3106
        %v3141 = vld [vmem:[%s2] sm:$0x1]
        %v3143 = vlaneseq
        %v3144 = vshrl.u32 %v3143, 7
        %v3145 = vsub.s32 0, %v3144
        %v3146 = vrot.slane %v3141, %v3145
        %v3148 = vadd.f32 %v3109, %v3146
        %v3149 = vadd.f32 %v3110, %v3146
        %v3150 = vadd.f32 %v3111, %v3146
        %v3151 = vadd.f32 %v3112, %v3146
        %v3152 = vadd.f32 %v3113, %v3146
        %v3153 = vadd.f32 %v3114, %v3146
        %v3154 = vadd.f32 %v3115, %v3146
        %v3155 = vadd.f32 %v3116, %v3146
        %v3156 = vadd.f32 %v3117, %v3146
        %v3157 = vadd.f32 %v3118, %v3146
        %v3158 = vadd.f32 %v3119, %v3146
        %v3159 = vadd.f32 %v3120, %v3146
        %v3160 = vadd.f32 %v3121, %v3146
        %v3161 = vadd.f32 %v3122, %v3146
        %v3162 = vadd.f32 %v3123, %v3146
        %v3163 = vadd.f32 %v3124, %v3146
        %v3164 = vadd.f32 %v3125, %v3146
        %v3165 = vadd.f32 %v3126, %v3146
        %v3166 = vadd.f32 %v3127, %v3146
        %v3167 = vadd.f32 %v3128, %v3146
        %v3168 = vadd.f32 %v3129, %v3146
        %v3169 = vadd.f32 %v3130, %v3146
        %v3170 = vadd.f32 %v3131, %v3146
        %v3171 = vadd.f32 %v3132, %v3146
        %v3172 = vadd.f32 %v3133, %v3146
        %v3173 = vadd.f32 %v3134, %v3146
        %v3174 = vadd.f32 %v3135, %v3146
        %v3175 = vadd.f32 %v3136, %v3146
        %v3176 = vadd.f32 %v3137, %v3146
        %v3177 = vadd.f32 %v3138, %v3146
        %v3178 = vadd.f32 %v3139, %v3146
        %v3179 = vadd.f32 %v3140, %v3146
        %v3180 = vadd.f32 %v3148, %v3149
        %v3181 = vadd.f32 %v3180, %v3150
        %v3182 = vadd.f32 %v3181, %v3151
        %v3183 = vadd.f32 %v3182, %v3152
        %v3184 = vadd.f32 %v3183, %v3153
        %v3185 = vadd.f32 %v3184, %v3154
        %v3186 = vadd.f32 %v3185, %v3155
        %v3187 = vadd.f32 %v3186, %v3156
        %v3188 = vadd.f32 %v3187, %v3157
        %v3189 = vadd.f32 %v3188, %v3158
        %v3190 = vadd.f32 %v3189, %v3159
        %v3191 = vadd.f32 %v3190, %v3160
        %v3192 = vadd.f32 %v3191, %v3161
        %v3193 = vadd.f32 %v3192, %v3162
        %v3194 = vadd.f32 %v3193, %v3163
        %v3195 = vadd.f32 %v3194, %v3164
        %v3196 = vadd.f32 %v3195, %v3165
        %v3197 = vadd.f32 %v3196, %v3166
        %v3198 = vadd.f32 %v3197, %v3167
        %v3199 = vadd.f32 %v3198, %v3168
        %v3200 = vadd.f32 %v3199, %v3169
        %v3201 = vadd.f32 %v3200, %v3170
        %v3202 = vadd.f32 %v3201, %v3171
        %v3203 = vadd.f32 %v3202, %v3172
        %v3204 = vadd.f32 %v3203, %v3173
        %v3205 = vadd.f32 %v3204, %v3174
        %v3206 = vadd.f32 %v3205, %v3175
        %v3207 = vadd.f32 %v3206, %v3176
        %v3208 = vadd.f32 %v3207, %v3177
        %v3209 = vadd.f32 %v3208, %v3178
        %v3210 = vadd.f32 %v3209, %v3179
        %v3211 = vrot.slane %v3210, 4
        %v3212 = vadd.f32 %v3210, %v3211
        %v3213 = vrot.slane %v3212, 2
        %v3214 = vadd.f32 %v3212, %v3213
        %v3215 = vrot.slane %v3214, 1
        %v3216 = vadd.f32 %v3214, %v3215
        %v3217 = vrcp.pop 256.0
        %v3218 = vmul.f32 %v3216, %v3217
        %v3219 = vsub.f32 %v3148, %v3218
        %v3220 = vsub.f32 %v3149, %v3218
        %v3221 = vsub.f32 %v3150, %v3218
        %v3222 = vsub.f32 %v3151, %v3218
        %v3223 = vsub.f32 %v3152, %v3218
        %v3224 = vsub.f32 %v3153, %v3218
        %v3225 = vsub.f32 %v3154, %v3218
        %v3226 = vsub.f32 %v3155, %v3218
        %v3227 = vsub.f32 %v3156, %v3218
        %v3228 = vsub.f32 %v3157, %v3218
        %v3229 = vsub.f32 %v3158, %v3218
        %v3230 = vsub.f32 %v3159, %v3218
        %v3231 = vsub.f32 %v3160, %v3218
        %v3232 = vsub.f32 %v3161, %v3218
        %v3233 = vsub.f32 %v3162, %v3218
        %v3234 = vsub.f32 %v3163, %v3218
        %v3235 = vsub.f32 %v3164, %v3218
        %v3236 = vsub.f32 %v3165, %v3218
        %v3237 = vsub.f32 %v3166, %v3218
        %v3238 = vsub.f32 %v3167, %v3218
        %v3239 = vsub.f32 %v3168, %v3218
        %v3240 = vsub.f32 %v3169, %v3218
        %v3241 = vsub.f32 %v3170, %v3218
        %v3242 = vsub.f32 %v3171, %v3218
        %v3243 = vsub.f32 %v3172, %v3218
        %v3244 = vsub.f32 %v3173, %v3218
        %v3245 = vsub.f32 %v3174, %v3218
        %v3246 = vsub.f32 %v3175, %v3218
        %v3247 = vsub.f32 %v3176, %v3218
        %v3248 = vsub.f32 %v3177, %v3218
        %v3249 = vsub.f32 %v3178, %v3218
        %v3250 = vsub.f32 %v3179, %v3218
        %v3251 = vmul.f32 %v3219, %v3219
        %v3252 = vmul.f32 %v3220, %v3220
        %v3253 = vmul.f32 %v3221, %v3221
        %v3254 = vmul.f32 %v3222, %v3222
        %v3255 = vmul.f32 %v3223, %v3223
        %v3256 = vmul.f32 %v3224, %v3224
        %v3257 = vmul.f32 %v3225, %v3225
        %v3258 = vmul.f32 %v3226, %v3226
        %v3259 = vmul.f32 %v3227, %v3227
        %v3260 = vmul.f32 %v3228, %v3228
        %v3261 = vmul.f32 %v3229, %v3229
        %v3262 = vmul.f32 %v3230, %v3230
        %v3263 = vmul.f32 %v3231, %v3231
        %v3264 = vmul.f32 %v3232, %v3232
        %v3265 = vmul.f32 %v3233, %v3233
        %v3266 = vmul.f32 %v3234, %v3234
        %v3267 = vmul.f32 %v3235, %v3235
        %v3268 = vmul.f32 %v3236, %v3236
        %v3269 = vmul.f32 %v3237, %v3237
        %v3270 = vmul.f32 %v3238, %v3238
        %v3271 = vmul.f32 %v3239, %v3239
        %v3272 = vmul.f32 %v3240, %v3240
        %v3273 = vmul.f32 %v3241, %v3241
        %v3274 = vmul.f32 %v3242, %v3242
        %v3275 = vmul.f32 %v3243, %v3243
        %v3276 = vmul.f32 %v3244, %v3244
        %v3277 = vmul.f32 %v3245, %v3245
        %v3278 = vmul.f32 %v3246, %v3246
        %v3279 = vmul.f32 %v3247, %v3247
        %v3280 = vmul.f32 %v3248, %v3248
        %v3281 = vmul.f32 %v3249, %v3249
        %v3282 = vmul.f32 %v3250, %v3250
        %v3283 = vadd.f32 %v3251, %v3252
        %v3284 = vadd.f32 %v3283, %v3253
        %v3285 = vadd.f32 %v3284, %v3254
        %v3286 = vadd.f32 %v3285, %v3255
        %v3287 = vadd.f32 %v3286, %v3256
        %v3288 = vadd.f32 %v3287, %v3257
        %v3289 = vadd.f32 %v3288, %v3258
        %v3290 = vadd.f32 %v3289, %v3259
        %v3291 = vadd.f32 %v3290, %v3260
        %v3292 = vadd.f32 %v3291, %v3261
        %v3293 = vadd.f32 %v3292, %v3262
        %v3294 = vadd.f32 %v3293, %v3263
        %v3295 = vadd.f32 %v3294, %v3264
        %v3296 = vadd.f32 %v3295, %v3265
        %v3297 = vadd.f32 %v3296, %v3266
        %v3298 = vadd.f32 %v3297, %v3267
        %v3299 = vadd.f32 %v3298, %v3268
        %v3300 = vadd.f32 %v3299, %v3269
        %v3301 = vadd.f32 %v3300, %v3270
        %v3302 = vadd.f32 %v3301, %v3271
        %v3303 = vadd.f32 %v3302, %v3272
        %v3304 = vadd.f32 %v3303, %v3273
        %v3305 = vadd.f32 %v3304, %v3274
        %v3306 = vadd.f32 %v3305, %v3275
        %v3307 = vadd.f32 %v3306, %v3276
        %v3308 = vadd.f32 %v3307, %v3277
        %v3309 = vadd.f32 %v3308, %v3278
        %v3310 = vadd.f32 %v3309, %v3279
        %v3311 = vadd.f32 %v3310, %v3280
        %v3312 = vadd.f32 %v3311, %v3281
        %v3313 = vadd.f32 %v3312, %v3282
        %v3314 = vrot.slane %v3313, 4
        %v3315 = vadd.f32 %v3313, %v3314
        %v3316 = vrot.slane %v3315, 2
        %v3317 = vadd.f32 %v3315, %v3316
        %v3318 = vrot.slane %v3317, 1
        %v3319 = vadd.f32 %v3317, %v3318
        %v3320 = vmul.f32 %v3319, %v3217
        %v3321 = vadd.f32 %v3320, 1e-05
        %v3322 = vrsqrt.pop %v3321
        %v3323 = vmul.f32 %v3219, %v3322
        %v3324 = vmul.f32 %v3220, %v3322
        %v3325 = vmul.f32 %v3221, %v3322
        %v3326 = vmul.f32 %v3222, %v3322
        %v3327 = vmul.f32 %v3223, %v3322
        %v3328 = vmul.f32 %v3224, %v3322
        %v3329 = vmul.f32 %v3225, %v3322
        %v3330 = vmul.f32 %v3226, %v3322
        %v3331 = vmul.f32 %v3227, %v3322
        %v3332 = vmul.f32 %v3228, %v3322
        %v3333 = vmul.f32 %v3229, %v3322
        %v3334 = vmul.f32 %v3230, %v3322
        %v3335 = vmul.f32 %v3231, %v3322
        %v3336 = vmul.f32 %v3232, %v3322
        %v3337 = vmul.f32 %v3233, %v3322
        %v3338 = vmul.f32 %v3234, %v3322
        %v3339 = vmul.f32 %v3235, %v3322
        %v3340 = vmul.f32 %v3236, %v3322
        %v3341 = vmul.f32 %v3237, %v3322
        %v3342 = vmul.f32 %v3238, %v3322
        %v3343 = vmul.f32 %v3239, %v3322
        %v3344 = vmul.f32 %v3240, %v3322
        %v3345 = vmul.f32 %v3241, %v3322
        %v3346 = vmul.f32 %v3242, %v3322
        %v3347 = vmul.f32 %v3243, %v3322
        %v3348 = vmul.f32 %v3244, %v3322
        %v3349 = vmul.f32 %v3245, %v3322
        %v3350 = vmul.f32 %v3246, %v3322
        %v3351 = vmul.f32 %v3247, %v3322
        %v3352 = vmul.f32 %v3248, %v3322
        %v3353 = vmul.f32 %v3249, %v3322
        %v3354 = vmul.f32 %v3250, %v3322
        %v3355 = vld [vmem:[%s3] sm:$0x1]
        %v3357 = vlaneseq
        %v3358 = vshrl.u32 %v3357, 7
        %v3359 = vsub.s32 0, %v3358
        %v3360 = vrot.slane %v3355, %v3359
        %v3362 = vmul.f32 %v3323, %v3360
        %v3363 = vmul.f32 %v3324, %v3360
        %v3364 = vmul.f32 %v3325, %v3360
        %v3365 = vmul.f32 %v3326, %v3360
        %v3366 = vmul.f32 %v3327, %v3360
        %v3367 = vmul.f32 %v3328, %v3360
        %v3368 = vmul.f32 %v3329, %v3360
        %v3369 = vmul.f32 %v3330, %v3360
        %v3370 = vmul.f32 %v3331, %v3360
        %v3371 = vmul.f32 %v3332, %v3360
        %v3372 = vmul.f32 %v3333, %v3360
        %v3373 = vmul.f32 %v3334, %v3360
        %v3374 = vmul.f32 %v3335, %v3360
        %v3375 = vmul.f32 %v3336, %v3360
        %v3376 = vmul.f32 %v3337, %v3360
        %v3377 = vmul.f32 %v3338, %v3360
        %v3378 = vmul.f32 %v3339, %v3360
        %v3379 = vmul.f32 %v3340, %v3360
        %v3380 = vmul.f32 %v3341, %v3360
        %v3381 = vmul.f32 %v3342, %v3360
        %v3382 = vmul.f32 %v3343, %v3360
        %v3383 = vmul.f32 %v3344, %v3360
        %v3384 = vmul.f32 %v3345, %v3360
        %v3385 = vmul.f32 %v3346, %v3360
        %v3386 = vmul.f32 %v3347, %v3360
        %v3387 = vmul.f32 %v3348, %v3360
        %v3388 = vmul.f32 %v3349, %v3360
        %v3389 = vmul.f32 %v3350, %v3360
        %v3390 = vmul.f32 %v3351, %v3360
        %v3391 = vmul.f32 %v3352, %v3360
        %v3392 = vmul.f32 %v3353, %v3360
        %v3393 = vmul.f32 %v3354, %v3360
        %v3394 = vld [vmem:[%s4] sm:$0x1]
        %v3396 = vlaneseq
        %v3397 = vshrl.u32 %v3396, 7
        %v3398 = vsub.s32 0, %v3397
        %v3399 = vrot.slane %v3394, %v3398
        %v3401 = vadd.f32 %v3362, %v3399
        %v3402 = vadd.f32 %v3363, %v3399
        %v3403 = vadd.f32 %v3364, %v3399
        %v3404 = vadd.f32 %v3365, %v3399
        %v3405 = vadd.f32 %v3366, %v3399
        %v3406 = vadd.f32 %v3367, %v3399
        %v3407 = vadd.f32 %v3368, %v3399
        %v3408 = vadd.f32 %v3369, %v3399
        %v3409 = vadd.f32 %v3370, %v3399
        %v3410 = vadd.f32 %v3371, %v3399
        %v3411 = vadd.f32 %v3372, %v3399
        %v3412 = vadd.f32 %v3373, %v3399
        %v3413 = vadd.f32 %v3374, %v3399
        %v3414 = vadd.f32 %v3375, %v3399
        %v3415 = vadd.f32 %v3376, %v3399
        %v3416 = vadd.f32 %v3377, %v3399
        %v3417 = vadd.f32 %v3378, %v3399
        %v3418 = vadd.f32 %v3379, %v3399
        %v3419 = vadd.f32 %v3380, %v3399
        %v3420 = vadd.f32 %v3381, %v3399
        %v3421 = vadd.f32 %v3382, %v3399
        %v3422 = vadd.f32 %v3383, %v3399
        %v3423 = vadd.f32 %v3384, %v3399
        %v3424 = vadd.f32 %v3385, %v3399
        %v3425 = vadd.f32 %v3386, %v3399
        %v3426 = vadd.f32 %v3387, %v3399
        %v3427 = vadd.f32 %v3388, %v3399
        %v3428 = vadd.f32 %v3389, %v3399
        %v3429 = vadd.f32 %v3390, %v3399
        %v3430 = vadd.f32 %v3391, %v3399
        %v3431 = vadd.f32 %v3392, %v3399
        %v3432 = vadd.f32 %v3393, %v3399
        %v3433 = vmax.f32 %v3401, 0.0
        %v3434 = vmax.f32 %v3402, 0.0
        %v3435 = vmax.f32 %v3403, 0.0
        %v3436 = vmax.f32 %v3404, 0.0
        %v3437 = vmax.f32 %v3405, 0.0
        %v3438 = vmax.f32 %v3406, 0.0
        %v3439 = vmax.f32 %v3407, 0.0
        %v3440 = vmax.f32 %v3408, 0.0
        %v3441 = vmax.f32 %v3409, 0.0
        %v3442 = vmax.f32 %v3410, 0.0
        %v3443 = vmax.f32 %v3411, 0.0
        %v3444 = vmax.f32 %v3412, 0.0
        %v3445 = vmax.f32 %v3413, 0.0
        %v3446 = vmax.f32 %v3414, 0.0
        %v3447 = vmax.f32 %v3415, 0.0
        %v3448 = vmax.f32 %v3416, 0.0
        %v3449 = vmax.f32 %v3417, 0.0
        %v3450 = vmax.f32 %v3418, 0.0
        %v3451 = vmax.f32 %v3419, 0.0
        %v3452 = vmax.f32 %v3420, 0.0
        %v3453 = vmax.f32 %v3421, 0.0
        %v3454 = vmax.f32 %v3422, 0.0
        %v3455 = vmax.f32 %v3423, 0.0
        %v3456 = vmax.f32 %v3424, 0.0
        %v3457 = vmax.f32 %v3425, 0.0
        %v3458 = vmax.f32 %v3426, 0.0
        %v3459 = vmax.f32 %v3427, 0.0
        %v3460 = vmax.f32 %v3428, 0.0
        %v3461 = vmax.f32 %v3429, 0.0
        %v3462 = vmax.f32 %v3430, 0.0
        %v3463 = vmax.f32 %v3431, 0.0
        %v3464 = vmax.f32 %v3432, 0.0
        %3465 = vst [vmem:[#allocation3] sm:$0xff] 0.0
        %3466 = vst [vmem:[#allocation3 + $0x8] sm:$0xff] 0.0
        %3467 = vst [vmem:[#allocation3 + $0x10] sm:$0x3] 0.0
        %3468 = vst [vmem:[#allocation3 + $0x18] sm:$0xff] 0.0
        %3469 = vst [vmem:[#allocation3 + $0x20] sm:$0xff] 0.0
        %3470 = vst [vmem:[#allocation3 + $0x28] sm:$0x3] 0.0
        %3471 = vst [vmem:[#allocation3 + $0x30] sm:$0xff] 0.0
        %3472 = vst [vmem:[#allocation3 + $0x38] sm:$0xff] 0.0
        %3473 = vst [vmem:[#allocation3 + $0x40] sm:$0x3] 0.0
        %3474 = vst [vmem:[#allocation3 + $0x48] sm:$0xff] 0.0
        %3475 = vst [vmem:[#allocation3 + $0x50] sm:$0xff] 0.0
        %3476 = vst [vmem:[#allocation3 + $0x58] sm:$0x3] 0.0
        %3477 = vst [vmem:[#allocation3 + $0x60] sm:$0xff] 0.0
        %3478 = vst [vmem:[#allocation3 + $0x68] sm:$0xff] 0.0
        %3479 = vst [vmem:[#allocation3 + $0x70] sm:$0x3] 0.0
        %3480 = vst [vmem:[#allocation3 + $0x78] sm:$0xff] 0.0
        %3481 = vst [vmem:[#allocation3 + $0x80] sm:$0xff] 0.0
        %3482 = vst [vmem:[#allocation3 + $0x88] sm:$0x3] 0.0
        %3483 = vst [vmem:[#allocation3 + $0x90] sm:$0xff] 0.0
        %3484 = vst [vmem:[#allocation3 + $0x98] sm:$0xff] 0.0
        %3485 = vst [vmem:[#allocation3 + $0xa0] sm:$0x3] 0.0
        %3486 = vst [vmem:[#allocation3 + $0xa8] sm:$0xff] 0.0
        %3487 = vst [vmem:[#allocation3 + $0xb0] sm:$0xff] 0.0
        %3488 = vst [vmem:[#allocation3 + $0xb8] sm:$0x3] 0.0
        %3489 = vst [vmem:[#allocation3 + $0xc0] sm:$0xff] 0.0
        %3490 = vst [vmem:[#allocation3 + $0xc8] sm:$0xff] 0.0
        %3491 = vst [vmem:[#allocation3 + $0xd0] sm:$0x3] 0.0
        %3492 = vst [vmem:[#allocation3 + $0xd8] sm:$0xff] 0.0
        %3493 = vst [vmem:[#allocation3 + $0xe0] sm:$0xff] 0.0
        %3494 = vst [vmem:[#allocation3 + $0xe8] sm:$0x3] 0.0
        %3495 = vst [vmem:[#allocation3 + $0xf0] sm:$0xff] 0.0
        %3496 = vst [vmem:[#allocation3 + $0xf8] sm:$0xff] 0.0
        %3497 = vst [vmem:[#allocation3 + $0x100] sm:$0x3] 0.0
        %3498 = vst [vmem:[#allocation3 + $0x108] sm:$0xff] 0.0
        %3499 = vst [vmem:[#allocation3 + $0x110] sm:$0xff] 0.0
        %3500 = vst [vmem:[#allocation3 + $0x118] sm:$0x3] 0.0
        %3501 = vst [vmem:[#allocation3 + $0x120] sm:$0xff] 0.0
        %3502 = vst [vmem:[#allocation3 + $0x128] sm:$0xff] 0.0
        %3503 = vst [vmem:[#allocation3 + $0x130] sm:$0x3] 0.0
        %3504 = vst [vmem:[#allocation3 + $0x138] sm:$0xff] 0.0
        %3505 = vst [vmem:[#allocation3 + $0x140] sm:$0xff] 0.0
        %3506 = vst [vmem:[#allocation3 + $0x148] sm:$0x3] 0.0
        %3507 = vst [vmem:[#allocation3 + $0x150] sm:$0xff] 0.0
        %3508 = vst [vmem:[#allocation3 + $0x158] sm:$0xff] 0.0
        %3509 = vst [vmem:[#allocation3 + $0x160] sm:$0x3] 0.0
        %3510 = vst [vmem:[#allocation3 + $0x168] sm:$0xff] 0.0
        %3511 = vst [vmem:[#allocation3 + $0x170] sm:$0xff] 0.0
        %3512 = vst [vmem:[#allocation3 + $0x178] sm:$0x3] 0.0
        %3513 = vst [vmem:[#allocation3 + $0x180] sm:$0xff] 0.0
        %3514 = vst [vmem:[#allocation3 + $0x188] sm:$0xff] 0.0
        %3515 = vst [vmem:[#allocation3 + $0x190] sm:$0x3] 0.0
        %3516 = vst [vmem:[#allocation3 + $0x198] sm:$0xff] 0.0
        %3517 = vst [vmem:[#allocation3 + $0x1a0] sm:$0xff] 0.0
        %3518 = vst [vmem:[#allocation3 + $0x1a8] sm:$0x3] 0.0
        %s3519 = scalar_lea.vmem [#allocation3], 24
        %3520 = vst [vmem:[%s3519 + $0x1] sm:$0xff] %v3433
        %3521 = vst [vmem:[%s3519 + $0x9] sm:$0xff] %v3434
        %3522 = vst [vmem:[%s3519 + $0x19] sm:$0xff] %v3435
        %3523 = vst [vmem:[%s3519 + $0x21] sm:$0xff] %v3436
        %3524 = vst [vmem:[%s3519 + $0x31] sm:$0xff] %v3437
        %3525 = vst [vmem:[%s3519 + $0x39] sm:$0xff] %v3438
        %3526 = vst [vmem:[%s3519 + $0x49] sm:$0xff] %v3439
        %3527 = vst [vmem:[%s3519 + $0x51] sm:$0xff] %v3440
        %3528 = vst [vmem:[%s3519 + $0x61] sm:$0xff] %v3441
        %3529 = vst [vmem:[%s3519 + $0x69] sm:$0xff] %v3442
        %3530 = vst [vmem:[%s3519 + $0x79] sm:$0xff] %v3443
        %3531 = vst [vmem:[%s3519 + $0x81] sm:$0xff] %v3444
        %3532 = vst [vmem:[%s3519 + $0x91] sm:$0xff] %v3445
        %3533 = vst [vmem:[%s3519 + $0x99] sm:$0xff] %v3446
        %3534 = vst [vmem:[%s3519 + $0xa9] sm:$0xff] %v3447
        %3535 = vst [vmem:[%s3519 + $0xb1] sm:$0xff] %v3448
        %3536 = vst [vmem:[%s3519 + $0xc1] sm:$0xff] %v3449
        %3537 = vst [vmem:[%s3519 + $0xc9] sm:$0xff] %v3450
        %3538 = vst [vmem:[%s3519 + $0xd9] sm:$0xff] %v3451
        %3539 = vst [vmem:[%s3519 + $0xe1] sm:$0xff] %v3452
        %3540 = vst [vmem:[%s3519 + $0xf1] sm:$0xff] %v3453
        %3541 = vst [vmem:[%s3519 + $0xf9] sm:$0xff] %v3454
        %3542 = vst [vmem:[%s3519 + $0x109] sm:$0xff] %v3455
        %3543 = vst [vmem:[%s3519 + $0x111] sm:$0xff] %v3456
        %3544 = vst [vmem:[%s3519 + $0x121] sm:$0xff] %v3457
        %3545 = vst [vmem:[%s3519 + $0x129] sm:$0xff] %v3458
        %3546 = vst [vmem:[%s3519 + $0x139] sm:$0xff] %v3459
        %3547 = vst [vmem:[%s3519 + $0x141] sm:$0xff] %v3460
        %3548 = vst [vmem:[%s3519 + $0x151] sm:$0xff] %v3461
        %3549 = vst [vmem:[%s3519 + $0x159] sm:$0xff] %v3462
        %3550 = vst [vmem:[%s3519 + $0x169] sm:$0xff] %v3463
        %3551 = vst [vmem:[%s3519 + $0x171] sm:$0xff] %v3464
        %v3552 = vld [vmem:[#allocation3] sm:$0xff]
        %v3553 = vld [vmem:[#allocation3 + $0x8] sm:$0xff]
        %v3554 = vld [vmem:[#allocation3 + $0x18] sm:$0xff]
        %v3555 = vld [vmem:[#allocation3 + $0x20] sm:$0xff]
        %v3556 = vld [vmem:[#allocation3 + $0x30] sm:$0xff]
        %v3557 = vld [vmem:[#allocation3 + $0x38] sm:$0xff]
        %v3558 = vld [vmem:[#allocation3 + $0x48] sm:$0xff]
        %v3559 = vld [vmem:[#allocation3 + $0x50] sm:$0xff]
        %v3560 = vld [vmem:[#allocation3 + $0x60] sm:$0xff]
        %v3561 = vld [vmem:[#allocation3 + $0x68] sm:$0xff]
        %v3562 = vld [vmem:[#allocation3 + $0x78] sm:$0xff]
        %v3563 = vld [vmem:[#allocation3 + $0x80] sm:$0xff]
        %v3564 = vld [vmem:[#allocation3 + $0x90] sm:$0xff]
        %v3565 = vld [vmem:[#allocation3 + $0x98] sm:$0xff]
        %v3566 = vld [vmem:[#allocation3 + $0xa8] sm:$0xff]
        %v3567 = vld [vmem:[#allocation3 + $0xb0] sm:$0xff]
        %v3568 = vld [vmem:[#allocation3 + $0xc0] sm:$0xff]
        %v3569 = vld [vmem:[#allocation3 + $0xc8] sm:$0xff]
        %v3570 = vld [vmem:[#allocation3 + $0xd8] sm:$0xff]
        %v3571 = vld [vmem:[#allocation3 + $0xe0] sm:$0xff]
        %v3572 = vld [vmem:[#allocation3 + $0xf0] sm:$0xff]
        %v3573 = vld [vmem:[#allocation3 + $0xf8] sm:$0xff]
        %v3574 = vld [vmem:[#allocation3 + $0x108] sm:$0xff]
        %v3575 = vld [vmem:[#allocation3 + $0x110] sm:$0xff]
        %v3576 = vld [vmem:[#allocation3 + $0x120] sm:$0xff]
        %v3577 = vld [vmem:[#allocation3 + $0x128] sm:$0xff]
        %v3578 = vld [vmem:[#allocation3 + $0x138] sm:$0xff]
        %v3579 = vld [vmem:[#allocation3 + $0x140] sm:$0xff]
        %v3580 = vld [vmem:[#allocation3 + $0x150] sm:$0xff]
        %v3581 = vld [vmem:[#allocation3 + $0x158] sm:$0xff]
        %v3582 = vld [vmem:[#allocation3 + $0x168] sm:$0xff]
        %v3583 = vld [vmem:[#allocation3 + $0x170] sm:$0xff]
        %v3584 = vpack.c.bf16 %v3553, %v3552
        %v3585 = vpack.c.bf16 %v3555, %v3554
        %v3586 = vpack.c.bf16 %v3557, %v3556
        %v3587 = vpack.c.bf16 %v3559, %v3558
        %v3588 = vpack.c.bf16 %v3561, %v3560
        %v3589 = vpack.c.bf16 %v3563, %v3562
        %v3590 = vpack.c.bf16 %v3565, %v3564
        %v3591 = vpack.c.bf16 %v3567, %v3566
        %v3592 = vpack.c.bf16 %v3569, %v3568
        %v3593 = vpack.c.bf16 %v3571, %v3570
        %v3594 = vpack.c.bf16 %v3573, %v3572
        %v3595 = vpack.c.bf16 %v3575, %v3574
        %v3596 = vpack.c.bf16 %v3577, %v3576
        %v3597 = vpack.c.bf16 %v3579, %v3578
        %v3598 = vpack.c.bf16 %v3581, %v3580
        %v3599 = vpack.c.bf16 %v3583, %v3582
        %v3600 = vld [vmem:[%s5] sm:$0xf]
        %v3601 = vld [vmem:[%s5 + $0x4] sm:$0xf]
        %v3602 = vld [vmem:[%s5 + $0x8] sm:$0xf]
        %v3603 = vld [vmem:[%s5 + $0xc] sm:$0xf]
        %v3604 = vld [vmem:[%s5 + $0x10] sm:$0xf]
        %v3605 = vld [vmem:[%s5 + $0x14] sm:$0xf]
        %v3606 = vld [vmem:[%s5 + $0x18] sm:$0xf]
        %v3607 = vld [vmem:[%s5 + $0x1c] sm:$0xf]
        %v3608 = vld [vmem:[%s5 + $0x20] sm:$0xf]
        %v3609 = vld [vmem:[%s5 + $0x24] sm:$0xf]
        %v3610 = vld [vmem:[%s5 + $0x28] sm:$0xf]
        %v3611 = vld [vmem:[%s5 + $0x2c] sm:$0xf]
        %v3612 = vld [vmem:[%s5 + $0x30] sm:$0xf]
        %v3613 = vld [vmem:[%s5 + $0x34] sm:$0xf]
        %v3614 = vld [vmem:[%s5 + $0x38] sm:$0xf]
        %v3615 = vld [vmem:[%s5 + $0x3c] sm:$0xf]
        %v3616 = vld [vmem:[#allocation3 + $0x1] sm:$0xff]
        %v3617 = vld [vmem:[#allocation3 + $0x9] sm:$0xff]
        %v3618 = vld [vmem:[#allocation3 + $0x19] sm:$0xff]
        %v3619 = vld [vmem:[#allocation3 + $0x21] sm:$0xff]
        %v3620 = vld [vmem:[#allocation3 + $0x31] sm:$0xff]
        %v3621 = vld [vmem:[#allocation3 + $0x39] sm:$0xff]
        %v3622 = vld [vmem:[#allocation3 + $0x49] sm:$0xff]
        %v3623 = vld [vmem:[#allocation3 + $0x51] sm:$0xff]
        %v3624 = vld [vmem:[#allocation3 + $0x61] sm:$0xff]
        %v3625 = vld [vmem:[#allocation3 + $0x69] sm:$0xff]
        %v3626 = vld [vmem:[#allocation3 + $0x79] sm:$0xff]
        %v3627 = vld [vmem:[#allocation3 + $0x81] sm:$0xff]
        %v3628 = vld [vmem:[#allocation3 + $0x91] sm:$0xff]
        %v3629 = vld [vmem:[#allocation3 + $0x99] sm:$0xff]
        %v3630 = vld [vmem:[#allocation3 + $0xa9] sm:$0xff]
        %v3631 = vld [vmem:[#allocation3 + $0xb1] sm:$0xff]
        %v3632 = vld [vmem:[#allocation3 + $0xc1] sm:$0xff]
        %v3633 = vld [vmem:[#allocation3 + $0xc9] sm:$0xff]
        %v3634 = vld [vmem:[#allocation3 + $0xd9] sm:$0xff]
        %v3635 = vld [vmem:[#allocation3 + $0xe1] sm:$0xff]
        %v3636 = vld [vmem:[#allocation3 + $0xf1] sm:$0xff]
        %v3637 = vld [vmem:[#allocation3 + $0xf9] sm:$0xff]
        %v3638 = vld [vmem:[#allocation3 + $0x109] sm:$0xff]
        %v3639 = vld [vmem:[#allocation3 + $0x111] sm:$0xff]
        %v3640 = vld [vmem:[#allocation3 + $0x121] sm:$0xff]
        %v3641 = vld [vmem:[#allocation3 + $0x129] sm:$0xff]
        %v3642 = vld [vmem:[#allocation3 + $0x139] sm:$0xff]
        %v3643 = vld [vmem:[#allocation3 + $0x141] sm:$0xff]
        %v3644 = vld [vmem:[#allocation3 + $0x151] sm:$0xff]
        %v3645 = vld [vmem:[#allocation3 + $0x159] sm:$0xff]
        %v3646 = vld [vmem:[#allocation3 + $0x169] sm:$0xff]
        %v3647 = vld [vmem:[#allocation3 + $0x171] sm:$0xff]
        %v3648 = vpack.c.bf16 %v3617, %v3616
        %v3649 = vpack.c.bf16 %v3619, %v3618
        %v3650 = vpack.c.bf16 %v3621, %v3620
        %v3651 = vpack.c.bf16 %v3623, %v3622
        %v3652 = vpack.c.bf16 %v3625, %v3624
        %v3653 = vpack.c.bf16 %v3627, %v3626
        %v3654 = vpack.c.bf16 %v3629, %v3628
        %v3655 = vpack.c.bf16 %v3631, %v3630
        %v3656 = vpack.c.bf16 %v3633, %v3632
        %v3657 = vpack.c.bf16 %v3635, %v3634
        %v3658 = vpack.c.bf16 %v3637, %v3636
        %v3659 = vpack.c.bf16 %v3639, %v3638
        %v3660 = vpack.c.bf16 %v3641, %v3640
        %v3661 = vpack.c.bf16 %v3643, %v3642
        %v3662 = vpack.c.bf16 %v3645, %v3644
        %v3663 = vpack.c.bf16 %v3647, %v3646
        %s3664 = scalar_lea.vmem %s5, 64
        %v3665 = vld [vmem:[%s3664] sm:$0xf]
        %v3666 = vld [vmem:[%s3664 + $0x4] sm:$0xf]
        %v3667 = vld [vmem:[%s3664 + $0x8] sm:$0xf]
        %v3668 = vld [vmem:[%s3664 + $0xc] sm:$0xf]
        %v3669 = vld [vmem:[%s3664 + $0x10] sm:$0xf]
        %v3670 = vld [vmem:[%s3664 + $0x14] sm:$0xf]
        %v3671 = vld [vmem:[%s3664 + $0x18] sm:$0xf]
        %v3672 = vld [vmem:[%s3664 + $0x1c] sm:$0xf]
        %v3673 = vld [vmem:[%s3664 + $0x20] sm:$0xf]
        %v3674 = vld [vmem:[%s3664 + $0x24] sm:$0xf]
        %v3675 = vld [vmem:[%s3664 + $0x28] sm:$0xf]
        %v3676 = vld [vmem:[%s3664 + $0x2c] sm:$0xf]
        %v3677 = vld [vmem:[%s3664 + $0x30] sm:$0xf]
        %v3678 = vld [vmem:[%s3664 + $0x34] sm:$0xf]
        %v3679 = vld [vmem:[%s3664 + $0x38] sm:$0xf]
        %v3680 = vld [vmem:[%s3664 + $0x3c] sm:$0xf]
        %v3697 = vunpack.c.l.b16 %v3665
        %v3698 = vunpack.c.l.b16 %v3666
        %v3699 = vunpack.c.l.b16 %v3667
        %v3700 = vunpack.c.l.b16 %v3668
        %v3701 = vunpack.c.l.b16 %v3669
        %v3702 = vunpack.c.l.b16 %v3670
        %v3703 = vunpack.c.l.b16 %v3671
        %v3704 = vunpack.c.l.b16 %v3672
        %v3705 = vunpack.c.l.b16 %v3673
        %v3706 = vunpack.c.l.b16 %v3674
        %v3707 = vunpack.c.l.b16 %v3675
        %v3708 = vunpack.c.l.b16 %v3676
        %v3709 = vunpack.c.l.b16 %v3677
        %v3710 = vunpack.c.l.b16 %v3678
        %v3711 = vunpack.c.l.b16 %v3679
        %v3712 = vunpack.c.l.b16 %v3680
        %v3713 = vpack.c.b16 %v3698, %v3697
        %v3714 = vpack.c.b16 %v3700, %v3699
        %v3715 = vpack.c.b16 %v3702, %v3701
        %v3716 = vpack.c.b16 %v3704, %v3703
        %v3717 = vpack.c.b16 %v3706, %v3705
        %v3718 = vpack.c.b16 %v3708, %v3707
        %v3719 = vpack.c.b16 %v3710, %v3709
        %v3720 = vpack.c.b16 %v3712, %v3711
        %3729 = vmatprep.subr.bf16.mxu0 0
        %3730 = vmatpush1.bf16.msra.mxu0 %v3713
        %3731 = vmatprep.subr.bf16.mxu0 0
        %3732 = vmatpush1.bf16.msra.mxu0 %v3714
        %3733 = vmatprep.subr.bf16.mxu0 0
        %3734 = vmatpush1.bf16.msra.mxu0 %v3715
        %3735 = vmatprep.subr.bf16.mxu0 0
        %3736 = vmatpush1.bf16.msra.mxu0 %v3716
        %3737 = vmatprep.subr.bf16.mxu0 0
        %3738 = vmatpush1.bf16.msra.mxu0 %v3717
        %3739 = vmatprep.subr.bf16.mxu0 0
        %3740 = vmatpush1.bf16.msra.mxu0 %v3718
        %3741 = vmatprep.subr.bf16.mxu0 0
        %3742 = vmatpush1.bf16.msra.mxu0 %v3719
        %3743 = vmatprep.subr.bf16.mxu0 0
        %3744 = vmatpush1.bf16.msra.mxu0 %v3720
        %3745 = vmatprep.subr.bf16.mxu0 0
        %3746 = vmatpush1.bf16.msra.mxu0 0
        %3747 = vmatprep.subr.bf16.mxu0 0
        %3748 = vmatpush1.bf16.msra.mxu0 0
        %3749 = vmatprep.subr.bf16.mxu0 0
        %3750 = vmatpush1.bf16.msra.mxu0 0
        %3751 = vmatprep.subr.bf16.mxu0 0
        %3752 = vmatpush1.bf16.msra.mxu0 0
        %3753 = vmatprep.subr.bf16.mxu0 0
        %3754 = vmatpush1.bf16.msra.mxu0 0
        %3755 = vmatprep.subr.bf16.mxu0 0
        %3756 = vmatpush1.bf16.msra.mxu0 0
        %3757 = vmatprep.subr.bf16.mxu0 0
        %3758 = vmatpush1.bf16.msra.mxu0 0
        %3759 = vmatprep.subr.bf16.mxu0 0
        %3760 = vmatpush1.bf16.msra.mxu0 0
        %3761 = vmatprep.mubr.bf16.mxu0 0
        %3762 = vmatmul.mubr.bf16.gmra.mrb[0].mxu0 %v3648
        %v3763 = vpop.f32.mrb[0].mxu0
        %v3764 = vadd.f32 0.0, %v3763
        %v3765 = vpop.f32.mrb[0].mxu0
        %v3766 = vpop.f32.mrb[0].mxu0
        %v3767 = vadd.f32 0.0, %v3766
        %v3768 = vpop.f32.mrb[0].mxu0
        %3769 = vmatprep.mubr.bf16.mxu0 0
        %3770 = vmatmul.mubr.bf16.gmra.mrb[0].mxu0 %v3649
        %v3771 = vpop.f32.mrb[0].mxu0
        %v3772 = vadd.f32 0.0, %v3771
        %v3773 = vpop.f32.mrb[0].mxu0
        %v3774 = vpop.f32.mrb[0].mxu0
        %v3775 = vadd.f32 0.0, %v3774
        %v3776 = vpop.f32.mrb[0].mxu0
        %3777 = vmatprep.mubr.bf16.mxu0 0
        %3778 = vmatmul.mubr.bf16.gmra.mrb[0].mxu0 %v3650
        %v3779 = vpop.f32.mrb[0].mxu0
        %v3780 = vadd.f32 0.0, %v3779
        %v3781 = vpop.f32.mrb[0].mxu0
        %v3782 = vpop.f32.mrb[0].mxu0
        %v3783 = vadd.f32 0.0, %v3782
        %v3784 = vpop.f32.mrb[0].mxu0
        %3785 = vmatprep.mubr.bf16.mxu0 0
        %3786 = vmatmul.mubr.bf16.gmra.mrb[0].mxu0 %v3651
        %v3787 = vpop.f32.mrb[0].mxu0
        %v3788 = vadd.f32 0.0, %v3787
        %v3789 = vpop.f32.mrb[0].mxu0
        %v3790 = vpop.f32.mrb[0].mxu0
        %v3791 = vadd.f32 0.0, %v3790
        %v3792 = vpop.f32.mrb[0].mxu0
        %3793 = vmatprep.mubr.bf16.mxu0 0
        %3794 = vmatmul.mubr.bf16.gmra.mrb[0].mxu0 %v3652
        %v3795 = vpop.f32.mrb[0].mxu0
        %v3796 = vadd.f32 0.0, %v3795
        %v3797 = vpop.f32.mrb[0].mxu0
        %v3798 = vpop.f32.mrb[0].mxu0
        %v3799 = vadd.f32 0.0, %v3798
        %v3800 = vpop.f32.mrb[0].mxu0
        %3801 = vmatprep.mubr.bf16.mxu0 0
        %3802 = vmatmul.mubr.bf16.gmra.mrb[0].mxu0 %v3653
        %v3803 = vpop.f32.mrb[0].mxu0
        %v3804 = vadd.f32 0.0, %v3803
        %v3805 = vpop.f32.mrb[0].mxu0
        %v3806 = vpop.f32.mrb[0].mxu0
        %v3807 = vadd.f32 0.0, %v3806
        %v3808 = vpop.f32.mrb[0].mxu0
        %3809 = vmatprep.mubr.bf16.mxu0 0
        %3810 = vmatmul.mubr.bf16.gmra.mrb[0].mxu0 %v3654
        %v3811 = vpop.f32.mrb[0].mxu0
        %v3812 = vadd.f32 0.0, %v3811
        %v3813 = vpop.f32.mrb[0].mxu0
        %v3814 = vpop.f32.mrb[0].mxu0
        %v3815 = vadd.f32 0.0, %v3814
        %v3816 = vpop.f32.mrb[0].mxu0
        %3817 = vmatprep.mubr.bf16.mxu0 0
        %3818 = vmatmul.mubr.bf16.gmra.mrb[0].mxu0 %v3655
        %v3819 = vpop.f32.mrb[0].mxu0
        %v3820 = vadd.f32 0.0, %v3819
        %v3821 = vpop.f32.mrb[0].mxu0
        %v3822 = vpop.f32.mrb[0].mxu0
        %v3823 = vadd.f32 0.0, %v3822
        %v3824 = vpop.f32.mrb[0].mxu0
        %3825 = vmatprep.mubr.bf16.mxu0 0
        %3826 = vmatmul.mubr.bf16.gmra.mrb[0].mxu0 %v3656
        %v3827 = vpop.f32.mrb[0].mxu0
        %v3828 = vadd.f32 0.0, %v3827
        %v3829 = vpop.f32.mrb[0].mxu0
        %v3830 = vpop.f32.mrb[0].mxu0
        %v3831 = vadd.f32 0.0, %v3830
        %v3832 = vpop.f32.mrb[0].mxu0
        %3833 = vmatprep.mubr.bf16.mxu0 0
        %3834 = vmatmul.mubr.bf16.gmra.mrb[0].mxu0 %v3657
        %v3835 = vpop.f32.mrb[0].mxu0
        %v3836 = vadd.f32 0.0, %v3835
        %v3837 = vpop.f32.mrb[0].mxu0
        %v3838 = vpop.f32.mrb[0].mxu0
        %v3839 = vadd.f32 0.0, %v3838
        %v3840 = vpop.f32.mrb[0].mxu0
        %3841 = vmatprep.mubr.bf16.mxu0 0
        %3842 = vmatmul.mubr.bf16.gmra.mrb[0].mxu0 %v3658
        %v3843 = vpop.f32.mrb[0].mxu0
        %v3844 = vadd.f32 0.0, %v3843
        %v3845 = vpop.f32.mrb[0].mxu0
        %v3846 = vpop.f32.mrb[0].mxu0
        %v3847 = vadd.f32 0.0, %v3846
        %v3848 = vpop.f32.mrb[0].mxu0
        %3849 = vmatprep.mubr.bf16.mxu0 0
        %3850 = vmatmul.mubr.bf16.gmra.mrb[0].mxu0 %v3659
        %v3851 = vpop.f32.mrb[0].mxu0
        %v3852 = vadd.f32 0.0, %v3851
        %v3853 = vpop.f32.mrb[0].mxu0
        %v3854 = vpop.f32.mrb[0].mxu0
        %v3855 = vadd.f32 0.0, %v3854
        %v3856 = vpop.f32.mrb[0].mxu0
        %3857 = vmatprep.mubr.bf16.mxu0 0
        %3858 = vmatmul.mubr.bf16.gmra.mrb[0].mxu0 %v3660
        %v3859 = vpop.f32.mrb[0].mxu0
        %v3860 = vadd.f32 0.0, %v3859
        %v3861 = vpop.f32.mrb[0].mxu0
        %v3862 = vpop.f32.mrb[0].mxu0
        %v3863 = vadd.f32 0.0, %v3862
        %v3864 = vpop.f32.mrb[0].mxu0
        %3865 = vmatprep.mubr.bf16.mxu0 0
        %3866 = vmatmul.mubr.bf16.gmra.mrb[0].mxu0 %v3661
        %v3867 = vpop.f32.mrb[0].mxu0
        %v3868 = vadd.f32 0.0, %v3867
        %v3869 = vpop.f32.mrb[0].mxu0
        %v3870 = vpop.f32.mrb[0].mxu0
        %v3871 = vadd.f32 0.0, %v3870
        %v3872 = vpop.f32.mrb[0].mxu0
        %3873 = vmatprep.mubr.bf16.mxu0 0
        %3874 = vmatmul.mubr.bf16.gmra.mrb[0].mxu0 %v3662
        %v3875 = vpop.f32.mrb[0].mxu0
        %v3876 = vadd.f32 0.0, %v3875
        %v3877 = vpop.f32.mrb[0].mxu0
        %v3878 = vpop.f32.mrb[0].mxu0
        %v3879 = vadd.f32 0.0, %v3878
        %v3880 = vpop.f32.mrb[0].mxu0
        %3881 = vmatprep.mubr.bf16.mxu0 0
        %3882 = vmatmul.mubr.bf16.gmra.mrb[0].mxu0 %v3663
        %v3883 = vpop.f32.mrb[0].mxu0
        %v3884 = vadd.f32 0.0, %v3883
        %v3885 = vpop.f32.mrb[0].mxu0
        %v3886 = vpop.f32.mrb[0].mxu0
        %v3887 = vadd.f32 0.0, %v3886
        %v3888 = vpop.f32.mrb[0].mxu0
        %3889 = vdwg.mxu0
        %v3906 = vunpack.c.l.b16 %v3600
        %v3907 = vunpack.c.l.b16 %v3601
        %v3908 = vunpack.c.l.b16 %v3602
        %v3909 = vunpack.c.l.b16 %v3603
        %v3910 = vunpack.c.l.b16 %v3604
        %v3911 = vunpack.c.l.b16 %v3605
        %v3912 = vunpack.c.l.b16 %v3606
        %v3913 = vunpack.c.l.b16 %v3607
        %v3914 = vunpack.c.l.b16 %v3608
        %v3915 = vunpack.c.l.b16 %v3609
        %v3916 = vunpack.c.l.b16 %v3610
        %v3917 = vunpack.c.l.b16 %v3611
        %v3918 = vunpack.c.l.b16 %v3612
        %v3919 = vunpack.c.l.b16 %v3613
        %v3920 = vunpack.c.l.b16 %v3614
        %v3921 = vunpack.c.l.b16 %v3615
        %v3922 = vpack.c.b16 %v3907, %v3906
        %v3923 = vpack.c.b16 %v3909, %v3908
        %v3924 = vpack.c.b16 %v3911, %v3910
        %v3925 = vpack.c.b16 %v3913, %v3912
        %v3926 = vpack.c.b16 %v3915, %v3914
        %v3927 = vpack.c.b16 %v3917, %v3916
        %v3928 = vpack.c.b16 %v3919, %v3918
        %v3929 = vpack.c.b16 %v3921, %v3920
        %3938 = vmatprep.subr.bf16.mxu0 0
        %3939 = vmatpush1.bf16.msra.mxu0 %v3922
        %3940 = vmatprep.subr.bf16.mxu0 0
        %3941 = vmatpush1.bf16.msra.mxu0 %v3923
        %3942 = vmatprep.subr.bf16.mxu0 0
        %3943 = vmatpush1.bf16.msra.mxu0 %v3924
        %3944 = vmatprep.subr.bf16.mxu0 0
        %3945 = vmatpush1.bf16.msra.mxu0 %v3925
        %3946 = vmatprep.subr.bf16.mxu0 0
        %3947 = vmatpush1.bf16.msra.mxu0 %v3926
        %3948 = vmatprep.subr.bf16.mxu0 0
        %3949 = vmatpush1.bf16.msra.mxu0 %v3927
        %3950 = vmatprep.subr.bf16.mxu0 0
        %3951 = vmatpush1.bf16.msra.mxu0 %v3928
        %3952 = vmatprep.subr.bf16.mxu0 0
        %3953 = vmatpush1.bf16.msra.mxu0 %v3929
        %3954 = vmatprep.subr.bf16.mxu0 0
        %3955 = vmatpush1.bf16.msra.mxu0 0
        %3956 = vmatprep.subr.bf16.mxu0 0
        %3957 = vmatpush1.bf16.msra.mxu0 0
        %3958 = vmatprep.subr.bf16.mxu0 0
        %3959 = vmatpush1.bf16.msra.mxu0 0
        %3960 = vmatprep.subr.bf16.mxu0 0
        %3961 = vmatpush1.bf16.msra.mxu0 0
        %3962 = vmatprep.subr.bf16.mxu0 0
        %3963 = vmatpush1.bf16.msra.mxu0 0
        %3964 = vmatprep.subr.bf16.mxu0 0
        %3965 = vmatpush1.bf16.msra.mxu0 0
        %3966 = vmatprep.subr.bf16.mxu0 0
        %3967 = vmatpush1.bf16.msra.mxu0 0
        %3968 = vmatprep.subr.bf16.mxu0 0
        %3969 = vmatpush1.bf16.msra.mxu0 0
        %3970 = vmatprep.mubr.bf16.mxu0 0
        %3971 = vmatmul.mubr.bf16.gmra.mrb[0].mxu0 %v3584
        %v3972 = vpop.f32.mrb[0].mxu0
        %v3973 = vadd.f32 %v3764, %v3972
        %v3974 = vpop.f32.mrb[0].mxu0
        %v3975 = vpop.f32.mrb[0].mxu0
        %v3976 = vadd.f32 %v3767, %v3975
        %v3977 = vpop.f32.mrb[0].mxu0
        %3978 = vmatprep.mubr.bf16.mxu0 0
        %3979 = vmatmul.mubr.bf16.gmra.mrb[0].mxu0 %v3585
        %v3980 = vpop.f32.mrb[0].mxu0
        %v3981 = vadd.f32 %v3772, %v3980
        %v3982 = vpop.f32.mrb[0].mxu0
        %v3983 = vpop.f32.mrb[0].mxu0
        %v3984 = vadd.f32 %v3775, %v3983
        %v3985 = vpop.f32.mrb[0].mxu0
        %3986 = vmatprep.mubr.bf16.mxu0 0
        %3987 = vmatmul.mubr.bf16.gmra.mrb[0].mxu0 %v3586
        %v3988 = vpop.f32.mrb[0].mxu0
        %v3989 = vadd.f32 %v3780, %v3988
        %v3990 = vpop.f32.mrb[0].mxu0
        %v3991 = vpop.f32.mrb[0].mxu0
        %v3992 = vadd.f32 %v3783, %v3991
        %v3993 = vpop.f32.mrb[0].mxu0
        %3994 = vmatprep.mubr.bf16.mxu0 0
        %3995 = vmatmul.mubr.bf16.gmra.mrb[0].mxu0 %v3587
        %v3996 = vpop.f32.mrb[0].mxu0
        %v3997 = vadd.f32 %v3788, %v3996
        %v3998 = vpop.f32.mrb[0].mxu0
        %v3999 = vpop.f32.mrb[0].mxu0
        %v4000 = vadd.f32 %v3791, %v3999
        %v4001 = vpop.f32.mrb[0].mxu0
        %4002 = vmatprep.mubr.bf16.mxu0 0
        %4003 = vmatmul.mubr.bf16.gmra.mrb[0].mxu0 %v3588
        %v4004 = vpop.f32.mrb[0].mxu0
        %v4005 = vadd.f32 %v3796, %v4004
        %v4006 = vpop.f32.mrb[0].mxu0
        %v4007 = vpop.f32.mrb[0].mxu0
        %v4008 = vadd.f32 %v3799, %v4007
        %v4009 = vpop.f32.mrb[0].mxu0
        %4010 = vmatprep.mubr.bf16.mxu0 0
        %4011 = vmatmul.mubr.bf16.gmra.mrb[0].mxu0 %v3589
        %v4012 = vpop.f32.mrb[0].mxu0
        %v4013 = vadd.f32 %v3804, %v4012
        %v4014 = vpop.f32.mrb[0].mxu0
        %v4015 = vpop.f32.mrb[0].mxu0
        %v4016 = vadd.f32 %v3807, %v4015
        %v4017 = vpop.f32.mrb[0].mxu0
        %4018 = vmatprep.mubr.bf16.mxu0 0
        %4019 = vmatmul.mubr.bf16.gmra.mrb[0].mxu0 %v3590
        %v4020 = vpop.f32.mrb[0].mxu0
        %v4021 = vadd.f32 %v3812, %v4020
        %v4022 = vpop.f32.mrb[0].mxu0
        %v4023 = vpop.f32.mrb[0].mxu0
        %v4024 = vadd.f32 %v3815, %v4023
        %v4025 = vpop.f32.mrb[0].mxu0
        %4026 = vmatprep.mubr.bf16.mxu0 0
        %4027 = vmatmul.mubr.bf16.gmra.mrb[0].mxu0 %v3591
        %v4028 = vpop.f32.mrb[0].mxu0
        %v4029 = vadd.f32 %v3820, %v4028
        %v4030 = vpop.f32.mrb[0].mxu0
        %v4031 = vpop.f32.mrb[0].mxu0
        %v4032 = vadd.f32 %v3823, %v4031
        %v4033 = vpop.f32.mrb[0].mxu0
        %4034 = vmatprep.mubr.bf16.mxu0 0
        %4035 = vmatmul.mubr.bf16.gmra.mrb[0].mxu0 %v3592
        %v4036 = vpop.f32.mrb[0].mxu0
        %v4037 = vadd.f32 %v3828, %v4036
        %v4038 = vpop.f32.mrb[0].mxu0
        %v4039 = vpop.f32.mrb[0].mxu0
        %v4040 = vadd.f32 %v3831, %v4039
        %v4041 = vpop.f32.mrb[0].mxu0
        %4042 = vmatprep.mubr.bf16.mxu0 0
        %4043 = vmatmul.mubr.bf16.gmra.mrb[0].mxu0 %v3593
        %v4044 = vpop.f32.mrb[0].mxu0
        %v4045 = vadd.f32 %v3836, %v4044
        %v4046 = vpop.f32.mrb[0].mxu0
        %v4047 = vpop.f32.mrb[0].mxu0
        %v4048 = vadd.f32 %v3839, %v4047
        %v4049 = vpop.f32.mrb[0].mxu0
        %4050 = vmatprep.mubr.bf16.mxu0 0
        %4051 = vmatmul.mubr.bf16.gmra.mrb[0].mxu0 %v3594
        %v4052 = vpop.f32.mrb[0].mxu0
        %v4053 = vadd.f32 %v3844, %v4052
        %v4054 = vpop.f32.mrb[0].mxu0
        %v4055 = vpop.f32.mrb[0].mxu0
        %v4056 = vadd.f32 %v3847, %v4055
        %v4057 = vpop.f32.mrb[0].mxu0
        %4058 = vmatprep.mubr.bf16.mxu0 0
        %4059 = vmatmul.mubr.bf16.gmra.mrb[0].mxu0 %v3595
        %v4060 = vpop.f32.mrb[0].mxu0
        %v4061 = vadd.f32 %v3852, %v4060
        %v4062 = vpop.f32.mrb[0].mxu0
        %v4063 = vpop.f32.mrb[0].mxu0
        %v4064 = vadd.f32 %v3855, %v4063
        %v4065 = vpop.f32.mrb[0].mxu0
        %4066 = vmatprep.mubr.bf16.mxu0 0
        %4067 = vmatmul.mubr.bf16.gmra.mrb[0].mxu0 %v3596
        %v4068 = vpop.f32.mrb[0].mxu0
        %v4069 = vadd.f32 %v3860, %v4068
        %v4070 = vpop.f32.mrb[0].mxu0
        %v4071 = vpop.f32.mrb[0].mxu0
        %v4072 = vadd.f32 %v3863, %v4071
        %v4073 = vpop.f32.mrb[0].mxu0
        %4074 = vmatprep.mubr.bf16.mxu0 0
        %4075 = vmatmul.mubr.bf16.gmra.mrb[0].mxu0 %v3597
        %v4076 = vpop.f32.mrb[0].mxu0
        %v4077 = vadd.f32 %v3868, %v4076
        %v4078 = vpop.f32.mrb[0].mxu0
        %v4079 = vpop.f32.mrb[0].mxu0
        %v4080 = vadd.f32 %v3871, %v4079
        %v4081 = vpop.f32.mrb[0].mxu0
        %4082 = vmatprep.mubr.bf16.mxu0 0
        %4083 = vmatmul.mubr.bf16.gmra.mrb[0].mxu0 %v3598
        %v4084 = vpop.f32.mrb[0].mxu0
        %v4085 = vadd.f32 %v3876, %v4084
        %v4086 = vpop.f32.mrb[0].mxu0
        %v4087 = vpop.f32.mrb[0].mxu0
        %v4088 = vadd.f32 %v3879, %v4087
        %v4089 = vpop.f32.mrb[0].mxu0
        %4090 = vmatprep.mubr.bf16.mxu0 0
        %4091 = vmatmul.mubr.bf16.gmra.mrb[0].mxu0 %v3599
        %v4092 = vpop.f32.mrb[0].mxu0
        %v4093 = vadd.f32 %v3884, %v4092
        %v4094 = vpop.f32.mrb[0].mxu0
        %v4095 = vpop.f32.mrb[0].mxu0
        %v4096 = vadd.f32 %v3887, %v4095
        %v4097 = vpop.f32.mrb[0].mxu0
        %4098 = vdwg.mxu0
        %v4099 = vld [vmem:[#allocation3 + $0x2] sm:$0xff]
        %v4100 = vld [vmem:[#allocation3 + $0xa] sm:$0xff]
        %v4101 = vld [vmem:[#allocation3 + $0x1a] sm:$0xff]
        %v4102 = vld [vmem:[#allocation3 + $0x22] sm:$0xff]
        %v4103 = vld [vmem:[#allocation3 + $0x32] sm:$0xff]
        %v4104 = vld [vmem:[#allocation3 + $0x3a] sm:$0xff]
        %v4105 = vld [vmem:[#allocation3 + $0x4a] sm:$0xff]
        %v4106 = vld [vmem:[#allocation3 + $0x52] sm:$0xff]
        %v4107 = vld [vmem:[#allocation3 + $0x62] sm:$0xff]
        %v4108 = vld [vmem:[#allocation3 + $0x6a] sm:$0xff]
        %v4109 = vld [vmem:[#allocation3 + $0x7a] sm:$0xff]
        %v4110 = vld [vmem:[#allocation3 + $0x82] sm:$0xff]
        %v4111 = vld [vmem:[#allocation3 + $0x92] sm:$0xff]
        %v4112 = vld [vmem:[#allocation3 + $0x9a] sm:$0xff]
        %v4113 = vld [vmem:[#allocation3 + $0xaa] sm:$0xff]
        %v4114 = vld [vmem:[#allocation3 + $0xb2] sm:$0xff]
        %v4115 = vld [vmem:[#allocation3 + $0xc2] sm:$0xff]
        %v4116 = vld [vmem:[#allocation3 + $0xca] sm:$0xff]
        %v4117 = vld [vmem:[#allocation3 + $0xda] sm:$0xff]
        %v4118 = vld [vmem:[#allocation3 + $0xe2] sm:$0xff]
        %v4119 = vld [vmem:[#allocation3 + $0xf2] sm:$0xff]
        %v4120 = vld [vmem:[#allocation3 + $0xfa] sm:$0xff]
        %v4121 = vld [vmem:[#allocation3 + $0x10a] sm:$0xff]
        %v4122 = vld [vmem:[#allocation3 + $0x112] sm:$0xff]
        %v4123 = vld [vmem:[#allocation3 + $0x122] sm:$0xff]
        %v4124 = vld [vmem:[#allocation3 + $0x12a] sm:$0xff]
        %v4125 = vld [vmem:[#allocation3 + $0x13a] sm:$0xff]
        %v4126 = vld [vmem:[#allocation3 + $0x142] sm:$0xff]
        %v4127 = vld [vmem:[#allocation3 + $0x152] sm:$0xff]
        %v4128 = vld [vmem:[#allocation3 + $0x15a] sm:$0xff]
        %v4129 = vld [vmem:[#allocation3 + $0x16a] sm:$0xff]
        %v4130 = vld [vmem:[#allocation3 + $0x172] sm:$0xff]
        %v4131 = vpack.c.bf16 %v4100, %v4099
        %v4132 = vpack.c.bf16 %v4102, %v4101
        %v4133 = vpack.c.bf16 %v4104, %v4103
        %v4134 = vpack.c.bf16 %v4106, %v4105
        %v4135 = vpack.c.bf16 %v4108, %v4107
        %v4136 = vpack.c.bf16 %v4110, %v4109
        %v4137 = vpack.c.bf16 %v4112, %v4111
        %v4138 = vpack.c.bf16 %v4114, %v4113
        %v4139 = vpack.c.bf16 %v4116, %v4115
        %v4140 = vpack.c.bf16 %v4118, %v4117
        %v4141 = vpack.c.bf16 %v4120, %v4119
        %v4142 = vpack.c.bf16 %v4122, %v4121
        %v4143 = vpack.c.bf16 %v4124, %v4123
        %v4144 = vpack.c.bf16 %v4126, %v4125
        %v4145 = vpack.c.bf16 %v4128, %v4127
        %v4146 = vpack.c.bf16 %v4130, %v4129
        %s4147 = scalar_lea.vmem %s5, 128
        %v4148 = vld [vmem:[%s4147] sm:$0xf]
        %v4149 = vld [vmem:[%s4147 + $0x4] sm:$0xf]
        %v4150 = vld [vmem:[%s4147 + $0x8] sm:$0xf]
        %v4151 = vld [vmem:[%s4147 + $0xc] sm:$0xf]
        %v4152 = vld [vmem:[%s4147 + $0x10] sm:$0xf]
        %v4153 = vld [vmem:[%s4147 + $0x14] sm:$0xf]
        %v4154 = vld [vmem:[%s4147 + $0x18] sm:$0xf]
        %v4155 = vld [vmem:[%s4147 + $0x1c] sm:$0xf]
        %v4156 = vld [vmem:[%s4147 + $0x20] sm:$0xf]
        %v4157 = vld [vmem:[%s4147 + $0x24] sm:$0xf]
        %v4158 = vld [vmem:[%s4147 + $0x28] sm:$0xf]
        %v4159 = vld [vmem:[%s4147 + $0x2c] sm:$0xf]
        %v4160 = vld [vmem:[%s4147 + $0x30] sm:$0xf]
        %v4161 = vld [vmem:[%s4147 + $0x34] sm:$0xf]
        %v4162 = vld [vmem:[%s4147 + $0x38] sm:$0xf]
        %v4163 = vld [vmem:[%s4147 + $0x3c] sm:$0xf]
        %v4180 = vunpack.c.l.b16 %v4148
        %v4181 = vunpack.c.l.b16 %v4149
        %v4182 = vunpack.c.l.b16 %v4150
        %v4183 = vunpack.c.l.b16 %v4151
        %v4184 = vunpack.c.l.b16 %v4152
        %v4185 = vunpack.c.l.b16 %v4153
        %v4186 = vunpack.c.l.b16 %v4154
        %v4187 = vunpack.c.l.b16 %v4155
        %v4188 = vunpack.c.l.b16 %v4156
        %v4189 = vunpack.c.l.b16 %v4157
        %v4190 = vunpack.c.l.b16 %v4158
        %v4191 = vunpack.c.l.b16 %v4159
        %v4192 = vunpack.c.l.b16 %v4160
        %v4193 = vunpack.c.l.b16 %v4161
        %v4194 = vunpack.c.l.b16 %v4162
        %v4195 = vunpack.c.l.b16 %v4163
        %v4196 = vpack.c.b16 %v4181, %v4180
        %v4197 = vpack.c.b16 %v4183, %v4182
        %v4198 = vpack.c.b16 %v4185, %v4184
        %v4199 = vpack.c.b16 %v4187, %v4186
        %v4200 = vpack.c.b16 %v4189, %v4188
        %v4201 = vpack.c.b16 %v4191, %v4190
        %v4202 = vpack.c.b16 %v4193, %v4192
        %v4203 = vpack.c.b16 %v4195, %v4194
        %4212 = vmatprep.subr.bf16.mxu0 0
        %4213 = vmatpush1.bf16.msra.mxu0 %v4196
        %4214 = vmatprep.subr.bf16.mxu0 0
        %4215 = vmatpush1.bf16.msra.mxu0 %v4197
        %4216 = vmatprep.subr.bf16.mxu0 0
        %4217 = vmatpush1.bf16.msra.mxu0 %v4198
        %4218 = vmatprep.subr.bf16.mxu0 0
        %4219 = vmatpush1.bf16.msra.mxu0 %v4199
        %4220 = vmatprep.subr.bf16.mxu0 0
        %4221 = vmatpush1.bf16.msra.mxu0 %v4200
        %4222 = vmatprep.subr.bf16.mxu0 0
        %4223 = vmatpush1.bf16.msra.mxu0 %v4201
        %4224 = vmatprep.subr.bf16.mxu0 0
        %4225 = vmatpush1.bf16.msra.mxu0 %v4202
        %4226 = vmatprep.subr.bf16.mxu0 0
        %4227 = vmatpush1.bf16.msra.mxu0 %v4203
        %4228 = vmatprep.subr.bf16.mxu0 0
        %4229 = vmatpush1.bf16.msra.mxu0 0
        %4230 = vmatprep.subr.bf16.mxu0 0
        %4231 = vmatpush1.bf16.msra.mxu0 0
        %4232 = vmatprep.subr.bf16.mxu0 0
        %4233 = vmatpush1.bf16.msra.mxu0 0
        %4234 = vmatprep.subr.bf16.mxu0 0
        %4235 = vmatpush1.bf16.msra.mxu0 0
        %4236 = vmatprep.subr.bf16.mxu0 0
        %4237 = vmatpush1.bf16.msra.mxu0 0
        %4238 = vmatprep.subr.bf16.mxu0 0
        %4239 = vmatpush1.bf16.msra.mxu0 0
        %4240 = vmatprep.subr.bf16.mxu0 0
        %4241 = vmatpush1.bf16.msra.mxu0 0
        %4242 = vmatprep.subr.bf16.mxu0 0
        %4243 = vmatpush1.bf16.msra.mxu0 0
        %4244 = vmatprep.mubr.bf16.mxu0 0
        %4245 = vmatmul.mubr.bf16.gmra.mrb[0].mxu0 %v4131
        %v4246 = vpop.f32.mrb[0].mxu0
        %v4247 = vadd.f32 0.0, %v4246
        %v4248 = vpop.f32.mrb[0].mxu0
        %v4249 = vpop.f32.mrb[0].mxu0
        %v4250 = vadd.f32 0.0, %v4249
        %v4251 = vpop.f32.mrb[0].mxu0
        %4252 = vmatprep.mubr.bf16.mxu0 0
        %4253 = vmatmul.mubr.bf16.gmra.mrb[0].mxu0 %v4132
        %v4254 = vpop.f32.mrb[0].mxu0
        %v4255 = vadd.f32 0.0, %v4254
        %v4256 = vpop.f32.mrb[0].mxu0
        %v4257 = vpop.f32.mrb[0].mxu0
        %v4258 = vadd.f32 0.0, %v4257
        %v4259 = vpop.f32.mrb[0].mxu0
        %4260 = vmatprep.mubr.bf16.mxu0 0
        %4261 = vmatmul.mubr.bf16.gmra.mrb[0].mxu0 %v4133
        %v4262 = vpop.f32.mrb[0].mxu0
        %v4263 = vadd.f32 0.0, %v4262
        %v4264 = vpop.f32.mrb[0].mxu0
        %v4265 = vpop.f32.mrb[0].mxu0
        %v4266 = vadd.f32 0.0, %v4265
        %v4267 = vpop.f32.mrb[0].mxu0
        %4268 = vmatprep.mubr.bf16.mxu0 0
        %4269 = vmatmul.mubr.bf16.gmra.mrb[0].mxu0 %v4134
        %v4270 = vpop.f32.mrb[0].mxu0
        %v4271 = vadd.f32 0.0, %v4270
        %v4272 = vpop.f32.mrb[0].mxu0
        %v4273 = vpop.f32.mrb[0].mxu0
        %v4274 = vadd.f32 0.0, %v4273
        %v4275 = vpop.f32.mrb[0].mxu0
        %4276 = vmatprep.mubr.bf16.mxu0 0
        %4277 = vmatmul.mubr.bf16.gmra.mrb[0].mxu0 %v4135
        %v4278 = vpop.f32.mrb[0].mxu0
        %v4279 = vadd.f32 0.0, %v4278
        %v4280 = vpop.f32.mrb[0].mxu0
        %v4281 = vpop.f32.mrb[0].mxu0
        %v4282 = vadd.f32 0.0, %v4281
        %v4283 = vpop.f32.mrb[0].mxu0
        %4284 = vmatprep.mubr.bf16.mxu0 0
        %4285 = vmatmul.mubr.bf16.gmra.mrb[0].mxu0 %v4136
        %v4286 = vpop.f32.mrb[0].mxu0
        %v4287 = vadd.f32 0.0, %v4286
        %v4288 = vpop.f32.mrb[0].mxu0
        %v4289 = vpop.f32.mrb[0].mxu0
        %v4290 = vadd.f32 0.0, %v4289
        %v4291 = vpop.f32.mrb[0].mxu0
        %4292 = vmatprep.mubr.bf16.mxu0 0
        %4293 = vmatmul.mubr.bf16.gmra.mrb[0].mxu0 %v4137
        %v4294 = vpop.f32.mrb[0].mxu0
        %v4295 = vadd.f32 0.0, %v4294
        %v4296 = vpop.f32.mrb[0].mxu0
        %v4297 = vpop.f32.mrb[0].mxu0
        %v4298 = vadd.f32 0.0, %v4297
        %v4299 = vpop.f32.mrb[0].mxu0
        %4300 = vmatprep.mubr.bf16.mxu0 0
        %4301 = vmatmul.mubr.bf16.gmra.mrb[0].mxu0 %v4138
        %v4302 = vpop.f32.mrb[0].mxu0
        %v4303 = vadd.f32 0.0, %v4302
        %v4304 = vpop.f32.mrb[0].mxu0
        %v4305 = vpop.f32.mrb[0].mxu0
        %v4306 = vadd.f32 0.0, %v4305
        %v4307 = vpop.f32.mrb[0].mxu0
        %4308 = vmatprep.mubr.bf16.mxu0 0
        %4309 = vmatmul.mubr.bf16.gmra.mrb[0].mxu0 %v4139
        %v4310 = vpop.f32.mrb[0].mxu0
        %v4311 = vadd.f32 0.0, %v4310
        %v4312 = vpop.f32.mrb[0].mxu0
        %v4313 = vpop.f32.mrb[0].mxu0
        %v4314 = vadd.f32 0.0, %v4313
        %v4315 = vpop.f32.mrb[0].mxu0
        %4316 = vmatprep.mubr.bf16.mxu0 0
        %4317 = vmatmul.mubr.bf16.gmra.mrb[0].mxu0 %v4140
        %v4318 = vpop.f32.mrb[0].mxu0
        %v4319 = vadd.f32 0.0, %v4318
        %v4320 = vpop.f32.mrb[0].mxu0
        %v4321 = vpop.f32.mrb[0].mxu0
        %v4322 = vadd.f32 0.0, %v4321
        %v4323 = vpop.f32.mrb[0].mxu0
        %4324 = vmatprep.mubr.bf16.mxu0 0
        %4325 = vmatmul.mubr.bf16.gmra.mrb[0].mxu0 %v4141
        %v4326 = vpop.f32.mrb[0].mxu0
        %v4327 = vadd.f32 0.0, %v4326
        %v4328 = vpop.f32.mrb[0].mxu0
        %v4329 = vpop.f32.mrb[0].mxu0
        %v4330 = vadd.f32 0.0, %v4329
        %v4331 = vpop.f32.mrb[0].mxu0
        %4332 = vmatprep.mubr.bf16.mxu0 0
        %4333 = vmatmul.mubr.bf16.gmra.mrb[0].mxu0 %v4142
        %v4334 = vpop.f32.mrb[0].mxu0
        %v4335 = vadd.f32 0.0, %v4334
        %v4336 = vpop.f32.mrb[0].mxu0
        %v4337 = vpop.f32.mrb[0].mxu0
        %v4338 = vadd.f32 0.0, %v4337
        %v4339 = vpop.f32.mrb[0].mxu0
        %4340 = vmatprep.mubr.bf16.mxu0 0
        %4341 = vmatmul.mubr.bf16.gmra.mrb[0].mxu0 %v4143
        %v4342 = vpop.f32.mrb[0].mxu0
        %v4343 = vadd.f32 0.0, %v4342
        %v4344 = vpop.f32.mrb[0].mxu0
        %v4345 = vpop.f32.mrb[0].mxu0
        %v4346 = vadd.f32 0.0, %v4345
        %v4347 = vpop.f32.mrb[0].mxu0
        %4348 = vmatprep.mubr.bf16.mxu0 0
        %4349 = vmatmul.mubr.bf16.gmra.mrb[0].mxu0 %v4144
        %v4350 = vpop.f32.mrb[0].mxu0
        %v4351 = vadd.f32 0.0, %v4350
        %v4352 = vpop.f32.mrb[0].mxu0
        %v4353 = vpop.f32.mrb[0].mxu0
        %v4354 = vadd.f32 0.0, %v4353
        %v4355 = vpop.f32.mrb[0].mxu0
        %4356 = vmatprep.mubr.bf16.mxu0 0
        %4357 = vmatmul.mubr.bf16.gmra.mrb[0].mxu0 %v4145
        %v4358 = vpop.f32.mrb[0].mxu0
        %v4359 = vadd.f32 0.0, %v4358
        %v4360 = vpop.f32.mrb[0].mxu0
        %v4361 = vpop.f32.mrb[0].mxu0
        %v4362 = vadd.f32 0.0, %v4361
        %v4363 = vpop.f32.mrb[0].mxu0
        %4364 = vmatprep.mubr.bf16.mxu0 0
        %4365 = vmatmul.mubr.bf16.gmra.mrb[0].mxu0 %v4146
        %v4366 = vpop.f32.mrb[0].mxu0
        %v4367 = vadd.f32 0.0, %v4366
        %v4368 = vpop.f32.mrb[0].mxu0
        %v4369 = vpop.f32.mrb[0].mxu0
        %v4370 = vadd.f32 0.0, %v4369
        %v4371 = vpop.f32.mrb[0].mxu0
        %4372 = vdwg.mxu0
        %v4373 = vadd.f32 %v3973, %v4247
        %v4374 = vadd.f32 %v3976, %v4250
        %v4375 = vadd.f32 %v3981, %v4255
        %v4376 = vadd.f32 %v3984, %v4258
        %v4377 = vadd.f32 %v3989, %v4263
        %v4378 = vadd.f32 %v3992, %v4266
        %v4379 = vadd.f32 %v3997, %v4271
        %v4380 = vadd.f32 %v4000, %v4274
        %v4381 = vadd.f32 %v4005, %v4279
        %v4382 = vadd.f32 %v4008, %v4282
        %v4383 = vadd.f32 %v4013, %v4287
        %v4384 = vadd.f32 %v4016, %v4290
        %v4385 = vadd.f32 %v4021, %v4295
        %v4386 = vadd.f32 %v4024, %v4298
        %v4387 = vadd.f32 %v4029, %v4303
        %v4388 = vadd.f32 %v4032, %v4306
        %v4389 = vadd.f32 %v4037, %v4311
        %v4390 = vadd.f32 %v4040, %v4314
        %v4391 = vadd.f32 %v4045, %v4319
        %v4392 = vadd.f32 %v4048, %v4322
        %v4393 = vadd.f32 %v4053, %v4327
        %v4394 = vadd.f32 %v4056, %v4330
        %v4395 = vadd.f32 %v4061, %v4335
        %v4396 = vadd.f32 %v4064, %v4338
        %v4397 = vadd.f32 %v4069, %v4343
        %v4398 = vadd.f32 %v4072, %v4346
        %v4399 = vadd.f32 %v4077, %v4351
        %v4400 = vadd.f32 %v4080, %v4354
        %v4401 = vadd.f32 %v4085, %v4359
        %v4402 = vadd.f32 %v4088, %v4362
        %v4403 = vadd.f32 %v4093, %v4367
        %v4404 = vadd.f32 %v4096, %v4370
        %v4405 = vld [vmem:[%s3519] sm:$0xff]
        %v4406 = vld [vmem:[%s3519 + $0x8] sm:$0xff]
        %v4407 = vld [vmem:[%s3519 + $0x18] sm:$0xff]
        %v4408 = vld [vmem:[%s3519 + $0x20] sm:$0xff]
        %v4409 = vld [vmem:[%s3519 + $0x30] sm:$0xff]
        %v4410 = vld [vmem:[%s3519 + $0x38] sm:$0xff]
        %v4411 = vld [vmem:[%s3519 + $0x48] sm:$0xff]
        %v4412 = vld [vmem:[%s3519 + $0x50] sm:$0xff]
        %v4413 = vld [vmem:[%s3519 + $0x60] sm:$0xff]
        %v4414 = vld [vmem:[%s3519 + $0x68] sm:$0xff]
        %v4415 = vld [vmem:[%s3519 + $0x78] sm:$0xff]
        %v4416 = vld [vmem:[%s3519 + $0x80] sm:$0xff]
        %v4417 = vld [vmem:[%s3519 + $0x90] sm:$0xff]
        %v4418 = vld [vmem:[%s3519 + $0x98] sm:$0xff]
        %v4419 = vld [vmem:[%s3519 + $0xa8] sm:$0xff]
        %v4420 = vld [vmem:[%s3519 + $0xb0] sm:$0xff]
        %v4421 = vld [vmem:[%s3519 + $0xc0] sm:$0xff]
        %v4422 = vld [vmem:[%s3519 + $0xc8] sm:$0xff]
        %v4423 = vld [vmem:[%s3519 + $0xd8] sm:$0xff]
        %v4424 = vld [vmem:[%s3519 + $0xe0] sm:$0xff]
        %v4425 = vld [vmem:[%s3519 + $0xf0] sm:$0xff]
        %v4426 = vld [vmem:[%s3519 + $0xf8] sm:$0xff]
        %v4427 = vld [vmem:[%s3519 + $0x108] sm:$0xff]
        %v4428 = vld [vmem:[%s3519 + $0x110] sm:$0xff]
        %v4429 = vld [vmem:[%s3519 + $0x120] sm:$0xff]
        %v4430 = vld [vmem:[%s3519 + $0x128] sm:$0xff]
        %v4431 = vld [vmem:[%s3519 + $0x138] sm:$0xff]
        %v4432 = vld [vmem:[%s3519 + $0x140] sm:$0xff]
        %v4433 = vld [vmem:[%s3519 + $0x150] sm:$0xff]
        %v4434 = vld [vmem:[%s3519 + $0x158] sm:$0xff]
        %v4435 = vld [vmem:[%s3519 + $0x168] sm:$0xff]
        %v4436 = vld [vmem:[%s3519 + $0x170] sm:$0xff]
        %v4437 = vpack.c.bf16 %v4406, %v4405
        %v4438 = vpack.c.bf16 %v4408, %v4407
        %v4439 = vpack.c.bf16 %v4410, %v4409
        %v4440 = vpack.c.bf16 %v4412, %v4411
        %v4441 = vpack.c.bf16 %v4414, %v4413
        %v4442 = vpack.c.bf16 %v4416, %v4415
        %v4443 = vpack.c.bf16 %v4418, %v4417
        %v4444 = vpack.c.bf16 %v4420, %v4419
        %v4445 = vpack.c.bf16 %v4422, %v4421
        %v4446 = vpack.c.bf16 %v4424, %v4423
        %v4447 = vpack.c.bf16 %v4426, %v4425
        %v4448 = vpack.c.bf16 %v4428, %v4427
        %v4449 = vpack.c.bf16 %v4430, %v4429
        %v4450 = vpack.c.bf16 %v4432, %v4431
        %v4451 = vpack.c.bf16 %v4434, %v4433
        %v4452 = vpack.c.bf16 %v4436, %v4435
        %s4453 = scalar_lea.vmem %s5, 192
        %v4454 = vld [vmem:[%s4453] sm:$0xf]
        %v4455 = vld [vmem:[%s4453 + $0x4] sm:$0xf]
        %v4456 = vld [vmem:[%s4453 + $0x8] sm:$0xf]
        %v4457 = vld [vmem:[%s4453 + $0xc] sm:$0xf]
        %v4458 = vld [vmem:[%s4453 + $0x10] sm:$0xf]
        %v4459 = vld [vmem:[%s4453 + $0x14] sm:$0xf]
        %v4460 = vld [vmem:[%s4453 + $0x18] sm:$0xf]
        %v4461 = vld [vmem:[%s4453 + $0x1c] sm:$0xf]
        %v4462 = vld [vmem:[%s4453 + $0x20] sm:$0xf]
        %v4463 = vld [vmem:[%s4453 + $0x24] sm:$0xf]
        %v4464 = vld [vmem:[%s4453 + $0x28] sm:$0xf]
        %v4465 = vld [vmem:[%s4453 + $0x2c] sm:$0xf]
        %v4466 = vld [vmem:[%s4453 + $0x30] sm:$0xf]
        %v4467 = vld [vmem:[%s4453 + $0x34] sm:$0xf]
        %v4468 = vld [vmem:[%s4453 + $0x38] sm:$0xf]
        %v4469 = vld [vmem:[%s4453 + $0x3c] sm:$0xf]
        %v4486 = vunpack.c.l.b16 %v4454
        %v4487 = vunpack.c.l.b16 %v4455
        %v4488 = vunpack.c.l.b16 %v4456
        %v4489 = vunpack.c.l.b16 %v4457
        %v4490 = vunpack.c.l.b16 %v4458
        %v4491 = vunpack.c.l.b16 %v4459
        %v4492 = vunpack.c.l.b16 %v4460
        %v4493 = vunpack.c.l.b16 %v4461
        %v4494 = vunpack.c.l.b16 %v4462
        %v4495 = vunpack.c.l.b16 %v4463
        %v4496 = vunpack.c.l.b16 %v4464
        %v4497 = vunpack.c.l.b16 %v4465
        %v4498 = vunpack.c.l.b16 %v4466
        %v4499 = vunpack.c.l.b16 %v4467
        %v4500 = vunpack.c.l.b16 %v4468
        %v4501 = vunpack.c.l.b16 %v4469
        %v4502 = vpack.c.b16 %v4487, %v4486
        %v4503 = vpack.c.b16 %v4489, %v4488
        %v4504 = vpack.c.b16 %v4491, %v4490
        %v4505 = vpack.c.b16 %v4493, %v4492
        %v4506 = vpack.c.b16 %v4495, %v4494
        %v4507 = vpack.c.b16 %v4497, %v4496
        %v4508 = vpack.c.b16 %v4499, %v4498
        %v4509 = vpack.c.b16 %v4501, %v4500
        %4518 = vmatprep.subr.bf16.mxu0 0
        %4519 = vmatpush1.bf16.msra.mxu0 %v4502
        %4520 = vmatprep.subr.bf16.mxu0 0
        %4521 = vmatpush1.bf16.msra.mxu0 %v4503
        %4522 = vmatprep.subr.bf16.mxu0 0
        %4523 = vmatpush1.bf16.msra.mxu0 %v4504
        %4524 = vmatprep.subr.bf16.mxu0 0
        %4525 = vmatpush1.bf16.msra.mxu0 %v4505
        %4526 = vmatprep.subr.bf16.mxu0 0
        %4527 = vmatpush1.bf16.msra.mxu0 %v4506
        %4528 = vmatprep.subr.bf16.mxu0 0
        %4529 = vmatpush1.bf16.msra.mxu0 %v4507
        %4530 = vmatprep.subr.bf16.mxu0 0
        %4531 = vmatpush1.bf16.msra.mxu0 %v4508
        %4532 = vmatprep.subr.bf16.mxu0 0
        %4533 = vmatpush1.bf16.msra.mxu0 %v4509
        %4534 = vmatprep.subr.bf16.mxu0 0
        %4535 = vmatpush1.bf16.msra.mxu0 0
        %4536 = vmatprep.subr.bf16.mxu0 0
        %4537 = vmatpush1.bf16.msra.mxu0 0
        %4538 = vmatprep.subr.bf16.mxu0 0
        %4539 = vmatpush1.bf16.msra.mxu0 0
        %4540 = vmatprep.subr.bf16.mxu0 0
        %4541 = vmatpush1.bf16.msra.mxu0 0
        %4542 = vmatprep.subr.bf16.mxu0 0
        %4543 = vmatpush1.bf16.msra.mxu0 0
        %4544 = vmatprep.subr.bf16.mxu0 0
        %4545 = vmatpush1.bf16.msra.mxu0 0
        %4546 = vmatprep.subr.bf16.mxu0 0
        %4547 = vmatpush1.bf16.msra.mxu0 0
        %4548 = vmatprep.subr.bf16.mxu0 0
        %4549 = vmatpush1.bf16.msra.mxu0 0
        %4550 = vmatprep.mubr.bf16.mxu0 0
        %4551 = vmatmul.mubr.bf16.gmra.mrb[0].mxu0 %v4437
        %v4552 = vpop.f32.mrb[0].mxu0
        %v4553 = vadd.f32 0.0, %v4552
        %v4554 = vpop.f32.mrb[0].mxu0
        %v4555 = vpop.f32.mrb[0].mxu0
        %v4556 = vadd.f32 0.0, %v4555
        %v4557 = vpop.f32.mrb[0].mxu0
        %4558 = vmatprep.mubr.bf16.mxu0 0
        %4559 = vmatmul.mubr.bf16.gmra.mrb[0].mxu0 %v4438
        %v4560 = vpop.f32.mrb[0].mxu0
        %v4561 = vadd.f32 0.0, %v4560
        %v4562 = vpop.f32.mrb[0].mxu0
        %v4563 = vpop.f32.mrb[0].mxu0
        %v4564 = vadd.f32 0.0, %v4563
        %v4565 = vpop.f32.mrb[0].mxu0
        %4566 = vmatprep.mubr.bf16.mxu0 0
        %4567 = vmatmul.mubr.bf16.gmra.mrb[0].mxu0 %v4439
        %v4568 = vpop.f32.mrb[0].mxu0
        %v4569 = vadd.f32 0.0, %v4568
        %v4570 = vpop.f32.mrb[0].mxu0
        %v4571 = vpop.f32.mrb[0].mxu0
        %v4572 = vadd.f32 0.0, %v4571
        %v4573 = vpop.f32.mrb[0].mxu0
        %4574 = vmatprep.mubr.bf16.mxu0 0
        %4575 = vmatmul.mubr.bf16.gmra.mrb[0].mxu0 %v4440
        %v4576 = vpop.f32.mrb[0].mxu0
        %v4577 = vadd.f32 0.0, %v4576
        %v4578 = vpop.f32.mrb[0].mxu0
        %v4579 = vpop.f32.mrb[0].mxu0
        %v4580 = vadd.f32 0.0, %v4579
        %v4581 = vpop.f32.mrb[0].mxu0
        %4582 = vmatprep.mubr.bf16.mxu0 0
        %4583 = vmatmul.mubr.bf16.gmra.mrb[0].mxu0 %v4441
        %v4584 = vpop.f32.mrb[0].mxu0
        %v4585 = vadd.f32 0.0, %v4584
        %v4586 = vpop.f32.mrb[0].mxu0
        %v4587 = vpop.f32.mrb[0].mxu0
        %v4588 = vadd.f32 0.0, %v4587
        %v4589 = vpop.f32.mrb[0].mxu0
        %4590 = vmatprep.mubr.bf16.mxu0 0
        %4591 = vmatmul.mubr.bf16.gmra.mrb[0].mxu0 %v4442
        %v4592 = vpop.f32.mrb[0].mxu0
        %v4593 = vadd.f32 0.0, %v4592
        %v4594 = vpop.f32.mrb[0].mxu0
        %v4595 = vpop.f32.mrb[0].mxu0
        %v4596 = vadd.f32 0.0, %v4595
        %v4597 = vpop.f32.mrb[0].mxu0
        %4598 = vmatprep.mubr.bf16.mxu0 0
        %4599 = vmatmul.mubr.bf16.gmra.mrb[0].mxu0 %v4443
        %v4600 = vpop.f32.mrb[0].mxu0
        %v4601 = vadd.f32 0.0, %v4600
        %v4602 = vpop.f32.mrb[0].mxu0
        %v4603 = vpop.f32.mrb[0].mxu0
        %v4604 = vadd.f32 0.0, %v4603
        %v4605 = vpop.f32.mrb[0].mxu0
        %4606 = vmatprep.mubr.bf16.mxu0 0
        %4607 = vmatmul.mubr.bf16.gmra.mrb[0].mxu0 %v4444
        %v4608 = vpop.f32.mrb[0].mxu0
        %v4609 = vadd.f32 0.0, %v4608
        %v4610 = vpop.f32.mrb[0].mxu0
        %v4611 = vpop.f32.mrb[0].mxu0
        %v4612 = vadd.f32 0.0, %v4611
        %v4613 = vpop.f32.mrb[0].mxu0
        %4614 = vmatprep.mubr.bf16.mxu0 0
        %4615 = vmatmul.mubr.bf16.gmra.mrb[0].mxu0 %v4445
        %v4616 = vpop.f32.mrb[0].mxu0
        %v4617 = vadd.f32 0.0, %v4616
        %v4618 = vpop.f32.mrb[0].mxu0
        %v4619 = vpop.f32.mrb[0].mxu0
        %v4620 = vadd.f32 0.0, %v4619
        %v4621 = vpop.f32.mrb[0].mxu0
        %4622 = vmatprep.mubr.bf16.mxu0 0
        %4623 = vmatmul.mubr.bf16.gmra.mrb[0].mxu0 %v4446
        %v4624 = vpop.f32.mrb[0].mxu0
        %v4625 = vadd.f32 0.0, %v4624
        %v4626 = vpop.f32.mrb[0].mxu0
        %v4627 = vpop.f32.mrb[0].mxu0
        %v4628 = vadd.f32 0.0, %v4627
        %v4629 = vpop.f32.mrb[0].mxu0
        %4630 = vmatprep.mubr.bf16.mxu0 0
        %4631 = vmatmul.mubr.bf16.gmra.mrb[0].mxu0 %v4447
        %v4632 = vpop.f32.mrb[0].mxu0
        %v4633 = vadd.f32 0.0, %v4632
        %v4634 = vpop.f32.mrb[0].mxu0
        %v4635 = vpop.f32.mrb[0].mxu0
        %v4636 = vadd.f32 0.0, %v4635
        %v4637 = vpop.f32.mrb[0].mxu0
        %4638 = vmatprep.mubr.bf16.mxu0 0
        %4639 = vmatmul.mubr.bf16.gmra.mrb[0].mxu0 %v4448
        %v4640 = vpop.f32.mrb[0].mxu0
        %v4641 = vadd.f32 0.0, %v4640
        %v4642 = vpop.f32.mrb[0].mxu0
        %v4643 = vpop.f32.mrb[0].mxu0
        %v4644 = vadd.f32 0.0, %v4643
        %v4645 = vpop.f32.mrb[0].mxu0
        %4646 = vmatprep.mubr.bf16.mxu0 0
        %4647 = vmatmul.mubr.bf16.gmra.mrb[0].mxu0 %v4449
        %v4648 = vpop.f32.mrb[0].mxu0
        %v4649 = vadd.f32 0.0, %v4648
        %v4650 = vpop.f32.mrb[0].mxu0
        %v4651 = vpop.f32.mrb[0].mxu0
        %v4652 = vadd.f32 0.0, %v4651
        %v4653 = vpop.f32.mrb[0].mxu0
        %4654 = vmatprep.mubr.bf16.mxu0 0
        %4655 = vmatmul.mubr.bf16.gmra.mrb[0].mxu0 %v4450
        %v4656 = vpop.f32.mrb[0].mxu0
        %v4657 = vadd.f32 0.0, %v4656
        %v4658 = vpop.f32.mrb[0].mxu0
        %v4659 = vpop.f32.mrb[0].mxu0
        %v4660 = vadd.f32 0.0, %v4659
        %v4661 = vpop.f32.mrb[0].mxu0
        %4662 = vmatprep.mubr.bf16.mxu0 0
        %4663 = vmatmul.mubr.bf16.gmra.mrb[0].mxu0 %v4451
        %v4664 = vpop.f32.mrb[0].mxu0
        %v4665 = vadd.f32 0.0, %v4664
        %v4666 = vpop.f32.mrb[0].mxu0
        %v4667 = vpop.f32.mrb[0].mxu0
        %v4668 = vadd.f32 0.0, %v4667
        %v4669 = vpop.f32.mrb[0].mxu0
        %4670 = vmatprep.mubr.bf16.mxu0 0
        %4671 = vmatmul.mubr.bf16.gmra.mrb[0].mxu0 %v4452
        %v4672 = vpop.f32.mrb[0].mxu0
        %v4673 = vadd.f32 0.0, %v4672
        %v4674 = vpop.f32.mrb[0].mxu0
        %v4675 = vpop.f32.mrb[0].mxu0
        %v4676 = vadd.f32 0.0, %v4675
        %v4677 = vpop.f32.mrb[0].mxu0
        %4678 = vdwg.mxu0
        %v4679 = vadd.f32 %v4373, %v4553
        %v4680 = vadd.f32 %v4374, %v4556
        %v4681 = vadd.f32 %v4375, %v4561
        %v4682 = vadd.f32 %v4376, %v4564
        %v4683 = vadd.f32 %v4377, %v4569
        %v4684 = vadd.f32 %v4378, %v4572
        %v4685 = vadd.f32 %v4379, %v4577
        %v4686 = vadd.f32 %v4380, %v4580
        %v4687 = vadd.f32 %v4381, %v4585
        %v4688 = vadd.f32 %v4382, %v4588
        %v4689 = vadd.f32 %v4383, %v4593
        %v4690 = vadd.f32 %v4384, %v4596
        %v4691 = vadd.f32 %v4385, %v4601
        %v4692 = vadd.f32 %v4386, %v4604
        %v4693 = vadd.f32 %v4387, %v4609
        %v4694 = vadd.f32 %v4388, %v4612
        %v4695 = vadd.f32 %v4389, %v4617
        %v4696 = vadd.f32 %v4390, %v4620
        %v4697 = vadd.f32 %v4391, %v4625
        %v4698 = vadd.f32 %v4392, %v4628
        %v4699 = vadd.f32 %v4393, %v4633
        %v4700 = vadd.f32 %v4394, %v4636
        %v4701 = vadd.f32 %v4395, %v4641
        %v4702 = vadd.f32 %v4396, %v4644
        %v4703 = vadd.f32 %v4397, %v4649
        %v4704 = vadd.f32 %v4398, %v4652
        %v4705 = vadd.f32 %v4399, %v4657
        %v4706 = vadd.f32 %v4400, %v4660
        %v4707 = vadd.f32 %v4401, %v4665
        %v4708 = vadd.f32 %v4402, %v4668
        %v4709 = vadd.f32 %v4403, %v4673
        %v4710 = vadd.f32 %v4404, %v4676
        %v4711 = vld [vmem:[%s3519 + $0x1] sm:$0xff]
        %v4712 = vld [vmem:[%s3519 + $0x9] sm:$0xff]
        %v4713 = vld [vmem:[%s3519 + $0x19] sm:$0xff]
        %v4714 = vld [vmem:[%s3519 + $0x21] sm:$0xff]
        %v4715 = vld [vmem:[%s3519 + $0x31] sm:$0xff]
        %v4716 = vld [vmem:[%s3519 + $0x39] sm:$0xff]
        %v4717 = vld [vmem:[%s3519 + $0x49] sm:$0xff]
        %v4718 = vld [vmem:[%s3519 + $0x51] sm:$0xff]
        %v4719 = vld [vmem:[%s3519 + $0x61] sm:$0xff]
        %v4720 = vld [vmem:[%s3519 + $0x69] sm:$0xff]
        %v4721 = vld [vmem:[%s3519 + $0x79] sm:$0xff]
        %v4722 = vld [vmem:[%s3519 + $0x81] sm:$0xff]
        %v4723 = vld [vmem:[%s3519 + $0x91] sm:$0xff]
        %v4724 = vld [vmem:[%s3519 + $0x99] sm:$0xff]
        %v4725 = vld [vmem:[%s3519 + $0xa9] sm:$0xff]
        %v4726 = vld [vmem:[%s3519 + $0xb1] sm:$0xff]
        %v4727 = vld [vmem:[%s3519 + $0xc1] sm:$0xff]
        %v4728 = vld [vmem:[%s3519 + $0xc9] sm:$0xff]
        %v4729 = vld [vmem:[%s3519 + $0xd9] sm:$0xff]
        %v4730 = vld [vmem:[%s3519 + $0xe1] sm:$0xff]
        %v4731 = vld [vmem:[%s3519 + $0xf1] sm:$0xff]
        %v4732 = vld [vmem:[%s3519 + $0xf9] sm:$0xff]
        %v4733 = vld [vmem:[%s3519 + $0x109] sm:$0xff]
        %v4734 = vld [vmem:[%s3519 + $0x111] sm:$0xff]
        %v4735 = vld [vmem:[%s3519 + $0x121] sm:$0xff]
        %v4736 = vld [vmem:[%s3519 + $0x129] sm:$0xff]
        %v4737 = vld [vmem:[%s3519 + $0x139] sm:$0xff]
        %v4738 = vld [vmem:[%s3519 + $0x141] sm:$0xff]
        %v4739 = vld [vmem:[%s3519 + $0x151] sm:$0xff]
        %v4740 = vld [vmem:[%s3519 + $0x159] sm:$0xff]
        %v4741 = vld [vmem:[%s3519 + $0x169] sm:$0xff]
        %v4742 = vld [vmem:[%s3519 + $0x171] sm:$0xff]
        %v4743 = vpack.c.bf16 %v4712, %v4711
        %v4744 = vpack.c.bf16 %v4714, %v4713
        %v4745 = vpack.c.bf16 %v4716, %v4715
        %v4746 = vpack.c.bf16 %v4718, %v4717
        %v4747 = vpack.c.bf16 %v4720, %v4719
        %v4748 = vpack.c.bf16 %v4722, %v4721
        %v4749 = vpack.c.bf16 %v4724, %v4723
        %v4750 = vpack.c.bf16 %v4726, %v4725
        %v4751 = vpack.c.bf16 %v4728, %v4727
        %v4752 = vpack.c.bf16 %v4730, %v4729
        %v4753 = vpack.c.bf16 %v4732, %v4731
        %v4754 = vpack.c.bf16 %v4734, %v4733
        %v4755 = vpack.c.bf16 %v4736, %v4735
        %v4756 = vpack.c.bf16 %v4738, %v4737
        %v4757 = vpack.c.bf16 %v4740, %v4739
        %v4758 = vpack.c.bf16 %v4742, %v4741
        %s4759 = scalar_lea.vmem %s5, 256
        %v4760 = vld [vmem:[%s4759] sm:$0xf]
        %v4761 = vld [vmem:[%s4759 + $0x4] sm:$0xf]
        %v4762 = vld [vmem:[%s4759 + $0x8] sm:$0xf]
        %v4763 = vld [vmem:[%s4759 + $0xc] sm:$0xf]
        %v4764 = vld [vmem:[%s4759 + $0x10] sm:$0xf]
        %v4765 = vld [vmem:[%s4759 + $0x14] sm:$0xf]
        %v4766 = vld [vmem:[%s4759 + $0x18] sm:$0xf]
        %v4767 = vld [vmem:[%s4759 + $0x1c] sm:$0xf]
        %v4768 = vld [vmem:[%s4759 + $0x20] sm:$0xf]
        %v4769 = vld [vmem:[%s4759 + $0x24] sm:$0xf]
        %v4770 = vld [vmem:[%s4759 + $0x28] sm:$0xf]
        %v4771 = vld [vmem:[%s4759 + $0x2c] sm:$0xf]
        %v4772 = vld [vmem:[%s4759 + $0x30] sm:$0xf]
        %v4773 = vld [vmem:[%s4759 + $0x34] sm:$0xf]
        %v4774 = vld [vmem:[%s4759 + $0x38] sm:$0xf]
        %v4775 = vld [vmem:[%s4759 + $0x3c] sm:$0xf]
        %v4792 = vunpack.c.l.b16 %v4760
        %v4793 = vunpack.c.l.b16 %v4761
        %v4794 = vunpack.c.l.b16 %v4762
        %v4795 = vunpack.c.l.b16 %v4763
        %v4796 = vunpack.c.l.b16 %v4764
        %v4797 = vunpack.c.l.b16 %v4765
        %v4798 = vunpack.c.l.b16 %v4766
        %v4799 = vunpack.c.l.b16 %v4767
        %v4800 = vunpack.c.l.b16 %v4768
        %v4801 = vunpack.c.l.b16 %v4769
        %v4802 = vunpack.c.l.b16 %v4770
        %v4803 = vunpack.c.l.b16 %v4771
        %v4804 = vunpack.c.l.b16 %v4772
        %v4805 = vunpack.c.l.b16 %v4773
        %v4806 = vunpack.c.l.b16 %v4774
        %v4807 = vunpack.c.l.b16 %v4775
        %v4808 = vpack.c.b16 %v4793, %v4792
        %v4809 = vpack.c.b16 %v4795, %v4794
        %v4810 = vpack.c.b16 %v4797, %v4796
        %v4811 = vpack.c.b16 %v4799, %v4798
        %v4812 = vpack.c.b16 %v4801, %v4800
        %v4813 = vpack.c.b16 %v4803, %v4802
        %v4814 = vpack.c.b16 %v4805, %v4804
        %v4815 = vpack.c.b16 %v4807, %v4806
        %4824 = vmatprep.subr.bf16.mxu0 0
        %4825 = vmatpush1.bf16.msra.mxu0 %v4808
        %4826 = vmatprep.subr.bf16.mxu0 0
        %4827 = vmatpush1.bf16.msra.mxu0 %v4809
        %4828 = vmatprep.subr.bf16.mxu0 0
        %4829 = vmatpush1.bf16.msra.mxu0 %v4810
        %4830 = vmatprep.subr.bf16.mxu0 0
        %4831 = vmatpush1.bf16.msra.mxu0 %v4811
        %4832 = vmatprep.subr.bf16.mxu0 0
        %4833 = vmatpush1.bf16.msra.mxu0 %v4812
        %4834 = vmatprep.subr.bf16.mxu0 0
        %4835 = vmatpush1.bf16.msra.mxu0 %v4813
        %4836 = vmatprep.subr.bf16.mxu0 0
        %4837 = vmatpush1.bf16.msra.mxu0 %v4814
        %4838 = vmatprep.subr.bf16.mxu0 0
        %4839 = vmatpush1.bf16.msra.mxu0 %v4815
        %4840 = vmatprep.subr.bf16.mxu0 0
        %4841 = vmatpush1.bf16.msra.mxu0 0
        %4842 = vmatprep.subr.bf16.mxu0 0
        %4843 = vmatpush1.bf16.msra.mxu0 0
        %4844 = vmatprep.subr.bf16.mxu0 0
        %4845 = vmatpush1.bf16.msra.mxu0 0
        %4846 = vmatprep.subr.bf16.mxu0 0
        %4847 = vmatpush1.bf16.msra.mxu0 0
        %4848 = vmatprep.subr.bf16.mxu0 0
        %4849 = vmatpush1.bf16.msra.mxu0 0
        %4850 = vmatprep.subr.bf16.mxu0 0
        %4851 = vmatpush1.bf16.msra.mxu0 0
        %4852 = vmatprep.subr.bf16.mxu0 0
        %4853 = vmatpush1.bf16.msra.mxu0 0
        %4854 = vmatprep.subr.bf16.mxu0 0
        %4855 = vmatpush1.bf16.msra.mxu0 0
        %4856 = vmatprep.mubr.bf16.mxu0 0
        %4857 = vmatmul.mubr.bf16.gmra.mrb[0].mxu0 %v4743
        %v4858 = vpop.f32.mrb[0].mxu0
        %v4859 = vadd.f32 0.0, %v4858
        %v4860 = vpop.f32.mrb[0].mxu0
        %v4861 = vpop.f32.mrb[0].mxu0
        %v4862 = vadd.f32 0.0, %v4861
        %v4863 = vpop.f32.mrb[0].mxu0
        %4864 = vmatprep.mubr.bf16.mxu0 0
        %4865 = vmatmul.mubr.bf16.gmra.mrb[0].mxu0 %v4744
        %v4866 = vpop.f32.mrb[0].mxu0
        %v4867 = vadd.f32 0.0, %v4866
        %v4868 = vpop.f32.mrb[0].mxu0
        %v4869 = vpop.f32.mrb[0].mxu0
        %v4870 = vadd.f32 0.0, %v4869
        %v4871 = vpop.f32.mrb[0].mxu0
        %4872 = vmatprep.mubr.bf16.mxu0 0
        %4873 = vmatmul.mubr.bf16.gmra.mrb[0].mxu0 %v4745
        %v4874 = vpop.f32.mrb[0].mxu0
        %v4875 = vadd.f32 0.0, %v4874
        %v4876 = vpop.f32.mrb[0].mxu0
        %v4877 = vpop.f32.mrb[0].mxu0
        %v4878 = vadd.f32 0.0, %v4877
        %v4879 = vpop.f32.mrb[0].mxu0
        %4880 = vmatprep.mubr.bf16.mxu0 0
        %4881 = vmatmul.mubr.bf16.gmra.mrb[0].mxu0 %v4746
        %v4882 = vpop.f32.mrb[0].mxu0
        %v4883 = vadd.f32 0.0, %v4882
        %v4884 = vpop.f32.mrb[0].mxu0
        %v4885 = vpop.f32.mrb[0].mxu0
        %v4886 = vadd.f32 0.0, %v4885
        %v4887 = vpop.f32.mrb[0].mxu0
        %4888 = vmatprep.mubr.bf16.mxu0 0
        %4889 = vmatmul.mubr.bf16.gmra.mrb[0].mxu0 %v4747
        %v4890 = vpop.f32.mrb[0].mxu0
        %v4891 = vadd.f32 0.0, %v4890
        %v4892 = vpop.f32.mrb[0].mxu0
        %v4893 = vpop.f32.mrb[0].mxu0
        %v4894 = vadd.f32 0.0, %v4893
        %v4895 = vpop.f32.mrb[0].mxu0
        %4896 = vmatprep.mubr.bf16.mxu0 0
        %4897 = vmatmul.mubr.bf16.gmra.mrb[0].mxu0 %v4748
        %v4898 = vpop.f32.mrb[0].mxu0
        %v4899 = vadd.f32 0.0, %v4898
        %v4900 = vpop.f32.mrb[0].mxu0
        %v4901 = vpop.f32.mrb[0].mxu0
        %v4902 = vadd.f32 0.0, %v4901
        %v4903 = vpop.f32.mrb[0].mxu0
        %4904 = vmatprep.mubr.bf16.mxu0 0
        %4905 = vmatmul.mubr.bf16.gmra.mrb[0].mxu0 %v4749
        %v4906 = vpop.f32.mrb[0].mxu0
        %v4907 = vadd.f32 0.0, %v4906
        %v4908 = vpop.f32.mrb[0].mxu0
        %v4909 = vpop.f32.mrb[0].mxu0
        %v4910 = vadd.f32 0.0, %v4909
        %v4911 = vpop.f32.mrb[0].mxu0
        %4912 = vmatprep.mubr.bf16.mxu0 0
        %4913 = vmatmul.mubr.bf16.gmra.mrb[0].mxu0 %v4750
        %v4914 = vpop.f32.mrb[0].mxu0
        %v4915 = vadd.f32 0.0, %v4914
        %v4916 = vpop.f32.mrb[0].mxu0
        %v4917 = vpop.f32.mrb[0].mxu0
        %v4918 = vadd.f32 0.0, %v4917
        %v4919 = vpop.f32.mrb[0].mxu0
        %4920 = vmatprep.mubr.bf16.mxu0 0
        %4921 = vmatmul.mubr.bf16.gmra.mrb[0].mxu0 %v4751
        %v4922 = vpop.f32.mrb[0].mxu0
        %v4923 = vadd.f32 0.0, %v4922
        %v4924 = vpop.f32.mrb[0].mxu0
        %v4925 = vpop.f32.mrb[0].mxu0
        %v4926 = vadd.f32 0.0, %v4925
        %v4927 = vpop.f32.mrb[0].mxu0
        %4928 = vmatprep.mubr.bf16.mxu0 0
        %4929 = vmatmul.mubr.bf16.gmra.mrb[0].mxu0 %v4752
        %v4930 = vpop.f32.mrb[0].mxu0
        %v4931 = vadd.f32 0.0, %v4930
        %v4932 = vpop.f32.mrb[0].mxu0
        %v4933 = vpop.f32.mrb[0].mxu0
        %v4934 = vadd.f32 0.0, %v4933
        %v4935 = vpop.f32.mrb[0].mxu0
        %4936 = vmatprep.mubr.bf16.mxu0 0
        %4937 = vmatmul.mubr.bf16.gmra.mrb[0].mxu0 %v4753
        %v4938 = vpop.f32.mrb[0].mxu0
        %v4939 = vadd.f32 0.0, %v4938
        %v4940 = vpop.f32.mrb[0].mxu0
        %v4941 = vpop.f32.mrb[0].mxu0
        %v4942 = vadd.f32 0.0, %v4941
        %v4943 = vpop.f32.mrb[0].mxu0
        %4944 = vmatprep.mubr.bf16.mxu0 0
        %4945 = vmatmul.mubr.bf16.gmra.mrb[0].mxu0 %v4754
        %v4946 = vpop.f32.mrb[0].mxu0
        %v4947 = vadd.f32 0.0, %v4946
        %v4948 = vpop.f32.mrb[0].mxu0
        %v4949 = vpop.f32.mrb[0].mxu0
        %v4950 = vadd.f32 0.0, %v4949
        %v4951 = vpop.f32.mrb[0].mxu0
        %4952 = vmatprep.mubr.bf16.mxu0 0
        %4953 = vmatmul.mubr.bf16.gmra.mrb[0].mxu0 %v4755
        %v4954 = vpop.f32.mrb[0].mxu0
        %v4955 = vadd.f32 0.0, %v4954
        %v4956 = vpop.f32.mrb[0].mxu0
        %v4957 = vpop.f32.mrb[0].mxu0
        %v4958 = vadd.f32 0.0, %v4957
        %v4959 = vpop.f32.mrb[0].mxu0
        %4960 = vmatprep.mubr.bf16.mxu0 0
        %4961 = vmatmul.mubr.bf16.gmra.mrb[0].mxu0 %v4756
        %v4962 = vpop.f32.mrb[0].mxu0
        %v4963 = vadd.f32 0.0, %v4962
        %v4964 = vpop.f32.mrb[0].mxu0
        %v4965 = vpop.f32.mrb[0].mxu0
        %v4966 = vadd.f32 0.0, %v4965
        %v4967 = vpop.f32.mrb[0].mxu0
        %4968 = vmatprep.mubr.bf16.mxu0 0
        %4969 = vmatmul.mubr.bf16.gmra.mrb[0].mxu0 %v4757
        %v4970 = vpop.f32.mrb[0].mxu0
        %v4971 = vadd.f32 0.0, %v4970
        %v4972 = vpop.f32.mrb[0].mxu0
        %v4973 = vpop.f32.mrb[0].mxu0
        %v4974 = vadd.f32 0.0, %v4973
        %v4975 = vpop.f32.mrb[0].mxu0
        %4976 = vmatprep.mubr.bf16.mxu0 0
        %4977 = vmatmul.mubr.bf16.gmra.mrb[0].mxu0 %v4758
        %v4978 = vpop.f32.mrb[0].mxu0
        %v4979 = vadd.f32 0.0, %v4978
        %v4980 = vpop.f32.mrb[0].mxu0
        %v4981 = vpop.f32.mrb[0].mxu0
        %v4982 = vadd.f32 0.0, %v4981
        %v4983 = vpop.f32.mrb[0].mxu0
        %4984 = vdwg.mxu0
        %v4985 = vadd.f32 %v4679, %v4859
        %v4986 = vadd.f32 %v4680, %v4862
        %v4987 = vadd.f32 %v4681, %v4867
        %v4988 = vadd.f32 %v4682, %v4870
        %v4989 = vadd.f32 %v4683, %v4875
        %v4990 = vadd.f32 %v4684, %v4878
        %v4991 = vadd.f32 %v4685, %v4883
        %v4992 = vadd.f32 %v4686, %v4886
        %v4993 = vadd.f32 %v4687, %v4891
        %v4994 = vadd.f32 %v4688, %v4894
        %v4995 = vadd.f32 %v4689, %v4899
        %v4996 = vadd.f32 %v4690, %v4902
        %v4997 = vadd.f32 %v4691, %v4907
        %v4998 = vadd.f32 %v4692, %v4910
        %v4999 = vadd.f32 %v4693, %v4915
        %v5000 = vadd.f32 %v4694, %v4918
        %v5001 = vadd.f32 %v4695, %v4923
        %v5002 = vadd.f32 %v4696, %v4926
        %v5003 = vadd.f32 %v4697, %v4931
        %v5004 = vadd.f32 %v4698, %v4934
        %v5005 = vadd.f32 %v4699, %v4939
        %v5006 = vadd.f32 %v4700, %v4942
        %v5007 = vadd.f32 %v4701, %v4947
        %v5008 = vadd.f32 %v4702, %v4950
        %v5009 = vadd.f32 %v4703, %v4955
        %v5010 = vadd.f32 %v4704, %v4958
        %v5011 = vadd.f32 %v4705, %v4963
        %v5012 = vadd.f32 %v4706, %v4966
        %v5013 = vadd.f32 %v4707, %v4971
        %v5014 = vadd.f32 %v4708, %v4974
        %v5015 = vadd.f32 %v4709, %v4979
        %v5016 = vadd.f32 %v4710, %v4982
        %v5017 = vld [vmem:[%s3519 + $0x2] sm:$0xff]
        %v5018 = vld [vmem:[%s3519 + $0xa] sm:$0xff]
        %v5019 = vld [vmem:[%s3519 + $0x1a] sm:$0xff]
        %v5020 = vld [vmem:[%s3519 + $0x22] sm:$0xff]
        %v5021 = vld [vmem:[%s3519 + $0x32] sm:$0xff]
        %v5022 = vld [vmem:[%s3519 + $0x3a] sm:$0xff]
        %v5023 = vld [vmem:[%s3519 + $0x4a] sm:$0xff]
        %v5024 = vld [vmem:[%s3519 + $0x52] sm:$0xff]
        %v5025 = vld [vmem:[%s3519 + $0x62] sm:$0xff]
        %v5026 = vld [vmem:[%s3519 + $0x6a] sm:$0xff]
        %v5027 = vld [vmem:[%s3519 + $0x7a] sm:$0xff]
        %v5028 = vld [vmem:[%s3519 + $0x82] sm:$0xff]
        %v5029 = vld [vmem:[%s3519 + $0x92] sm:$0xff]
        %v5030 = vld [vmem:[%s3519 + $0x9a] sm:$0xff]
        %v5031 = vld [vmem:[%s3519 + $0xaa] sm:$0xff]
        %v5032 = vld [vmem:[%s3519 + $0xb2] sm:$0xff]
        %v5033 = vld [vmem:[%s3519 + $0xc2] sm:$0xff]
        %v5034 = vld [vmem:[%s3519 + $0xca] sm:$0xff]
        %v5035 = vld [vmem:[%s3519 + $0xda] sm:$0xff]
        %v5036 = vld [vmem:[%s3519 + $0xe2] sm:$0xff]
        %v5037 = vld [vmem:[%s3519 + $0xf2] sm:$0xff]
        %v5038 = vld [vmem:[%s3519 + $0xfa] sm:$0xff]
        %v5039 = vld [vmem:[%s3519 + $0x10a] sm:$0xff]
        %v5040 = vld [vmem:[%s3519 + $0x112] sm:$0xff]
        %v5041 = vld [vmem:[%s3519 + $0x122] sm:$0xff]
        %v5042 = vld [vmem:[%s3519 + $0x12a] sm:$0xff]
        %v5043 = vld [vmem:[%s3519 + $0x13a] sm:$0xff]
        %v5044 = vld [vmem:[%s3519 + $0x142] sm:$0xff]
        %v5045 = vld [vmem:[%s3519 + $0x152] sm:$0xff]
        %v5046 = vld [vmem:[%s3519 + $0x15a] sm:$0xff]
        %v5047 = vld [vmem:[%s3519 + $0x16a] sm:$0xff]
        %v5048 = vld [vmem:[%s3519 + $0x172] sm:$0xff]
        %v5049 = vpack.c.bf16 %v5018, %v5017
        %v5050 = vpack.c.bf16 %v5020, %v5019
        %v5051 = vpack.c.bf16 %v5022, %v5021
        %v5052 = vpack.c.bf16 %v5024, %v5023
        %v5053 = vpack.c.bf16 %v5026, %v5025
        %v5054 = vpack.c.bf16 %v5028, %v5027
        %v5055 = vpack.c.bf16 %v5030, %v5029
        %v5056 = vpack.c.bf16 %v5032, %v5031
        %v5057 = vpack.c.bf16 %v5034, %v5033
        %v5058 = vpack.c.bf16 %v5036, %v5035
        %v5059 = vpack.c.bf16 %v5038, %v5037
        %v5060 = vpack.c.bf16 %v5040, %v5039
        %v5061 = vpack.c.bf16 %v5042, %v5041
        %v5062 = vpack.c.bf16 %v5044, %v5043
        %v5063 = vpack.c.bf16 %v5046, %v5045
        %v5064 = vpack.c.bf16 %v5048, %v5047
        %s5065 = scalar_lea.vmem %s5, 320
        %v5066 = vld [vmem:[%s5065] sm:$0xf]
        %v5067 = vld [vmem:[%s5065 + $0x4] sm:$0xf]
        %v5068 = vld [vmem:[%s5065 + $0x8] sm:$0xf]
        %v5069 = vld [vmem:[%s5065 + $0xc] sm:$0xf]
        %v5070 = vld [vmem:[%s5065 + $0x10] sm:$0xf]
        %v5071 = vld [vmem:[%s5065 + $0x14] sm:$0xf]
        %v5072 = vld [vmem:[%s5065 + $0x18] sm:$0xf]
        %v5073 = vld [vmem:[%s5065 + $0x1c] sm:$0xf]
        %v5074 = vld [vmem:[%s5065 + $0x20] sm:$0xf]
        %v5075 = vld [vmem:[%s5065 + $0x24] sm:$0xf]
        %v5076 = vld [vmem:[%s5065 + $0x28] sm:$0xf]
        %v5077 = vld [vmem:[%s5065 + $0x2c] sm:$0xf]
        %v5078 = vld [vmem:[%s5065 + $0x30] sm:$0xf]
        %v5079 = vld [vmem:[%s5065 + $0x34] sm:$0xf]
        %v5080 = vld [vmem:[%s5065 + $0x38] sm:$0xf]
        %v5081 = vld [vmem:[%s5065 + $0x3c] sm:$0xf]
        %v5098 = vunpack.c.l.b16 %v5066
        %v5099 = vunpack.c.l.b16 %v5067
        %v5100 = vunpack.c.l.b16 %v5068
        %v5101 = vunpack.c.l.b16 %v5069
        %v5102 = vunpack.c.l.b16 %v5070
        %v5103 = vunpack.c.l.b16 %v5071
        %v5104 = vunpack.c.l.b16 %v5072
        %v5105 = vunpack.c.l.b16 %v5073
        %v5106 = vunpack.c.l.b16 %v5074
        %v5107 = vunpack.c.l.b16 %v5075
        %v5108 = vunpack.c.l.b16 %v5076
        %v5109 = vunpack.c.l.b16 %v5077
        %v5110 = vunpack.c.l.b16 %v5078
        %v5111 = vunpack.c.l.b16 %v5079
        %v5112 = vunpack.c.l.b16 %v5080
        %v5113 = vunpack.c.l.b16 %v5081
        %v5114 = vpack.c.b16 %v5099, %v5098
        %v5115 = vpack.c.b16 %v5101, %v5100
        %v5116 = vpack.c.b16 %v5103, %v5102
        %v5117 = vpack.c.b16 %v5105, %v5104
        %v5118 = vpack.c.b16 %v5107, %v5106
        %v5119 = vpack.c.b16 %v5109, %v5108
        %v5120 = vpack.c.b16 %v5111, %v5110
        %v5121 = vpack.c.b16 %v5113, %v5112
        %5130 = vmatprep.subr.bf16.mxu0 0
        %5131 = vmatpush1.bf16.msra.mxu0 %v5114
        %5132 = vmatprep.subr.bf16.mxu0 0
        %5133 = vmatpush1.bf16.msra.mxu0 %v5115
        %5134 = vmatprep.subr.bf16.mxu0 0
        %5135 = vmatpush1.bf16.msra.mxu0 %v5116
        %5136 = vmatprep.subr.bf16.mxu0 0
        %5137 = vmatpush1.bf16.msra.mxu0 %v5117
        %5138 = vmatprep.subr.bf16.mxu0 0
        %5139 = vmatpush1.bf16.msra.mxu0 %v5118
        %5140 = vmatprep.subr.bf16.mxu0 0
        %5141 = vmatpush1.bf16.msra.mxu0 %v5119
        %5142 = vmatprep.subr.bf16.mxu0 0
        %5143 = vmatpush1.bf16.msra.mxu0 %v5120
        %5144 = vmatprep.subr.bf16.mxu0 0
        %5145 = vmatpush1.bf16.msra.mxu0 %v5121
        %5146 = vmatprep.subr.bf16.mxu0 0
        %5147 = vmatpush1.bf16.msra.mxu0 0
        %5148 = vmatprep.subr.bf16.mxu0 0
        %5149 = vmatpush1.bf16.msra.mxu0 0
        %5150 = vmatprep.subr.bf16.mxu0 0
        %5151 = vmatpush1.bf16.msra.mxu0 0
        %5152 = vmatprep.subr.bf16.mxu0 0
        %5153 = vmatpush1.bf16.msra.mxu0 0
        %5154 = vmatprep.subr.bf16.mxu0 0
        %5155 = vmatpush1.bf16.msra.mxu0 0
        %5156 = vmatprep.subr.bf16.mxu0 0
        %5157 = vmatpush1.bf16.msra.mxu0 0
        %5158 = vmatprep.subr.bf16.mxu0 0
        %5159 = vmatpush1.bf16.msra.mxu0 0
        %5160 = vmatprep.subr.bf16.mxu0 0
        %5161 = vmatpush1.bf16.msra.mxu0 0
        %5162 = vmatprep.mubr.bf16.mxu0 0
        %5163 = vmatmul.mubr.bf16.gmra.mrb[0].mxu0 %v5049
        %v5164 = vpop.f32.mrb[0].mxu0
        %v5165 = vadd.f32 0.0, %v5164
        %v5166 = vpop.f32.mrb[0].mxu0
        %v5167 = vpop.f32.mrb[0].mxu0
        %v5168 = vadd.f32 0.0, %v5167
        %v5169 = vpop.f32.mrb[0].mxu0
        %5170 = vmatprep.mubr.bf16.mxu0 0
        %5171 = vmatmul.mubr.bf16.gmra.mrb[0].mxu0 %v5050
        %v5172 = vpop.f32.mrb[0].mxu0
        %v5173 = vadd.f32 0.0, %v5172
        %v5174 = vpop.f32.mrb[0].mxu0
        %v5175 = vpop.f32.mrb[0].mxu0
        %v5176 = vadd.f32 0.0, %v5175
        %v5177 = vpop.f32.mrb[0].mxu0
        %5178 = vmatprep.mubr.bf16.mxu0 0
        %5179 = vmatmul.mubr.bf16.gmra.mrb[0].mxu0 %v5051
        %v5180 = vpop.f32.mrb[0].mxu0
        %v5181 = vadd.f32 0.0, %v5180
        %v5182 = vpop.f32.mrb[0].mxu0
        %v5183 = vpop.f32.mrb[0].mxu0
        %v5184 = vadd.f32 0.0, %v5183
        %v5185 = vpop.f32.mrb[0].mxu0
        %5186 = vmatprep.mubr.bf16.mxu0 0
        %5187 = vmatmul.mubr.bf16.gmra.mrb[0].mxu0 %v5052
        %v5188 = vpop.f32.mrb[0].mxu0
        %v5189 = vadd.f32 0.0, %v5188
        %v5190 = vpop.f32.mrb[0].mxu0
        %v5191 = vpop.f32.mrb[0].mxu0
        %v5192 = vadd.f32 0.0, %v5191
        %v5193 = vpop.f32.mrb[0].mxu0
        %5194 = vmatprep.mubr.bf16.mxu0 0
        %5195 = vmatmul.mubr.bf16.gmra.mrb[0].mxu0 %v5053
        %v5196 = vpop.f32.mrb[0].mxu0
        %v5197 = vadd.f32 0.0, %v5196
        %v5198 = vpop.f32.mrb[0].mxu0
        %v5199 = vpop.f32.mrb[0].mxu0
        %v5200 = vadd.f32 0.0, %v5199
        %v5201 = vpop.f32.mrb[0].mxu0
        %5202 = vmatprep.mubr.bf16.mxu0 0
        %5203 = vmatmul.mubr.bf16.gmra.mrb[0].mxu0 %v5054
        %v5204 = vpop.f32.mrb[0].mxu0
        %v5205 = vadd.f32 0.0, %v5204
        %v5206 = vpop.f32.mrb[0].mxu0
        %v5207 = vpop.f32.mrb[0].mxu0
        %v5208 = vadd.f32 0.0, %v5207
        %v5209 = vpop.f32.mrb[0].mxu0
        %5210 = vmatprep.mubr.bf16.mxu0 0
        %5211 = vmatmul.mubr.bf16.gmra.mrb[0].mxu0 %v5055
        %v5212 = vpop.f32.mrb[0].mxu0
        %v5213 = vadd.f32 0.0, %v5212
        %v5214 = vpop.f32.mrb[0].mxu0
        %v5215 = vpop.f32.mrb[0].mxu0
        %v5216 = vadd.f32 0.0, %v5215
        %v5217 = vpop.f32.mrb[0].mxu0
        %5218 = vmatprep.mubr.bf16.mxu0 0
        %5219 = vmatmul.mubr.bf16.gmra.mrb[0].mxu0 %v5056
        %v5220 = vpop.f32.mrb[0].mxu0
        %v5221 = vadd.f32 0.0, %v5220
        %v5222 = vpop.f32.mrb[0].mxu0
        %v5223 = vpop.f32.mrb[0].mxu0
        %v5224 = vadd.f32 0.0, %v5223
        %v5225 = vpop.f32.mrb[0].mxu0
        %5226 = vmatprep.mubr.bf16.mxu0 0
        %5227 = vmatmul.mubr.bf16.gmra.mrb[0].mxu0 %v5057
        %v5228 = vpop.f32.mrb[0].mxu0
        %v5229 = vadd.f32 0.0, %v5228
        %v5230 = vpop.f32.mrb[0].mxu0
        %v5231 = vpop.f32.mrb[0].mxu0
        %v5232 = vadd.f32 0.0, %v5231
        %v5233 = vpop.f32.mrb[0].mxu0
        %5234 = vmatprep.mubr.bf16.mxu0 0
        %5235 = vmatmul.mubr.bf16.gmra.mrb[0].mxu0 %v5058
        %v5236 = vpop.f32.mrb[0].mxu0
        %v5237 = vadd.f32 0.0, %v5236
        %v5238 = vpop.f32.mrb[0].mxu0
        %v5239 = vpop.f32.mrb[0].mxu0
        %v5240 = vadd.f32 0.0, %v5239
        %v5241 = vpop.f32.mrb[0].mxu0
        %5242 = vmatprep.mubr.bf16.mxu0 0
        %5243 = vmatmul.mubr.bf16.gmra.mrb[0].mxu0 %v5059
        %v5244 = vpop.f32.mrb[0].mxu0
        %v5245 = vadd.f32 0.0, %v5244
        %v5246 = vpop.f32.mrb[0].mxu0
        %v5247 = vpop.f32.mrb[0].mxu0
        %v5248 = vadd.f32 0.0, %v5247
        %v5249 = vpop.f32.mrb[0].mxu0
        %5250 = vmatprep.mubr.bf16.mxu0 0
        %5251 = vmatmul.mubr.bf16.gmra.mrb[0].mxu0 %v5060
        %v5252 = vpop.f32.mrb[0].mxu0
        %v5253 = vadd.f32 0.0, %v5252
        %v5254 = vpop.f32.mrb[0].mxu0
        %v5255 = vpop.f32.mrb[0].mxu0
        %v5256 = vadd.f32 0.0, %v5255
        %v5257 = vpop.f32.mrb[0].mxu0
        %5258 = vmatprep.mubr.bf16.mxu0 0
        %5259 = vmatmul.mubr.bf16.gmra.mrb[0].mxu0 %v5061
        %v5260 = vpop.f32.mrb[0].mxu0
        %v5261 = vadd.f32 0.0, %v5260
        %v5262 = vpop.f32.mrb[0].mxu0
        %v5263 = vpop.f32.mrb[0].mxu0
        %v5264 = vadd.f32 0.0, %v5263
        %v5265 = vpop.f32.mrb[0].mxu0
        %5266 = vmatprep.mubr.bf16.mxu0 0
        %5267 = vmatmul.mubr.bf16.gmra.mrb[0].mxu0 %v5062
        %v5268 = vpop.f32.mrb[0].mxu0
        %v5269 = vadd.f32 0.0, %v5268
        %v5270 = vpop.f32.mrb[0].mxu0
        %v5271 = vpop.f32.mrb[0].mxu0
        %v5272 = vadd.f32 0.0, %v5271
        %v5273 = vpop.f32.mrb[0].mxu0
        %5274 = vmatprep.mubr.bf16.mxu0 0
        %5275 = vmatmul.mubr.bf16.gmra.mrb[0].mxu0 %v5063
        %v5276 = vpop.f32.mrb[0].mxu0
        %v5277 = vadd.f32 0.0, %v5276
        %v5278 = vpop.f32.mrb[0].mxu0
        %v5279 = vpop.f32.mrb[0].mxu0
        %v5280 = vadd.f32 0.0, %v5279
        %v5281 = vpop.f32.mrb[0].mxu0
        %5282 = vmatprep.mubr.bf16.mxu0 0
        %5283 = vmatmul.mubr.bf16.gmra.mrb[0].mxu0 %v5064
        %v5284 = vpop.f32.mrb[0].mxu0
        %v5285 = vadd.f32 0.0, %v5284
        %v5286 = vpop.f32.mrb[0].mxu0
        %v5287 = vpop.f32.mrb[0].mxu0
        %v5288 = vadd.f32 0.0, %v5287
        %v5289 = vpop.f32.mrb[0].mxu0
        %5290 = vdwg.mxu0
        %v5291 = vadd.f32 %v4985, %v5165
        %v5292 = vadd.f32 %v4986, %v5168
        %v5293 = vadd.f32 %v4987, %v5173
        %v5294 = vadd.f32 %v4988, %v5176
        %v5295 = vadd.f32 %v4989, %v5181
        %v5296 = vadd.f32 %v4990, %v5184
        %v5297 = vadd.f32 %v4991, %v5189
        %v5298 = vadd.f32 %v4992, %v5192
        %v5299 = vadd.f32 %v4993, %v5197
        %v5300 = vadd.f32 %v4994, %v5200
        %v5301 = vadd.f32 %v4995, %v5205
        %v5302 = vadd.f32 %v4996, %v5208
        %v5303 = vadd.f32 %v4997, %v5213
        %v5304 = vadd.f32 %v4998, %v5216
        %v5305 = vadd.f32 %v4999, %v5221
        %v5306 = vadd.f32 %v5000, %v5224
        %v5307 = vadd.f32 %v5001, %v5229
        %v5308 = vadd.f32 %v5002, %v5232
        %v5309 = vadd.f32 %v5003, %v5237
        %v5310 = vadd.f32 %v5004, %v5240
        %v5311 = vadd.f32 %v5005, %v5245
        %v5312 = vadd.f32 %v5006, %v5248
        %v5313 = vadd.f32 %v5007, %v5253
        %v5314 = vadd.f32 %v5008, %v5256
        %v5315 = vadd.f32 %v5009, %v5261
        %v5316 = vadd.f32 %v5010, %v5264
        %v5317 = vadd.f32 %v5011, %v5269
        %v5318 = vadd.f32 %v5012, %v5272
        %v5319 = vadd.f32 %v5013, %v5277
        %v5320 = vadd.f32 %v5014, %v5280
        %v5321 = vadd.f32 %v5015, %v5285
        %v5322 = vadd.f32 %v5016, %v5288
        %s5323 = scalar_lea.vmem [#allocation3], 48
        %v5324 = vld [vmem:[%s5323] sm:$0xff]
        %v5325 = vld [vmem:[%s5323 + $0x8] sm:$0xff]
        %v5326 = vld [vmem:[%s5323 + $0x18] sm:$0xff]
        %v5327 = vld [vmem:[%s5323 + $0x20] sm:$0xff]
        %v5328 = vld [vmem:[%s5323 + $0x30] sm:$0xff]
        %v5329 = vld [vmem:[%s5323 + $0x38] sm:$0xff]
        %v5330 = vld [vmem:[%s5323 + $0x48] sm:$0xff]
        %v5331 = vld [vmem:[%s5323 + $0x50] sm:$0xff]
        %v5332 = vld [vmem:[%s5323 + $0x60] sm:$0xff]
        %v5333 = vld [vmem:[%s5323 + $0x68] sm:$0xff]
        %v5334 = vld [vmem:[%s5323 + $0x78] sm:$0xff]
        %v5335 = vld [vmem:[%s5323 + $0x80] sm:$0xff]
        %v5336 = vld [vmem:[%s5323 + $0x90] sm:$0xff]
        %v5337 = vld [vmem:[%s5323 + $0x98] sm:$0xff]
        %v5338 = vld [vmem:[%s5323 + $0xa8] sm:$0xff]
        %v5339 = vld [vmem:[%s5323 + $0xb0] sm:$0xff]
        %v5340 = vld [vmem:[%s5323 + $0xc0] sm:$0xff]
        %v5341 = vld [vmem:[%s5323 + $0xc8] sm:$0xff]
        %v5342 = vld [vmem:[%s5323 + $0xd8] sm:$0xff]
        %v5343 = vld [vmem:[%s5323 + $0xe0] sm:$0xff]
        %v5344 = vld [vmem:[%s5323 + $0xf0] sm:$0xff]
        %v5345 = vld [vmem:[%s5323 + $0xf8] sm:$0xff]
        %v5346 = vld [vmem:[%s5323 + $0x108] sm:$0xff]
        %v5347 = vld [vmem:[%s5323 + $0x110] sm:$0xff]
        %v5348 = vld [vmem:[%s5323 + $0x120] sm:$0xff]
        %v5349 = vld [vmem:[%s5323 + $0x128] sm:$0xff]
        %v5350 = vld [vmem:[%s5323 + $0x138] sm:$0xff]
        %v5351 = vld [vmem:[%s5323 + $0x140] sm:$0xff]
        %v5352 = vld [vmem:[%s5323 + $0x150] sm:$0xff]
        %v5353 = vld [vmem:[%s5323 + $0x158] sm:$0xff]
        %v5354 = vld [vmem:[%s5323 + $0x168] sm:$0xff]
        %v5355 = vld [vmem:[%s5323 + $0x170] sm:$0xff]
        %v5356 = vpack.c.bf16 %v5325, %v5324
        %v5357 = vpack.c.bf16 %v5327, %v5326
        %v5358 = vpack.c.bf16 %v5329, %v5328
        %v5359 = vpack.c.bf16 %v5331, %v5330
        %v5360 = vpack.c.bf16 %v5333, %v5332
        %v5361 = vpack.c.bf16 %v5335, %v5334
        %v5362 = vpack.c.bf16 %v5337, %v5336
        %v5363 = vpack.c.bf16 %v5339, %v5338
        %v5364 = vpack.c.bf16 %v5341, %v5340
        %v5365 = vpack.c.bf16 %v5343, %v5342
        %v5366 = vpack.c.bf16 %v5345, %v5344
        %v5367 = vpack.c.bf16 %v5347, %v5346
        %v5368 = vpack.c.bf16 %v5349, %v5348
        %v5369 = vpack.c.bf16 %v5351, %v5350
        %v5370 = vpack.c.bf16 %v5353, %v5352
        %v5371 = vpack.c.bf16 %v5355, %v5354
        %s5372 = scalar_lea.vmem %s5, 384
        %v5373 = vld [vmem:[%s5372] sm:$0xf]
        %v5374 = vld [vmem:[%s5372 + $0x4] sm:$0xf]
        %v5375 = vld [vmem:[%s5372 + $0x8] sm:$0xf]
        %v5376 = vld [vmem:[%s5372 + $0xc] sm:$0xf]
        %v5377 = vld [vmem:[%s5372 + $0x10] sm:$0xf]
        %v5378 = vld [vmem:[%s5372 + $0x14] sm:$0xf]
        %v5379 = vld [vmem:[%s5372 + $0x18] sm:$0xf]
        %v5380 = vld [vmem:[%s5372 + $0x1c] sm:$0xf]
        %v5381 = vld [vmem:[%s5372 + $0x20] sm:$0xf]
        %v5382 = vld [vmem:[%s5372 + $0x24] sm:$0xf]
        %v5383 = vld [vmem:[%s5372 + $0x28] sm:$0xf]
        %v5384 = vld [vmem:[%s5372 + $0x2c] sm:$0xf]
        %v5385 = vld [vmem:[%s5372 + $0x30] sm:$0xf]
        %v5386 = vld [vmem:[%s5372 + $0x34] sm:$0xf]
        %v5387 = vld [vmem:[%s5372 + $0x38] sm:$0xf]
        %v5388 = vld [vmem:[%s5372 + $0x3c] sm:$0xf]
        %v5405 = vunpack.c.l.b16 %v5373
        %v5406 = vunpack.c.l.b16 %v5374
        %v5407 = vunpack.c.l.b16 %v5375
        %v5408 = vunpack.c.l.b16 %v5376
        %v5409 = vunpack.c.l.b16 %v5377
        %v5410 = vunpack.c.l.b16 %v5378
        %v5411 = vunpack.c.l.b16 %v5379
        %v5412 = vunpack.c.l.b16 %v5380
        %v5413 = vunpack.c.l.b16 %v5381
        %v5414 = vunpack.c.l.b16 %v5382
        %v5415 = vunpack.c.l.b16 %v5383
        %v5416 = vunpack.c.l.b16 %v5384
        %v5417 = vunpack.c.l.b16 %v5385
        %v5418 = vunpack.c.l.b16 %v5386
        %v5419 = vunpack.c.l.b16 %v5387
        %v5420 = vunpack.c.l.b16 %v5388
        %v5421 = vpack.c.b16 %v5406, %v5405
        %v5422 = vpack.c.b16 %v5408, %v5407
        %v5423 = vpack.c.b16 %v5410, %v5409
        %v5424 = vpack.c.b16 %v5412, %v5411
        %v5425 = vpack.c.b16 %v5414, %v5413
        %v5426 = vpack.c.b16 %v5416, %v5415
        %v5427 = vpack.c.b16 %v5418, %v5417
        %v5428 = vpack.c.b16 %v5420, %v5419
        %5437 = vmatprep.subr.bf16.mxu0 0
        %5438 = vmatpush1.bf16.msra.mxu0 %v5421
        %5439 = vmatprep.subr.bf16.mxu0 0
        %5440 = vmatpush1.bf16.msra.mxu0 %v5422
        %5441 = vmatprep.subr.bf16.mxu0 0
        %5442 = vmatpush1.bf16.msra.mxu0 %v5423
        %5443 = vmatprep.subr.bf16.mxu0 0
        %5444 = vmatpush1.bf16.msra.mxu0 %v5424
        %5445 = vmatprep.subr.bf16.mxu0 0
        %5446 = vmatpush1.bf16.msra.mxu0 %v5425
        %5447 = vmatprep.subr.bf16.mxu0 0
        %5448 = vmatpush1.bf16.msra.mxu0 %v5426
        %5449 = vmatprep.subr.bf16.mxu0 0
        %5450 = vmatpush1.bf16.msra.mxu0 %v5427
        %5451 = vmatprep.subr.bf16.mxu0 0
        %5452 = vmatpush1.bf16.msra.mxu0 %v5428
        %5453 = vmatprep.subr.bf16.mxu0 0
        %5454 = vmatpush1.bf16.msra.mxu0 0
        %5455 = vmatprep.subr.bf16.mxu0 0
        %5456 = vmatpush1.bf16.msra.mxu0 0
        %5457 = vmatprep.subr.bf16.mxu0 0
        %5458 = vmatpush1.bf16.msra.mxu0 0
        %5459 = vmatprep.subr.bf16.mxu0 0
        %5460 = vmatpush1.bf16.msra.mxu0 0
        %5461 = vmatprep.subr.bf16.mxu0 0
        %5462 = vmatpush1.bf16.msra.mxu0 0
        %5463 = vmatprep.subr.bf16.mxu0 0
        %5464 = vmatpush1.bf16.msra.mxu0 0
        %5465 = vmatprep.subr.bf16.mxu0 0
        %5466 = vmatpush1.bf16.msra.mxu0 0
        %5467 = vmatprep.subr.bf16.mxu0 0
        %5468 = vmatpush1.bf16.msra.mxu0 0
        %5469 = vmatprep.mubr.bf16.mxu0 0
        %5470 = vmatmul.mubr.bf16.gmra.mrb[0].mxu0 %v5356
        %v5471 = vpop.f32.mrb[0].mxu0
        %v5472 = vadd.f32 0.0, %v5471
        %v5473 = vpop.f32.mrb[0].mxu0
        %v5474 = vpop.f32.mrb[0].mxu0
        %v5475 = vadd.f32 0.0, %v5474
        %v5476 = vpop.f32.mrb[0].mxu0
        %5477 = vmatprep.mubr.bf16.mxu0 0
        %5478 = vmatmul.mubr.bf16.gmra.mrb[0].mxu0 %v5357
        %v5479 = vpop.f32.mrb[0].mxu0
        %v5480 = vadd.f32 0.0, %v5479
        %v5481 = vpop.f32.mrb[0].mxu0
        %v5482 = vpop.f32.mrb[0].mxu0
        %v5483 = vadd.f32 0.0, %v5482
        %v5484 = vpop.f32.mrb[0].mxu0
        %5485 = vmatprep.mubr.bf16.mxu0 0
        %5486 = vmatmul.mubr.bf16.gmra.mrb[0].mxu0 %v5358
        %v5487 = vpop.f32.mrb[0].mxu0
        %v5488 = vadd.f32 0.0, %v5487
        %v5489 = vpop.f32.mrb[0].mxu0
        %v5490 = vpop.f32.mrb[0].mxu0
        %v5491 = vadd.f32 0.0, %v5490
        %v5492 = vpop.f32.mrb[0].mxu0
        %5493 = vmatprep.mubr.bf16.mxu0 0
        %5494 = vmatmul.mubr.bf16.gmra.mrb[0].mxu0 %v5359
        %v5495 = vpop.f32.mrb[0].mxu0
        %v5496 = vadd.f32 0.0, %v5495
        %v5497 = vpop.f32.mrb[0].mxu0
        %v5498 = vpop.f32.mrb[0].mxu0
        %v5499 = vadd.f32 0.0, %v5498
        %v5500 = vpop.f32.mrb[0].mxu0
        %5501 = vmatprep.mubr.bf16.mxu0 0
        %5502 = vmatmul.mubr.bf16.gmra.mrb[0].mxu0 %v5360
        %v5503 = vpop.f32.mrb[0].mxu0
        %v5504 = vadd.f32 0.0, %v5503
        %v5505 = vpop.f32.mrb[0].mxu0
        %v5506 = vpop.f32.mrb[0].mxu0
        %v5507 = vadd.f32 0.0, %v5506
        %v5508 = vpop.f32.mrb[0].mxu0
        %5509 = vmatprep.mubr.bf16.mxu0 0
        %5510 = vmatmul.mubr.bf16.gmra.mrb[0].mxu0 %v5361
        %v5511 = vpop.f32.mrb[0].mxu0
        %v5512 = vadd.f32 0.0, %v5511
        %v5513 = vpop.f32.mrb[0].mxu0
        %v5514 = vpop.f32.mrb[0].mxu0
        %v5515 = vadd.f32 0.0, %v5514
        %v5516 = vpop.f32.mrb[0].mxu0
        %5517 = vmatprep.mubr.bf16.mxu0 0
        %5518 = vmatmul.mubr.bf16.gmra.mrb[0].mxu0 %v5362
        %v5519 = vpop.f32.mrb[0].mxu0
        %v5520 = vadd.f32 0.0, %v5519
        %v5521 = vpop.f32.mrb[0].mxu0
        %v5522 = vpop.f32.mrb[0].mxu0
        %v5523 = vadd.f32 0.0, %v5522
        %v5524 = vpop.f32.mrb[0].mxu0
        %5525 = vmatprep.mubr.bf16.mxu0 0
        %5526 = vmatmul.mubr.bf16.gmra.mrb[0].mxu0 %v5363
        %v5527 = vpop.f32.mrb[0].mxu0
        %v5528 = vadd.f32 0.0, %v5527
        %v5529 = vpop.f32.mrb[0].mxu0
        %v5530 = vpop.f32.mrb[0].mxu0
        %v5531 = vadd.f32 0.0, %v5530
        %v5532 = vpop.f32.mrb[0].mxu0
        %5533 = vmatprep.mubr.bf16.mxu0 0
        %5534 = vmatmul.mubr.bf16.gmra.mrb[0].mxu0 %v5364
        %v5535 = vpop.f32.mrb[0].mxu0
        %v5536 = vadd.f32 0.0, %v5535
        %v5537 = vpop.f32.mrb[0].mxu0
        %v5538 = vpop.f32.mrb[0].mxu0
        %v5539 = vadd.f32 0.0, %v5538
        %v5540 = vpop.f32.mrb[0].mxu0
        %5541 = vmatprep.mubr.bf16.mxu0 0
        %5542 = vmatmul.mubr.bf16.gmra.mrb[0].mxu0 %v5365
        %v5543 = vpop.f32.mrb[0].mxu0
        %v5544 = vadd.f32 0.0, %v5543
        %v5545 = vpop.f32.mrb[0].mxu0
        %v5546 = vpop.f32.mrb[0].mxu0
        %v5547 = vadd.f32 0.0, %v5546
        %v5548 = vpop.f32.mrb[0].mxu0
        %5549 = vmatprep.mubr.bf16.mxu0 0
        %5550 = vmatmul.mubr.bf16.gmra.mrb[0].mxu0 %v5366
        %v5551 = vpop.f32.mrb[0].mxu0
        %v5552 = vadd.f32 0.0, %v5551
        %v5553 = vpop.f32.mrb[0].mxu0
        %v5554 = vpop.f32.mrb[0].mxu0
        %v5555 = vadd.f32 0.0, %v5554
        %v5556 = vpop.f32.mrb[0].mxu0
        %5557 = vmatprep.mubr.bf16.mxu0 0
        %5558 = vmatmul.mubr.bf16.gmra.mrb[0].mxu0 %v5367
        %v5559 = vpop.f32.mrb[0].mxu0
        %v5560 = vadd.f32 0.0, %v5559
        %v5561 = vpop.f32.mrb[0].mxu0
        %v5562 = vpop.f32.mrb[0].mxu0
        %v5563 = vadd.f32 0.0, %v5562
        %v5564 = vpop.f32.mrb[0].mxu0
        %5565 = vmatprep.mubr.bf16.mxu0 0
        %5566 = vmatmul.mubr.bf16.gmra.mrb[0].mxu0 %v5368
        %v5567 = vpop.f32.mrb[0].mxu0
        %v5568 = vadd.f32 0.0, %v5567
        %v5569 = vpop.f32.mrb[0].mxu0
        %v5570 = vpop.f32.mrb[0].mxu0
        %v5571 = vadd.f32 0.0, %v5570
        %v5572 = vpop.f32.mrb[0].mxu0
        %5573 = vmatprep.mubr.bf16.mxu0 0
        %5574 = vmatmul.mubr.bf16.gmra.mrb[0].mxu0 %v5369
        %v5575 = vpop.f32.mrb[0].mxu0
        %v5576 = vadd.f32 0.0, %v5575
        %v5577 = vpop.f32.mrb[0].mxu0
        %v5578 = vpop.f32.mrb[0].mxu0
        %v5579 = vadd.f32 0.0, %v5578
        %v5580 = vpop.f32.mrb[0].mxu0
        %5581 = vmatprep.mubr.bf16.mxu0 0
        %5582 = vmatmul.mubr.bf16.gmra.mrb[0].mxu0 %v5370
        %v5583 = vpop.f32.mrb[0].mxu0
        %v5584 = vadd.f32 0.0, %v5583
        %v5585 = vpop.f32.mrb[0].mxu0
        %v5586 = vpop.f32.mrb[0].mxu0
        %v5587 = vadd.f32 0.0, %v5586
        %v5588 = vpop.f32.mrb[0].mxu0
        %5589 = vmatprep.mubr.bf16.mxu0 0
        %5590 = vmatmul.mubr.bf16.gmra.mrb[0].mxu0 %v5371
        %v5591 = vpop.f32.mrb[0].mxu0
        %v5592 = vadd.f32 0.0, %v5591
        %v5593 = vpop.f32.mrb[0].mxu0
        %v5594 = vpop.f32.mrb[0].mxu0
        %v5595 = vadd.f32 0.0, %v5594
        %v5596 = vpop.f32.mrb[0].mxu0
        %5597 = vdwg.mxu0
        %v5598 = vadd.f32 %v5291, %v5472
        %v5599 = vadd.f32 %v5292, %v5475
        %v5600 = vadd.f32 %v5293, %v5480
        %v5601 = vadd.f32 %v5294, %v5483
        %v5602 = vadd.f32 %v5295, %v5488
        %v5603 = vadd.f32 %v5296, %v5491
        %v5604 = vadd.f32 %v5297, %v5496
        %v5605 = vadd.f32 %v5298, %v5499
        %v5606 = vadd.f32 %v5299, %v5504
        %v5607 = vadd.f32 %v5300, %v5507
        %v5608 = vadd.f32 %v5301, %v5512
        %v5609 = vadd.f32 %v5302, %v5515
        %v5610 = vadd.f32 %v5303, %v5520
        %v5611 = vadd.f32 %v5304, %v5523
        %v5612 = vadd.f32 %v5305, %v5528
        %v5613 = vadd.f32 %v5306, %v5531
        %v5614 = vadd.f32 %v5307, %v5536
        %v5615 = vadd.f32 %v5308, %v5539
        %v5616 = vadd.f32 %v5309, %v5544
        %v5617 = vadd.f32 %v5310, %v5547
        %v5618 = vadd.f32 %v5311, %v5552
        %v5619 = vadd.f32 %v5312, %v5555
        %v5620 = vadd.f32 %v5313, %v5560
        %v5621 = vadd.f32 %v5314, %v5563
        %v5622 = vadd.f32 %v5315, %v5568
        %v5623 = vadd.f32 %v5316, %v5571
        %v5624 = vadd.f32 %v5317, %v5576
        %v5625 = vadd.f32 %v5318, %v5579
        %v5626 = vadd.f32 %v5319, %v5584
        %v5627 = vadd.f32 %v5320, %v5587
        %v5628 = vadd.f32 %v5321, %v5592
        %v5629 = vadd.f32 %v5322, %v5595
        %v5630 = vld [vmem:[%s5323 + $0x1] sm:$0xff]
        %v5631 = vld [vmem:[%s5323 + $0x9] sm:$0xff]
        %v5632 = vld [vmem:[%s5323 + $0x19] sm:$0xff]
        %v5633 = vld [vmem:[%s5323 + $0x21] sm:$0xff]
        %v5634 = vld [vmem:[%s5323 + $0x31] sm:$0xff]
        %v5635 = vld [vmem:[%s5323 + $0x39] sm:$0xff]
        %v5636 = vld [vmem:[%s5323 + $0x49] sm:$0xff]
        %v5637 = vld [vmem:[%s5323 + $0x51] sm:$0xff]
        %v5638 = vld [vmem:[%s5323 + $0x61] sm:$0xff]
        %v5639 = vld [vmem:[%s5323 + $0x69] sm:$0xff]
        %v5640 = vld [vmem:[%s5323 + $0x79] sm:$0xff]
        %v5641 = vld [vmem:[%s5323 + $0x81] sm:$0xff]
        %v5642 = vld [vmem:[%s5323 + $0x91] sm:$0xff]
        %v5643 = vld [vmem:[%s5323 + $0x99] sm:$0xff]
        %v5644 = vld [vmem:[%s5323 + $0xa9] sm:$0xff]
        %v5645 = vld [vmem:[%s5323 + $0xb1] sm:$0xff]
        %v5646 = vld [vmem:[%s5323 + $0xc1] sm:$0xff]
        %v5647 = vld [vmem:[%s5323 + $0xc9] sm:$0xff]
        %v5648 = vld [vmem:[%s5323 + $0xd9] sm:$0xff]
        %v5649 = vld [vmem:[%s5323 + $0xe1] sm:$0xff]
        %v5650 = vld [vmem:[%s5323 + $0xf1] sm:$0xff]
        %v5651 = vld [vmem:[%s5323 + $0xf9] sm:$0xff]
        %v5652 = vld [vmem:[%s5323 + $0x109] sm:$0xff]
        %v5653 = vld [vmem:[%s5323 + $0x111] sm:$0xff]
        %v5654 = vld [vmem:[%s5323 + $0x121] sm:$0xff]
        %v5655 = vld [vmem:[%s5323 + $0x129] sm:$0xff]
        %v5656 = vld [vmem:[%s5323 + $0x139] sm:$0xff]
        %v5657 = vld [vmem:[%s5323 + $0x141] sm:$0xff]
        %v5658 = vld [vmem:[%s5323 + $0x151] sm:$0xff]
        %v5659 = vld [vmem:[%s5323 + $0x159] sm:$0xff]
        %v5660 = vld [vmem:[%s5323 + $0x169] sm:$0xff]
        %v5661 = vld [vmem:[%s5323 + $0x171] sm:$0xff]
        %v5662 = vpack.c.bf16 %v5631, %v5630
        %v5663 = vpack.c.bf16 %v5633, %v5632
        %v5664 = vpack.c.bf16 %v5635, %v5634
        %v5665 = vpack.c.bf16 %v5637, %v5636
        %v5666 = vpack.c.bf16 %v5639, %v5638
        %v5667 = vpack.c.bf16 %v5641, %v5640
        %v5668 = vpack.c.bf16 %v5643, %v5642
        %v5669 = vpack.c.bf16 %v5645, %v5644
        %v5670 = vpack.c.bf16 %v5647, %v5646
        %v5671 = vpack.c.bf16 %v5649, %v5648
        %v5672 = vpack.c.bf16 %v5651, %v5650
        %v5673 = vpack.c.bf16 %v5653, %v5652
        %v5674 = vpack.c.bf16 %v5655, %v5654
        %v5675 = vpack.c.bf16 %v5657, %v5656
        %v5676 = vpack.c.bf16 %v5659, %v5658
        %v5677 = vpack.c.bf16 %v5661, %v5660
        %s5678 = scalar_lea.vmem %s5, 448
        %v5679 = vld [vmem:[%s5678] sm:$0xf]
        %v5680 = vld [vmem:[%s5678 + $0x4] sm:$0xf]
        %v5681 = vld [vmem:[%s5678 + $0x8] sm:$0xf]
        %v5682 = vld [vmem:[%s5678 + $0xc] sm:$0xf]
        %v5683 = vld [vmem:[%s5678 + $0x10] sm:$0xf]
        %v5684 = vld [vmem:[%s5678 + $0x14] sm:$0xf]
        %v5685 = vld [vmem:[%s5678 + $0x18] sm:$0xf]
        %v5686 = vld [vmem:[%s5678 + $0x1c] sm:$0xf]
        %v5687 = vld [vmem:[%s5678 + $0x20] sm:$0xf]
        %v5688 = vld [vmem:[%s5678 + $0x24] sm:$0xf]
        %v5689 = vld [vmem:[%s5678 + $0x28] sm:$0xf]
        %v5690 = vld [vmem:[%s5678 + $0x2c] sm:$0xf]
        %v5691 = vld [vmem:[%s5678 + $0x30] sm:$0xf]
        %v5692 = vld [vmem:[%s5678 + $0x34] sm:$0xf]
        %v5693 = vld [vmem:[%s5678 + $0x38] sm:$0xf]
        %v5694 = vld [vmem:[%s5678 + $0x3c] sm:$0xf]
        %v5711 = vunpack.c.l.b16 %v5679
        %v5712 = vunpack.c.l.b16 %v5680
        %v5713 = vunpack.c.l.b16 %v5681
        %v5714 = vunpack.c.l.b16 %v5682
        %v5715 = vunpack.c.l.b16 %v5683
        %v5716 = vunpack.c.l.b16 %v5684
        %v5717 = vunpack.c.l.b16 %v5685
        %v5718 = vunpack.c.l.b16 %v5686
        %v5719 = vunpack.c.l.b16 %v5687
        %v5720 = vunpack.c.l.b16 %v5688
        %v5721 = vunpack.c.l.b16 %v5689
        %v5722 = vunpack.c.l.b16 %v5690
        %v5723 = vunpack.c.l.b16 %v5691
        %v5724 = vunpack.c.l.b16 %v5692
        %v5725 = vunpack.c.l.b16 %v5693
        %v5726 = vunpack.c.l.b16 %v5694
        %v5727 = vpack.c.b16 %v5712, %v5711
        %v5728 = vpack.c.b16 %v5714, %v5713
        %v5729 = vpack.c.b16 %v5716, %v5715
        %v5730 = vpack.c.b16 %v5718, %v5717
        %v5731 = vpack.c.b16 %v5720, %v5719
        %v5732 = vpack.c.b16 %v5722, %v5721
        %v5733 = vpack.c.b16 %v5724, %v5723
        %v5734 = vpack.c.b16 %v5726, %v5725
        %5743 = vmatprep.subr.bf16.mxu0 0
        %5744 = vmatpush1.bf16.msra.mxu0 %v5727
        %5745 = vmatprep.subr.bf16.mxu0 0
        %5746 = vmatpush1.bf16.msra.mxu0 %v5728
        %5747 = vmatprep.subr.bf16.mxu0 0
        %5748 = vmatpush1.bf16.msra.mxu0 %v5729
        %5749 = vmatprep.subr.bf16.mxu0 0
        %5750 = vmatpush1.bf16.msra.mxu0 %v5730
        %5751 = vmatprep.subr.bf16.mxu0 0
        %5752 = vmatpush1.bf16.msra.mxu0 %v5731
        %5753 = vmatprep.subr.bf16.mxu0 0
        %5754 = vmatpush1.bf16.msra.mxu0 %v5732
        %5755 = vmatprep.subr.bf16.mxu0 0
        %5756 = vmatpush1.bf16.msra.mxu0 %v5733
        %5757 = vmatprep.subr.bf16.mxu0 0
        %5758 = vmatpush1.bf16.msra.mxu0 %v5734
        %5759 = vmatprep.subr.bf16.mxu0 0
        %5760 = vmatpush1.bf16.msra.mxu0 0
        %5761 = vmatprep.subr.bf16.mxu0 0
        %5762 = vmatpush1.bf16.msra.mxu0 0
        %5763 = vmatprep.subr.bf16.mxu0 0
        %5764 = vmatpush1.bf16.msra.mxu0 0
        %5765 = vmatprep.subr.bf16.mxu0 0
        %5766 = vmatpush1.bf16.msra.mxu0 0
        %5767 = vmatprep.subr.bf16.mxu0 0
        %5768 = vmatpush1.bf16.msra.mxu0 0
        %5769 = vmatprep.subr.bf16.mxu0 0
        %5770 = vmatpush1.bf16.msra.mxu0 0
        %5771 = vmatprep.subr.bf16.mxu0 0
        %5772 = vmatpush1.bf16.msra.mxu0 0
        %5773 = vmatprep.subr.bf16.mxu0 0
        %5774 = vmatpush1.bf16.msra.mxu0 0
        %5775 = vmatprep.mubr.bf16.mxu0 0
        %5776 = vmatmul.mubr.bf16.gmra.mrb[0].mxu0 %v5662
        %v5777 = vpop.f32.mrb[0].mxu0
        %v5778 = vadd.f32 0.0, %v5777
        %v5779 = vpop.f32.mrb[0].mxu0
        %v5780 = vpop.f32.mrb[0].mxu0
        %v5781 = vadd.f32 0.0, %v5780
        %v5782 = vpop.f32.mrb[0].mxu0
        %5783 = vmatprep.mubr.bf16.mxu0 0
        %5784 = vmatmul.mubr.bf16.gmra.mrb[0].mxu0 %v5663
        %v5785 = vpop.f32.mrb[0].mxu0
        %v5786 = vadd.f32 0.0, %v5785
        %v5787 = vpop.f32.mrb[0].mxu0
        %v5788 = vpop.f32.mrb[0].mxu0
        %v5789 = vadd.f32 0.0, %v5788
        %v5790 = vpop.f32.mrb[0].mxu0
        %5791 = vmatprep.mubr.bf16.mxu0 0
        %5792 = vmatmul.mubr.bf16.gmra.mrb[0].mxu0 %v5664
        %v5793 = vpop.f32.mrb[0].mxu0
        %v5794 = vadd.f32 0.0, %v5793
        %v5795 = vpop.f32.mrb[0].mxu0
        %v5796 = vpop.f32.mrb[0].mxu0
        %v5797 = vadd.f32 0.0, %v5796
        %v5798 = vpop.f32.mrb[0].mxu0
        %5799 = vmatprep.mubr.bf16.mxu0 0
        %5800 = vmatmul.mubr.bf16.gmra.mrb[0].mxu0 %v5665
        %v5801 = vpop.f32.mrb[0].mxu0
        %v5802 = vadd.f32 0.0, %v5801
        %v5803 = vpop.f32.mrb[0].mxu0
        %v5804 = vpop.f32.mrb[0].mxu0
        %v5805 = vadd.f32 0.0, %v5804
        %v5806 = vpop.f32.mrb[0].mxu0
        %5807 = vmatprep.mubr.bf16.mxu0 0
        %5808 = vmatmul.mubr.bf16.gmra.mrb[0].mxu0 %v5666
        %v5809 = vpop.f32.mrb[0].mxu0
        %v5810 = vadd.f32 0.0, %v5809
        %v5811 = vpop.f32.mrb[0].mxu0
        %v5812 = vpop.f32.mrb[0].mxu0
        %v5813 = vadd.f32 0.0, %v5812
        %v5814 = vpop.f32.mrb[0].mxu0
        %5815 = vmatprep.mubr.bf16.mxu0 0
        %5816 = vmatmul.mubr.bf16.gmra.mrb[0].mxu0 %v5667
        %v5817 = vpop.f32.mrb[0].mxu0
        %v5818 = vadd.f32 0.0, %v5817
        %v5819 = vpop.f32.mrb[0].mxu0
        %v5820 = vpop.f32.mrb[0].mxu0
        %v5821 = vadd.f32 0.0, %v5820
        %v5822 = vpop.f32.mrb[0].mxu0
        %5823 = vmatprep.mubr.bf16.mxu0 0
        %5824 = vmatmul.mubr.bf16.gmra.mrb[0].mxu0 %v5668
        %v5825 = vpop.f32.mrb[0].mxu0
        %v5826 = vadd.f32 0.0, %v5825
        %v5827 = vpop.f32.mrb[0].mxu0
        %v5828 = vpop.f32.mrb[0].mxu0
        %v5829 = vadd.f32 0.0, %v5828
        %v5830 = vpop.f32.mrb[0].mxu0
        %5831 = vmatprep.mubr.bf16.mxu0 0
        %5832 = vmatmul.mubr.bf16.gmra.mrb[0].mxu0 %v5669
        %v5833 = vpop.f32.mrb[0].mxu0
        %v5834 = vadd.f32 0.0, %v5833
        %v5835 = vpop.f32.mrb[0].mxu0
        %v5836 = vpop.f32.mrb[0].mxu0
        %v5837 = vadd.f32 0.0, %v5836
        %v5838 = vpop.f32.mrb[0].mxu0
        %5839 = vmatprep.mubr.bf16.mxu0 0
        %5840 = vmatmul.mubr.bf16.gmra.mrb[0].mxu0 %v5670
        %v5841 = vpop.f32.mrb[0].mxu0
        %v5842 = vadd.f32 0.0, %v5841
        %v5843 = vpop.f32.mrb[0].mxu0
        %v5844 = vpop.f32.mrb[0].mxu0
        %v5845 = vadd.f32 0.0, %v5844
        %v5846 = vpop.f32.mrb[0].mxu0
        %5847 = vmatprep.mubr.bf16.mxu0 0
        %5848 = vmatmul.mubr.bf16.gmra.mrb[0].mxu0 %v5671
        %v5849 = vpop.f32.mrb[0].mxu0
        %v5850 = vadd.f32 0.0, %v5849
        %v5851 = vpop.f32.mrb[0].mxu0
        %v5852 = vpop.f32.mrb[0].mxu0
        %v5853 = vadd.f32 0.0, %v5852
        %v5854 = vpop.f32.mrb[0].mxu0
        %5855 = vmatprep.mubr.bf16.mxu0 0
        %5856 = vmatmul.mubr.bf16.gmra.mrb[0].mxu0 %v5672
        %v5857 = vpop.f32.mrb[0].mxu0
        %v5858 = vadd.f32 0.0, %v5857
        %v5859 = vpop.f32.mrb[0].mxu0
        %v5860 = vpop.f32.mrb[0].mxu0
        %v5861 = vadd.f32 0.0, %v5860
        %v5862 = vpop.f32.mrb[0].mxu0
        %5863 = vmatprep.mubr.bf16.mxu0 0
        %5864 = vmatmul.mubr.bf16.gmra.mrb[0].mxu0 %v5673
        %v5865 = vpop.f32.mrb[0].mxu0
        %v5866 = vadd.f32 0.0, %v5865
        %v5867 = vpop.f32.mrb[0].mxu0
        %v5868 = vpop.f32.mrb[0].mxu0
        %v5869 = vadd.f32 0.0, %v5868
        %v5870 = vpop.f32.mrb[0].mxu0
        %5871 = vmatprep.mubr.bf16.mxu0 0
        %5872 = vmatmul.mubr.bf16.gmra.mrb[0].mxu0 %v5674
        %v5873 = vpop.f32.mrb[0].mxu0
        %v5874 = vadd.f32 0.0, %v5873
        %v5875 = vpop.f32.mrb[0].mxu0
        %v5876 = vpop.f32.mrb[0].mxu0
        %v5877 = vadd.f32 0.0, %v5876
        %v5878 = vpop.f32.mrb[0].mxu0
        %5879 = vmatprep.mubr.bf16.mxu0 0
        %5880 = vmatmul.mubr.bf16.gmra.mrb[0].mxu0 %v5675
        %v5881 = vpop.f32.mrb[0].mxu0
        %v5882 = vadd.f32 0.0, %v5881
        %v5883 = vpop.f32.mrb[0].mxu0
        %v5884 = vpop.f32.mrb[0].mxu0
        %v5885 = vadd.f32 0.0, %v5884
        %v5886 = vpop.f32.mrb[0].mxu0
        %5887 = vmatprep.mubr.bf16.mxu0 0
        %5888 = vmatmul.mubr.bf16.gmra.mrb[0].mxu0 %v5676
        %v5889 = vpop.f32.mrb[0].mxu0
        %v5890 = vadd.f32 0.0, %v5889
        %v5891 = vpop.f32.mrb[0].mxu0
        %v5892 = vpop.f32.mrb[0].mxu0
        %v5893 = vadd.f32 0.0, %v5892
        %v5894 = vpop.f32.mrb[0].mxu0
        %5895 = vmatprep.mubr.bf16.mxu0 0
        %5896 = vmatmul.mubr.bf16.gmra.mrb[0].mxu0 %v5677
        %v5897 = vpop.f32.mrb[0].mxu0
        %v5898 = vadd.f32 0.0, %v5897
        %v5899 = vpop.f32.mrb[0].mxu0
        %v5900 = vpop.f32.mrb[0].mxu0
        %v5901 = vadd.f32 0.0, %v5900
        %v5902 = vpop.f32.mrb[0].mxu0
        %5903 = vdwg.mxu0
        %v5904 = vadd.f32 %v5598, %v5778
        %v5905 = vadd.f32 %v5599, %v5781
        %v5906 = vadd.f32 %v5600, %v5786
        %v5907 = vadd.f32 %v5601, %v5789
        %v5908 = vadd.f32 %v5602, %v5794
        %v5909 = vadd.f32 %v5603, %v5797
        %v5910 = vadd.f32 %v5604, %v5802
        %v5911 = vadd.f32 %v5605, %v5805
        %v5912 = vadd.f32 %v5606, %v5810
        %v5913 = vadd.f32 %v5607, %v5813
        %v5914 = vadd.f32 %v5608, %v5818
        %v5915 = vadd.f32 %v5609, %v5821
        %v5916 = vadd.f32 %v5610, %v5826
        %v5917 = vadd.f32 %v5611, %v5829
        %v5918 = vadd.f32 %v5612, %v5834
        %v5919 = vadd.f32 %v5613, %v5837
        %v5920 = vadd.f32 %v5614, %v5842
        %v5921 = vadd.f32 %v5615, %v5845
        %v5922 = vadd.f32 %v5616, %v5850
        %v5923 = vadd.f32 %v5617, %v5853
        %v5924 = vadd.f32 %v5618, %v5858
        %v5925 = vadd.f32 %v5619, %v5861
        %v5926 = vadd.f32 %v5620, %v5866
        %v5927 = vadd.f32 %v5621, %v5869
        %v5928 = vadd.f32 %v5622, %v5874
        %v5929 = vadd.f32 %v5623, %v5877
        %v5930 = vadd.f32 %v5624, %v5882
        %v5931 = vadd.f32 %v5625, %v5885
        %v5932 = vadd.f32 %v5626, %v5890
        %v5933 = vadd.f32 %v5627, %v5893
        %v5934 = vadd.f32 %v5628, %v5898
        %v5935 = vadd.f32 %v5629, %v5901
        %v5936 = vld [vmem:[%s5323 + $0x2] sm:$0xff]
        %v5937 = vld [vmem:[%s5323 + $0xa] sm:$0xff]
        %v5938 = vld [vmem:[%s5323 + $0x1a] sm:$0xff]
        %v5939 = vld [vmem:[%s5323 + $0x22] sm:$0xff]
        %v5940 = vld [vmem:[%s5323 + $0x32] sm:$0xff]
        %v5941 = vld [vmem:[%s5323 + $0x3a] sm:$0xff]
        %v5942 = vld [vmem:[%s5323 + $0x4a] sm:$0xff]
        %v5943 = vld [vmem:[%s5323 + $0x52] sm:$0xff]
        %v5944 = vld [vmem:[%s5323 + $0x62] sm:$0xff]
        %v5945 = vld [vmem:[%s5323 + $0x6a] sm:$0xff]
        %v5946 = vld [vmem:[%s5323 + $0x7a] sm:$0xff]
        %v5947 = vld [vmem:[%s5323 + $0x82] sm:$0xff]
        %v5948 = vld [vmem:[%s5323 + $0x92] sm:$0xff]
        %v5949 = vld [vmem:[%s5323 + $0x9a] sm:$0xff]
        %v5950 = vld [vmem:[%s5323 + $0xaa] sm:$0xff]
        %v5951 = vld [vmem:[%s5323 + $0xb2] sm:$0xff]
        %v5952 = vld [vmem:[%s5323 + $0xc2] sm:$0xff]
        %v5953 = vld [vmem:[%s5323 + $0xca] sm:$0xff]
        %v5954 = vld [vmem:[%s5323 + $0xda] sm:$0xff]
        %v5955 = vld [vmem:[%s5323 + $0xe2] sm:$0xff]
        %v5956 = vld [vmem:[%s5323 + $0xf2] sm:$0xff]
        %v5957 = vld [vmem:[%s5323 + $0xfa] sm:$0xff]
        %v5958 = vld [vmem:[%s5323 + $0x10a] sm:$0xff]
        %v5959 = vld [vmem:[%s5323 + $0x112] sm:$0xff]
        %v5960 = vld [vmem:[%s5323 + $0x122] sm:$0xff]
        %v5961 = vld [vmem:[%s5323 + $0x12a] sm:$0xff]
        %v5962 = vld [vmem:[%s5323 + $0x13a] sm:$0xff]
        %v5963 = vld [vmem:[%s5323 + $0x142] sm:$0xff]
        %v5964 = vld [vmem:[%s5323 + $0x152] sm:$0xff]
        %v5965 = vld [vmem:[%s5323 + $0x15a] sm:$0xff]
        %v5966 = vld [vmem:[%s5323 + $0x16a] sm:$0xff]
        %v5967 = vld [vmem:[%s5323 + $0x172] sm:$0xff]
        %v5968 = vpack.c.bf16 %v5937, %v5936
        %v5969 = vpack.c.bf16 %v5939, %v5938
        %v5970 = vpack.c.bf16 %v5941, %v5940
        %v5971 = vpack.c.bf16 %v5943, %v5942
        %v5972 = vpack.c.bf16 %v5945, %v5944
        %v5973 = vpack.c.bf16 %v5947, %v5946
        %v5974 = vpack.c.bf16 %v5949, %v5948
        %v5975 = vpack.c.bf16 %v5951, %v5950
        %v5976 = vpack.c.bf16 %v5953, %v5952
        %v5977 = vpack.c.bf16 %v5955, %v5954
        %v5978 = vpack.c.bf16 %v5957, %v5956
        %v5979 = vpack.c.bf16 %v5959, %v5958
        %v5980 = vpack.c.bf16 %v5961, %v5960
        %v5981 = vpack.c.bf16 %v5963, %v5962
        %v5982 = vpack.c.bf16 %v5965, %v5964
        %v5983 = vpack.c.bf16 %v5967, %v5966
        %s5984 = scalar_lea.vmem %s5, 512
        %v5985 = vld [vmem:[%s5984] sm:$0xf]
        %v5986 = vld [vmem:[%s5984 + $0x4] sm:$0xf]
        %v5987 = vld [vmem:[%s5984 + $0x8] sm:$0xf]
        %v5988 = vld [vmem:[%s5984 + $0xc] sm:$0xf]
        %v5989 = vld [vmem:[%s5984 + $0x10] sm:$0xf]
        %v5990 = vld [vmem:[%s5984 + $0x14] sm:$0xf]
        %v5991 = vld [vmem:[%s5984 + $0x18] sm:$0xf]
        %v5992 = vld [vmem:[%s5984 + $0x1c] sm:$0xf]
        %v5993 = vld [vmem:[%s5984 + $0x20] sm:$0xf]
        %v5994 = vld [vmem:[%s5984 + $0x24] sm:$0xf]
        %v5995 = vld [vmem:[%s5984 + $0x28] sm:$0xf]
        %v5996 = vld [vmem:[%s5984 + $0x2c] sm:$0xf]
        %v5997 = vld [vmem:[%s5984 + $0x30] sm:$0xf]
        %v5998 = vld [vmem:[%s5984 + $0x34] sm:$0xf]
        %v5999 = vld [vmem:[%s5984 + $0x38] sm:$0xf]
        %v6000 = vld [vmem:[%s5984 + $0x3c] sm:$0xf]
        %v6017 = vunpack.c.l.b16 %v5985
        %v6018 = vunpack.c.l.b16 %v5986
        %v6019 = vunpack.c.l.b16 %v5987
        %v6020 = vunpack.c.l.b16 %v5988
        %v6021 = vunpack.c.l.b16 %v5989
        %v6022 = vunpack.c.l.b16 %v5990
        %v6023 = vunpack.c.l.b16 %v5991
        %v6024 = vunpack.c.l.b16 %v5992
        %v6025 = vunpack.c.l.b16 %v5993
        %v6026 = vunpack.c.l.b16 %v5994
        %v6027 = vunpack.c.l.b16 %v5995
        %v6028 = vunpack.c.l.b16 %v5996
        %v6029 = vunpack.c.l.b16 %v5997
        %v6030 = vunpack.c.l.b16 %v5998
        %v6031 = vunpack.c.l.b16 %v5999
        %v6032 = vunpack.c.l.b16 %v6000
        %v6033 = vpack.c.b16 %v6018, %v6017
        %v6034 = vpack.c.b16 %v6020, %v6019
        %v6035 = vpack.c.b16 %v6022, %v6021
        %v6036 = vpack.c.b16 %v6024, %v6023
        %v6037 = vpack.c.b16 %v6026, %v6025
        %v6038 = vpack.c.b16 %v6028, %v6027
        %v6039 = vpack.c.b16 %v6030, %v6029
        %v6040 = vpack.c.b16 %v6032, %v6031
        %6049 = vmatprep.subr.bf16.mxu0 0
        %6050 = vmatpush1.bf16.msra.mxu0 %v6033
        %6051 = vmatprep.subr.bf16.mxu0 0
        %6052 = vmatpush1.bf16.msra.mxu0 %v6034
        %6053 = vmatprep.subr.bf16.mxu0 0
        %6054 = vmatpush1.bf16.msra.mxu0 %v6035
        %6055 = vmatprep.subr.bf16.mxu0 0
        %6056 = vmatpush1.bf16.msra.mxu0 %v6036
        %6057 = vmatprep.subr.bf16.mxu0 0
        %6058 = vmatpush1.bf16.msra.mxu0 %v6037
        %6059 = vmatprep.subr.bf16.mxu0 0
        %6060 = vmatpush1.bf16.msra.mxu0 %v6038
        %6061 = vmatprep.subr.bf16.mxu0 0
        %6062 = vmatpush1.bf16.msra.mxu0 %v6039
        %6063 = vmatprep.subr.bf16.mxu0 0
        %6064 = vmatpush1.bf16.msra.mxu0 %v6040
        %6065 = vmatprep.subr.bf16.mxu0 0
        %6066 = vmatpush1.bf16.msra.mxu0 0
        %6067 = vmatprep.subr.bf16.mxu0 0
        %6068 = vmatpush1.bf16.msra.mxu0 0
        %6069 = vmatprep.subr.bf16.mxu0 0
        %6070 = vmatpush1.bf16.msra.mxu0 0
        %6071 = vmatprep.subr.bf16.mxu0 0
        %6072 = vmatpush1.bf16.msra.mxu0 0
        %6073 = vmatprep.subr.bf16.mxu0 0
        %6074 = vmatpush1.bf16.msra.mxu0 0
        %6075 = vmatprep.subr.bf16.mxu0 0
        %6076 = vmatpush1.bf16.msra.mxu0 0
        %6077 = vmatprep.subr.bf16.mxu0 0
        %6078 = vmatpush1.bf16.msra.mxu0 0
        %6079 = vmatprep.subr.bf16.mxu0 0
        %6080 = vmatpush1.bf16.msra.mxu0 0
        %6081 = vmatprep.mubr.bf16.mxu0 0
        %6082 = vmatmul.mubr.bf16.gmra.mrb[0].mxu0 %v5968
        %v6083 = vpop.f32.mrb[0].mxu0
        %v6084 = vadd.f32 0.0, %v6083
        %v6085 = vpop.f32.mrb[0].mxu0
        %v6086 = vpop.f32.mrb[0].mxu0
        %v6087 = vadd.f32 0.0, %v6086
        %v6088 = vpop.f32.mrb[0].mxu0
        %6089 = vmatprep.mubr.bf16.mxu0 0
        %6090 = vmatmul.mubr.bf16.gmra.mrb[0].mxu0 %v5969
        %v6091 = vpop.f32.mrb[0].mxu0
        %v6092 = vadd.f32 0.0, %v6091
        %v6093 = vpop.f32.mrb[0].mxu0
        %v6094 = vpop.f32.mrb[0].mxu0
        %v6095 = vadd.f32 0.0, %v6094
        %v6096 = vpop.f32.mrb[0].mxu0
        %6097 = vmatprep.mubr.bf16.mxu0 0
        %6098 = vmatmul.mubr.bf16.gmra.mrb[0].mxu0 %v5970
        %v6099 = vpop.f32.mrb[0].mxu0
        %v6100 = vadd.f32 0.0, %v6099
        %v6101 = vpop.f32.mrb[0].mxu0
        %v6102 = vpop.f32.mrb[0].mxu0
        %v6103 = vadd.f32 0.0, %v6102
        %v6104 = vpop.f32.mrb[0].mxu0
        %6105 = vmatprep.mubr.bf16.mxu0 0
        %6106 = vmatmul.mubr.bf16.gmra.mrb[0].mxu0 %v5971
        %v6107 = vpop.f32.mrb[0].mxu0
        %v6108 = vadd.f32 0.0, %v6107
        %v6109 = vpop.f32.mrb[0].mxu0
        %v6110 = vpop.f32.mrb[0].mxu0
        %v6111 = vadd.f32 0.0, %v6110
        %v6112 = vpop.f32.mrb[0].mxu0
        %6113 = vmatprep.mubr.bf16.mxu0 0
        %6114 = vmatmul.mubr.bf16.gmra.mrb[0].mxu0 %v5972
        %v6115 = vpop.f32.mrb[0].mxu0
        %v6116 = vadd.f32 0.0, %v6115
        %v6117 = vpop.f32.mrb[0].mxu0
        %v6118 = vpop.f32.mrb[0].mxu0
        %v6119 = vadd.f32 0.0, %v6118
        %v6120 = vpop.f32.mrb[0].mxu0
        %6121 = vmatprep.mubr.bf16.mxu0 0
        %6122 = vmatmul.mubr.bf16.gmra.mrb[0].mxu0 %v5973
        %v6123 = vpop.f32.mrb[0].mxu0
        %v6124 = vadd.f32 0.0, %v6123
        %v6125 = vpop.f32.mrb[0].mxu0
        %v6126 = vpop.f32.mrb[0].mxu0
        %v6127 = vadd.f32 0.0, %v6126
        %v6128 = vpop.f32.mrb[0].mxu0
        %6129 = vmatprep.mubr.bf16.mxu0 0
        %6130 = vmatmul.mubr.bf16.gmra.mrb[0].mxu0 %v5974
        %v6131 = vpop.f32.mrb[0].mxu0
        %v6132 = vadd.f32 0.0, %v6131
        %v6133 = vpop.f32.mrb[0].mxu0
        %v6134 = vpop.f32.mrb[0].mxu0
        %v6135 = vadd.f32 0.0, %v6134
        %v6136 = vpop.f32.mrb[0].mxu0
        %6137 = vmatprep.mubr.bf16.mxu0 0
        %6138 = vmatmul.mubr.bf16.gmra.mrb[0].mxu0 %v5975
        %v6139 = vpop.f32.mrb[0].mxu0
        %v6140 = vadd.f32 0.0, %v6139
        %v6141 = vpop.f32.mrb[0].mxu0
        %v6142 = vpop.f32.mrb[0].mxu0
        %v6143 = vadd.f32 0.0, %v6142
        %v6144 = vpop.f32.mrb[0].mxu0
        %6145 = vmatprep.mubr.bf16.mxu0 0
        %6146 = vmatmul.mubr.bf16.gmra.mrb[0].mxu0 %v5976
        %v6147 = vpop.f32.mrb[0].mxu0
        %v6148 = vadd.f32 0.0, %v6147
        %v6149 = vpop.f32.mrb[0].mxu0
        %v6150 = vpop.f32.mrb[0].mxu0
        %v6151 = vadd.f32 0.0, %v6150
        %v6152 = vpop.f32.mrb[0].mxu0
        %6153 = vmatprep.mubr.bf16.mxu0 0
        %6154 = vmatmul.mubr.bf16.gmra.mrb[0].mxu0 %v5977
        %v6155 = vpop.f32.mrb[0].mxu0
        %v6156 = vadd.f32 0.0, %v6155
        %v6157 = vpop.f32.mrb[0].mxu0
        %v6158 = vpop.f32.mrb[0].mxu0
        %v6159 = vadd.f32 0.0, %v6158
        %v6160 = vpop.f32.mrb[0].mxu0
        %6161 = vmatprep.mubr.bf16.mxu0 0
        %6162 = vmatmul.mubr.bf16.gmra.mrb[0].mxu0 %v5978
        %v6163 = vpop.f32.mrb[0].mxu0
        %v6164 = vadd.f32 0.0, %v6163
        %v6165 = vpop.f32.mrb[0].mxu0
        %v6166 = vpop.f32.mrb[0].mxu0
        %v6167 = vadd.f32 0.0, %v6166
        %v6168 = vpop.f32.mrb[0].mxu0
        %6169 = vmatprep.mubr.bf16.mxu0 0
        %6170 = vmatmul.mubr.bf16.gmra.mrb[0].mxu0 %v5979
        %v6171 = vpop.f32.mrb[0].mxu0
        %v6172 = vadd.f32 0.0, %v6171
        %v6173 = vpop.f32.mrb[0].mxu0
        %v6174 = vpop.f32.mrb[0].mxu0
        %v6175 = vadd.f32 0.0, %v6174
        %v6176 = vpop.f32.mrb[0].mxu0
        %6177 = vmatprep.mubr.bf16.mxu0 0
        %6178 = vmatmul.mubr.bf16.gmra.mrb[0].mxu0 %v5980
        %v6179 = vpop.f32.mrb[0].mxu0
        %v6180 = vadd.f32 0.0, %v6179
        %v6181 = vpop.f32.mrb[0].mxu0
        %v6182 = vpop.f32.mrb[0].mxu0
        %v6183 = vadd.f32 0.0, %v6182
        %v6184 = vpop.f32.mrb[0].mxu0
        %6185 = vmatprep.mubr.bf16.mxu0 0
        %6186 = vmatmul.mubr.bf16.gmra.mrb[0].mxu0 %v5981
        %v6187 = vpop.f32.mrb[0].mxu0
        %v6188 = vadd.f32 0.0, %v6187
        %v6189 = vpop.f32.mrb[0].mxu0
        %v6190 = vpop.f32.mrb[0].mxu0
        %v6191 = vadd.f32 0.0, %v6190
        %v6192 = vpop.f32.mrb[0].mxu0
        %6193 = vmatprep.mubr.bf16.mxu0 0
        %6194 = vmatmul.mubr.bf16.gmra.mrb[0].mxu0 %v5982
        %v6195 = vpop.f32.mrb[0].mxu0
        %v6196 = vadd.f32 0.0, %v6195
        %v6197 = vpop.f32.mrb[0].mxu0
        %v6198 = vpop.f32.mrb[0].mxu0
        %v6199 = vadd.f32 0.0, %v6198
        %v6200 = vpop.f32.mrb[0].mxu0
        %6201 = vmatprep.mubr.bf16.mxu0 0
        %6202 = vmatmul.mubr.bf16.gmra.mrb[0].mxu0 %v5983
        %v6203 = vpop.f32.mrb[0].mxu0
        %v6204 = vadd.f32 0.0, %v6203
        %v6205 = vpop.f32.mrb[0].mxu0
        %v6206 = vpop.f32.mrb[0].mxu0
        %v6207 = vadd.f32 0.0, %v6206
        %v6208 = vpop.f32.mrb[0].mxu0
        %6209 = vdwg.mxu0
        %v6210 = vadd.f32 %v5904, %v6084
        %v6211 = vadd.f32 %v5905, %v6087
        %v6212 = vadd.f32 %v5906, %v6092
        %v6213 = vadd.f32 %v5907, %v6095
        %v6214 = vadd.f32 %v5908, %v6100
        %v6215 = vadd.f32 %v5909, %v6103
        %v6216 = vadd.f32 %v5910, %v6108
        %v6217 = vadd.f32 %v5911, %v6111
        %v6218 = vadd.f32 %v5912, %v6116
        %v6219 = vadd.f32 %v5913, %v6119
        %v6220 = vadd.f32 %v5914, %v6124
        %v6221 = vadd.f32 %v5915, %v6127
        %v6222 = vadd.f32 %v5916, %v6132
        %v6223 = vadd.f32 %v5917, %v6135
        %v6224 = vadd.f32 %v5918, %v6140
        %v6225 = vadd.f32 %v5919, %v6143
        %v6226 = vadd.f32 %v5920, %v6148
        %v6227 = vadd.f32 %v5921, %v6151
        %v6228 = vadd.f32 %v5922, %v6156
        %v6229 = vadd.f32 %v5923, %v6159
        %v6230 = vadd.f32 %v5924, %v6164
        %v6231 = vadd.f32 %v5925, %v6167
        %v6232 = vadd.f32 %v5926, %v6172
        %v6233 = vadd.f32 %v5927, %v6175
        %v6234 = vadd.f32 %v5928, %v6180
        %v6235 = vadd.f32 %v5929, %v6183
        %v6236 = vadd.f32 %v5930, %v6188
        %v6237 = vadd.f32 %v5931, %v6191
        %v6238 = vadd.f32 %v5932, %v6196
        %v6239 = vadd.f32 %v5933, %v6199
        %v6240 = vadd.f32 %v5934, %v6204
        %v6241 = vadd.f32 %v5935, %v6207
        %v6242 = vld [vmem:[%s6] sm:$0x1]
        %v6244 = vlaneseq
        %v6245 = vshrl.u32 %v6244, 7
        %v6246 = vsub.s32 0, %v6245
        %v6247 = vrot.slane %v6242, %v6246
        %v6249 = vadd.f32 %v6210, %v6247
        %v6250 = vadd.f32 %v6211, %v6247
        %v6251 = vadd.f32 %v6212, %v6247
        %v6252 = vadd.f32 %v6213, %v6247
        %v6253 = vadd.f32 %v6214, %v6247
        %v6254 = vadd.f32 %v6215, %v6247
        %v6255 = vadd.f32 %v6216, %v6247
        %v6256 = vadd.f32 %v6217, %v6247
        %v6257 = vadd.f32 %v6218, %v6247
        %v6258 = vadd.f32 %v6219, %v6247
        %v6259 = vadd.f32 %v6220, %v6247
        %v6260 = vadd.f32 %v6221, %v6247
        %v6261 = vadd.f32 %v6222, %v6247
        %v6262 = vadd.f32 %v6223, %v6247
        %v6263 = vadd.f32 %v6224, %v6247
        %v6264 = vadd.f32 %v6225, %v6247
        %v6265 = vadd.f32 %v6226, %v6247
        %v6266 = vadd.f32 %v6227, %v6247
        %v6267 = vadd.f32 %v6228, %v6247
        %v6268 = vadd.f32 %v6229, %v6247
        %v6269 = vadd.f32 %v6230, %v6247
        %v6270 = vadd.f32 %v6231, %v6247
        %v6271 = vadd.f32 %v6232, %v6247
        %v6272 = vadd.f32 %v6233, %v6247
        %v6273 = vadd.f32 %v6234, %v6247
        %v6274 = vadd.f32 %v6235, %v6247
        %v6275 = vadd.f32 %v6236, %v6247
        %v6276 = vadd.f32 %v6237, %v6247
        %v6277 = vadd.f32 %v6238, %v6247
        %v6278 = vadd.f32 %v6239, %v6247
        %v6279 = vadd.f32 %v6240, %v6247
        %v6280 = vadd.f32 %v6241, %v6247
        %v6281 = vadd.f32 %v6249, %v6250
        %v6282 = vadd.f32 %v6281, %v6251
        %v6283 = vadd.f32 %v6282, %v6252
        %v6284 = vadd.f32 %v6283, %v6253
        %v6285 = vadd.f32 %v6284, %v6254
        %v6286 = vadd.f32 %v6285, %v6255
        %v6287 = vadd.f32 %v6286, %v6256
        %v6288 = vadd.f32 %v6287, %v6257
        %v6289 = vadd.f32 %v6288, %v6258
        %v6290 = vadd.f32 %v6289, %v6259
        %v6291 = vadd.f32 %v6290, %v6260
        %v6292 = vadd.f32 %v6291, %v6261
        %v6293 = vadd.f32 %v6292, %v6262
        %v6294 = vadd.f32 %v6293, %v6263
        %v6295 = vadd.f32 %v6294, %v6264
        %v6296 = vadd.f32 %v6295, %v6265
        %v6297 = vadd.f32 %v6296, %v6266
        %v6298 = vadd.f32 %v6297, %v6267
        %v6299 = vadd.f32 %v6298, %v6268
        %v6300 = vadd.f32 %v6299, %v6269
        %v6301 = vadd.f32 %v6300, %v6270
        %v6302 = vadd.f32 %v6301, %v6271
        %v6303 = vadd.f32 %v6302, %v6272
        %v6304 = vadd.f32 %v6303, %v6273
        %v6305 = vadd.f32 %v6304, %v6274
        %v6306 = vadd.f32 %v6305, %v6275
        %v6307 = vadd.f32 %v6306, %v6276
        %v6308 = vadd.f32 %v6307, %v6277
        %v6309 = vadd.f32 %v6308, %v6278
        %v6310 = vadd.f32 %v6309, %v6279
        %v6311 = vadd.f32 %v6310, %v6280
        %v6312 = vrot.slane %v6311, 4
        %v6313 = vadd.f32 %v6311, %v6312
        %v6314 = vrot.slane %v6313, 2
        %v6315 = vadd.f32 %v6313, %v6314
        %v6316 = vrot.slane %v6315, 1
        %v6317 = vadd.f32 %v6315, %v6316
        %v6318 = vmul.f32 %v6317, %v3217
        %v6319 = vsub.f32 %v6249, %v6318
        %v6320 = vsub.f32 %v6250, %v6318
        %v6321 = vsub.f32 %v6251, %v6318
        %v6322 = vsub.f32 %v6252, %v6318
        %v6323 = vsub.f32 %v6253, %v6318
        %v6324 = vsub.f32 %v6254, %v6318
        %v6325 = vsub.f32 %v6255, %v6318
        %v6326 = vsub.f32 %v6256, %v6318
        %v6327 = vsub.f32 %v6257, %v6318
        %v6328 = vsub.f32 %v6258, %v6318
        %v6329 = vsub.f32 %v6259, %v6318
        %v6330 = vsub.f32 %v6260, %v6318
        %v6331 = vsub.f32 %v6261, %v6318
        %v6332 = vsub.f32 %v6262, %v6318
        %v6333 = vsub.f32 %v6263, %v6318
        %v6334 = vsub.f32 %v6264, %v6318
        %v6335 = vsub.f32 %v6265, %v6318
        %v6336 = vsub.f32 %v6266, %v6318
        %v6337 = vsub.f32 %v6267, %v6318
        %v6338 = vsub.f32 %v6268, %v6318
        %v6339 = vsub.f32 %v6269, %v6318
        %v6340 = vsub.f32 %v6270, %v6318
        %v6341 = vsub.f32 %v6271, %v6318
        %v6342 = vsub.f32 %v6272, %v6318
        %v6343 = vsub.f32 %v6273, %v6318
        %v6344 = vsub.f32 %v6274, %v6318
        %v6345 = vsub.f32 %v6275, %v6318
        %v6346 = vsub.f32 %v6276, %v6318
        %v6347 = vsub.f32 %v6277, %v6318
        %v6348 = vsub.f32 %v6278, %v6318
        %v6349 = vsub.f32 %v6279, %v6318
        %v6350 = vsub.f32 %v6280, %v6318
        %v6351 = vmul.f32 %v6319, %v6319
        %v6352 = vmul.f32 %v6320, %v6320
        %v6353 = vmul.f32 %v6321, %v6321
        %v6354 = vmul.f32 %v6322, %v6322
        %v6355 = vmul.f32 %v6323, %v6323
        %v6356 = vmul.f32 %v6324, %v6324
        %v6357 = vmul.f32 %v6325, %v6325
        %v6358 = vmul.f32 %v6326, %v6326
        %v6359 = vmul.f32 %v6327, %v6327
        %v6360 = vmul.f32 %v6328, %v6328
        %v6361 = vmul.f32 %v6329, %v6329
        %v6362 = vmul.f32 %v6330, %v6330
        %v6363 = vmul.f32 %v6331, %v6331
        %v6364 = vmul.f32 %v6332, %v6332
        %v6365 = vmul.f32 %v6333, %v6333
        %v6366 = vmul.f32 %v6334, %v6334
        %v6367 = vmul.f32 %v6335, %v6335
        %v6368 = vmul.f32 %v6336, %v6336
        %v6369 = vmul.f32 %v6337, %v6337
        %v6370 = vmul.f32 %v6338, %v6338
        %v6371 = vmul.f32 %v6339, %v6339
        %v6372 = vmul.f32 %v6340, %v6340
        %v6373 = vmul.f32 %v6341, %v6341
        %v6374 = vmul.f32 %v6342, %v6342
        %v6375 = vmul.f32 %v6343, %v6343
        %v6376 = vmul.f32 %v6344, %v6344
        %v6377 = vmul.f32 %v6345, %v6345
        %v6378 = vmul.f32 %v6346, %v6346
        %v6379 = vmul.f32 %v6347, %v6347
        %v6380 = vmul.f32 %v6348, %v6348
        %v6381 = vmul.f32 %v6349, %v6349
        %v6382 = vmul.f32 %v6350, %v6350
        %v6383 = vadd.f32 %v6351, %v6352
        %v6384 = vadd.f32 %v6383, %v6353
        %v6385 = vadd.f32 %v6384, %v6354
        %v6386 = vadd.f32 %v6385, %v6355
        %v6387 = vadd.f32 %v6386, %v6356
        %v6388 = vadd.f32 %v6387, %v6357
        %v6389 = vadd.f32 %v6388, %v6358
        %v6390 = vadd.f32 %v6389, %v6359
        %v6391 = vadd.f32 %v6390, %v6360
        %v6392 = vadd.f32 %v6391, %v6361
        %v6393 = vadd.f32 %v6392, %v6362
        %v6394 = vadd.f32 %v6393, %v6363
        %v6395 = vadd.f32 %v6394, %v6364
        %v6396 = vadd.f32 %v6395, %v6365
        %v6397 = vadd.f32 %v6396, %v6366
        %v6398 = vadd.f32 %v6397, %v6367
        %v6399 = vadd.f32 %v6398, %v6368
        %v6400 = vadd.f32 %v6399, %v6369
        %v6401 = vadd.f32 %v6400, %v6370
        %v6402 = vadd.f32 %v6401, %v6371
        %v6403 = vadd.f32 %v6402, %v6372
        %v6404 = vadd.f32 %v6403, %v6373
        %v6405 = vadd.f32 %v6404, %v6374
        %v6406 = vadd.f32 %v6405, %v6375
        %v6407 = vadd.f32 %v6406, %v6376
        %v6408 = vadd.f32 %v6407, %v6377
        %v6409 = vadd.f32 %v6408, %v6378
        %v6410 = vadd.f32 %v6409, %v6379
        %v6411 = vadd.f32 %v6410, %v6380
        %v6412 = vadd.f32 %v6411, %v6381
        %v6413 = vadd.f32 %v6412, %v6382
        %v6414 = vrot.slane %v6413, 4
        %v6415 = vadd.f32 %v6413, %v6414
        %v6416 = vrot.slane %v6415, 2
        %v6417 = vadd.f32 %v6415, %v6416
        %v6418 = vrot.slane %v6417, 1
        %v6419 = vadd.f32 %v6417, %v6418
        %v6420 = vmul.f32 %v6419, %v3217
        %v6421 = vadd.f32 %v6420, 1e-05
        %v6422 = vrsqrt.pop %v6421
        %v6423 = vmul.f32 %v6319, %v6422
        %v6424 = vmul.f32 %v6320, %v6422
        %v6425 = vmul.f32 %v6321, %v6422
        %v6426 = vmul.f32 %v6322, %v6422
        %v6427 = vmul.f32 %v6323, %v6422
        %v6428 = vmul.f32 %v6324, %v6422
        %v6429 = vmul.f32 %v6325, %v6422
        %v6430 = vmul.f32 %v6326, %v6422
        %v6431 = vmul.f32 %v6327, %v6422
        %v6432 = vmul.f32 %v6328, %v6422
        %v6433 = vmul.f32 %v6329, %v6422
        %v6434 = vmul.f32 %v6330, %v6422
        %v6435 = vmul.f32 %v6331, %v6422
        %v6436 = vmul.f32 %v6332, %v6422
        %v6437 = vmul.f32 %v6333, %v6422
        %v6438 = vmul.f32 %v6334, %v6422
        %v6439 = vmul.f32 %v6335, %v6422
        %v6440 = vmul.f32 %v6336, %v6422
        %v6441 = vmul.f32 %v6337, %v6422
        %v6442 = vmul.f32 %v6338, %v6422
        %v6443 = vmul.f32 %v6339, %v6422
        %v6444 = vmul.f32 %v6340, %v6422
        %v6445 = vmul.f32 %v6341, %v6422
        %v6446 = vmul.f32 %v6342, %v6422
        %v6447 = vmul.f32 %v6343, %v6422
        %v6448 = vmul.f32 %v6344, %v6422
        %v6449 = vmul.f32 %v6345, %v6422
        %v6450 = vmul.f32 %v6346, %v6422
        %v6451 = vmul.f32 %v6347, %v6422
        %v6452 = vmul.f32 %v6348, %v6422
        %v6453 = vmul.f32 %v6349, %v6422
        %v6454 = vmul.f32 %v6350, %v6422
        %v6455 = vld [vmem:[%s7] sm:$0x1]
        %v6457 = vlaneseq
        %v6458 = vshrl.u32 %v6457, 7
        %v6459 = vsub.s32 0, %v6458
        %v6460 = vrot.slane %v6455, %v6459
        %v6462 = vmul.f32 %v6423, %v6460
        %v6463 = vmul.f32 %v6424, %v6460
        %v6464 = vmul.f32 %v6425, %v6460
        %v6465 = vmul.f32 %v6426, %v6460
        %v6466 = vmul.f32 %v6427, %v6460
        %v6467 = vmul.f32 %v6428, %v6460
        %v6468 = vmul.f32 %v6429, %v6460
        %v6469 = vmul.f32 %v6430, %v6460
        %v6470 = vmul.f32 %v6431, %v6460
        %v6471 = vmul.f32 %v6432, %v6460
        %v6472 = vmul.f32 %v6433, %v6460
        %v6473 = vmul.f32 %v6434, %v6460
        %v6474 = vmul.f32 %v6435, %v6460
        %v6475 = vmul.f32 %v6436, %v6460
        %v6476 = vmul.f32 %v6437, %v6460
        %v6477 = vmul.f32 %v6438, %v6460
        %v6478 = vmul.f32 %v6439, %v6460
        %v6479 = vmul.f32 %v6440, %v6460
        %v6480 = vmul.f32 %v6441, %v6460
        %v6481 = vmul.f32 %v6442, %v6460
        %v6482 = vmul.f32 %v6443, %v6460
        %v6483 = vmul.f32 %v6444, %v6460
        %v6484 = vmul.f32 %v6445, %v6460
        %v6485 = vmul.f32 %v6446, %v6460
        %v6486 = vmul.f32 %v6447, %v6460
        %v6487 = vmul.f32 %v6448, %v6460
        %v6488 = vmul.f32 %v6449, %v6460
        %v6489 = vmul.f32 %v6450, %v6460
        %v6490 = vmul.f32 %v6451, %v6460
        %v6491 = vmul.f32 %v6452, %v6460
        %v6492 = vmul.f32 %v6453, %v6460
        %v6493 = vmul.f32 %v6454, %v6460
        %v6494 = vld [vmem:[%s8] sm:$0x1]
        %v6496 = vlaneseq
        %v6497 = vshrl.u32 %v6496, 7
        %v6498 = vsub.s32 0, %v6497
        %v6499 = vrot.slane %v6494, %v6498
        %v6501 = vadd.f32 %v6462, %v6499
        %v6502 = vadd.f32 %v6463, %v6499
        %v6503 = vadd.f32 %v6464, %v6499
        %v6504 = vadd.f32 %v6465, %v6499
        %v6505 = vadd.f32 %v6466, %v6499
        %v6506 = vadd.f32 %v6467, %v6499
        %v6507 = vadd.f32 %v6468, %v6499
        %v6508 = vadd.f32 %v6469, %v6499
        %v6509 = vadd.f32 %v6470, %v6499
        %v6510 = vadd.f32 %v6471, %v6499
        %v6511 = vadd.f32 %v6472, %v6499
        %v6512 = vadd.f32 %v6473, %v6499
        %v6513 = vadd.f32 %v6474, %v6499
        %v6514 = vadd.f32 %v6475, %v6499
        %v6515 = vadd.f32 %v6476, %v6499
        %v6516 = vadd.f32 %v6477, %v6499
        %v6517 = vadd.f32 %v6478, %v6499
        %v6518 = vadd.f32 %v6479, %v6499
        %v6519 = vadd.f32 %v6480, %v6499
        %v6520 = vadd.f32 %v6481, %v6499
        %v6521 = vadd.f32 %v6482, %v6499
        %v6522 = vadd.f32 %v6483, %v6499
        %v6523 = vadd.f32 %v6484, %v6499
        %v6524 = vadd.f32 %v6485, %v6499
        %v6525 = vadd.f32 %v6486, %v6499
        %v6526 = vadd.f32 %v6487, %v6499
        %v6527 = vadd.f32 %v6488, %v6499
        %v6528 = vadd.f32 %v6489, %v6499
        %v6529 = vadd.f32 %v6490, %v6499
        %v6530 = vadd.f32 %v6491, %v6499
        %v6531 = vadd.f32 %v6492, %v6499
        %v6532 = vadd.f32 %v6493, %v6499
        %v6533 = vadd.f32 %v332, %v6501
        %v6534 = vadd.f32 %v333, %v6502
        %v6535 = vadd.f32 %v334, %v6503
        %v6536 = vadd.f32 %v335, %v6504
        %v6537 = vadd.f32 %v336, %v6505
        %v6538 = vadd.f32 %v337, %v6506
        %v6539 = vadd.f32 %v338, %v6507
        %v6540 = vadd.f32 %v339, %v6508
        %v6541 = vadd.f32 %v340, %v6509
        %v6542 = vadd.f32 %v341, %v6510
        %v6543 = vadd.f32 %v342, %v6511
        %v6544 = vadd.f32 %v343, %v6512
        %v6545 = vadd.f32 %v344, %v6513
        %v6546 = vadd.f32 %v345, %v6514
        %v6547 = vadd.f32 %v346, %v6515
        %v6548 = vadd.f32 %v347, %v6516
        %v6549 = vadd.f32 %v348, %v6517
        %v6550 = vadd.f32 %v349, %v6518
        %v6551 = vadd.f32 %v350, %v6519
        %v6552 = vadd.f32 %v351, %v6520
        %v6553 = vadd.f32 %v352, %v6521
        %v6554 = vadd.f32 %v353, %v6522
        %v6555 = vadd.f32 %v354, %v6523
        %v6556 = vadd.f32 %v355, %v6524
        %v6557 = vadd.f32 %v356, %v6525
        %v6558 = vadd.f32 %v357, %v6526
        %v6559 = vadd.f32 %v358, %v6527
        %v6560 = vadd.f32 %v359, %v6528
        %v6561 = vadd.f32 %v360, %v6529
        %v6562 = vadd.f32 %v361, %v6530
        %v6563 = vadd.f32 %v362, %v6531
        %v6564 = vadd.f32 %v363, %v6532
        %6565 = vst [vmem:[%s325] sm:$0xff] %v6533
        %6566 = vst [vmem:[%s325 + $0x8] sm:$0xff] %v6534
        %6567 = vst [vmem:[%s325 + $0x10] sm:$0xff] %v6535
        %6568 = vst [vmem:[%s325 + $0x18] sm:$0xff] %v6536
        %6569 = vst [vmem:[%s325 + $0x20] sm:$0xff] %v6537
        %6570 = vst [vmem:[%s325 + $0x28] sm:$0xff] %v6538
        %6571 = vst [vmem:[%s325 + $0x30] sm:$0xff] %v6539
        %6572 = vst [vmem:[%s325 + $0x38] sm:$0xff] %v6540
        %6573 = vst [vmem:[%s325 + $0x40] sm:$0xff] %v6541
        %6574 = vst [vmem:[%s325 + $0x48] sm:$0xff] %v6542
        %6575 = vst [vmem:[%s325 + $0x50] sm:$0xff] %v6543
        %6576 = vst [vmem:[%s325 + $0x58] sm:$0xff] %v6544
        %6577 = vst [vmem:[%s325 + $0x60] sm:$0xff] %v6545
        %6578 = vst [vmem:[%s325 + $0x68] sm:$0xff] %v6546
        %6579 = vst [vmem:[%s325 + $0x70] sm:$0xff] %v6547
        %6580 = vst [vmem:[%s325 + $0x78] sm:$0xff] %v6548
        %6581 = vst [vmem:[%s325 + $0x80] sm:$0xff] %v6549
        %6582 = vst [vmem:[%s325 + $0x88] sm:$0xff] %v6550
        %6583 = vst [vmem:[%s325 + $0x90] sm:$0xff] %v6551
        %6584 = vst [vmem:[%s325 + $0x98] sm:$0xff] %v6552
        %6585 = vst [vmem:[%s325 + $0xa0] sm:$0xff] %v6553
        %6586 = vst [vmem:[%s325 + $0xa8] sm:$0xff] %v6554
        %6587 = vst [vmem:[%s325 + $0xb0] sm:$0xff] %v6555
        %6588 = vst [vmem:[%s325 + $0xb8] sm:$0xff] %v6556
        %6589 = vst [vmem:[%s325 + $0xc0] sm:$0xff] %v6557
        %6590 = vst [vmem:[%s325 + $0xc8] sm:$0xff] %v6558
        %6591 = vst [vmem:[%s325 + $0xd0] sm:$0xff] %v6559
        %6592 = vst [vmem:[%s325 + $0xd8] sm:$0xff] %v6560
        %6593 = vst [vmem:[%s325 + $0xe0] sm:$0xff] %v6561
        %6594 = vst [vmem:[%s325 + $0xe8] sm:$0xff] %v6562
        %6595 = vst [vmem:[%s325 + $0xf0] sm:$0xff] %v6563
        %6596 = vst [vmem:[%s325 + $0xf8] sm:$0xff] %v6564
        %s6597 = sand.u32 %s225, 1
        %s6598 = scalar_lea.sflag [#allocation5], %s6597
        %s6599 = sand.u32 %s225, 1
        %s6600 = smul.addr %s6599, 256
        %s6601 = scalar_lea.vmem [#allocation4], %s6600
        // Predicated region
        $region57: #{resnet_block_forward.1} parent=55 // pred_check
          %p6602 = pneg %p235
        $region58: #{resnet_block_forward.1} parent=55 // pred_check_branch
          %6604 = sbr.rel (%p6602) target = $region60
        $region59: #{resnet_block_forward.1} parent=55 // pred_region
          %s6606 = ssub.s32 4096, 4096
          %6607 = vsyncadd %s6598, %s6606
          %s6608 = smul.addr %s23, 32
          %s6609 = smul.addr %s6608, 128
          %s6610 = scalar_lea.hbm %s9, %s6609
          %s6611 = sshll.u32 %s6601, 4
          %s6612 = int_to_ptr.vmem [resolvable:$true] %s6611
          %6617 = dma.vmem_to_hbm [thread:$0]  %s6612, 4096, %s6610, %s6598, 128, 128, 8
        $region60: #{resnet_block_forward.1} parent=55 // pred_fallthru
          _
      $region56: #{resnet_block_forward.1} parent=5 // pred_fallthru
        _
      %p6618 = scmp.le.s32.totalorder 2, %s18
      // Predicated region
      $region61: #{resnet_block_forward.1} parent=5 // pred_check
        %p6619 = pneg %p6618
      $region62: #{resnet_block_forward.1} parent=5 // pred_check_branch
        %6621 = sbr.rel (%p6619) target = $region64
      $region63: #{resnet_block_forward.1} parent=5 // pred_region
        %s6622 = ssub.s32 %s18, 2
        // Predicated region
        $region65: #{resnet_block_forward.1} parent=63 // pred_check
          %p6623 = pneg %p241
        $region66: #{resnet_block_forward.1} parent=63 // pred_check_branch
          %6625 = sbr.rel (%p6623) target = $region68
        $region67: #{resnet_block_forward.1} parent=63 // pred_region
          %s6626 = sand.u32 %s226, 1
          %s6627 = scalar_lea.sflag [#allocation5], %s6626
          %s6628 = sand.u32 %s226, 1
          %s6629 = smul.addr %s6628, 256
          %s6630 = scalar_lea.vmem [#allocation4], %s6629
          %6631 = dma.done %s6627, 4096
        $region68: #{resnet_block_forward.1} parent=63 // pred_fallthru
          _
      $region64: #{resnet_block_forward.1} parent=5 // pred_fallthru
        _
    $region6: #{resnet_block_forward.1} parent=1 // loop_footer
      %s22 = sadd.s32 1, %s18
    $region7: #{resnet_block_forward.1} parent=1 // loop_footer_branch
      %17 = sbr.rel target = $region3
    $region8: #{resnet_block_forward.1} parent=1 // loop_exit
      _
    %6632 = vsyncpa [#allocation5], 1
    %s6633 = scalar_lea.sflag [#allocation5], 1
    %6634 = vsyncpa %s6633, 1

</llo_original>
